<compile_context>
chip_gen: v7x
topology: tpu7x:2x2x1
jax: 0.10.0
libtpu: 0.0.40
codegen_flags: <defaults>
</compile_context>

<pallas_src>
import math

import numpy as np
import jax
import jax.numpy as jnp
from jax import lax
from jax.experimental import pallas as pl
from jax.experimental.pallas import tpu as pltpu


# ----------------------------------------------------------------------------
# Fused kernel: whole SimpleNet forward, everything resident in VMEM.
# ----------------------------------------------------------------------------
def _simplenet_kernel(x_ref,
                      s1_ref, w1_ref, b1_ref,
                      s2_ref, w2_ref, b2_ref,
                      s3_ref, w3_ref, b3_ref,
                      poolt_ref, wfc1_ref, bfc1_ref,
                      wfc2_ref, bfc2_ref,
                      out_ref):
    def conv_sigmoid(a, s_ref, w_ref, b_ref):
        # a: (N*Cin, S_in).  Per tap t: spatial selection (lane side) then
        # batch-block-diagonal channel mixing (sublane side).
        acc = None
        for t in range(4):  # k*k = 4 taps, statically unrolled
            sel = jnp.dot(a, s_ref[t], preferred_element_type=jnp.float32)      # (N*Cin,  S_out)
            part = jnp.dot(w_ref[t], sel, preferred_element_type=jnp.float32)   # (N*Cout, S_out)
            acc = part if acc is None else acc + part
        return jax.nn.sigmoid(acc + b_ref[...])

    a = x_ref[...].astype(jnp.float32)               # (N*3,  16*16)
    a = conv_sigmoid(a, s1_ref, w1_ref, b1_ref)      # (N*32, 17*17)
    a = conv_sigmoid(a, s2_ref, w2_ref, b2_ref)      # (N*32,  9*9)
    a = conv_sigmoid(a, s3_ref, w3_ref, b3_ref)      # (N*32,  5*5)

    # AdaptiveAvgPool2d((2,2)) fused with Linear(128, 32): one averaging column
    # and one block-diagonal fc1 tap per pooled position p = oh*2 + ow.
    h = None
    for p in range(4):
        col = jnp.dot(a, poolt_ref[p], preferred_element_type=jnp.float32)      # (N*32, 1)
        term = jnp.dot(wfc1_ref[p], col, preferred_element_type=jnp.float32)    # (N*32, 1)
        h = term if h is None else h + term
    h = jax.nn.sigmoid(h + bfc1_ref[...])
    # TODO(synk): nn.Dropout(p=0.4) is identity in eval mode; training-mode RNG mask not implemented.
    h = jax.nn.sigmoid(h)                             # second Sigmoid after Dropout

    o = jnp.dot(wfc2_ref[...], h, preferred_element_type=jnp.float32) + bfc2_ref[...]  # (N, 1)
    out_ref[...] = jax.nn.sigmoid(o).astype(out_ref.dtype)


# ----------------------------------------------------------------------------
# One-time constant / parameter re-layout (hoisted out of the hot path)
# ----------------------------------------------------------------------------
def _conv_selection_mats(h_in, w_in, k, stride, pad):
    """(k*k, h_in*w_in, h_out*w_out) 0/1 matrices; tap t implements the
    padding + stride + patch extraction on the spatial (lane) axis."""
    h_out = (h_in + 2 * pad - k) // stride + 1
    w_out = (w_in + 2 * pad - k) // stride + 1
    mats = np.zeros((k * k, h_in * w_in, h_out * w_out), np.float32)
    for di in range(k):
        for dj in range(k):
            t = di * k + dj
            for ho in range(h_out):
                hi = ho * stride + di - pad
                if not (0 <= hi < h_in):
                    continue
                for wo in range(w_out):
                    wi = wo * stride + dj - pad
                    if 0 <= wi < w_in:
                        mats[t, hi * w_in + wi, ho * w_out + wo] = 1.0
    return mats, h_out, w_out


def _adaptive_pool_cols(in_h, in_w, out_h, out_w):
    """(out_h*out_w, in_h*in_w, 1) averaging columns (PyTorch adaptive windows)."""
    cols = np.zeros((out_h * out_w, in_h * in_w, 1), np.float32)
    for oh in range(out_h):
        hs, he = (oh * in_h) // out_h, -(-((oh + 1) * in_h) // out_h)
        for ow in range(out_w):
            ws, we = (ow * in_w) // out_w, -(-((ow + 1) * in_w) // out_w)
            inv = 1.0 / ((he - hs) * (we - ws))
            for h in range(hs, he):
                for w in range(ws, we):
                    cols[oh * out_w + ow, h * in_w + w, 0] = inv
    return cols


def prepare_params(params, batch, height, width):
    """Re-layout PyTorch-style parameters into the matmul layouts the fused
    kernel consumes.  Done once; the result is reused across forward calls."""
    n = batch
    eye = jnp.eye(n, dtype=jnp.float32)

    def conv_w_taps(w):                       # (Cout, Cin, 2, 2) -> (4, N*Cout, N*Cin)
        taps = [jnp.kron(eye, w[:, :, di, dj]) for di in range(2) for dj in range(2)]
        return jnp.stack(taps, axis=0)

    def bias_col(b):                          # (C,) -> (N*C, 1)
        return jnp.tile(b, (n,)).reshape(n * b.shape[0], 1)

    s1, h1, w1 = _conv_selection_mats(height, width, 2, 1, 1)   # conv1: s=1, p=1
    s2, h2, w2 = _conv_selection_mats(h1, w1, 2, 2, 1)          # conv2: s=2, p=1
    s3, h3, w3 = _conv_selection_mats(h2, w2, 2, 2, 1)          # conv3: s=2, p=1
    poolt = _adaptive_pool_cols(h3, w3, 2, 2)

    # fc1: torch weight (32, 128); input feature index = c*4 + (h*2 + w).
    fc1_w = params["fc1_w"].reshape(params["fc1_w"].shape[0], -1, 4)   # (j, c, p)
    wfc1 = jnp.stack([jnp.kron(eye, fc1_w[:, :, p]) for p in range(4)], axis=0)

    return {
        "s1": jnp.asarray(s1), "w1": conv_w_taps(params["conv1_w"]), "b1": bias_col(params["conv1_b"]),
        "s2": jnp.asarray(s2), "w2": conv_w_taps(params["conv2_w"]), "b2": bias_col(params["conv2_b"]),
        "s3": jnp.asarray(s3), "w3": conv_w_taps(params["conv3_w"]), "b3": bias_col(params["conv3_b"]),
        "poolt": jnp.asarray(poolt),
        "wfc1": wfc1, "bfc1": bias_col(params["fc1_b"]),
        "wfc2": jnp.kron(eye, params["fc2_w"]),      # (N, N*32)
        "bfc2": bias_col(params["fc2_b"]),
    }


# ----------------------------------------------------------------------------
# Forward pass (SimpleNet.forward, inference mode) -- single pallas_call
# ----------------------------------------------------------------------------
def simplenet_forward(prepared, x):
    if x.ndim == 3:                            # torch.unsqueeze(x, 0)
        x = x[None]
    n, cin, h, w = x.shape
    assert prepared["s1"].shape[1] == h * w, "prepared params built for a different spatial size"
    assert prepared["wfc2"].shape[0] == n, "prepared params built for a different batch size"

    x2d = x.reshape(n * cin, h * w).astype(jnp.float32)   # rows=(n,c), lanes=(h,w)

    operands = [x2d,
                prepared["s1"], prepared["w1"], prepared["b1"],
                prepared["s2"], prepared["w2"], prepared["b2"],
                prepared["s3"], prepared["w3"], prepared["b3"],
                prepared["poolt"], prepared["wfc1"], prepared["bfc1"],
                prepared["wfc2"], prepared["bfc2"]]

    def full_spec(a):
        nd = a.ndim
        return pl.BlockSpec(a.shape, lambda i, _nd=nd: (0,) * _nd)

    # Advisory cost estimate so XLA schedules the custom call sensibly.
    flops, trans = 0, 0
    for s_key, w_key in (("s1", "w1"), ("s2", "w2"), ("s3", "w3")):
        _, s_in, s_out = prepared[s_key].shape
        _, ncout, ncin = prepared[w_key].shape
        flops += 4 * (2 * ncin * s_in * s_out + 2 * ncout * ncin * s_out)
        trans += ncout * s_out
    ncp = prepared["wfc1"].shape[1]
    s_pool = prepared["poolt"].shape[1]
    flops += 4 * (2 * ncp * s_pool + 2 * ncp * ncp) + 2 * n * ncp
    trans += 2 * ncp + n
    bytes_accessed = sum(int(np.prod(a.shape)) * 4 for a in operands) + n * 4

    return pl.pallas_call(
        _simplenet_kernel,
        out_shape=jax.ShapeDtypeStruct((n, 1), jnp.float32),
        grid=(1,),
        in_specs=[full_spec(a) for a in operands],
        out_specs=pl.BlockSpec((n, 1), lambda i: (0, 0)),
        compiler_params=pltpu.CompilerParams(dimension_semantics=("arbitrary",)),
        cost_estimate=pl.CostEstimate(flops=int(flops), transcendentals=int(trans),
                                      bytes_accessed=int(bytes_accessed)),
    )(*operands)


# ----------------------------------------------------------------------------
# Parameters (deterministic Kaiming-uniform as in initialize_weights, bias=0)
# ----------------------------------------------------------------------------
def _kaiming_uniform(key, shape, fan_in):
    gain = math.sqrt(2.0 / (1.0 + 0.01 ** 2))  # leaky_relu, negative_slope=0.01
    bound = gain * math.sqrt(3.0 / fan_in)
    return jax.random.uniform(key, shape, jnp.float32, -bound, bound)


def init_params(key):
    ks = jax.random.split(key, 5)
    return {
        "conv1_w": _kaiming_uniform(ks[0], (32, 3, 2, 2), 3 * 2 * 2),
        "conv1_b": jnp.zeros((32,), jnp.float32),
        "conv2_w": _kaiming_uniform(ks[1], (32, 32, 2, 2), 32 * 2 * 2),
        "conv2_b": jnp.zeros((32,), jnp.float32),
        "conv3_w": _kaiming_uniform(ks[2], (32, 32, 2, 2), 32 * 2 * 2),
        "conv3_b": jnp.zeros((32,), jnp.float32),
        "fc1_w": _kaiming_uniform(ks[3], (32, 32 * 2 * 2), 32 * 2 * 2),  # torch (out, in)
        "fc1_b": jnp.zeros((32,), jnp.float32),
        "fc2_w": _kaiming_uniform(ks[4], (1, 32), 32),
        "fc2_b": jnp.zeros((1,), jnp.float32),
    }


# ----------------------------------------------------------------------------
# Plain-JAX reference (for an in-script correctness cross-check only)
# ----------------------------------------------------------------------------
def _reference_forward(params, x):
    if x.ndim == 3:
        x = x[None]
    hp = lax.Precision.HIGHEST

    def conv(v, w, b, stride):
        y = lax.conv_general_dilated(v, w, window_strides=(stride, stride),
                                     padding=((1, 1), (1, 1)),
                                     dimension_numbers=("NCHW", "OIHW", "NCHW"),
                                     precision=hp)
        return jax.nn.sigmoid(y + b[None, :, None, None])

    v = conv(x, params["conv1_w"], params["conv1_b"], 1)
    v = conv(v, params["conv2_w"], params["conv2_b"], 2)
    v = conv(v, params["conv3_w"], params["conv3_b"], 2)
    n, c, h, w = v.shape
    rows = []
    for oh in range(2):
        hs, he = (oh * h) // 2, -(-((oh + 1) * h) // 2)
        cols = []
        for ow in range(2):
            ws, we = (ow * w) // 2, -(-((ow + 1) * w) // 2)
            cols.append(v[:, :, hs:he, ws:we].mean(axis=(2, 3)))
        rows.append(jnp.stack(cols, axis=-1))
    pooled = jnp.stack(rows, axis=-2)                 # (N, C, 2, 2)
    flat = pooled.reshape(n, c * 4)
    h1 = jax.nn.sigmoid(jnp.dot(flat, params["fc1_w"].T, precision=hp) + params["fc1_b"])
    h1 = jax.nn.sigmoid(h1)
    return jax.nn.sigmoid(jnp.dot(h1, params["fc2_w"].T, precision=hp) + params["fc2_b"])


if __name__ == "__main__":
    key = jax.random.PRNGKey(0)
    pkey, xkey = jax.random.split(key)
    params = init_params(pkey)
    # layout: NCHW input, batch=2, channels=3, spatial=16x16
    x = jax.random.normal(xkey, (2, 3, 16, 16), jnp.float32)

    prepared = prepare_params(params, batch=2, height=16, width=16)  # one-time re-layout
    fwd = jax.jit(simplenet_forward)

    out = jax.block_until_ready(fwd(prepared, x))
    assert out.shape == (2, 1), out.shape
    assert bool(jnp.all(jnp.isfinite(out)))
    assert bool(jnp.all((out > 0.0) & (out < 1.0)))   # sigmoid range

    # Cross-check against a plain-JAX reference; tolerance covers MXU-matmul
    # vs XLA-conv accumulation differences.
    ref = jax.block_until_ready(_reference_forward(params, x))
    assert bool(jnp.allclose(out, ref, atol=2e-2)), (out, ref)

    print("KERNEL_OK")
</pallas_src>

<mosaic_0001>
module attributes {stable_mosaic.version = 11 : i64} {
  func.func @_simplenet_kernel(%arg0: i32, %arg1: memref<6x256xf32, #tpu.memory_space<vmem>>, %arg2: memref<4x256x289xf32, #tpu.memory_space<vmem>>, %arg3: memref<4x64x6xf32, #tpu.memory_space<vmem>>, %arg4: memref<64x1xf32, #tpu.memory_space<vmem>>, %arg5: memref<4x289x81xf32, #tpu.memory_space<vmem>>, %arg6: memref<4x64x64xf32, #tpu.memory_space<vmem>>, %arg7: memref<64x1xf32, #tpu.memory_space<vmem>>, %arg8: memref<4x81x25xf32, #tpu.memory_space<vmem>>, %arg9: memref<4x64x64xf32, #tpu.memory_space<vmem>>, %arg10: memref<64x1xf32, #tpu.memory_space<vmem>>, %arg11: memref<4x25x1xf32, #tpu.memory_space<vmem>>, %arg12: memref<4x64x64xf32, #tpu.memory_space<vmem>>, %arg13: memref<64x1xf32, #tpu.memory_space<vmem>>, %arg14: memref<2x64xf32, #tpu.memory_space<vmem>>, %arg15: memref<2x1xf32, #tpu.memory_space<vmem>>, %arg16: memref<2x1xf32, #tpu.memory_space<vmem>>) attributes {dimension_semantics = [#tpu.dimension_semantics<arbitrary>], iteration_bounds = array<i64: 1>, scalar_prefetch = 0 : i64, scratch_operands = 0 : i64, tpu.core_type = #tpu.core_type<tc>, window_params = [{pipeline_mode = #tpu.pipeline_mode<synchronous>, transform_indices = @transform_0, window_bounds = array<i64: 6, 256>}, {pipeline_mode = #tpu.pipeline_mode<synchronous>, transform_indices = @transform_1, window_bounds = array<i64: 4, 256, 289>}, {pipeline_mode = #tpu.pipeline_mode<synchronous>, transform_indices = @transform_2, window_bounds = array<i64: 4, 64, 6>}, {pipeline_mode = #tpu.pipeline_mode<synchronous>, transform_indices = @transform_3, window_bounds = array<i64: 64, 1>}, {pipeline_mode = #tpu.pipeline_mode<synchronous>, transform_indices = @transform_4, window_bounds = array<i64: 4, 289, 81>}, {pipeline_mode = #tpu.pipeline_mode<synchronous>, transform_indices = @transform_5, window_bounds = array<i64: 4, 64, 64>}, {pipeline_mode = #tpu.pipeline_mode<synchronous>, transform_indices = @transform_6, window_bounds = array<i64: 64, 1>}, {pipeline_mode = #tpu.pipeline_mode<synchronous>, transform_indices = @transform_7, window_bounds = array<i64: 4, 81, 25>}, {pipeline_mode = #tpu.pipeline_mode<synchronous>, transform_indices = @transform_8, window_bounds = array<i64: 4, 64, 64>}, {pipeline_mode = #tpu.pipeline_mode<synchronous>, transform_indices = @transform_9, window_bounds = array<i64: 64, 1>}, {pipeline_mode = #tpu.pipeline_mode<synchronous>, transform_indices = @transform_10, window_bounds = array<i64: 4, 25, 1>}, {pipeline_mode = #tpu.pipeline_mode<synchronous>, transform_indices = @transform_11, window_bounds = array<i64: 4, 64, 64>}, {pipeline_mode = #tpu.pipeline_mode<synchronous>, transform_indices = @transform_12, window_bounds = array<i64: 64, 1>}, {pipeline_mode = #tpu.pipeline_mode<synchronous>, transform_indices = @transform_13, window_bounds = array<i64: 2, 64>}, {pipeline_mode = #tpu.pipeline_mode<synchronous>, transform_indices = @transform_14, window_bounds = array<i64: 2, 1>}, {pipeline_mode = #tpu.pipeline_mode<synchronous>, transform_indices = @transform_15, window_bounds = array<i64: 2, 1>}]} {
    %c0 = arith.constant 0 : index
    %c0_0 = arith.constant 0 : index
    %0 = vector.load %arg1[%c0, %c0_0] : memref<6x256xf32, #tpu.memory_space<vmem>>, vector<6x256xf32>
    %c0_1 = arith.constant 0 : index
    %c0_2 = arith.constant 0 : index
    %c0_3 = arith.constant 0 : index
    %1 = vector.load %arg2[%c0_1, %c0_2, %c0_3] : memref<4x256x289xf32, #tpu.memory_space<vmem>>, vector<1x256x289xf32>
    %2 = vector.shape_cast %1 : vector<1x256x289xf32> to vector<256x289xf32>
    %cst = arith.constant dense<0.000000e+00> : vector<6x289xf32>
    %3 = tpu.matmul %0, %2, %cst {dimension_numbers = #tpu.dot_dimension_numbers<[1], [0], [0], [1], [0, 0, 1, 1], [], []>} : vector<6x256xf32>, vector<256x289xf32>, vector<6x289xf32> -> vector<6x289xf32>
    %c0_4 = arith.constant 0 : index
    %c0_5 = arith.constant 0 : index
    %c0_6 = arith.constant 0 : index
    %4 = vector.load %arg3[%c0_4, %c0_5, %c0_6] : memref<4x64x6xf32, #tpu.memory_space<vmem>>, vector<1x64x6xf32>
    %5 = vector.shape_cast %4 : vector<1x64x6xf32> to vector<64x6xf32>
    %cst_7 = arith.constant dense<0.000000e+00> : vector<64x289xf32>
    %6 = tpu.matmul %5, %3, %cst_7 {dimension_numbers = #tpu.dot_dimension_numbers<[1], [0], [0], [1], [0, 0, 1, 1], [], []>} : vector<64x6xf32>, vector<6x289xf32>, vector<64x289xf32> -> vector<64x289xf32>
    %c1 = arith.constant 1 : index
    %c0_8 = arith.constant 0 : index
    %c0_9 = arith.constant 0 : index
    %7 = vector.load %arg2[%c1, %c0_8, %c0_9] : memref<4x256x289xf32, #tpu.memory_space<vmem>>, vector<1x256x289xf32>
    %8 = vector.shape_cast %7 : vector<1x256x289xf32> to vector<256x289xf32>
    %cst_10 = arith.constant dense<0.000000e+00> : vector<6x289xf32>
    %9 = tpu.matmul %0, %8, %cst_10 {dimension_numbers = #tpu.dot_dimension_numbers<[1], [0], [0], [1], [0, 0, 1, 1], [], []>} : vector<6x256xf32>, vector<256x289xf32>, vector<6x289xf32> -> vector<6x289xf32>
    %c1_11 = arith.constant 1 : index
    %c0_12 = arith.constant 0 : index
    %c0_13 = arith.constant 0 : index
    %10 = vector.load %arg3[%c1_11, %c0_12, %c0_13] : memref<4x64x6xf32, #tpu.memory_space<vmem>>, vector<1x64x6xf32>
    %11 = vector.shape_cast %10 : vector<1x64x6xf32> to vector<64x6xf32>
    %cst_14 = arith.constant dense<0.000000e+00> : vector<64x289xf32>
    %12 = tpu.matmul %11, %9, %cst_14 {dimension_numbers = #tpu.dot_dimension_numbers<[1], [0], [0], [1], [0, 0, 1, 1], [], []>} : vector<64x6xf32>, vector<6x289xf32>, vector<64x289xf32> -> vector<64x289xf32>
    %13 = arith.addf %6, %12 : vector<64x289xf32>
    %c2 = arith.constant 2 : index
    %c0_15 = arith.constant 0 : index
    %c0_16 = arith.constant 0 : index
    %14 = vector.load %arg2[%c2, %c0_15, %c0_16] : memref<4x256x289xf32, #tpu.memory_space<vmem>>, vector<1x256x289xf32>
    %15 = vector.shape_cast %14 : vector<1x256x289xf32> to vector<256x289xf32>
    %cst_17 = arith.constant dense<0.000000e+00> : vector<6x289xf32>
    %16 = tpu.matmul %0, %15, %cst_17 {dimension_numbers = #tpu.dot_dimension_numbers<[1], [0], [0], [1], [0, 0, 1, 1], [], []>} : vector<6x256xf32>, vector<256x289xf32>, vector<6x289xf32> -> vector<6x289xf32>
    %c2_18 = arith.constant 2 : index
    %c0_19 = arith.constant 0 : index
    %c0_20 = arith.constant 0 : index
    %17 = vector.load %arg3[%c2_18, %c0_19, %c0_20] : memref<4x64x6xf32, #tpu.memory_space<vmem>>, vector<1x64x6xf32>
    %18 = vector.shape_cast %17 : vector<1x64x6xf32> to vector<64x6xf32>
    %cst_21 = arith.constant dense<0.000000e+00> : vector<64x289xf32>
    %19 = tpu.matmul %18, %16, %cst_21 {dimension_numbers = #tpu.dot_dimension_numbers<[1], [0], [0], [1], [0, 0, 1, 1], [], []>} : vector<64x6xf32>, vector<6x289xf32>, vector<64x289xf32> -> vector<64x289xf32>
    %20 = arith.addf %13, %19 : vector<64x289xf32>
    %c3 = arith.constant 3 : index
    %c0_22 = arith.constant 0 : index
    %c0_23 = arith.constant 0 : index
    %21 = vector.load %arg2[%c3, %c0_22, %c0_23] : memref<4x256x289xf32, #tpu.memory_space<vmem>>, vector<1x256x289xf32>
    %22 = vector.shape_cast %21 : vector<1x256x289xf32> to vector<256x289xf32>
    %cst_24 = arith.constant dense<0.000000e+00> : vector<6x289xf32>
    %23 = tpu.matmul %0, %22, %cst_24 {dimension_numbers = #tpu.dot_dimension_numbers<[1], [0], [0], [1], [0, 0, 1, 1], [], []>} : vector<6x256xf32>, vector<256x289xf32>, vector<6x289xf32> -> vector<6x289xf32>
    %c3_25 = arith.constant 3 : index
    %c0_26 = arith.constant 0 : index
    %c0_27 = arith.constant 0 : index
    %24 = vector.load %arg3[%c3_25, %c0_26, %c0_27] : memref<4x64x6xf32, #tpu.memory_space<vmem>>, vector<1x64x6xf32>
    %25 = vector.shape_cast %24 : vector<1x64x6xf32> to vector<64x6xf32>
    %cst_28 = arith.constant dense<0.000000e+00> : vector<64x289xf32>
    %26 = tpu.matmul %25, %23, %cst_28 {dimension_numbers = #tpu.dot_dimension_numbers<[1], [0], [0], [1], [0, 0, 1, 1], [], []>} : vector<64x6xf32>, vector<6x289xf32>, vector<64x289xf32> -> vector<64x289xf32>
    %27 = arith.addf %20, %26 : vector<64x289xf32>
    %c0_29 = arith.constant 0 : index
    %c0_30 = arith.constant 0 : index
    %28 = vector.load %arg4[%c0_29, %c0_30] : memref<64x1xf32, #tpu.memory_space<vmem>>, vector<64x1xf32>
    %29 = vector.broadcast %28 : vector<64x1xf32> to vector<64x289xf32>
    %30 = arith.addf %27, %29 : vector<64x289xf32>
    %31 = arith.negf %30 : vector<64x289xf32>
    %32 = math.exp %31 : vector<64x289xf32>
    %cst_31 = arith.constant 1.000000e+00 : f32
    %33 = vector.broadcast %cst_31 : f32 to vector<64x289xf32>
    %34 = arith.addf %33, %32 : vector<64x289xf32>
    %35 = arith.divf %33, %34 : vector<64x289xf32>
    %c0_32 = arith.constant 0 : index
    %c0_33 = arith.constant 0 : index
    %c0_34 = arith.constant 0 : index
    %36 = vector.load %arg5[%c0_32, %c0_33, %c0_34] : memref<4x289x81xf32, #tpu.memory_space<vmem>>, vector<1x289x81xf32>
    %37 = vector.shape_cast %36 : vector<1x289x81xf32> to vector<289x81xf32>
    %cst_35 = arith.constant dense<0.000000e+00> : vector<64x81xf32>
    %38 = tpu.matmul %35, %37, %cst_35 {dimension_numbers = #tpu.dot_dimension_numbers<[1], [0], [0], [1], [0, 0, 1, 1], [], []>} : vector<64x289xf32>, vector<289x81xf32>, vector<64x81xf32> -> vector<64x81xf32>
    %c0_36 = arith.constant 0 : index
    %c0_37 = arith.constant 0 : index
    %c0_38 = arith.constant 0 : index
    %39 = vector.load %arg6[%c0_36, %c0_37, %c0_38] : memref<4x64x64xf32, #tpu.memory_space<vmem>>, vector<1x64x64xf32>
    %40 = vector.shape_cast %39 : vector<1x64x64xf32> to vector<64x64xf32>
    %cst_39 = arith.constant dense<0.000000e+00> : vector<64x81xf32>
    %41 = tpu.matmul %40, %38, %cst_39 {dimension_numbers = #tpu.dot_dimension_numbers<[1], [0], [0], [1], [0, 0, 1, 1], [], []>} : vector<64x64xf32>, vector<64x81xf32>, vector<64x81xf32> -> vector<64x81xf32>
    %c1_40 = arith.constant 1 : index
    %c0_41 = arith.constant 0 : index
    %c0_42 = arith.constant 0 : index
    %42 = vector.load %arg5[%c1_40, %c0_41, %c0_42] : memref<4x289x81xf32, #tpu.memory_space<vmem>>, vector<1x289x81xf32>
    %43 = vector.shape_cast %42 : vector<1x289x81xf32> to vector<289x81xf32>
    %cst_43 = arith.constant dense<0.000000e+00> : vector<64x81xf32>
    %44 = tpu.matmul %35, %43, %cst_43 {dimension_numbers = #tpu.dot_dimension_numbers<[1], [0], [0], [1], [0, 0, 1, 1], [], []>} : vector<64x289xf32>, vector<289x81xf32>, vector<64x81xf32> -> vector<64x81xf32>
    %c1_44 = arith.constant 1 : index
    %c0_45 = arith.constant 0 : index
    %c0_46 = arith.constant 0 : index
    %45 = vector.load %arg6[%c1_44, %c0_45, %c0_46] : memref<4x64x64xf32, #tpu.memory_space<vmem>>, vector<1x64x64xf32>
    %46 = vector.shape_cast %45 : vector<1x64x64xf32> to vector<64x64xf32>
    %cst_47 = arith.constant dense<0.000000e+00> : vector<64x81xf32>
    %47 = tpu.matmul %46, %44, %cst_47 {dimension_numbers = #tpu.dot_dimension_numbers<[1], [0], [0], [1], [0, 0, 1, 1], [], []>} : vector<64x64xf32>, vector<64x81xf32>, vector<64x81xf32> -> vector<64x81xf32>
    %48 = arith.addf %41, %47 : vector<64x81xf32>
    %c2_48 = arith.constant 2 : index
    %c0_49 = arith.constant 0 : index
    %c0_50 = arith.constant 0 : index
    %49 = vector.load %arg5[%c2_48, %c0_49, %c0_50] : memref<4x289x81xf32, #tpu.memory_space<vmem>>, vector<1x289x81xf32>
    %50 = vector.shape_cast %49 : vector<1x289x81xf32> to vector<289x81xf32>
    %cst_51 = arith.constant dense<0.000000e+00> : vector<64x81xf32>
    %51 = tpu.matmul %35, %50, %cst_51 {dimension_numbers = #tpu.dot_dimension_numbers<[1], [0], [0], [1], [0, 0, 1, 1], [], []>} : vector<64x289xf32>, vector<289x81xf32>, vector<64x81xf32> -> vector<64x81xf32>
    %c2_52 = arith.constant 2 : index
    %c0_53 = arith.constant 0 : index
    %c0_54 = arith.constant 0 : index
    %52 = vector.load %arg6[%c2_52, %c0_53, %c0_54] : memref<4x64x64xf32, #tpu.memory_space<vmem>>, vector<1x64x64xf32>
    %53 = vector.shape_cast %52 : vector<1x64x64xf32> to vector<64x64xf32>
    %cst_55 = arith.constant dense<0.000000e+00> : vector<64x81xf32>
    %54 = tpu.matmul %53, %51, %cst_55 {dimension_numbers = #tpu.dot_dimension_numbers<[1], [0], [0], [1], [0, 0, 1, 1], [], []>} : vector<64x64xf32>, vector<64x81xf32>, vector<64x81xf32> -> vector<64x81xf32>
    %55 = arith.addf %48, %54 : vector<64x81xf32>
    %c3_56 = arith.constant 3 : index
    %c0_57 = arith.constant 0 : index
    %c0_58 = arith.constant 0 : index
    %56 = vector.load %arg5[%c3_56, %c0_57, %c0_58] : memref<4x289x81xf32, #tpu.memory_space<vmem>>, vector<1x289x81xf32>
    %57 = vector.shape_cast %56 : vector<1x289x81xf32> to vector<289x81xf32>
    %cst_59 = arith.constant dense<0.000000e+00> : vector<64x81xf32>
    %58 = tpu.matmul %35, %57, %cst_59 {dimension_numbers = #tpu.dot_dimension_numbers<[1], [0], [0], [1], [0, 0, 1, 1], [], []>} : vector<64x289xf32>, vector<289x81xf32>, vector<64x81xf32> -> vector<64x81xf32>
    %c3_60 = arith.constant 3 : index
    %c0_61 = arith.constant 0 : index
    %c0_62 = arith.constant 0 : index
    %59 = vector.load %arg6[%c3_60, %c0_61, %c0_62] : memref<4x64x64xf32, #tpu.memory_space<vmem>>, vector<1x64x64xf32>
    %60 = vector.shape_cast %59 : vector<1x64x64xf32> to vector<64x64xf32>
    %cst_63 = arith.constant dense<0.000000e+00> : vector<64x81xf32>
    %61 = tpu.matmul %60, %58, %cst_63 {dimension_numbers = #tpu.dot_dimension_numbers<[1], [0], [0], [1], [0, 0, 1, 1], [], []>} : vector<64x64xf32>, vector<64x81xf32>, vector<64x81xf32> -> vector<64x81xf32>
    %62 = arith.addf %55, %61 : vector<64x81xf32>
    %c0_64 = arith.constant 0 : index
    %c0_65 = arith.constant 0 : index
    %63 = vector.load %arg7[%c0_64, %c0_65] : memref<64x1xf32, #tpu.memory_space<vmem>>, vector<64x1xf32>
    %64 = vector.broadcast %63 : vector<64x1xf32> to vector<64x81xf32>
    %65 = arith.addf %62, %64 : vector<64x81xf32>
    %66 = arith.negf %65 : vector<64x81xf32>
    %67 = math.exp %66 : vector<64x81xf32>
    %cst_66 = arith.constant 1.000000e+00 : f32
    %68 = vector.broadcast %cst_66 : f32 to vector<64x81xf32>
    %69 = arith.addf %68, %67 : vector<64x81xf32>
    %70 = arith.divf %68, %69 : vector<64x81xf32>
    %c0_67 = arith.constant 0 : index
    %c0_68 = arith.constant 0 : index
    %c0_69 = arith.constant 0 : index
    %71 = vector.load %arg8[%c0_67, %c0_68, %c0_69] : memref<4x81x25xf32, #tpu.memory_space<vmem>>, vector<1x81x25xf32>
    %72 = vector.shape_cast %71 : vector<1x81x25xf32> to vector<81x25xf32>
    %cst_70 = arith.constant dense<0.000000e+00> : vector<64x25xf32>
    %73 = tpu.matmul %70, %72, %cst_70 {dimension_numbers = #tpu.dot_dimension_numbers<[1], [0], [0], [1], [0, 0, 1, 1], [], []>} : vector<64x81xf32>, vector<81x25xf32>, vector<64x25xf32> -> vector<64x25xf32>
    %c0_71 = arith.constant 0 : index
    %c0_72 = arith.constant 0 : index
    %c0_73 = arith.constant 0 : index
    %74 = vector.load %arg9[%c0_71, %c0_72, %c0_73] : memref<4x64x64xf32, #tpu.memory_space<vmem>>, vector<1x64x64xf32>
    %75 = vector.shape_cast %74 : vector<1x64x64xf32> to vector<64x64xf32>
    %cst_74 = arith.constant dense<0.000000e+00> : vector<64x25xf32>
    %76 = tpu.matmul %75, %73, %cst_74 {dimension_numbers = #tpu.dot_dimension_numbers<[1], [0], [0], [1], [0, 0, 1, 1], [], []>} : vector<64x64xf32>, vector<64x25xf32>, vector<64x25xf32> -> vector<64x25xf32>
    %c1_75 = arith.constant 1 : index
    %c0_76 = arith.constant 0 : index
    %c0_77 = arith.constant 0 : index
    %77 = vector.load %arg8[%c1_75, %c0_76, %c0_77] : memref<4x81x25xf32, #tpu.memory_space<vmem>>, vector<1x81x25xf32>
    %78 = vector.shape_cast %77 : vector<1x81x25xf32> to vector<81x25xf32>
    %cst_78 = arith.constant dense<0.000000e+00> : vector<64x25xf32>
    %79 = tpu.matmul %70, %78, %cst_78 {dimension_numbers = #tpu.dot_dimension_numbers<[1], [0], [0], [1], [0, 0, 1, 1], [], []>} : vector<64x81xf32>, vector<81x25xf32>, vector<64x25xf32> -> vector<64x25xf32>
    %c1_79 = arith.constant 1 : index
    %c0_80 = arith.constant 0 : index
    %c0_81 = arith.constant 0 : index
    %80 = vector.load %arg9[%c1_79, %c0_80, %c0_81] : memref<4x64x64xf32, #tpu.memory_space<vmem>>, vector<1x64x64xf32>
    %81 = vector.shape_cast %80 : vector<1x64x64xf32> to vector<64x64xf32>
    %cst_82 = arith.constant dense<0.000000e+00> : vector<64x25xf32>
    %82 = tpu.matmul %81, %79, %cst_82 {dimension_numbers = #tpu.dot_dimension_numbers<[1], [0], [0], [1], [0, 0, 1, 1], [], []>} : vector<64x64xf32>, vector<64x25xf32>, vector<64x25xf32> -> vector<64x25xf32>
    %83 = arith.addf %76, %82 : vector<64x25xf32>
    %c2_83 = arith.constant 2 : index
    %c0_84 = arith.constant 0 : index
    %c0_85 = arith.constant 0 : index
    %84 = vector.load %arg8[%c2_83, %c0_84, %c0_85] : memref<4x81x25xf32, #tpu.memory_space<vmem>>, vector<1x81x25xf32>
    %85 = vector.shape_cast %84 : vector<1x81x25xf32> to vector<81x25xf32>
    %cst_86 = arith.constant dense<0.000000e+00> : vector<64x25xf32>
    %86 = tpu.matmul %70, %85, %cst_86 {dimension_numbers = #tpu.dot_dimension_numbers<[1], [0], [0], [1], [0, 0, 1, 1], [], []>} : vector<64x81xf32>, vector<81x25xf32>, vector<64x25xf32> -> vector<64x25xf32>
    %c2_87 = arith.constant 2 : index
    %c0_88 = arith.constant 0 : index
    %c0_89 = arith.constant 0 : index
    %87 = vector.load %arg9[%c2_87, %c0_88, %c0_89] : memref<4x64x64xf32, #tpu.memory_space<vmem>>, vector<1x64x64xf32>
    %88 = vector.shape_cast %87 : vector<1x64x64xf32> to vector<64x64xf32>
    %cst_90 = arith.constant dense<0.000000e+00> : vector<64x25xf32>
    %89 = tpu.matmul %88, %86, %cst_90 {dimension_numbers = #tpu.dot_dimension_numbers<[1], [0], [0], [1], [0, 0, 1, 1], [], []>} : vector<64x64xf32>, vector<64x25xf32>, vector<64x25xf32> -> vector<64x25xf32>
    %90 = arith.addf %83, %89 : vector<64x25xf32>
    %c3_91 = arith.constant 3 : index
    %c0_92 = arith.constant 0 : index
    %c0_93 = arith.constant 0 : index
    %91 = vector.load %arg8[%c3_91, %c0_92, %c0_93] : memref<4x81x25xf32, #tpu.memory_space<vmem>>, vector<1x81x25xf32>
    %92 = vector.shape_cast %91 : vector<1x81x25xf32> to vector<81x25xf32>
    %cst_94 = arith.constant dense<0.000000e+00> : vector<64x25xf32>
    %93 = tpu.matmul %70, %92, %cst_94 {dimension_numbers = #tpu.dot_dimension_numbers<[1], [0], [0], [1], [0, 0, 1, 1], [], []>} : vector<64x81xf32>, vector<81x25xf32>, vector<64x25xf32> -> vector<64x25xf32>
    %c3_95 = arith.constant 3 : index
    %c0_96 = arith.constant 0 : index
    %c0_97 = arith.constant 0 : index
    %94 = vector.load %arg9[%c3_95, %c0_96, %c0_97] : memref<4x64x64xf32, #tpu.memory_space<vmem>>, vector<1x64x64xf32>
    %95 = vector.shape_cast %94 : vector<1x64x64xf32> to vector<64x64xf32>
    %cst_98 = arith.constant dense<0.000000e+00> : vector<64x25xf32>
    %96 = tpu.matmul %95, %93, %cst_98 {dimension_numbers = #tpu.dot_dimension_numbers<[1], [0], [0], [1], [0, 0, 1, 1], [], []>} : vector<64x64xf32>, vector<64x25xf32>, vector<64x25xf32> -> vector<64x25xf32>
    %97 = arith.addf %90, %96 : vector<64x25xf32>
    %c0_99 = arith.constant 0 : index
    %c0_100 = arith.constant 0 : index
    %98 = vector.load %arg10[%c0_99, %c0_100] : memref<64x1xf32, #tpu.memory_space<vmem>>, vector<64x1xf32>
    %99 = vector.broadcast %98 : vector<64x1xf32> to vector<64x25xf32>
    %100 = arith.addf %97, %99 : vector<64x25xf32>
    %101 = arith.negf %100 : vector<64x25xf32>
    %102 = math.exp %101 : vector<64x25xf32>
    %cst_101 = arith.constant 1.000000e+00 : f32
    %103 = vector.broadcast %cst_101 : f32 to vector<64x25xf32>
    %104 = arith.addf %103, %102 : vector<64x25xf32>
    %105 = arith.divf %103, %104 : vector<64x25xf32>
    %c0_102 = arith.constant 0 : index
    %c0_103 = arith.constant 0 : index
    %c0_104 = arith.constant 0 : index
    %106 = vector.load %arg11[%c0_102, %c0_103, %c0_104] : memref<4x25x1xf32, #tpu.memory_space<vmem>>, vector<1x25x1xf32>
    %107 = vector.shape_cast %106 : vector<1x25x1xf32> to vector<25x1xf32>
    %cst_105 = arith.constant dense<0.000000e+00> : vector<64x1xf32>
    %108 = tpu.matmul %105, %107, %cst_105 {dimension_numbers = #tpu.dot_dimension_numbers<[1], [0], [0], [1], [0, 0, 1, 1], [], []>} : vector<64x25xf32>, vector<25x1xf32>, vector<64x1xf32> -> vector<64x1xf32>
    %c0_106 = arith.constant 0 : index
    %c0_107 = arith.constant 0 : index
    %c0_108 = arith.constant 0 : index
    %109 = vector.load %arg12[%c0_106, %c0_107, %c0_108] : memref<4x64x64xf32, #tpu.memory_space<vmem>>, vector<1x64x64xf32>
    %110 = vector.shape_cast %109 : vector<1x64x64xf32> to vector<64x64xf32>
    %cst_109 = arith.constant dense<0.000000e+00> : vector<64x1xf32>
    %111 = tpu.matmul %110, %108, %cst_109 {dimension_numbers = #tpu.dot_dimension_numbers<[1], [0], [0], [1], [0, 0, 1, 1], [], []>} : vector<64x64xf32>, vector<64x1xf32>, vector<64x1xf32> -> vector<64x1xf32>
    %c1_110 = arith.constant 1 : index
    %c0_111 = arith.constant 0 : index
    %c0_112 = arith.constant 0 : index
    %112 = vector.load %arg11[%c1_110, %c0_111, %c0_112] : memref<4x25x1xf32, #tpu.memory_space<vmem>>, vector<1x25x1xf32>
    %113 = vector.shape_cast %112 : vector<1x25x1xf32> to vector<25x1xf32>
    %cst_113 = arith.constant dense<0.000000e+00> : vector<64x1xf32>
    %114 = tpu.matmul %105, %113, %cst_113 {dimension_numbers = #tpu.dot_dimension_numbers<[1], [0], [0], [1], [0, 0, 1, 1], [], []>} : vector<64x25xf32>, vector<25x1xf32>, vector<64x1xf32> -> vector<64x1xf32>
    %c1_114 = arith.constant 1 : index
    %c0_115 = arith.constant 0 : index
    %c0_116 = arith.constant 0 : index
    %115 = vector.load %arg12[%c1_114, %c0_115, %c0_116] : memref<4x64x64xf32, #tpu.memory_space<vmem>>, vector<1x64x64xf32>
    %116 = vector.shape_cast %115 : vector<1x64x64xf32> to vector<64x64xf32>
    %cst_117 = arith.constant dense<0.000000e+00> : vector<64x1xf32>
    %117 = tpu.matmul %116, %114, %cst_117 {dimension_numbers = #tpu.dot_dimension_numbers<[1], [0], [0], [1], [0, 0, 1, 1], [], []>} : vector<64x64xf32>, vector<64x1xf32>, vector<64x1xf32> -> vector<64x1xf32>
    %118 = arith.addf %111, %117 : vector<64x1xf32>
    %c2_118 = arith.constant 2 : index
    %c0_119 = arith.constant 0 : index
    %c0_120 = arith.constant 0 : index
    %119 = vector.load %arg11[%c2_118, %c0_119, %c0_120] : memref<4x25x1xf32, #tpu.memory_space<vmem>>, vector<1x25x1xf32>
    %120 = vector.shape_cast %119 : vector<1x25x1xf32> to vector<25x1xf32>
    %cst_121 = arith.constant dense<0.000000e+00> : vector<64x1xf32>
    %121 = tpu.matmul %105, %120, %cst_121 {dimension_numbers = #tpu.dot_dimension_numbers<[1], [0], [0], [1], [0, 0, 1, 1], [], []>} : vector<64x25xf32>, vector<25x1xf32>, vector<64x1xf32> -> vector<64x1xf32>
    %c2_122 = arith.constant 2 : index
    %c0_123 = arith.constant 0 : index
    %c0_124 = arith.constant 0 : index
    %122 = vector.load %arg12[%c2_122, %c0_123, %c0_124] : memref<4x64x64xf32, #tpu.memory_space<vmem>>, vector<1x64x64xf32>
    %123 = vector.shape_cast %122 : vector<1x64x64xf32> to vector<64x64xf32>
    %cst_125 = arith.constant dense<0.000000e+00> : vector<64x1xf32>
    %124 = tpu.matmul %123, %121, %cst_125 {dimension_numbers = #tpu.dot_dimension_numbers<[1], [0], [0], [1], [0, 0, 1, 1], [], []>} : vector<64x64xf32>, vector<64x1xf32>, vector<64x1xf32> -> vector<64x1xf32>
    %125 = arith.addf %118, %124 : vector<64x1xf32>
    %c3_126 = arith.constant 3 : index
    %c0_127 = arith.constant 0 : index
    %c0_128 = arith.constant 0 : index
    %126 = vector.load %arg11[%c3_126, %c0_127, %c0_128] : memref<4x25x1xf32, #tpu.memory_space<vmem>>, vector<1x25x1xf32>
    %127 = vector.shape_cast %126 : vector<1x25x1xf32> to vector<25x1xf32>
    %cst_129 = arith.constant dense<0.000000e+00> : vector<64x1xf32>
    %128 = tpu.matmul %105, %127, %cst_129 {dimension_numbers = #tpu.dot_dimension_numbers<[1], [0], [0], [1], [0, 0, 1, 1], [], []>} : vector<64x25xf32>, vector<25x1xf32>, vector<64x1xf32> -> vector<64x1xf32>
    %c3_130 = arith.constant 3 : index
    %c0_131 = arith.constant 0 : index
    %c0_132 = arith.constant 0 : index
    %129 = vector.load %arg12[%c3_130, %c0_131, %c0_132] : memref<4x64x64xf32, #tpu.memory_space<vmem>>, vector<1x64x64xf32>
    %130 = vector.shape_cast %129 : vector<1x64x64xf32> to vector<64x64xf32>
    %cst_133 = arith.constant dense<0.000000e+00> : vector<64x1xf32>
    %131 = tpu.matmul %130, %128, %cst_133 {dimension_numbers = #tpu.dot_dimension_numbers<[1], [0], [0], [1], [0, 0, 1, 1], [], []>} : vector<64x64xf32>, vector<64x1xf32>, vector<64x1xf32> -> vector<64x1xf32>
    %132 = arith.addf %125, %131 : vector<64x1xf32>
    %c0_134 = arith.constant 0 : index
    %c0_135 = arith.constant 0 : index
    %133 = vector.load %arg13[%c0_134, %c0_135] : memref<64x1xf32, #tpu.memory_space<vmem>>, vector<64x1xf32>
    %134 = arith.addf %132, %133 : vector<64x1xf32>
    %135 = arith.negf %134 : vector<64x1xf32>
    %136 = math.exp %135 : vector<64x1xf32>
    %cst_136 = arith.constant 1.000000e+00 : f32
    %137 = vector.broadcast %cst_136 : f32 to vector<64x1xf32>
    %138 = arith.addf %137, %136 : vector<64x1xf32>
    %139 = arith.divf %137, %138 : vector<64x1xf32>
    %140 = arith.negf %139 : vector<64x1xf32>
    %141 = math.exp %140 : vector<64x1xf32>
    %cst_137 = arith.constant 1.000000e+00 : f32
    %142 = vector.broadcast %cst_137 : f32 to vector<64x1xf32>
    %143 = arith.addf %142, %141 : vector<64x1xf32>
    %144 = arith.divf %142, %143 : vector<64x1xf32>
    %c0_138 = arith.constant 0 : index
    %c0_139 = arith.constant 0 : index
    %145 = vector.load %arg14[%c0_138, %c0_139] : memref<2x64xf32, #tpu.memory_space<vmem>>, vector<2x64xf32>
    %cst_140 = arith.constant dense<0.000000e+00> : vector<2x1xf32>
    %146 = tpu.matmul %145, %144, %cst_140 {dimension_numbers = #tpu.dot_dimension_numbers<[1], [0], [0], [1], [0, 0, 1, 1], [], []>} : vector<2x64xf32>, vector<64x1xf32>, vector<2x1xf32> -> vector<2x1xf32>
    %c0_141 = arith.constant 0 : index
    %c0_142 = arith.constant 0 : index
    %147 = vector.load %arg15[%c0_141, %c0_142] : memref<2x1xf32, #tpu.memory_space<vmem>>, vector<2x1xf32>
    %148 = arith.addf %146, %147 : vector<2x1xf32>
    %149 = arith.negf %148 : vector<2x1xf32>
    %150 = math.exp %149 : vector<2x1xf32>
    %cst_143 = arith.constant 1.000000e+00 : f32
    %151 = vector.broadcast %cst_143 : f32 to vector<2x1xf32>
    %152 = arith.addf %151, %150 : vector<2x1xf32>
    %153 = arith.divf %151, %152 : vector<2x1xf32>
    %c0_144 = arith.constant 0 : index
    %c0_145 = arith.constant 0 : index
    %154 = vector.load %arg16[%c0_144, %c0_145] : memref<2x1xf32, #tpu.memory_space<vmem>>, vector<2x1xf32>
    tpu.vector_store %arg16[%c0_144, %c0_145], %153 {strides = array<i32>} : memref<2x1xf32, #tpu.memory_space<vmem>>, vector<2x1xf32>,
    return
  }
  func.func @transform_0(%arg0: i32) -> (i32, i32) {
    %c0_i32 = arith.constant 0 : i32
    %c0_i32_0 = arith.constant 0 : i32
    %c0_i32_1 = arith.constant 0 : i32
    return %c0_i32, %c0_i32_0 : i32, i32
  }
  func.func @transform_1(%arg0: i32) -> (i32, i32, i32) {
    %c0_i32 = arith.constant 0 : i32
    %c0_i32_0 = arith.constant 0 : i32
    %c0_i32_1 = arith.constant 0 : i32
    %c0_i32_2 = arith.constant 0 : i32
    return %c0_i32, %c0_i32_0, %c0_i32_1 : i32, i32, i32
  }
  func.func @transform_2(%arg0: i32) -> (i32, i32, i32) {
    %c0_i32 = arith.constant 0 : i32
    %c0_i32_0 = arith.constant 0 : i32
    %c0_i32_1 = arith.constant 0 : i32
    %c0_i32_2 = arith.constant 0 : i32
    return %c0_i32, %c0_i32_0, %c0_i32_1 : i32, i32, i32
  }
  func.func @transform_3(%arg0: i32) -> (i32, i32) {
    %c0_i32 = arith.constant 0 : i32
    %c0_i32_0 = arith.constant 0 : i32
    %c0_i32_1 = arith.constant 0 : i32
    return %c0_i32, %c0_i32_0 : i32, i32
  }
  func.func @transform_4(%arg0: i32) -> (i32, i32, i32) {
    %c0_i32 = arith.constant 0 : i32
    %c0_i32_0 = arith.constant 0 : i32
    %c0_i32_1 = arith.constant 0 : i32
    %c0_i32_2 = arith.constant 0 : i32
    return %c0_i32, %c0_i32_0, %c0_i32_1 : i32, i32, i32
  }
  func.func @transform_5(%arg0: i32) -> (i32, i32, i32) {
    %c0_i32 = arith.constant 0 : i32
    %c0_i32_0 = arith.constant 0 : i32
    %c0_i32_1 = arith.constant 0 : i32
    %c0_i32_2 = arith.constant 0 : i32
    return %c0_i32, %c0_i32_0, %c0_i32_1 : i32, i32, i32
  }
  func.func @transform_6(%arg0: i32) -> (i32, i32) {
    %c0_i32 = arith.constant 0 : i32
    %c0_i32_0 = arith.constant 0 : i32
    %c0_i32_1 = arith.constant 0 : i32
    return %c0_i32, %c0_i32_0 : i32, i32
  }
  func.func @transform_7(%arg0: i32) -> (i32, i32, i32) {
    %c0_i32 = arith.constant 0 : i32
    %c0_i32_0 = arith.constant 0 : i32
    %c0_i32_1 = arith.constant 0 : i32
    %c0_i32_2 = arith.constant 0 : i32
    return %c0_i32, %c0_i32_0, %c0_i32_1 : i32, i32, i32
  }
  func.func @transform_8(%arg0: i32) -> (i32, i32, i32) {
    %c0_i32 = arith.constant 0 : i32
    %c0_i32_0 = arith.constant 0 : i32
    %c0_i32_1 = arith.constant 0 : i32
    %c0_i32_2 = arith.constant 0 : i32
    return %c0_i32, %c0_i32_0, %c0_i32_1 : i32, i32, i32
  }
  func.func @transform_9(%arg0: i32) -> (i32, i32) {
    %c0_i32 = arith.constant 0 : i32
    %c0_i32_0 = arith.constant 0 : i32
    %c0_i32_1 = arith.constant 0 : i32
    return %c0_i32, %c0_i32_0 : i32, i32
  }
  func.func @transform_10(%arg0: i32) -> (i32, i32, i32) {
    %c0_i32 = arith.constant 0 : i32
    %c0_i32_0 = arith.constant 0 : i32
    %c0_i32_1 = arith.constant 0 : i32
    %c0_i32_2 = arith.constant 0 : i32
    return %c0_i32, %c0_i32_0, %c0_i32_1 : i32, i32, i32
  }
  func.func @transform_11(%arg0: i32) -> (i32, i32, i32) {
    %c0_i32 = arith.constant 0 : i32
    %c0_i32_0 = arith.constant 0 : i32
    %c0_i32_1 = arith.constant 0 : i32
    %c0_i32_2 = arith.constant 0 : i32
    return %c0_i32, %c0_i32_0, %c0_i32_1 : i32, i32, i32
  }
  func.func @transform_12(%arg0: i32) -> (i32, i32) {
    %c0_i32 = arith.constant 0 : i32
    %c0_i32_0 = arith.constant 0 : i32
    %c0_i32_1 = arith.constant 0 : i32
    return %c0_i32, %c0_i32_0 : i32, i32
  }
  func.func @transform_13(%arg0: i32) -> (i32, i32) {
    %c0_i32 = arith.constant 0 : i32
    %c0_i32_0 = arith.constant 0 : i32
    %c0_i32_1 = arith.constant 0 : i32
    return %c0_i32, %c0_i32_0 : i32, i32
  }
  func.func @transform_14(%arg0: i32) -> (i32, i32) {
    %c0_i32 = arith.constant 0 : i32
    %c0_i32_0 = arith.constant 0 : i32
    %c0_i32_1 = arith.constant 0 : i32
    return %c0_i32, %c0_i32_0 : i32, i32
  }
  func.func @transform_15(%arg0: i32) -> (i32, i32) {
    %c0_i32 = arith.constant 0 : i32
    %c0_i32_0 = arith.constant 0 : i32
    %c0_i32_1 = arith.constant 0 : i32
    return %c0_i32, %c0_i32_0 : i32, i32
  }
}

</mosaic_0001>

<llo_original>
// kernel: simplenet_forward.1
$region0: #{simplenet_forward.1}
  #allocation0 [shape = 'u32[]', space=smem, size = 0x4, offset = 0x4, fixed_abs, tag = 'smem constant byte address 0x4 - core index']
  #allocation1 [shape = 'u32[144,128]{1,0:T(1,128)}', space=vmem, size = 0x12000, scoped, tag = 'internal scratch']
  %s0 = inlined_call_operand.vmem [shape: f32[6,256], index: 0, kind: input, shape index: {}]
  %s1 = inlined_call_operand.vmem [shape: f32[4,256,289], index: 1, kind: input, shape index: {}]
  %s2 = inlined_call_operand.vmem [shape: f32[4,64,6], index: 2, kind: input, shape index: {}]
  %s3 = inlined_call_operand.vmem [shape: f32[64,1], index: 3, kind: input, shape index: {}]
  %s4 = inlined_call_operand.vmem [shape: f32[4,289,81], index: 4, kind: input, shape index: {}]
  %s5 = inlined_call_operand.vmem [shape: f32[4,64,64], index: 5, kind: input, shape index: {}]
  %s6 = inlined_call_operand.vmem [shape: f32[64,1], index: 6, kind: input, shape index: {}]
  %s7 = inlined_call_operand.vmem [shape: f32[4,81,25], index: 7, kind: input, shape index: {}]
  %s8 = inlined_call_operand.vmem [shape: f32[4,64,64], index: 8, kind: input, shape index: {}]
  %s9 = inlined_call_operand.vmem [shape: f32[64,1], index: 9, kind: input, shape index: {}]
  %s10 = inlined_call_operand.vmem [shape: f32[4,25,1], index: 10, kind: input, shape index: {}]
  %s11 = inlined_call_operand.vmem [shape: f32[4,64,64], index: 11, kind: input, shape index: {}]
  %s12 = inlined_call_operand.vmem [shape: f32[64,1], index: 12, kind: input, shape index: {}]
  %s13 = inlined_call_operand.vmem [shape: f32[2,64], index: 13, kind: input, shape index: {}]
  %s14 = inlined_call_operand.vmem [shape: f32[2,1], index: 14, kind: input, shape index: {}]
  %s15 = inlined_call_operand.vmem [shape: f32[2,1], index: 15, kind: output, shape index: {}]
  %s16 = sld [smem:[#allocation0]]
  $region70: #{simplenet_forward.1} parent=0
    _
  %s18 = ssub.s32 1, %s16
  %s19 = scalar_select 0, %s18, %s16
  // Predicated region
  $region2: #{simplenet_forward.1} parent=0 // pred_check
    _
  $region3: #{simplenet_forward.1} parent=0 // pred_check_branch
    %21 = sbr.rel (0) target = $region5
  $region4: #{simplenet_forward.1} parent=0 // pred_region
    _
  $region5: #{simplenet_forward.1} parent=0 // pred_fallthru
    _
  // Predicated region
  $region6: #{simplenet_forward.1} parent=0 // pred_check
    _
  $region7: #{simplenet_forward.1} parent=0 // pred_check_branch
    %23 = sbr.rel (0) target = $region9
  $region8: #{simplenet_forward.1} parent=0 // pred_region
    _
  $region9: #{simplenet_forward.1} parent=0 // pred_fallthru
    _
  // Predicated region
  $region10: #{simplenet_forward.1} parent=0 // pred_check
    _
  $region11: #{simplenet_forward.1} parent=0 // pred_check_branch
    %25 = sbr.rel (0) target = $region13
  $region12: #{simplenet_forward.1} parent=0 // pred_region
    _
  $region13: #{simplenet_forward.1} parent=0 // pred_fallthru
    _
  // Predicated region
  $region14: #{simplenet_forward.1} parent=0 // pred_check
    _
  $region15: #{simplenet_forward.1} parent=0 // pred_check_branch
    %27 = sbr.rel (0) target = $region17
  $region16: #{simplenet_forward.1} parent=0 // pred_region
    _
  $region17: #{simplenet_forward.1} parent=0 // pred_fallthru
    _
  // Predicated region
  $region18: #{simplenet_forward.1} parent=0 // pred_check
    _
  $region19: #{simplenet_forward.1} parent=0 // pred_check_branch
    %29 = sbr.rel (0) target = $region21
  $region20: #{simplenet_forward.1} parent=0 // pred_region
    _
  $region21: #{simplenet_forward.1} parent=0 // pred_fallthru
    _
  // Predicated region
  $region22: #{simplenet_forward.1} parent=0 // pred_check
    _
  $region23: #{simplenet_forward.1} parent=0 // pred_check_branch
    %31 = sbr.rel (0) target = $region25
  $region24: #{simplenet_forward.1} parent=0 // pred_region
    _
  $region25: #{simplenet_forward.1} parent=0 // pred_fallthru
    _
  // Predicated region
  $region26: #{simplenet_forward.1} parent=0 // pred_check
    _
  $region27: #{simplenet_forward.1} parent=0 // pred_check_branch
    %33 = sbr.rel (0) target = $region29
  $region28: #{simplenet_forward.1} parent=0 // pred_region
    _
  $region29: #{simplenet_forward.1} parent=0 // pred_fallthru
    _
  // Predicated region
  $region30: #{simplenet_forward.1} parent=0 // pred_check
    _
  $region31: #{simplenet_forward.1} parent=0 // pred_check_branch
    %35 = sbr.rel (0) target = $region33
  $region32: #{simplenet_forward.1} parent=0 // pred_region
    _
  $region33: #{simplenet_forward.1} parent=0 // pred_fallthru
    _
  // Predicated region
  $region34: #{simplenet_forward.1} parent=0 // pred_check
    _
  $region35: #{simplenet_forward.1} parent=0 // pred_check_branch
    %37 = sbr.rel (0) target = $region37
  $region36: #{simplenet_forward.1} parent=0 // pred_region
    _
  $region37: #{simplenet_forward.1} parent=0 // pred_fallthru
    _
  // Predicated region
  $region38: #{simplenet_forward.1} parent=0 // pred_check
    _
  $region39: #{simplenet_forward.1} parent=0 // pred_check_branch
    %39 = sbr.rel (0) target = $region41
  $region40: #{simplenet_forward.1} parent=0 // pred_region
    _
  $region41: #{simplenet_forward.1} parent=0 // pred_fallthru
    _
  // Predicated region
  $region42: #{simplenet_forward.1} parent=0 // pred_check
    _
  $region43: #{simplenet_forward.1} parent=0 // pred_check_branch
    %41 = sbr.rel (0) target = $region45
  $region44: #{simplenet_forward.1} parent=0 // pred_region
    _
  $region45: #{simplenet_forward.1} parent=0 // pred_fallthru
    _
  // Predicated region
  $region46: #{simplenet_forward.1} parent=0 // pred_check
    _
  $region47: #{simplenet_forward.1} parent=0 // pred_check_branch
    %43 = sbr.rel (0) target = $region49
  $region48: #{simplenet_forward.1} parent=0 // pred_region
    _
  $region49: #{simplenet_forward.1} parent=0 // pred_fallthru
    _
  // Predicated region
  $region50: #{simplenet_forward.1} parent=0 // pred_check
    _
  $region51: #{simplenet_forward.1} parent=0 // pred_check_branch
    %45 = sbr.rel (0) target = $region53
  $region52: #{simplenet_forward.1} parent=0 // pred_region
    _
  $region53: #{simplenet_forward.1} parent=0 // pred_fallthru
    _
  // Predicated region
  $region54: #{simplenet_forward.1} parent=0 // pred_check
    _
  $region55: #{simplenet_forward.1} parent=0 // pred_check_branch
    %47 = sbr.rel (0) target = $region57
  $region56: #{simplenet_forward.1} parent=0 // pred_region
    _
  $region57: #{simplenet_forward.1} parent=0 // pred_fallthru
    _
  // Predicated region
  $region58: #{simplenet_forward.1} parent=0 // pred_check
    _
  $region59: #{simplenet_forward.1} parent=0 // pred_check_branch
    %49 = sbr.rel (0) target = $region61
  $region60: #{simplenet_forward.1} parent=0 // pred_region
    _
  $region61: #{simplenet_forward.1} parent=0 // pred_fallthru
    _
  %v50 = vld [vmem:[%s0] sm:$0x3f]
  %v51 = vld [vmem:[%s0 + $0x8] sm:$0x3f]
  %v52 = vld [vmem:[%s1] sm:$0xff]
  %v53 = vld [vmem:[%s1 + $0x8] sm:$0xff]
  %v54 = vld [vmem:[%s1 + $0x10] sm:$0xff]
  %v55 = vld [vmem:[%s1 + $0x18] sm:$0xff]
  %v56 = vld [vmem:[%s1 + $0x20] sm:$0xff]
  %v57 = vld [vmem:[%s1 + $0x28] sm:$0xff]
  %v58 = vld [vmem:[%s1 + $0x30] sm:$0xff]
  %v59 = vld [vmem:[%s1 + $0x38] sm:$0xff]
  %v60 = vld [vmem:[%s1 + $0x40] sm:$0xff]
  %v61 = vld [vmem:[%s1 + $0x48] sm:$0xff]
  %v62 = vld [vmem:[%s1 + $0x50] sm:$0xff]
  %v63 = vld [vmem:[%s1 + $0x58] sm:$0xff]
  %v64 = vld [vmem:[%s1 + $0x60] sm:$0xff]
  %v65 = vld [vmem:[%s1 + $0x68] sm:$0xff]
  %v66 = vld [vmem:[%s1 + $0x70] sm:$0xff]
  %v67 = vld [vmem:[%s1 + $0x78] sm:$0xff]
  %v68 = vld [vmem:[%s1 + $0x80] sm:$0xff]
  %v69 = vld [vmem:[%s1 + $0x88] sm:$0xff]
  %v70 = vld [vmem:[%s1 + $0x90] sm:$0xff]
  %v71 = vld [vmem:[%s1 + $0x98] sm:$0xff]
  %v72 = vld [vmem:[%s1 + $0xa0] sm:$0xff]
  %v73 = vld [vmem:[%s1 + $0xa8] sm:$0xff]
  %v74 = vld [vmem:[%s1 + $0xb0] sm:$0xff]
  %v75 = vld [vmem:[%s1 + $0xb8] sm:$0xff]
  %v76 = vld [vmem:[%s1 + $0xc0] sm:$0xff]
  %v77 = vld [vmem:[%s1 + $0xc8] sm:$0xff]
  %v78 = vld [vmem:[%s1 + $0xd0] sm:$0xff]
  %v79 = vld [vmem:[%s1 + $0xd8] sm:$0xff]
  %v80 = vld [vmem:[%s1 + $0xe0] sm:$0xff]
  %v81 = vld [vmem:[%s1 + $0xe8] sm:$0xff]
  %v82 = vld [vmem:[%s1 + $0xf0] sm:$0xff]
  %v83 = vld [vmem:[%s1 + $0xf8] sm:$0xff]
  %v84 = vld [vmem:[%s1 + $0x100] sm:$0xff]
  %v85 = vld [vmem:[%s1 + $0x108] sm:$0xff]
  %v86 = vld [vmem:[%s1 + $0x110] sm:$0xff]
  %v87 = vld [vmem:[%s1 + $0x118] sm:$0xff]
  %v88 = vld [vmem:[%s1 + $0x120] sm:$0xff]
  %v89 = vld [vmem:[%s1 + $0x128] sm:$0xff]
  %v90 = vld [vmem:[%s1 + $0x130] sm:$0xff]
  %v91 = vld [vmem:[%s1 + $0x138] sm:$0xff]
  %v92 = vld [vmem:[%s1 + $0x140] sm:$0xff]
  %v93 = vld [vmem:[%s1 + $0x148] sm:$0xff]
  %v94 = vld [vmem:[%s1 + $0x150] sm:$0xff]
  %v95 = vld [vmem:[%s1 + $0x158] sm:$0xff]
  %v96 = vld [vmem:[%s1 + $0x160] sm:$0xff]
  %v97 = vld [vmem:[%s1 + $0x168] sm:$0xff]
  %v98 = vld [vmem:[%s1 + $0x170] sm:$0xff]
  %v99 = vld [vmem:[%s1 + $0x178] sm:$0xff]
  %v100 = vld [vmem:[%s1 + $0x180] sm:$0xff]
  %v101 = vld [vmem:[%s1 + $0x188] sm:$0xff]
  %v102 = vld [vmem:[%s1 + $0x190] sm:$0xff]
  %v103 = vld [vmem:[%s1 + $0x198] sm:$0xff]
  %v104 = vld [vmem:[%s1 + $0x1a0] sm:$0xff]
  %v105 = vld [vmem:[%s1 + $0x1a8] sm:$0xff]
  %v106 = vld [vmem:[%s1 + $0x1b0] sm:$0xff]
  %v107 = vld [vmem:[%s1 + $0x1b8] sm:$0xff]
  %v108 = vld [vmem:[%s1 + $0x1c0] sm:$0xff]
  %v109 = vld [vmem:[%s1 + $0x1c8] sm:$0xff]
  %v110 = vld [vmem:[%s1 + $0x1d0] sm:$0xff]
  %v111 = vld [vmem:[%s1 + $0x1d8] sm:$0xff]
  %v112 = vld [vmem:[%s1 + $0x1e0] sm:$0xff]
  %v113 = vld [vmem:[%s1 + $0x1e8] sm:$0xff]
  %v114 = vld [vmem:[%s1 + $0x1f0] sm:$0xff]
  %v115 = vld [vmem:[%s1 + $0x1f8] sm:$0xff]
  %v116 = vld [vmem:[%s1 + $0x200] sm:$0xff]
  %v117 = vld [vmem:[%s1 + $0x208] sm:$0xff]
  %v118 = vld [vmem:[%s1 + $0x210] sm:$0xff]
  %v119 = vld [vmem:[%s1 + $0x218] sm:$0xff]
  %v120 = vld [vmem:[%s1 + $0x220] sm:$0xff]
  %v121 = vld [vmem:[%s1 + $0x228] sm:$0xff]
  %v122 = vld [vmem:[%s1 + $0x230] sm:$0xff]
  %v123 = vld [vmem:[%s1 + $0x238] sm:$0xff]
  %v124 = vld [vmem:[%s1 + $0x240] sm:$0xff]
  %v125 = vld [vmem:[%s1 + $0x248] sm:$0xff]
  %v126 = vld [vmem:[%s1 + $0x250] sm:$0xff]
  %v127 = vld [vmem:[%s1 + $0x258] sm:$0xff]
  %v128 = vld [vmem:[%s1 + $0x260] sm:$0xff]
  %v129 = vld [vmem:[%s1 + $0x268] sm:$0xff]
  %v130 = vld [vmem:[%s1 + $0x270] sm:$0xff]
  %v131 = vld [vmem:[%s1 + $0x278] sm:$0xff]
  %v132 = vld [vmem:[%s1 + $0x280] sm:$0xff]
  %v133 = vld [vmem:[%s1 + $0x288] sm:$0xff]
  %v134 = vld [vmem:[%s1 + $0x290] sm:$0xff]
  %v135 = vld [vmem:[%s1 + $0x298] sm:$0xff]
  %v136 = vld [vmem:[%s1 + $0x2a0] sm:$0xff]
  %v137 = vld [vmem:[%s1 + $0x2a8] sm:$0xff]
  %v138 = vld [vmem:[%s1 + $0x2b0] sm:$0xff]
  %v139 = vld [vmem:[%s1 + $0x2b8] sm:$0xff]
  %v140 = vld [vmem:[%s1 + $0x2c0] sm:$0xff]
  %v141 = vld [vmem:[%s1 + $0x2c8] sm:$0xff]
  %v142 = vld [vmem:[%s1 + $0x2d0] sm:$0xff]
  %v143 = vld [vmem:[%s1 + $0x2d8] sm:$0xff]
  %v144 = vld [vmem:[%s1 + $0x2e0] sm:$0xff]
  %v145 = vld [vmem:[%s1 + $0x2e8] sm:$0xff]
  %v146 = vld [vmem:[%s1 + $0x2f0] sm:$0xff]
  %v147 = vld [vmem:[%s1 + $0x2f8] sm:$0xff]
  %148 = vmatprep.subr.mxu0 %v53
  %149 = vmatpush1.msra.mxu0 %v52
  %150 = vmatprep.subr.mxu0 %v56
  %151 = vmatpush1.msra.mxu0 %v55
  %152 = vmatprep.subr.mxu0 %v59
  %153 = vmatpush1.msra.mxu0 %v58
  %154 = vmatprep.subr.mxu0 %v62
  %155 = vmatpush1.msra.mxu0 %v61
  %156 = vmatprep.subr.mxu0 %v65
  %157 = vmatpush1.msra.mxu0 %v64
  %158 = vmatprep.subr.mxu0 %v68
  %159 = vmatpush1.msra.mxu0 %v67
  %160 = vmatprep.subr.mxu0 %v71
  %161 = vmatpush1.msra.mxu0 %v70
  %162 = vmatprep.subr.mxu0 %v74
  %163 = vmatpush1.msra.mxu0 %v73
  %164 = vmatprep.subr.mxu0 %v77
  %165 = vmatpush1.msra.mxu0 %v76
  %166 = vmatprep.subr.mxu0 %v80
  %167 = vmatpush1.msra.mxu0 %v79
  %168 = vmatprep.subr.mxu0 %v83
  %169 = vmatpush1.msra.mxu0 %v82
  %170 = vmatprep.subr.mxu0 %v86
  %171 = vmatpush1.msra.mxu0 %v85
  %172 = vmatprep.subr.mxu0 %v89
  %173 = vmatpush1.msra.mxu0 %v88
  %174 = vmatprep.subr.mxu0 %v92
  %175 = vmatpush1.msra.mxu0 %v91
  %176 = vmatprep.subr.mxu0 %v95
  %177 = vmatpush1.msra.mxu0 %v94
  %178 = vmatprep.subr.mxu0 %v98
  %179 = vmatpush1.msra.mxu0 %v97
  %180 = vmatprep.subr.mxu0 %v101
  %181 = vmatpush1.msra.mxu0 %v100
  %182 = vmatprep.subr.mxu0 %v104
  %183 = vmatpush1.msra.mxu0 %v103
  %184 = vmatprep.subr.mxu0 %v107
  %185 = vmatpush1.msra.mxu0 %v106
  %186 = vmatprep.subr.mxu0 %v110
  %187 = vmatpush1.msra.mxu0 %v109
  %188 = vmatprep.subr.mxu0 %v113
  %189 = vmatpush1.msra.mxu0 %v112
  %190 = vmatprep.subr.mxu0 %v116
  %191 = vmatpush1.msra.mxu0 %v115
  %192 = vmatprep.subr.mxu0 %v119
  %193 = vmatpush1.msra.mxu0 %v118
  %194 = vmatprep.subr.mxu0 %v122
  %195 = vmatpush1.msra.mxu0 %v121
  %196 = vmatprep.subr.mxu0 %v125
  %197 = vmatpush1.msra.mxu0 %v124
  %198 = vmatprep.subr.mxu0 %v128
  %199 = vmatpush1.msra.mxu0 %v127
  %200 = vmatprep.subr.mxu0 %v131
  %201 = vmatpush1.msra.mxu0 %v130
  %202 = vmatprep.subr.mxu0 %v134
  %203 = vmatpush1.msra.mxu0 %v133
  %204 = vmatprep.subr.mxu0 %v137
  %205 = vmatpush1.msra.mxu0 %v136
  %206 = vmatprep.subr.mxu0 %v140
  %207 = vmatpush1.msra.mxu0 %v139
  %208 = vmatprep.subr.mxu0 %v143
  %209 = vmatpush1.msra.mxu0 %v142
  %210 = vmatprep.subr.mxu0 %v146
  %211 = vmatpush1.msra.mxu0 %v145
  %212 = vmatprep.mubr.f32.mxu0 %v51
  %213 = vmatmul.mubr.f32.gmra.mrb[0].mxu0 %v50
  %v214 = vpop.f32.mrb[0].mxu0
  %v215 = vadd.f32 0.0, %v214
  %v216 = vpop.f32.mrb[0].mxu0
  %v217 = vadd.f32 0.0, %v216
  %218 = vdwg.mxu0
  %219 = vmatprep.subr.mxu0 0.0
  %220 = vmatpush1.msra.mxu0 %v54
  %221 = vmatprep.subr.mxu0 0.0
  %222 = vmatpush1.msra.mxu0 %v57
  %223 = vmatprep.subr.mxu0 0.0
  %224 = vmatpush1.msra.mxu0 %v60
  %225 = vmatprep.subr.mxu0 0.0
  %226 = vmatpush1.msra.mxu0 %v63
  %227 = vmatprep.subr.mxu0 0.0
  %228 = vmatpush1.msra.mxu0 %v66
  %229 = vmatprep.subr.mxu0 0.0
  %230 = vmatpush1.msra.mxu0 %v69
  %231 = vmatprep.subr.mxu0 0.0
  %232 = vmatpush1.msra.mxu0 %v72
  %233 = vmatprep.subr.mxu0 0.0
  %234 = vmatpush1.msra.mxu0 %v75
  %235 = vmatprep.subr.mxu0 0.0
  %236 = vmatpush1.msra.mxu0 %v78
  %237 = vmatprep.subr.mxu0 0.0
  %238 = vmatpush1.msra.mxu0 %v81
  %239 = vmatprep.subr.mxu0 0.0
  %240 = vmatpush1.msra.mxu0 %v84
  %241 = vmatprep.subr.mxu0 0.0
  %242 = vmatpush1.msra.mxu0 %v87
  %243 = vmatprep.subr.mxu0 0.0
  %244 = vmatpush1.msra.mxu0 %v90
  %245 = vmatprep.subr.mxu0 0.0
  %246 = vmatpush1.msra.mxu0 %v93
  %247 = vmatprep.subr.mxu0 0.0
  %248 = vmatpush1.msra.mxu0 %v96
  %249 = vmatprep.subr.mxu0 0.0
  %250 = vmatpush1.msra.mxu0 %v99
  %251 = vmatprep.subr.mxu0 0.0
  %252 = vmatpush1.msra.mxu0 %v102
  %253 = vmatprep.subr.mxu0 0.0
  %254 = vmatpush1.msra.mxu0 %v105
  %255 = vmatprep.subr.mxu0 0.0
  %256 = vmatpush1.msra.mxu0 %v108
  %257 = vmatprep.subr.mxu0 0.0
  %258 = vmatpush1.msra.mxu0 %v111
  %259 = vmatprep.subr.mxu0 0.0
  %260 = vmatpush1.msra.mxu0 %v114
  %261 = vmatprep.subr.mxu0 0.0
  %262 = vmatpush1.msra.mxu0 %v117
  %263 = vmatprep.subr.mxu0 0.0
  %264 = vmatpush1.msra.mxu0 %v120
  %265 = vmatprep.subr.mxu0 0.0
  %266 = vmatpush1.msra.mxu0 %v123
  %267 = vmatprep.subr.mxu0 0.0
  %268 = vmatpush1.msra.mxu0 %v126
  %269 = vmatprep.subr.mxu0 0.0
  %270 = vmatpush1.msra.mxu0 %v129
  %271 = vmatprep.subr.mxu0 0.0
  %272 = vmatpush1.msra.mxu0 %v132
  %273 = vmatprep.subr.mxu0 0.0
  %274 = vmatpush1.msra.mxu0 %v135
  %275 = vmatprep.subr.mxu0 0.0
  %276 = vmatpush1.msra.mxu0 %v138
  %277 = vmatprep.subr.mxu0 0.0
  %278 = vmatpush1.msra.mxu0 %v141
  %279 = vmatprep.subr.mxu0 0.0
  %280 = vmatpush1.msra.mxu0 %v144
  %281 = vmatprep.subr.mxu0 0.0
  %282 = vmatpush1.msra.mxu0 %v147
  %283 = vmatprep.mubr.f32.mxu0 %v51
  %284 = vmatmul.mubr.f32.gmra.mrb[0].mxu0 %v50
  %v285 = vpop.f32.mrb[0].mxu0
  %v286 = vadd.f32 0.0, %v285
  %v287 = vpop.f32.mrb[0].mxu0
  %288 = vdwg.mxu0
  %v289 = vld [vmem:[%s2] sm:$0xff]
  %v290 = vld [vmem:[%s2 + $0x8] sm:$0xff]
  %v291 = vld [vmem:[%s2 + $0x10] sm:$0xff]
  %v292 = vld [vmem:[%s2 + $0x18] sm:$0xff]
  %v293 = vld [vmem:[%s2 + $0x20] sm:$0xff]
  %v294 = vld [vmem:[%s2 + $0x28] sm:$0xff]
  %v295 = vld [vmem:[%s2 + $0x30] sm:$0xff]
  %v296 = vld [vmem:[%s2 + $0x38] sm:$0xff]
  %s297 = scalar_lea.vmem %s1, 768
  %v298 = vld [vmem:[%s297] sm:$0xff]
  %v299 = vld [vmem:[%s297 + $0x8] sm:$0xff]
  %v300 = vld [vmem:[%s297 + $0x10] sm:$0xff]
  %v301 = vld [vmem:[%s297 + $0x18] sm:$0xff]
  %v302 = vld [vmem:[%s297 + $0x20] sm:$0xff]
  %v303 = vld [vmem:[%s297 + $0x28] sm:$0xff]
  %v304 = vld [vmem:[%s297 + $0x30] sm:$0xff]
  %v305 = vld [vmem:[%s297 + $0x38] sm:$0xff]
  %v306 = vld [vmem:[%s297 + $0x40] sm:$0xff]
  %v307 = vld [vmem:[%s297 + $0x48] sm:$0xff]
  %v308 = vld [vmem:[%s297 + $0x50] sm:$0xff]
  %v309 = vld [vmem:[%s297 + $0x58] sm:$0xff]
  %v310 = vld [vmem:[%s297 + $0x60] sm:$0xff]
  %v311 = vld [vmem:[%s297 + $0x68] sm:$0xff]
  %v312 = vld [vmem:[%s297 + $0x70] sm:$0xff]
  %v313 = vld [vmem:[%s297 + $0x78] sm:$0xff]
  %v314 = vld [vmem:[%s297 + $0x80] sm:$0xff]
  %v315 = vld [vmem:[%s297 + $0x88] sm:$0xff]
  %v316 = vld [vmem:[%s297 + $0x90] sm:$0xff]
  %v317 = vld [vmem:[%s297 + $0x98] sm:$0xff]
  %v318 = vld [vmem:[%s297 + $0xa0] sm:$0xff]
  %v319 = vld [vmem:[%s297 + $0xa8] sm:$0xff]
  %v320 = vld [vmem:[%s297 + $0xb0] sm:$0xff]
  %v321 = vld [vmem:[%s297 + $0xb8] sm:$0xff]
  %v322 = vld [vmem:[%s297 + $0xc0] sm:$0xff]
  %v323 = vld [vmem:[%s297 + $0xc8] sm:$0xff]
  %v324 = vld [vmem:[%s297 + $0xd0] sm:$0xff]
  %v325 = vld [vmem:[%s297 + $0xd8] sm:$0xff]
  %v326 = vld [vmem:[%s297 + $0xe0] sm:$0xff]
  %v327 = vld [vmem:[%s297 + $0xe8] sm:$0xff]
  %v328 = vld [vmem:[%s297 + $0xf0] sm:$0xff]
  %v329 = vld [vmem:[%s297 + $0xf8] sm:$0xff]
  %v330 = vld [vmem:[%s297 + $0x100] sm:$0xff]
  %v331 = vld [vmem:[%s297 + $0x108] sm:$0xff]
  %v332 = vld [vmem:[%s297 + $0x110] sm:$0xff]
  %v333 = vld [vmem:[%s297 + $0x118] sm:$0xff]
  %v334 = vld [vmem:[%s297 + $0x120] sm:$0xff]
  %v335 = vld [vmem:[%s297 + $0x128] sm:$0xff]
  %v336 = vld [vmem:[%s297 + $0x130] sm:$0xff]
  %v337 = vld [vmem:[%s297 + $0x138] sm:$0xff]
  %v338 = vld [vmem:[%s297 + $0x140] sm:$0xff]
  %v339 = vld [vmem:[%s297 + $0x148] sm:$0xff]
  %v340 = vld [vmem:[%s297 + $0x150] sm:$0xff]
  %v341 = vld [vmem:[%s297 + $0x158] sm:$0xff]
  %v342 = vld [vmem:[%s297 + $0x160] sm:$0xff]
  %v343 = vld [vmem:[%s297 + $0x168] sm:$0xff]
  %v344 = vld [vmem:[%s297 + $0x170] sm:$0xff]
  %v345 = vld [vmem:[%s297 + $0x178] sm:$0xff]
  %v346 = vld [vmem:[%s297 + $0x180] sm:$0xff]
  %v347 = vld [vmem:[%s297 + $0x188] sm:$0xff]
  %v348 = vld [vmem:[%s297 + $0x190] sm:$0xff]
  %v349 = vld [vmem:[%s297 + $0x198] sm:$0xff]
  %v350 = vld [vmem:[%s297 + $0x1a0] sm:$0xff]
  %v351 = vld [vmem:[%s297 + $0x1a8] sm:$0xff]
  %v352 = vld [vmem:[%s297 + $0x1b0] sm:$0xff]
  %v353 = vld [vmem:[%s297 + $0x1b8] sm:$0xff]
  %v354 = vld [vmem:[%s297 + $0x1c0] sm:$0xff]
  %v355 = vld [vmem:[%s297 + $0x1c8] sm:$0xff]
  %v356 = vld [vmem:[%s297 + $0x1d0] sm:$0xff]
  %v357 = vld [vmem:[%s297 + $0x1d8] sm:$0xff]
  %v358 = vld [vmem:[%s297 + $0x1e0] sm:$0xff]
  %v359 = vld [vmem:[%s297 + $0x1e8] sm:$0xff]
  %v360 = vld [vmem:[%s297 + $0x1f0] sm:$0xff]
  %v361 = vld [vmem:[%s297 + $0x1f8] sm:$0xff]
  %v362 = vld [vmem:[%s297 + $0x200] sm:$0xff]
  %v363 = vld [vmem:[%s297 + $0x208] sm:$0xff]
  %v364 = vld [vmem:[%s297 + $0x210] sm:$0xff]
  %v365 = vld [vmem:[%s297 + $0x218] sm:$0xff]
  %v366 = vld [vmem:[%s297 + $0x220] sm:$0xff]
  %v367 = vld [vmem:[%s297 + $0x228] sm:$0xff]
  %v368 = vld [vmem:[%s297 + $0x230] sm:$0xff]
  %v369 = vld [vmem:[%s297 + $0x238] sm:$0xff]
  %v370 = vld [vmem:[%s297 + $0x240] sm:$0xff]
  %v371 = vld [vmem:[%s297 + $0x248] sm:$0xff]
  %v372 = vld [vmem:[%s297 + $0x250] sm:$0xff]
  %v373 = vld [vmem:[%s297 + $0x258] sm:$0xff]
  %v374 = vld [vmem:[%s297 + $0x260] sm:$0xff]
  %v375 = vld [vmem:[%s297 + $0x268] sm:$0xff]
  %v376 = vld [vmem:[%s297 + $0x270] sm:$0xff]
  %v377 = vld [vmem:[%s297 + $0x278] sm:$0xff]
  %v378 = vld [vmem:[%s297 + $0x280] sm:$0xff]
  %v379 = vld [vmem:[%s297 + $0x288] sm:$0xff]
  %v380 = vld [vmem:[%s297 + $0x290] sm:$0xff]
  %v381 = vld [vmem:[%s297 + $0x298] sm:$0xff]
  %v382 = vld [vmem:[%s297 + $0x2a0] sm:$0xff]
  %v383 = vld [vmem:[%s297 + $0x2a8] sm:$0xff]
  %v384 = vld [vmem:[%s297 + $0x2b0] sm:$0xff]
  %v385 = vld [vmem:[%s297 + $0x2b8] sm:$0xff]
  %v386 = vld [vmem:[%s297 + $0x2c0] sm:$0xff]
  %v387 = vld [vmem:[%s297 + $0x2c8] sm:$0xff]
  %v388 = vld [vmem:[%s297 + $0x2d0] sm:$0xff]
  %v389 = vld [vmem:[%s297 + $0x2d8] sm:$0xff]
  %v390 = vld [vmem:[%s297 + $0x2e0] sm:$0xff]
  %v391 = vld [vmem:[%s297 + $0x2e8] sm:$0xff]
  %v392 = vld [vmem:[%s297 + $0x2f0] sm:$0xff]
  %v393 = vld [vmem:[%s297 + $0x2f8] sm:$0xff]
  %394 = vmatprep.subr.mxu0 %v299
  %395 = vmatpush1.msra.mxu0 %v298
  %396 = vmatprep.subr.mxu0 %v302
  %397 = vmatpush1.msra.mxu0 %v301
  %398 = vmatprep.subr.mxu0 %v305
  %399 = vmatpush1.msra.mxu0 %v304
  %400 = vmatprep.subr.mxu0 %v308
  %401 = vmatpush1.msra.mxu0 %v307
  %402 = vmatprep.subr.mxu0 %v311
  %403 = vmatpush1.msra.mxu0 %v310
  %404 = vmatprep.subr.mxu0 %v314
  %405 = vmatpush1.msra.mxu0 %v313
  %406 = vmatprep.subr.mxu0 %v317
  %407 = vmatpush1.msra.mxu0 %v316
  %408 = vmatprep.subr.mxu0 %v320
  %409 = vmatpush1.msra.mxu0 %v319
  %410 = vmatprep.subr.mxu0 %v323
  %411 = vmatpush1.msra.mxu0 %v322
  %412 = vmatprep.subr.mxu0 %v326
  %413 = vmatpush1.msra.mxu0 %v325
  %414 = vmatprep.subr.mxu0 %v329
  %415 = vmatpush1.msra.mxu0 %v328
  %416 = vmatprep.subr.mxu0 %v332
  %417 = vmatpush1.msra.mxu0 %v331
  %418 = vmatprep.subr.mxu0 %v335
  %419 = vmatpush1.msra.mxu0 %v334
  %420 = vmatprep.subr.mxu0 %v338
  %421 = vmatpush1.msra.mxu0 %v337
  %422 = vmatprep.subr.mxu0 %v341
  %423 = vmatpush1.msra.mxu0 %v340
  %424 = vmatprep.subr.mxu0 %v344
  %425 = vmatpush1.msra.mxu0 %v343
  %426 = vmatprep.subr.mxu0 %v347
  %427 = vmatpush1.msra.mxu0 %v346
  %428 = vmatprep.subr.mxu0 %v350
  %429 = vmatpush1.msra.mxu0 %v349
  %430 = vmatprep.subr.mxu0 %v353
  %431 = vmatpush1.msra.mxu0 %v352
  %432 = vmatprep.subr.mxu0 %v356
  %433 = vmatpush1.msra.mxu0 %v355
  %434 = vmatprep.subr.mxu0 %v359
  %435 = vmatpush1.msra.mxu0 %v358
  %436 = vmatprep.subr.mxu0 %v362
  %437 = vmatpush1.msra.mxu0 %v361
  %438 = vmatprep.subr.mxu0 %v365
  %439 = vmatpush1.msra.mxu0 %v364
  %440 = vmatprep.subr.mxu0 %v368
  %441 = vmatpush1.msra.mxu0 %v367
  %442 = vmatprep.subr.mxu0 %v371
  %443 = vmatpush1.msra.mxu0 %v370
  %444 = vmatprep.subr.mxu0 %v374
  %445 = vmatpush1.msra.mxu0 %v373
  %446 = vmatprep.subr.mxu0 %v377
  %447 = vmatpush1.msra.mxu0 %v376
  %448 = vmatprep.subr.mxu0 %v380
  %449 = vmatpush1.msra.mxu0 %v379
  %450 = vmatprep.subr.mxu0 %v383
  %451 = vmatpush1.msra.mxu0 %v382
  %452 = vmatprep.subr.mxu0 %v386
  %453 = vmatpush1.msra.mxu0 %v385
  %454 = vmatprep.subr.mxu0 %v389
  %455 = vmatpush1.msra.mxu0 %v388
  %456 = vmatprep.subr.mxu0 %v392
  %457 = vmatpush1.msra.mxu0 %v391
  %458 = vmatprep.mubr.f32.mxu0 %v51
  %459 = vmatmul.mubr.f32.gmra.mrb[0].mxu0 %v50
  %v460 = vpop.f32.mrb[0].mxu0
  %v461 = vadd.f32 0.0, %v460
  %v462 = vpop.f32.mrb[0].mxu0
  %v463 = vadd.f32 0.0, %v462
  %464 = vdwg.mxu0
  %465 = vmatprep.subr.mxu0 0.0
  %466 = vmatpush1.msra.mxu0 %v300
  %467 = vmatprep.subr.mxu0 0.0
  %468 = vmatpush1.msra.mxu0 %v303
  %469 = vmatprep.subr.mxu0 0.0
  %470 = vmatpush1.msra.mxu0 %v306
  %471 = vmatprep.subr.mxu0 0.0
  %472 = vmatpush1.msra.mxu0 %v309
  %473 = vmatprep.subr.mxu0 0.0
  %474 = vmatpush1.msra.mxu0 %v312
  %475 = vmatprep.subr.mxu0 0.0
  %476 = vmatpush1.msra.mxu0 %v315
  %477 = vmatprep.subr.mxu0 0.0
  %478 = vmatpush1.msra.mxu0 %v318
  %479 = vmatprep.subr.mxu0 0.0
  %480 = vmatpush1.msra.mxu0 %v321
  %481 = vmatprep.subr.mxu0 0.0
  %482 = vmatpush1.msra.mxu0 %v324
  %483 = vmatprep.subr.mxu0 0.0
  %484 = vmatpush1.msra.mxu0 %v327
  %485 = vmatprep.subr.mxu0 0.0
  %486 = vmatpush1.msra.mxu0 %v330
  %487 = vmatprep.subr.mxu0 0.0
  %488 = vmatpush1.msra.mxu0 %v333
  %489 = vmatprep.subr.mxu0 0.0
  %490 = vmatpush1.msra.mxu0 %v336
  %491 = vmatprep.subr.mxu0 0.0
  %492 = vmatpush1.msra.mxu0 %v339
  %493 = vmatprep.subr.mxu0 0.0
  %494 = vmatpush1.msra.mxu0 %v342
  %495 = vmatprep.subr.mxu0 0.0
  %496 = vmatpush1.msra.mxu0 %v345
  %497 = vmatprep.subr.mxu0 0.0
  %498 = vmatpush1.msra.mxu0 %v348
  %499 = vmatprep.subr.mxu0 0.0
  %500 = vmatpush1.msra.mxu0 %v351
  %501 = vmatprep.subr.mxu0 0.0
  %502 = vmatpush1.msra.mxu0 %v354
  %503 = vmatprep.subr.mxu0 0.0
  %504 = vmatpush1.msra.mxu0 %v357
  %505 = vmatprep.subr.mxu0 0.0
  %506 = vmatpush1.msra.mxu0 %v360
  %507 = vmatprep.subr.mxu0 0.0
  %508 = vmatpush1.msra.mxu0 %v363
  %509 = vmatprep.subr.mxu0 0.0
  %510 = vmatpush1.msra.mxu0 %v366
  %511 = vmatprep.subr.mxu0 0.0
  %512 = vmatpush1.msra.mxu0 %v369
  %513 = vmatprep.subr.mxu0 0.0
  %514 = vmatpush1.msra.mxu0 %v372
  %515 = vmatprep.subr.mxu0 0.0
  %516 = vmatpush1.msra.mxu0 %v375
  %517 = vmatprep.subr.mxu0 0.0
  %518 = vmatpush1.msra.mxu0 %v378
  %519 = vmatprep.subr.mxu0 0.0
  %520 = vmatpush1.msra.mxu0 %v381
  %521 = vmatprep.subr.mxu0 0.0
  %522 = vmatpush1.msra.mxu0 %v384
  %523 = vmatprep.subr.mxu0 0.0
  %524 = vmatpush1.msra.mxu0 %v387
  %525 = vmatprep.subr.mxu0 0.0
  %526 = vmatpush1.msra.mxu0 %v390
  %527 = vmatprep.subr.mxu0 0.0
  %528 = vmatpush1.msra.mxu0 %v393
  %529 = vmatprep.mubr.f32.mxu0 %v51
  %530 = vmatmul.mubr.f32.gmra.mrb[0].mxu0 %v50
  %v531 = vpop.f32.mrb[0].mxu0
  %v532 = vadd.f32 0.0, %v531
  %v533 = vpop.f32.mrb[0].mxu0
  %534 = vdwg.mxu0
  %s535 = scalar_lea.vmem %s2, 64
  %v536 = vld [vmem:[%s535] sm:$0xff]
  %v537 = vld [vmem:[%s535 + $0x8] sm:$0xff]
  %v538 = vld [vmem:[%s535 + $0x10] sm:$0xff]
  %v539 = vld [vmem:[%s535 + $0x18] sm:$0xff]
  %v540 = vld [vmem:[%s535 + $0x20] sm:$0xff]
  %v541 = vld [vmem:[%s535 + $0x28] sm:$0xff]
  %v542 = vld [vmem:[%s535 + $0x30] sm:$0xff]
  %v543 = vld [vmem:[%s535 + $0x38] sm:$0xff]
  %vm544 = vcmask 48128
  %v546 = vsel %vm544, %v536, 0
  %v549 = vsel %vm544, %v537, 0
  %v552 = vsel %vm544, %v538, 0
  %v555 = vsel %vm544, %v539, 0
  %v558 = vsel %vm544, %v540, 0
  %v561 = vsel %vm544, %v541, 0
  %v564 = vsel %vm544, %v542, 0
  %v567 = vsel %vm544, %v543, 0
  %vm569 = vcmask 1045504
  %v571 = vsel %vm569, %v461, 0
  %v574 = vsel %vm569, %v463, 0
  %v577 = vsel %vm569, %v532, 0
  %579 = vmatprep.subr.mxu0 %v574
  %580 = vmatpush1.msra.mxu0 %v571
  %581 = vmatprep.subr.mxu0 0.0
  %582 = vmatpush1.msra.mxu0 0.0
  %583 = vmatprep.subr.mxu0 0.0
  %584 = vmatpush1.msra.mxu0 0.0
  %585 = vmatprep.subr.mxu0 0.0
  %586 = vmatpush1.msra.mxu0 0.0
  %587 = vmatprep.subr.mxu0 0.0
  %588 = vmatpush1.msra.mxu0 0.0
  %589 = vmatprep.subr.mxu0 0.0
  %590 = vmatpush1.msra.mxu0 0.0
  %591 = vmatprep.subr.mxu0 0.0
  %592 = vmatpush1.msra.mxu0 0.0
  %593 = vmatprep.subr.mxu0 0.0
  %594 = vmatpush1.msra.mxu0 0.0
  %595 = vmatprep.subr.mxu0 0.0
  %596 = vmatpush1.msra.mxu0 0.0
  %597 = vmatprep.subr.mxu0 0.0
  %598 = vmatpush1.msra.mxu0 0.0
  %599 = vmatprep.subr.mxu0 0.0
  %600 = vmatpush1.msra.mxu0 0.0
  %601 = vmatprep.subr.mxu0 0.0
  %602 = vmatpush1.msra.mxu0 0.0
  %603 = vmatprep.subr.mxu0 0.0
  %604 = vmatpush1.msra.mxu0 0.0
  %605 = vmatprep.subr.mxu0 0.0
  %606 = vmatpush1.msra.mxu0 0.0
  %607 = vmatprep.subr.mxu0 0.0
  %608 = vmatpush1.msra.mxu0 0.0
  %609 = vmatprep.subr.mxu0 0.0
  %610 = vmatpush1.msra.mxu0 0.0
  %611 = vmatprep.subr.mxu0 0.0
  %612 = vmatpush1.msra.mxu0 0.0
  %613 = vmatprep.subr.mxu0 0.0
  %614 = vmatpush1.msra.mxu0 0.0
  %615 = vmatprep.subr.mxu0 0.0
  %616 = vmatpush1.msra.mxu0 0.0
  %617 = vmatprep.subr.mxu0 0.0
  %618 = vmatpush1.msra.mxu0 0.0
  %619 = vmatprep.subr.mxu0 0.0
  %620 = vmatpush1.msra.mxu0 0.0
  %621 = vmatprep.subr.mxu0 0.0
  %622 = vmatpush1.msra.mxu0 0.0
  %623 = vmatprep.subr.mxu0 0.0
  %624 = vmatpush1.msra.mxu0 0.0
  %625 = vmatprep.subr.mxu0 0.0
  %626 = vmatpush1.msra.mxu0 0.0
  %627 = vmatprep.subr.mxu0 0.0
  %628 = vmatpush1.msra.mxu0 0.0
  %629 = vmatprep.subr.mxu0 0.0
  %630 = vmatpush1.msra.mxu0 0.0
  %631 = vmatprep.subr.mxu0 0.0
  %632 = vmatpush1.msra.mxu0 0.0
  %633 = vmatprep.subr.mxu0 0.0
  %634 = vmatpush1.msra.mxu0 0.0
  %635 = vmatprep.subr.mxu0 0.0
  %636 = vmatpush1.msra.mxu0 0.0
  %637 = vmatprep.subr.mxu0 0.0
  %638 = vmatpush1.msra.mxu0 0.0
  %639 = vmatprep.subr.mxu0 0.0
  %640 = vmatpush1.msra.mxu0 0.0
  %641 = vmatprep.subr.mxu0 0.0
  %642 = vmatpush1.msra.mxu0 0.0
  %643 = vmatprep.mubr.f32.mxu0 0.0
  %644 = vmatmul.mubr.f32.gmra.mrb[0].mxu0 %v546
  %v645 = vpop.f32.mrb[0].mxu0
  %v646 = vadd.f32 0.0, %v645
  %v647 = vpop.f32.mrb[0].mxu0
  %v648 = vadd.f32 0.0, %v647
  %649 = vmatprep.mubr.f32.mxu0 0.0
  %650 = vmatmul.mubr.f32.gmra.mrb[0].mxu0 %v549
  %v651 = vpop.f32.mrb[0].mxu0
  %v652 = vadd.f32 0.0, %v651
  %v653 = vpop.f32.mrb[0].mxu0
  %v654 = vadd.f32 0.0, %v653
  %655 = vmatprep.mubr.f32.mxu0 0.0
  %656 = vmatmul.mubr.f32.gmra.mrb[0].mxu0 %v552
  %v657 = vpop.f32.mrb[0].mxu0
  %v658 = vadd.f32 0.0, %v657
  %v659 = vpop.f32.mrb[0].mxu0
  %v660 = vadd.f32 0.0, %v659
  %661 = vmatprep.mubr.f32.mxu0 0.0
  %662 = vmatmul.mubr.f32.gmra.mrb[0].mxu0 %v555
  %v663 = vpop.f32.mrb[0].mxu0
  %v664 = vadd.f32 0.0, %v663
  %v665 = vpop.f32.mrb[0].mxu0
  %v666 = vadd.f32 0.0, %v665
  %667 = vmatprep.mubr.f32.mxu0 0.0
  %668 = vmatmul.mubr.f32.gmra.mrb[0].mxu0 %v558
  %v669 = vpop.f32.mrb[0].mxu0
  %v670 = vadd.f32 0.0, %v669
  %v671 = vpop.f32.mrb[0].mxu0
  %v672 = vadd.f32 0.0, %v671
  %673 = vmatprep.mubr.f32.mxu0 0.0
  %674 = vmatmul.mubr.f32.gmra.mrb[0].mxu0 %v561
  %v675 = vpop.f32.mrb[0].mxu0
  %v676 = vadd.f32 0.0, %v675
  %v677 = vpop.f32.mrb[0].mxu0
  %v678 = vadd.f32 0.0, %v677
  %679 = vmatprep.mubr.f32.mxu0 0.0
  %680 = vmatmul.mubr.f32.gmra.mrb[0].mxu0 %v564
  %v681 = vpop.f32.mrb[0].mxu0
  %v682 = vadd.f32 0.0, %v681
  %v683 = vpop.f32.mrb[0].mxu0
  %v684 = vadd.f32 0.0, %v683
  %685 = vmatprep.mubr.f32.mxu0 0.0
  %686 = vmatmul.mubr.f32.gmra.mrb[0].mxu0 %v567
  %v687 = vpop.f32.mrb[0].mxu0
  %v688 = vadd.f32 0.0, %v687
  %v689 = vpop.f32.mrb[0].mxu0
  %v690 = vadd.f32 0.0, %v689
  %691 = vdwg.mxu0
  %692 = vmatprep.subr.mxu0 0.0
  %693 = vmatpush1.msra.mxu0 %v577
  %694 = vmatprep.subr.mxu0 0.0
  %695 = vmatpush1.msra.mxu0 0.0
  %696 = vmatprep.subr.mxu0 0.0
  %697 = vmatpush1.msra.mxu0 0.0
  %698 = vmatprep.subr.mxu0 0.0
  %699 = vmatpush1.msra.mxu0 0.0
  %700 = vmatprep.subr.mxu0 0.0
  %701 = vmatpush1.msra.mxu0 0.0
  %702 = vmatprep.subr.mxu0 0.0
  %703 = vmatpush1.msra.mxu0 0.0
  %704 = vmatprep.subr.mxu0 0.0
  %705 = vmatpush1.msra.mxu0 0.0
  %706 = vmatprep.subr.mxu0 0.0
  %707 = vmatpush1.msra.mxu0 0.0
  %708 = vmatprep.subr.mxu0 0.0
  %709 = vmatpush1.msra.mxu0 0.0
  %710 = vmatprep.subr.mxu0 0.0
  %711 = vmatpush1.msra.mxu0 0.0
  %712 = vmatprep.subr.mxu0 0.0
  %713 = vmatpush1.msra.mxu0 0.0
  %714 = vmatprep.subr.mxu0 0.0
  %715 = vmatpush1.msra.mxu0 0.0
  %716 = vmatprep.subr.mxu0 0.0
  %717 = vmatpush1.msra.mxu0 0.0
  %718 = vmatprep.subr.mxu0 0.0
  %719 = vmatpush1.msra.mxu0 0.0
  %720 = vmatprep.subr.mxu0 0.0
  %721 = vmatpush1.msra.mxu0 0.0
  %722 = vmatprep.subr.mxu0 0.0
  %723 = vmatpush1.msra.mxu0 0.0
  %724 = vmatprep.subr.mxu0 0.0
  %725 = vmatpush1.msra.mxu0 0.0
  %726 = vmatprep.subr.mxu0 0.0
  %727 = vmatpush1.msra.mxu0 0.0
  %728 = vmatprep.subr.mxu0 0.0
  %729 = vmatpush1.msra.mxu0 0.0
  %730 = vmatprep.subr.mxu0 0.0
  %731 = vmatpush1.msra.mxu0 0.0
  %732 = vmatprep.subr.mxu0 0.0
  %733 = vmatpush1.msra.mxu0 0.0
  %734 = vmatprep.subr.mxu0 0.0
  %735 = vmatpush1.msra.mxu0 0.0
  %736 = vmatprep.subr.mxu0 0.0
  %737 = vmatpush1.msra.mxu0 0.0
  %738 = vmatprep.subr.mxu0 0.0
  %739 = vmatpush1.msra.mxu0 0.0
  %740 = vmatprep.subr.mxu0 0.0
  %741 = vmatpush1.msra.mxu0 0.0
  %742 = vmatprep.subr.mxu0 0.0
  %743 = vmatpush1.msra.mxu0 0.0
  %744 = vmatprep.subr.mxu0 0.0
  %745 = vmatpush1.msra.mxu0 0.0
  %746 = vmatprep.subr.mxu0 0.0
  %747 = vmatpush1.msra.mxu0 0.0
  %748 = vmatprep.subr.mxu0 0.0
  %749 = vmatpush1.msra.mxu0 0.0
  %750 = vmatprep.subr.mxu0 0.0
  %751 = vmatpush1.msra.mxu0 0.0
  %752 = vmatprep.subr.mxu0 0.0
  %753 = vmatpush1.msra.mxu0 0.0
  %754 = vmatprep.subr.mxu0 0.0
  %755 = vmatpush1.msra.mxu0 0.0
  %756 = vmatprep.mubr.f32.mxu0 0.0
  %757 = vmatmul.mubr.f32.gmra.mrb[0].mxu0 %v546
  %v758 = vpop.f32.mrb[0].mxu0
  %v759 = vadd.f32 0.0, %v758
  %v760 = vpop.f32.mrb[0].mxu0
  %761 = vmatprep.mubr.f32.mxu0 0.0
  %762 = vmatmul.mubr.f32.gmra.mrb[0].mxu0 %v549
  %v763 = vpop.f32.mrb[0].mxu0
  %v764 = vadd.f32 0.0, %v763
  %v765 = vpop.f32.mrb[0].mxu0
  %766 = vmatprep.mubr.f32.mxu0 0.0
  %767 = vmatmul.mubr.f32.gmra.mrb[0].mxu0 %v552
  %v768 = vpop.f32.mrb[0].mxu0
  %v769 = vadd.f32 0.0, %v768
  %v770 = vpop.f32.mrb[0].mxu0
  %771 = vmatprep.mubr.f32.mxu0 0.0
  %772 = vmatmul.mubr.f32.gmra.mrb[0].mxu0 %v555
  %v773 = vpop.f32.mrb[0].mxu0
  %v774 = vadd.f32 0.0, %v773
  %v775 = vpop.f32.mrb[0].mxu0
  %776 = vmatprep.mubr.f32.mxu0 0.0
  %777 = vmatmul.mubr.f32.gmra.mrb[0].mxu0 %v558
  %v778 = vpop.f32.mrb[0].mxu0
  %v779 = vadd.f32 0.0, %v778
  %v780 = vpop.f32.mrb[0].mxu0
  %781 = vmatprep.mubr.f32.mxu0 0.0
  %782 = vmatmul.mubr.f32.gmra.mrb[0].mxu0 %v561
  %v783 = vpop.f32.mrb[0].mxu0
  %v784 = vadd.f32 0.0, %v783
  %v785 = vpop.f32.mrb[0].mxu0
  %786 = vmatprep.mubr.f32.mxu0 0.0
  %787 = vmatmul.mubr.f32.gmra.mrb[0].mxu0 %v564
  %v788 = vpop.f32.mrb[0].mxu0
  %v789 = vadd.f32 0.0, %v788
  %v790 = vpop.f32.mrb[0].mxu0
  %791 = vmatprep.mubr.f32.mxu0 0.0
  %792 = vmatmul.mubr.f32.gmra.mrb[0].mxu0 %v567
  %v793 = vpop.f32.mrb[0].mxu0
  %v794 = vadd.f32 0.0, %v793
  %v795 = vpop.f32.mrb[0].mxu0
  %796 = vdwg.mxu0
  %v798 = vsel %vm544, %v289, 0
  %v801 = vsel %vm544, %v290, 0
  %v804 = vsel %vm544, %v291, 0
  %v807 = vsel %vm544, %v292, 0
  %v810 = vsel %vm544, %v293, 0
  %v813 = vsel %vm544, %v294, 0
  %v816 = vsel %vm544, %v295, 0
  %v819 = vsel %vm544, %v296, 0
  %v822 = vsel %vm569, %v215, 0
  %v825 = vsel %vm569, %v217, 0
  %v828 = vsel %vm569, %v286, 0
  %830 = vmatprep.subr.mxu0 %v825
  %831 = vmatpush1.msra.mxu0 %v822
  %832 = vmatprep.subr.mxu0 0.0
  %833 = vmatpush1.msra.mxu0 0.0
  %834 = vmatprep.subr.mxu0 0.0
  %835 = vmatpush1.msra.mxu0 0.0
  %836 = vmatprep.subr.mxu0 0.0
  %837 = vmatpush1.msra.mxu0 0.0
  %838 = vmatprep.subr.mxu0 0.0
  %839 = vmatpush1.msra.mxu0 0.0
  %840 = vmatprep.subr.mxu0 0.0
  %841 = vmatpush1.msra.mxu0 0.0
  %842 = vmatprep.subr.mxu0 0.0
  %843 = vmatpush1.msra.mxu0 0.0
  %844 = vmatprep.subr.mxu0 0.0
  %845 = vmatpush1.msra.mxu0 0.0
  %846 = vmatprep.subr.mxu0 0.0
  %847 = vmatpush1.msra.mxu0 0.0
  %848 = vmatprep.subr.mxu0 0.0
  %849 = vmatpush1.msra.mxu0 0.0
  %850 = vmatprep.subr.mxu0 0.0
  %851 = vmatpush1.msra.mxu0 0.0
  %852 = vmatprep.subr.mxu0 0.0
  %853 = vmatpush1.msra.mxu0 0.0
  %854 = vmatprep.subr.mxu0 0.0
  %855 = vmatpush1.msra.mxu0 0.0
  %856 = vmatprep.subr.mxu0 0.0
  %857 = vmatpush1.msra.mxu0 0.0
  %858 = vmatprep.subr.mxu0 0.0
  %859 = vmatpush1.msra.mxu0 0.0
  %860 = vmatprep.subr.mxu0 0.0
  %861 = vmatpush1.msra.mxu0 0.0
  %862 = vmatprep.subr.mxu0 0.0
  %863 = vmatpush1.msra.mxu0 0.0
  %864 = vmatprep.subr.mxu0 0.0
  %865 = vmatpush1.msra.mxu0 0.0
  %866 = vmatprep.subr.mxu0 0.0
  %867 = vmatpush1.msra.mxu0 0.0
  %868 = vmatprep.subr.mxu0 0.0
  %869 = vmatpush1.msra.mxu0 0.0
  %870 = vmatprep.subr.mxu0 0.0
  %871 = vmatpush1.msra.mxu0 0.0
  %872 = vmatprep.subr.mxu0 0.0
  %873 = vmatpush1.msra.mxu0 0.0
  %874 = vmatprep.subr.mxu0 0.0
  %875 = vmatpush1.msra.mxu0 0.0
  %876 = vmatprep.subr.mxu0 0.0
  %877 = vmatpush1.msra.mxu0 0.0
  %878 = vmatprep.subr.mxu0 0.0
  %879 = vmatpush1.msra.mxu0 0.0
  %880 = vmatprep.subr.mxu0 0.0
  %881 = vmatpush1.msra.mxu0 0.0
  %882 = vmatprep.subr.mxu0 0.0
  %883 = vmatpush1.msra.mxu0 0.0
  %884 = vmatprep.subr.mxu0 0.0
  %885 = vmatpush1.msra.mxu0 0.0
  %886 = vmatprep.subr.mxu0 0.0
  %887 = vmatpush1.msra.mxu0 0.0
  %888 = vmatprep.subr.mxu0 0.0
  %889 = vmatpush1.msra.mxu0 0.0
  %890 = vmatprep.subr.mxu0 0.0
  %891 = vmatpush1.msra.mxu0 0.0
  %892 = vmatprep.subr.mxu0 0.0
  %893 = vmatpush1.msra.mxu0 0.0
  %894 = vmatprep.mubr.f32.mxu0 0.0
  %895 = vmatmul.mubr.f32.gmra.mrb[0].mxu0 %v798
  %v896 = vpop.f32.mrb[0].mxu0
  %v897 = vadd.f32 %v646, %v896
  %v898 = vpop.f32.mrb[0].mxu0
  %v899 = vadd.f32 %v648, %v898
  %900 = vmatprep.mubr.f32.mxu0 0.0
  %901 = vmatmul.mubr.f32.gmra.mrb[0].mxu0 %v801
  %v902 = vpop.f32.mrb[0].mxu0
  %v903 = vadd.f32 %v652, %v902
  %v904 = vpop.f32.mrb[0].mxu0
  %v905 = vadd.f32 %v654, %v904
  %906 = vmatprep.mubr.f32.mxu0 0.0
  %907 = vmatmul.mubr.f32.gmra.mrb[0].mxu0 %v804
  %v908 = vpop.f32.mrb[0].mxu0
  %v909 = vadd.f32 %v658, %v908
  %v910 = vpop.f32.mrb[0].mxu0
  %v911 = vadd.f32 %v660, %v910
  %912 = vmatprep.mubr.f32.mxu0 0.0
  %913 = vmatmul.mubr.f32.gmra.mrb[0].mxu0 %v807
  %v914 = vpop.f32.mrb[0].mxu0
  %v915 = vadd.f32 %v664, %v914
  %v916 = vpop.f32.mrb[0].mxu0
  %v917 = vadd.f32 %v666, %v916
  %918 = vmatprep.mubr.f32.mxu0 0.0
  %919 = vmatmul.mubr.f32.gmra.mrb[0].mxu0 %v810
  %v920 = vpop.f32.mrb[0].mxu0
  %v921 = vadd.f32 %v670, %v920
  %v922 = vpop.f32.mrb[0].mxu0
  %v923 = vadd.f32 %v672, %v922
  %924 = vmatprep.mubr.f32.mxu0 0.0
  %925 = vmatmul.mubr.f32.gmra.mrb[0].mxu0 %v813
  %v926 = vpop.f32.mrb[0].mxu0
  %v927 = vadd.f32 %v676, %v926
  %v928 = vpop.f32.mrb[0].mxu0
  %v929 = vadd.f32 %v678, %v928
  %930 = vmatprep.mubr.f32.mxu0 0.0
  %931 = vmatmul.mubr.f32.gmra.mrb[0].mxu0 %v816
  %v932 = vpop.f32.mrb[0].mxu0
  %v933 = vadd.f32 %v682, %v932
  %v934 = vpop.f32.mrb[0].mxu0
  %v935 = vadd.f32 %v684, %v934
  %936 = vmatprep.mubr.f32.mxu0 0.0
  %937 = vmatmul.mubr.f32.gmra.mrb[0].mxu0 %v819
  %v938 = vpop.f32.mrb[0].mxu0
  %v939 = vadd.f32 %v688, %v938
  %v940 = vpop.f32.mrb[0].mxu0
  %v941 = vadd.f32 %v690, %v940
  %942 = vdwg.mxu0
  %943 = vmatprep.subr.mxu0 0.0
  %944 = vmatpush1.msra.mxu0 %v828
  %945 = vmatprep.subr.mxu0 0.0
  %946 = vmatpush1.msra.mxu0 0.0
  %947 = vmatprep.subr.mxu0 0.0
  %948 = vmatpush1.msra.mxu0 0.0
  %949 = vmatprep.subr.mxu0 0.0
  %950 = vmatpush1.msra.mxu0 0.0
  %951 = vmatprep.subr.mxu0 0.0
  %952 = vmatpush1.msra.mxu0 0.0
  %953 = vmatprep.subr.mxu0 0.0
  %954 = vmatpush1.msra.mxu0 0.0
  %955 = vmatprep.subr.mxu0 0.0
  %956 = vmatpush1.msra.mxu0 0.0
  %957 = vmatprep.subr.mxu0 0.0
  %958 = vmatpush1.msra.mxu0 0.0
  %959 = vmatprep.subr.mxu0 0.0
  %960 = vmatpush1.msra.mxu0 0.0
  %961 = vmatprep.subr.mxu0 0.0
  %962 = vmatpush1.msra.mxu0 0.0
  %963 = vmatprep.subr.mxu0 0.0
  %964 = vmatpush1.msra.mxu0 0.0
  %965 = vmatprep.subr.mxu0 0.0
  %966 = vmatpush1.msra.mxu0 0.0
  %967 = vmatprep.subr.mxu0 0.0
  %968 = vmatpush1.msra.mxu0 0.0
  %969 = vmatprep.subr.mxu0 0.0
  %970 = vmatpush1.msra.mxu0 0.0
  %971 = vmatprep.subr.mxu0 0.0
  %972 = vmatpush1.msra.mxu0 0.0
  %973 = vmatprep.subr.mxu0 0.0
  %974 = vmatpush1.msra.mxu0 0.0
  %975 = vmatprep.subr.mxu0 0.0
  %976 = vmatpush1.msra.mxu0 0.0
  %977 = vmatprep.subr.mxu0 0.0
  %978 = vmatpush1.msra.mxu0 0.0
  %979 = vmatprep.subr.mxu0 0.0
  %980 = vmatpush1.msra.mxu0 0.0
  %981 = vmatprep.subr.mxu0 0.0
  %982 = vmatpush1.msra.mxu0 0.0
  %983 = vmatprep.subr.mxu0 0.0
  %984 = vmatpush1.msra.mxu0 0.0
  %985 = vmatprep.subr.mxu0 0.0
  %986 = vmatpush1.msra.mxu0 0.0
  %987 = vmatprep.subr.mxu0 0.0
  %988 = vmatpush1.msra.mxu0 0.0
  %989 = vmatprep.subr.mxu0 0.0
  %990 = vmatpush1.msra.mxu0 0.0
  %991 = vmatprep.subr.mxu0 0.0
  %992 = vmatpush1.msra.mxu0 0.0
  %993 = vmatprep.subr.mxu0 0.0
  %994 = vmatpush1.msra.mxu0 0.0
  %995 = vmatprep.subr.mxu0 0.0
  %996 = vmatpush1.msra.mxu0 0.0
  %997 = vmatprep.subr.mxu0 0.0
  %998 = vmatpush1.msra.mxu0 0.0
  %999 = vmatprep.subr.mxu0 0.0
  %1000 = vmatpush1.msra.mxu0 0.0
  %1001 = vmatprep.subr.mxu0 0.0
  %1002 = vmatpush1.msra.mxu0 0.0
  %1003 = vmatprep.subr.mxu0 0.0
  %1004 = vmatpush1.msra.mxu0 0.0
  %1005 = vmatprep.subr.mxu0 0.0
  %1006 = vmatpush1.msra.mxu0 0.0
  %1007 = vmatprep.mubr.f32.mxu0 0.0
  %1008 = vmatmul.mubr.f32.gmra.mrb[0].mxu0 %v798
  %v1009 = vpop.f32.mrb[0].mxu0
  %v1010 = vadd.f32 %v759, %v1009
  %v1011 = vpop.f32.mrb[0].mxu0
  %1012 = vmatprep.mubr.f32.mxu0 0.0
  %1013 = vmatmul.mubr.f32.gmra.mrb[0].mxu0 %v801
  %v1014 = vpop.f32.mrb[0].mxu0
  %v1015 = vadd.f32 %v764, %v1014
  %v1016 = vpop.f32.mrb[0].mxu0
  %1017 = vmatprep.mubr.f32.mxu0 0.0
  %1018 = vmatmul.mubr.f32.gmra.mrb[0].mxu0 %v804
  %v1019 = vpop.f32.mrb[0].mxu0
  %v1020 = vadd.f32 %v769, %v1019
  %v1021 = vpop.f32.mrb[0].mxu0
  %1022 = vmatprep.mubr.f32.mxu0 0.0
  %1023 = vmatmul.mubr.f32.gmra.mrb[0].mxu0 %v807
  %v1024 = vpop.f32.mrb[0].mxu0
  %v1025 = vadd.f32 %v774, %v1024
  %v1026 = vpop.f32.mrb[0].mxu0
  %1027 = vmatprep.mubr.f32.mxu0 0.0
  %1028 = vmatmul.mubr.f32.gmra.mrb[0].mxu0 %v810
  %v1029 = vpop.f32.mrb[0].mxu0
  %v1030 = vadd.f32 %v779, %v1029
  %v1031 = vpop.f32.mrb[0].mxu0
  %1032 = vmatprep.mubr.f32.mxu0 0.0
  %1033 = vmatmul.mubr.f32.gmra.mrb[0].mxu0 %v813
  %v1034 = vpop.f32.mrb[0].mxu0
  %v1035 = vadd.f32 %v784, %v1034
  %v1036 = vpop.f32.mrb[0].mxu0
  %1037 = vmatprep.mubr.f32.mxu0 0.0
  %1038 = vmatmul.mubr.f32.gmra.mrb[0].mxu0 %v816
  %v1039 = vpop.f32.mrb[0].mxu0
  %v1040 = vadd.f32 %v789, %v1039
  %v1041 = vpop.f32.mrb[0].mxu0
  %1042 = vmatprep.mubr.f32.mxu0 0.0
  %1043 = vmatmul.mubr.f32.gmra.mrb[0].mxu0 %v819
  %v1044 = vpop.f32.mrb[0].mxu0
  %v1045 = vadd.f32 %v794, %v1044
  %v1046 = vpop.f32.mrb[0].mxu0
  %1047 = vdwg.mxu0
  %s1048 = scalar_lea.vmem %s1, 1536
  %v1049 = vld [vmem:[%s1048] sm:$0xff]
  %v1050 = vld [vmem:[%s1048 + $0x8] sm:$0xff]
  %v1051 = vld [vmem:[%s1048 + $0x10] sm:$0xff]
  %v1052 = vld [vmem:[%s1048 + $0x18] sm:$0xff]
  %v1053 = vld [vmem:[%s1048 + $0x20] sm:$0xff]
  %v1054 = vld [vmem:[%s1048 + $0x28] sm:$0xff]
  %v1055 = vld [vmem:[%s1048 + $0x30] sm:$0xff]
  %v1056 = vld [vmem:[%s1048 + $0x38] sm:$0xff]
  %v1057 = vld [vmem:[%s1048 + $0x40] sm:$0xff]
  %v1058 = vld [vmem:[%s1048 + $0x48] sm:$0xff]
  %v1059 = vld [vmem:[%s1048 + $0x50] sm:$0xff]
  %v1060 = vld [vmem:[%s1048 + $0x58] sm:$0xff]
  %v1061 = vld [vmem:[%s1048 + $0x60] sm:$0xff]
  %v1062 = vld [vmem:[%s1048 + $0x68] sm:$0xff]
  %v1063 = vld [vmem:[%s1048 + $0x70] sm:$0xff]
  %v1064 = vld [vmem:[%s1048 + $0x78] sm:$0xff]
  %v1065 = vld [vmem:[%s1048 + $0x80] sm:$0xff]
  %v1066 = vld [vmem:[%s1048 + $0x88] sm:$0xff]
  %v1067 = vld [vmem:[%s1048 + $0x90] sm:$0xff]
  %v1068 = vld [vmem:[%s1048 + $0x98] sm:$0xff]
  %v1069 = vld [vmem:[%s1048 + $0xa0] sm:$0xff]
  %v1070 = vld [vmem:[%s1048 + $0xa8] sm:$0xff]
  %v1071 = vld [vmem:[%s1048 + $0xb0] sm:$0xff]
  %v1072 = vld [vmem:[%s1048 + $0xb8] sm:$0xff]
  %v1073 = vld [vmem:[%s1048 + $0xc0] sm:$0xff]
  %v1074 = vld [vmem:[%s1048 + $0xc8] sm:$0xff]
  %v1075 = vld [vmem:[%s1048 + $0xd0] sm:$0xff]
  %v1076 = vld [vmem:[%s1048 + $0xd8] sm:$0xff]
  %v1077 = vld [vmem:[%s1048 + $0xe0] sm:$0xff]
  %v1078 = vld [vmem:[%s1048 + $0xe8] sm:$0xff]
  %v1079 = vld [vmem:[%s1048 + $0xf0] sm:$0xff]
  %v1080 = vld [vmem:[%s1048 + $0xf8] sm:$0xff]
  %v1081 = vld [vmem:[%s1048 + $0x100] sm:$0xff]
  %v1082 = vld [vmem:[%s1048 + $0x108] sm:$0xff]
  %v1083 = vld [vmem:[%s1048 + $0x110] sm:$0xff]
  %v1084 = vld [vmem:[%s1048 + $0x118] sm:$0xff]
  %v1085 = vld [vmem:[%s1048 + $0x120] sm:$0xff]
  %v1086 = vld [vmem:[%s1048 + $0x128] sm:$0xff]
  %v1087 = vld [vmem:[%s1048 + $0x130] sm:$0xff]
  %v1088 = vld [vmem:[%s1048 + $0x138] sm:$0xff]
  %v1089 = vld [vmem:[%s1048 + $0x140] sm:$0xff]
  %v1090 = vld [vmem:[%s1048 + $0x148] sm:$0xff]
  %v1091 = vld [vmem:[%s1048 + $0x150] sm:$0xff]
  %v1092 = vld [vmem:[%s1048 + $0x158] sm:$0xff]
  %v1093 = vld [vmem:[%s1048 + $0x160] sm:$0xff]
  %v1094 = vld [vmem:[%s1048 + $0x168] sm:$0xff]
  %v1095 = vld [vmem:[%s1048 + $0x170] sm:$0xff]
  %v1096 = vld [vmem:[%s1048 + $0x178] sm:$0xff]
  %v1097 = vld [vmem:[%s1048 + $0x180] sm:$0xff]
  %v1098 = vld [vmem:[%s1048 + $0x188] sm:$0xff]
  %v1099 = vld [vmem:[%s1048 + $0x190] sm:$0xff]
  %v1100 = vld [vmem:[%s1048 + $0x198] sm:$0xff]
  %v1101 = vld [vmem:[%s1048 + $0x1a0] sm:$0xff]
  %v1102 = vld [vmem:[%s1048 + $0x1a8] sm:$0xff]
  %v1103 = vld [vmem:[%s1048 + $0x1b0] sm:$0xff]
  %v1104 = vld [vmem:[%s1048 + $0x1b8] sm:$0xff]
  %v1105 = vld [vmem:[%s1048 + $0x1c0] sm:$0xff]
  %v1106 = vld [vmem:[%s1048 + $0x1c8] sm:$0xff]
  %v1107 = vld [vmem:[%s1048 + $0x1d0] sm:$0xff]
  %v1108 = vld [vmem:[%s1048 + $0x1d8] sm:$0xff]
  %v1109 = vld [vmem:[%s1048 + $0x1e0] sm:$0xff]
  %v1110 = vld [vmem:[%s1048 + $0x1e8] sm:$0xff]
  %v1111 = vld [vmem:[%s1048 + $0x1f0] sm:$0xff]
  %v1112 = vld [vmem:[%s1048 + $0x1f8] sm:$0xff]
  %v1113 = vld [vmem:[%s1048 + $0x200] sm:$0xff]
  %v1114 = vld [vmem:[%s1048 + $0x208] sm:$0xff]
  %v1115 = vld [vmem:[%s1048 + $0x210] sm:$0xff]
  %v1116 = vld [vmem:[%s1048 + $0x218] sm:$0xff]
  %v1117 = vld [vmem:[%s1048 + $0x220] sm:$0xff]
  %v1118 = vld [vmem:[%s1048 + $0x228] sm:$0xff]
  %v1119 = vld [vmem:[%s1048 + $0x230] sm:$0xff]
  %v1120 = vld [vmem:[%s1048 + $0x238] sm:$0xff]
  %v1121 = vld [vmem:[%s1048 + $0x240] sm:$0xff]
  %v1122 = vld [vmem:[%s1048 + $0x248] sm:$0xff]
  %v1123 = vld [vmem:[%s1048 + $0x250] sm:$0xff]
  %v1124 = vld [vmem:[%s1048 + $0x258] sm:$0xff]
  %v1125 = vld [vmem:[%s1048 + $0x260] sm:$0xff]
  %v1126 = vld [vmem:[%s1048 + $0x268] sm:$0xff]
  %v1127 = vld [vmem:[%s1048 + $0x270] sm:$0xff]
  %v1128 = vld [vmem:[%s1048 + $0x278] sm:$0xff]
  %v1129 = vld [vmem:[%s1048 + $0x280] sm:$0xff]
  %v1130 = vld [vmem:[%s1048 + $0x288] sm:$0xff]
  %v1131 = vld [vmem:[%s1048 + $0x290] sm:$0xff]
  %v1132 = vld [vmem:[%s1048 + $0x298] sm:$0xff]
  %v1133 = vld [vmem:[%s1048 + $0x2a0] sm:$0xff]
  %v1134 = vld [vmem:[%s1048 + $0x2a8] sm:$0xff]
  %v1135 = vld [vmem:[%s1048 + $0x2b0] sm:$0xff]
  %v1136 = vld [vmem:[%s1048 + $0x2b8] sm:$0xff]
  %v1137 = vld [vmem:[%s1048 + $0x2c0] sm:$0xff]
  %v1138 = vld [vmem:[%s1048 + $0x2c8] sm:$0xff]
  %v1139 = vld [vmem:[%s1048 + $0x2d0] sm:$0xff]
  %v1140 = vld [vmem:[%s1048 + $0x2d8] sm:$0xff]
  %v1141 = vld [vmem:[%s1048 + $0x2e0] sm:$0xff]
  %v1142 = vld [vmem:[%s1048 + $0x2e8] sm:$0xff]
  %v1143 = vld [vmem:[%s1048 + $0x2f0] sm:$0xff]
  %v1144 = vld [vmem:[%s1048 + $0x2f8] sm:$0xff]
  %1145 = vmatprep.subr.mxu0 %v1050
  %1146 = vmatpush1.msra.mxu0 %v1049
  %1147 = vmatprep.subr.mxu0 %v1053
  %1148 = vmatpush1.msra.mxu0 %v1052
  %1149 = vmatprep.subr.mxu0 %v1056
  %1150 = vmatpush1.msra.mxu0 %v1055
  %1151 = vmatprep.subr.mxu0 %v1059
  %1152 = vmatpush1.msra.mxu0 %v1058
  %1153 = vmatprep.subr.mxu0 %v1062
  %1154 = vmatpush1.msra.mxu0 %v1061
  %1155 = vmatprep.subr.mxu0 %v1065
  %1156 = vmatpush1.msra.mxu0 %v1064
  %1157 = vmatprep.subr.mxu0 %v1068
  %1158 = vmatpush1.msra.mxu0 %v1067
  %1159 = vmatprep.subr.mxu0 %v1071
  %1160 = vmatpush1.msra.mxu0 %v1070
  %1161 = vmatprep.subr.mxu0 %v1074
  %1162 = vmatpush1.msra.mxu0 %v1073
  %1163 = vmatprep.subr.mxu0 %v1077
  %1164 = vmatpush1.msra.mxu0 %v1076
  %1165 = vmatprep.subr.mxu0 %v1080
  %1166 = vmatpush1.msra.mxu0 %v1079
  %1167 = vmatprep.subr.mxu0 %v1083
  %1168 = vmatpush1.msra.mxu0 %v1082
  %1169 = vmatprep.subr.mxu0 %v1086
  %1170 = vmatpush1.msra.mxu0 %v1085
  %1171 = vmatprep.subr.mxu0 %v1089
  %1172 = vmatpush1.msra.mxu0 %v1088
  %1173 = vmatprep.subr.mxu0 %v1092
  %1174 = vmatpush1.msra.mxu0 %v1091
  %1175 = vmatprep.subr.mxu0 %v1095
  %1176 = vmatpush1.msra.mxu0 %v1094
  %1177 = vmatprep.subr.mxu0 %v1098
  %1178 = vmatpush1.msra.mxu0 %v1097
  %1179 = vmatprep.subr.mxu0 %v1101
  %1180 = vmatpush1.msra.mxu0 %v1100
  %1181 = vmatprep.subr.mxu0 %v1104
  %1182 = vmatpush1.msra.mxu0 %v1103
  %1183 = vmatprep.subr.mxu0 %v1107
  %1184 = vmatpush1.msra.mxu0 %v1106
  %1185 = vmatprep.subr.mxu0 %v1110
  %1186 = vmatpush1.msra.mxu0 %v1109
  %1187 = vmatprep.subr.mxu0 %v1113
  %1188 = vmatpush1.msra.mxu0 %v1112
  %1189 = vmatprep.subr.mxu0 %v1116
  %1190 = vmatpush1.msra.mxu0 %v1115
  %1191 = vmatprep.subr.mxu0 %v1119
  %1192 = vmatpush1.msra.mxu0 %v1118
  %1193 = vmatprep.subr.mxu0 %v1122
  %1194 = vmatpush1.msra.mxu0 %v1121
  %1195 = vmatprep.subr.mxu0 %v1125
  %1196 = vmatpush1.msra.mxu0 %v1124
  %1197 = vmatprep.subr.mxu0 %v1128
  %1198 = vmatpush1.msra.mxu0 %v1127
  %1199 = vmatprep.subr.mxu0 %v1131
  %1200 = vmatpush1.msra.mxu0 %v1130
  %1201 = vmatprep.subr.mxu0 %v1134
  %1202 = vmatpush1.msra.mxu0 %v1133
  %1203 = vmatprep.subr.mxu0 %v1137
  %1204 = vmatpush1.msra.mxu0 %v1136
  %1205 = vmatprep.subr.mxu0 %v1140
  %1206 = vmatpush1.msra.mxu0 %v1139
  %1207 = vmatprep.subr.mxu0 %v1143
  %1208 = vmatpush1.msra.mxu0 %v1142
  %1209 = vmatprep.mubr.f32.mxu0 %v51
  %1210 = vmatmul.mubr.f32.gmra.mrb[0].mxu0 %v50
  %v1211 = vpop.f32.mrb[0].mxu0
  %v1212 = vadd.f32 0.0, %v1211
  %v1213 = vpop.f32.mrb[0].mxu0
  %v1214 = vadd.f32 0.0, %v1213
  %1215 = vdwg.mxu0
  %1216 = vmatprep.subr.mxu0 0.0
  %1217 = vmatpush1.msra.mxu0 %v1051
  %1218 = vmatprep.subr.mxu0 0.0
  %1219 = vmatpush1.msra.mxu0 %v1054
  %1220 = vmatprep.subr.mxu0 0.0
  %1221 = vmatpush1.msra.mxu0 %v1057
  %1222 = vmatprep.subr.mxu0 0.0
  %1223 = vmatpush1.msra.mxu0 %v1060
  %1224 = vmatprep.subr.mxu0 0.0
  %1225 = vmatpush1.msra.mxu0 %v1063
  %1226 = vmatprep.subr.mxu0 0.0
  %1227 = vmatpush1.msra.mxu0 %v1066
  %1228 = vmatprep.subr.mxu0 0.0
  %1229 = vmatpush1.msra.mxu0 %v1069
  %1230 = vmatprep.subr.mxu0 0.0
  %1231 = vmatpush1.msra.mxu0 %v1072
  %1232 = vmatprep.subr.mxu0 0.0
  %1233 = vmatpush1.msra.mxu0 %v1075
  %1234 = vmatprep.subr.mxu0 0.0
  %1235 = vmatpush1.msra.mxu0 %v1078
  %1236 = vmatprep.subr.mxu0 0.0
  %1237 = vmatpush1.msra.mxu0 %v1081
  %1238 = vmatprep.subr.mxu0 0.0
  %1239 = vmatpush1.msra.mxu0 %v1084
  %1240 = vmatprep.subr.mxu0 0.0
  %1241 = vmatpush1.msra.mxu0 %v1087
  %1242 = vmatprep.subr.mxu0 0.0
  %1243 = vmatpush1.msra.mxu0 %v1090
  %1244 = vmatprep.subr.mxu0 0.0
  %1245 = vmatpush1.msra.mxu0 %v1093
  %1246 = vmatprep.subr.mxu0 0.0
  %1247 = vmatpush1.msra.mxu0 %v1096
  %1248 = vmatprep.subr.mxu0 0.0
  %1249 = vmatpush1.msra.mxu0 %v1099
  %1250 = vmatprep.subr.mxu0 0.0
  %1251 = vmatpush1.msra.mxu0 %v1102
  %1252 = vmatprep.subr.mxu0 0.0
  %1253 = vmatpush1.msra.mxu0 %v1105
  %1254 = vmatprep.subr.mxu0 0.0
  %1255 = vmatpush1.msra.mxu0 %v1108
  %1256 = vmatprep.subr.mxu0 0.0
  %1257 = vmatpush1.msra.mxu0 %v1111
  %1258 = vmatprep.subr.mxu0 0.0
  %1259 = vmatpush1.msra.mxu0 %v1114
  %1260 = vmatprep.subr.mxu0 0.0
  %1261 = vmatpush1.msra.mxu0 %v1117
  %1262 = vmatprep.subr.mxu0 0.0
  %1263 = vmatpush1.msra.mxu0 %v1120
  %1264 = vmatprep.subr.mxu0 0.0
  %1265 = vmatpush1.msra.mxu0 %v1123
  %1266 = vmatprep.subr.mxu0 0.0
  %1267 = vmatpush1.msra.mxu0 %v1126
  %1268 = vmatprep.subr.mxu0 0.0
  %1269 = vmatpush1.msra.mxu0 %v1129
  %1270 = vmatprep.subr.mxu0 0.0
  %1271 = vmatpush1.msra.mxu0 %v1132
  %1272 = vmatprep.subr.mxu0 0.0
  %1273 = vmatpush1.msra.mxu0 %v1135
  %1274 = vmatprep.subr.mxu0 0.0
  %1275 = vmatpush1.msra.mxu0 %v1138
  %1276 = vmatprep.subr.mxu0 0.0
  %1277 = vmatpush1.msra.mxu0 %v1141
  %1278 = vmatprep.subr.mxu0 0.0
  %1279 = vmatpush1.msra.mxu0 %v1144
  %1280 = vmatprep.mubr.f32.mxu0 %v51
  %1281 = vmatmul.mubr.f32.gmra.mrb[0].mxu0 %v50
  %v1282 = vpop.f32.mrb[0].mxu0
  %v1283 = vadd.f32 0.0, %v1282
  %v1284 = vpop.f32.mrb[0].mxu0
  %1285 = vdwg.mxu0
  %s1286 = scalar_lea.vmem %s2, 128
  %v1287 = vld [vmem:[%s1286] sm:$0xff]
  %v1288 = vld [vmem:[%s1286 + $0x8] sm:$0xff]
  %v1289 = vld [vmem:[%s1286 + $0x10] sm:$0xff]
  %v1290 = vld [vmem:[%s1286 + $0x18] sm:$0xff]
  %v1291 = vld [vmem:[%s1286 + $0x20] sm:$0xff]
  %v1292 = vld [vmem:[%s1286 + $0x28] sm:$0xff]
  %v1293 = vld [vmem:[%s1286 + $0x30] sm:$0xff]
  %v1294 = vld [vmem:[%s1286 + $0x38] sm:$0xff]
  %v1296 = vsel %vm544, %v1287, 0
  %v1299 = vsel %vm544, %v1288, 0
  %v1302 = vsel %vm544, %v1289, 0
  %v1305 = vsel %vm544, %v1290, 0
  %v1308 = vsel %vm544, %v1291, 0
  %v1311 = vsel %vm544, %v1292, 0
  %v1314 = vsel %vm544, %v1293, 0
  %v1317 = vsel %vm544, %v1294, 0
  %v1320 = vsel %vm569, %v1212, 0
  %v1323 = vsel %vm569, %v1214, 0
  %v1326 = vsel %vm569, %v1283, 0
  %1328 = vmatprep.subr.mxu0 %v1323
  %1329 = vmatpush1.msra.mxu0 %v1320
  %1330 = vmatprep.subr.mxu0 0.0
  %1331 = vmatpush1.msra.mxu0 0.0
  %1332 = vmatprep.subr.mxu0 0.0
  %1333 = vmatpush1.msra.mxu0 0.0
  %1334 = vmatprep.subr.mxu0 0.0
  %1335 = vmatpush1.msra.mxu0 0.0
  %1336 = vmatprep.subr.mxu0 0.0
  %1337 = vmatpush1.msra.mxu0 0.0
  %1338 = vmatprep.subr.mxu0 0.0
  %1339 = vmatpush1.msra.mxu0 0.0
  %1340 = vmatprep.subr.mxu0 0.0
  %1341 = vmatpush1.msra.mxu0 0.0
  %1342 = vmatprep.subr.mxu0 0.0
  %1343 = vmatpush1.msra.mxu0 0.0
  %1344 = vmatprep.subr.mxu0 0.0
  %1345 = vmatpush1.msra.mxu0 0.0
  %1346 = vmatprep.subr.mxu0 0.0
  %1347 = vmatpush1.msra.mxu0 0.0
  %1348 = vmatprep.subr.mxu0 0.0
  %1349 = vmatpush1.msra.mxu0 0.0
  %1350 = vmatprep.subr.mxu0 0.0
  %1351 = vmatpush1.msra.mxu0 0.0
  %1352 = vmatprep.subr.mxu0 0.0
  %1353 = vmatpush1.msra.mxu0 0.0
  %1354 = vmatprep.subr.mxu0 0.0
  %1355 = vmatpush1.msra.mxu0 0.0
  %1356 = vmatprep.subr.mxu0 0.0
  %1357 = vmatpush1.msra.mxu0 0.0
  %1358 = vmatprep.subr.mxu0 0.0
  %1359 = vmatpush1.msra.mxu0 0.0
  %1360 = vmatprep.subr.mxu0 0.0
  %1361 = vmatpush1.msra.mxu0 0.0
  %1362 = vmatprep.subr.mxu0 0.0
  %1363 = vmatpush1.msra.mxu0 0.0
  %1364 = vmatprep.subr.mxu0 0.0
  %1365 = vmatpush1.msra.mxu0 0.0
  %1366 = vmatprep.subr.mxu0 0.0
  %1367 = vmatpush1.msra.mxu0 0.0
  %1368 = vmatprep.subr.mxu0 0.0
  %1369 = vmatpush1.msra.mxu0 0.0
  %1370 = vmatprep.subr.mxu0 0.0
  %1371 = vmatpush1.msra.mxu0 0.0
  %1372 = vmatprep.subr.mxu0 0.0
  %1373 = vmatpush1.msra.mxu0 0.0
  %1374 = vmatprep.subr.mxu0 0.0
  %1375 = vmatpush1.msra.mxu0 0.0
  %1376 = vmatprep.subr.mxu0 0.0
  %1377 = vmatpush1.msra.mxu0 0.0
  %1378 = vmatprep.subr.mxu0 0.0
  %1379 = vmatpush1.msra.mxu0 0.0
  %1380 = vmatprep.subr.mxu0 0.0
  %1381 = vmatpush1.msra.mxu0 0.0
  %1382 = vmatprep.subr.mxu0 0.0
  %1383 = vmatpush1.msra.mxu0 0.0
  %1384 = vmatprep.subr.mxu0 0.0
  %1385 = vmatpush1.msra.mxu0 0.0
  %1386 = vmatprep.subr.mxu0 0.0
  %1387 = vmatpush1.msra.mxu0 0.0
  %1388 = vmatprep.subr.mxu0 0.0
  %1389 = vmatpush1.msra.mxu0 0.0
  %1390 = vmatprep.subr.mxu0 0.0
  %1391 = vmatpush1.msra.mxu0 0.0
  %1392 = vmatprep.mubr.f32.mxu0 0.0
  %1393 = vmatmul.mubr.f32.gmra.mrb[0].mxu0 %v1296
  %v1394 = vpop.f32.mrb[0].mxu0
  %v1395 = vadd.f32 0.0, %v1394
  %v1396 = vpop.f32.mrb[0].mxu0
  %v1397 = vadd.f32 0.0, %v1396
  %1398 = vmatprep.mubr.f32.mxu0 0.0
  %1399 = vmatmul.mubr.f32.gmra.mrb[0].mxu0 %v1299
  %v1400 = vpop.f32.mrb[0].mxu0
  %v1401 = vadd.f32 0.0, %v1400
  %v1402 = vpop.f32.mrb[0].mxu0
  %v1403 = vadd.f32 0.0, %v1402
  %1404 = vmatprep.mubr.f32.mxu0 0.0
  %1405 = vmatmul.mubr.f32.gmra.mrb[0].mxu0 %v1302
  %v1406 = vpop.f32.mrb[0].mxu0
  %v1407 = vadd.f32 0.0, %v1406
  %v1408 = vpop.f32.mrb[0].mxu0
  %v1409 = vadd.f32 0.0, %v1408
  %1410 = vmatprep.mubr.f32.mxu0 0.0
  %1411 = vmatmul.mubr.f32.gmra.mrb[0].mxu0 %v1305
  %v1412 = vpop.f32.mrb[0].mxu0
  %v1413 = vadd.f32 0.0, %v1412
  %v1414 = vpop.f32.mrb[0].mxu0
  %v1415 = vadd.f32 0.0, %v1414
  %1416 = vmatprep.mubr.f32.mxu0 0.0
  %1417 = vmatmul.mubr.f32.gmra.mrb[0].mxu0 %v1308
  %v1418 = vpop.f32.mrb[0].mxu0
  %v1419 = vadd.f32 0.0, %v1418
  %v1420 = vpop.f32.mrb[0].mxu0
  %v1421 = vadd.f32 0.0, %v1420
  %1422 = vmatprep.mubr.f32.mxu0 0.0
  %1423 = vmatmul.mubr.f32.gmra.mrb[0].mxu0 %v1311
  %v1424 = vpop.f32.mrb[0].mxu0
  %v1425 = vadd.f32 0.0, %v1424
  %v1426 = vpop.f32.mrb[0].mxu0
  %v1427 = vadd.f32 0.0, %v1426
  %1428 = vmatprep.mubr.f32.mxu0 0.0
  %1429 = vmatmul.mubr.f32.gmra.mrb[0].mxu0 %v1314
  %v1430 = vpop.f32.mrb[0].mxu0
  %v1431 = vadd.f32 0.0, %v1430
  %v1432 = vpop.f32.mrb[0].mxu0
  %v1433 = vadd.f32 0.0, %v1432
  %1434 = vmatprep.mubr.f32.mxu0 0.0
  %1435 = vmatmul.mubr.f32.gmra.mrb[0].mxu0 %v1317
  %v1436 = vpop.f32.mrb[0].mxu0
  %v1437 = vadd.f32 0.0, %v1436
  %v1438 = vpop.f32.mrb[0].mxu0
  %v1439 = vadd.f32 0.0, %v1438
  %1440 = vdwg.mxu0
  %1441 = vmatprep.subr.mxu0 0.0
  %1442 = vmatpush1.msra.mxu0 %v1326
  %1443 = vmatprep.subr.mxu0 0.0
  %1444 = vmatpush1.msra.mxu0 0.0
  %1445 = vmatprep.subr.mxu0 0.0
  %1446 = vmatpush1.msra.mxu0 0.0
  %1447 = vmatprep.subr.mxu0 0.0
  %1448 = vmatpush1.msra.mxu0 0.0
  %1449 = vmatprep.subr.mxu0 0.0
  %1450 = vmatpush1.msra.mxu0 0.0
  %1451 = vmatprep.subr.mxu0 0.0
  %1452 = vmatpush1.msra.mxu0 0.0
  %1453 = vmatprep.subr.mxu0 0.0
  %1454 = vmatpush1.msra.mxu0 0.0
  %1455 = vmatprep.subr.mxu0 0.0
  %1456 = vmatpush1.msra.mxu0 0.0
  %1457 = vmatprep.subr.mxu0 0.0
  %1458 = vmatpush1.msra.mxu0 0.0
  %1459 = vmatprep.subr.mxu0 0.0
  %1460 = vmatpush1.msra.mxu0 0.0
  %1461 = vmatprep.subr.mxu0 0.0
  %1462 = vmatpush1.msra.mxu0 0.0
  %1463 = vmatprep.subr.mxu0 0.0
  %1464 = vmatpush1.msra.mxu0 0.0
  %1465 = vmatprep.subr.mxu0 0.0
  %1466 = vmatpush1.msra.mxu0 0.0
  %1467 = vmatprep.subr.mxu0 0.0
  %1468 = vmatpush1.msra.mxu0 0.0
  %1469 = vmatprep.subr.mxu0 0.0
  %1470 = vmatpush1.msra.mxu0 0.0
  %1471 = vmatprep.subr.mxu0 0.0
  %1472 = vmatpush1.msra.mxu0 0.0
  %1473 = vmatprep.subr.mxu0 0.0
  %1474 = vmatpush1.msra.mxu0 0.0
  %1475 = vmatprep.subr.mxu0 0.0
  %1476 = vmatpush1.msra.mxu0 0.0
  %1477 = vmatprep.subr.mxu0 0.0
  %1478 = vmatpush1.msra.mxu0 0.0
  %1479 = vmatprep.subr.mxu0 0.0
  %1480 = vmatpush1.msra.mxu0 0.0
  %1481 = vmatprep.subr.mxu0 0.0
  %1482 = vmatpush1.msra.mxu0 0.0
  %1483 = vmatprep.subr.mxu0 0.0
  %1484 = vmatpush1.msra.mxu0 0.0
  %1485 = vmatprep.subr.mxu0 0.0
  %1486 = vmatpush1.msra.mxu0 0.0
  %1487 = vmatprep.subr.mxu0 0.0
  %1488 = vmatpush1.msra.mxu0 0.0
  %1489 = vmatprep.subr.mxu0 0.0
  %1490 = vmatpush1.msra.mxu0 0.0
  %1491 = vmatprep.subr.mxu0 0.0
  %1492 = vmatpush1.msra.mxu0 0.0
  %1493 = vmatprep.subr.mxu0 0.0
  %1494 = vmatpush1.msra.mxu0 0.0
  %1495 = vmatprep.subr.mxu0 0.0
  %1496 = vmatpush1.msra.mxu0 0.0
  %1497 = vmatprep.subr.mxu0 0.0
  %1498 = vmatpush1.msra.mxu0 0.0
  %1499 = vmatprep.subr.mxu0 0.0
  %1500 = vmatpush1.msra.mxu0 0.0
  %1501 = vmatprep.subr.mxu0 0.0
  %1502 = vmatpush1.msra.mxu0 0.0
  %1503 = vmatprep.subr.mxu0 0.0
  %1504 = vmatpush1.msra.mxu0 0.0
  %1505 = vmatprep.mubr.f32.mxu0 0.0
  %1506 = vmatmul.mubr.f32.gmra.mrb[0].mxu0 %v1296
  %v1507 = vpop.f32.mrb[0].mxu0
  %v1508 = vadd.f32 0.0, %v1507
  %v1509 = vpop.f32.mrb[0].mxu0
  %1510 = vmatprep.mubr.f32.mxu0 0.0
  %1511 = vmatmul.mubr.f32.gmra.mrb[0].mxu0 %v1299
  %v1512 = vpop.f32.mrb[0].mxu0
  %v1513 = vadd.f32 0.0, %v1512
  %v1514 = vpop.f32.mrb[0].mxu0
  %1515 = vmatprep.mubr.f32.mxu0 0.0
  %1516 = vmatmul.mubr.f32.gmra.mrb[0].mxu0 %v1302
  %v1517 = vpop.f32.mrb[0].mxu0
  %v1518 = vadd.f32 0.0, %v1517
  %v1519 = vpop.f32.mrb[0].mxu0
  %1520 = vmatprep.mubr.f32.mxu0 0.0
  %1521 = vmatmul.mubr.f32.gmra.mrb[0].mxu0 %v1305
  %v1522 = vpop.f32.mrb[0].mxu0
  %v1523 = vadd.f32 0.0, %v1522
  %v1524 = vpop.f32.mrb[0].mxu0
  %1525 = vmatprep.mubr.f32.mxu0 0.0
  %1526 = vmatmul.mubr.f32.gmra.mrb[0].mxu0 %v1308
  %v1527 = vpop.f32.mrb[0].mxu0
  %v1528 = vadd.f32 0.0, %v1527
  %v1529 = vpop.f32.mrb[0].mxu0
  %1530 = vmatprep.mubr.f32.mxu0 0.0
  %1531 = vmatmul.mubr.f32.gmra.mrb[0].mxu0 %v1311
  %v1532 = vpop.f32.mrb[0].mxu0
  %v1533 = vadd.f32 0.0, %v1532
  %v1534 = vpop.f32.mrb[0].mxu0
  %1535 = vmatprep.mubr.f32.mxu0 0.0
  %1536 = vmatmul.mubr.f32.gmra.mrb[0].mxu0 %v1314
  %v1537 = vpop.f32.mrb[0].mxu0
  %v1538 = vadd.f32 0.0, %v1537
  %v1539 = vpop.f32.mrb[0].mxu0
  %1540 = vmatprep.mubr.f32.mxu0 0.0
  %1541 = vmatmul.mubr.f32.gmra.mrb[0].mxu0 %v1317
  %v1542 = vpop.f32.mrb[0].mxu0
  %v1543 = vadd.f32 0.0, %v1542
  %v1544 = vpop.f32.mrb[0].mxu0
  %1545 = vdwg.mxu0
  %v1546 = vadd.f32 %v897, %v1395
  %v1547 = vadd.f32 %v899, %v1397
  %v1548 = vadd.f32 %v1010, %v1508
  %v1549 = vadd.f32 %v903, %v1401
  %v1550 = vadd.f32 %v905, %v1403
  %v1551 = vadd.f32 %v1015, %v1513
  %v1552 = vadd.f32 %v909, %v1407
  %v1553 = vadd.f32 %v911, %v1409
  %v1554 = vadd.f32 %v1020, %v1518
  %v1555 = vadd.f32 %v915, %v1413
  %v1556 = vadd.f32 %v917, %v1415
  %v1557 = vadd.f32 %v1025, %v1523
  %v1558 = vadd.f32 %v921, %v1419
  %v1559 = vadd.f32 %v923, %v1421
  %v1560 = vadd.f32 %v1030, %v1528
  %v1561 = vadd.f32 %v927, %v1425
  %v1562 = vadd.f32 %v929, %v1427
  %v1563 = vadd.f32 %v1035, %v1533
  %v1564 = vadd.f32 %v933, %v1431
  %v1565 = vadd.f32 %v935, %v1433
  %v1566 = vadd.f32 %v1040, %v1538
  %v1567 = vadd.f32 %v939, %v1437
  %v1568 = vadd.f32 %v941, %v1439
  %v1569 = vadd.f32 %v1045, %v1543
  %s1570 = scalar_lea.vmem %s1, 2304
  %v1571 = vld [vmem:[%s1570] sm:$0xff]
  %v1572 = vld [vmem:[%s1570 + $0x8] sm:$0xff]
  %v1573 = vld [vmem:[%s1570 + $0x10] sm:$0xff]
  %v1574 = vld [vmem:[%s1570 + $0x18] sm:$0xff]
  %v1575 = vld [vmem:[%s1570 + $0x20] sm:$0xff]
  %v1576 = vld [vmem:[%s1570 + $0x28] sm:$0xff]
  %v1577 = vld [vmem:[%s1570 + $0x30] sm:$0xff]
  %v1578 = vld [vmem:[%s1570 + $0x38] sm:$0xff]
  %v1579 = vld [vmem:[%s1570 + $0x40] sm:$0xff]
  %v1580 = vld [vmem:[%s1570 + $0x48] sm:$0xff]
  %v1581 = vld [vmem:[%s1570 + $0x50] sm:$0xff]
  %v1582 = vld [vmem:[%s1570 + $0x58] sm:$0xff]
  %v1583 = vld [vmem:[%s1570 + $0x60] sm:$0xff]
  %v1584 = vld [vmem:[%s1570 + $0x68] sm:$0xff]
  %v1585 = vld [vmem:[%s1570 + $0x70] sm:$0xff]
  %v1586 = vld [vmem:[%s1570 + $0x78] sm:$0xff]
  %v1587 = vld [vmem:[%s1570 + $0x80] sm:$0xff]
  %v1588 = vld [vmem:[%s1570 + $0x88] sm:$0xff]
  %v1589 = vld [vmem:[%s1570 + $0x90] sm:$0xff]
  %v1590 = vld [vmem:[%s1570 + $0x98] sm:$0xff]
  %v1591 = vld [vmem:[%s1570 + $0xa0] sm:$0xff]
  %v1592 = vld [vmem:[%s1570 + $0xa8] sm:$0xff]
  %v1593 = vld [vmem:[%s1570 + $0xb0] sm:$0xff]
  %v1594 = vld [vmem:[%s1570 + $0xb8] sm:$0xff]
  %v1595 = vld [vmem:[%s1570 + $0xc0] sm:$0xff]
  %v1596 = vld [vmem:[%s1570 + $0xc8] sm:$0xff]
  %v1597 = vld [vmem:[%s1570 + $0xd0] sm:$0xff]
  %v1598 = vld [vmem:[%s1570 + $0xd8] sm:$0xff]
  %v1599 = vld [vmem:[%s1570 + $0xe0] sm:$0xff]
  %v1600 = vld [vmem:[%s1570 + $0xe8] sm:$0xff]
  %v1601 = vld [vmem:[%s1570 + $0xf0] sm:$0xff]
  %v1602 = vld [vmem:[%s1570 + $0xf8] sm:$0xff]
  %v1603 = vld [vmem:[%s1570 + $0x100] sm:$0xff]
  %v1604 = vld [vmem:[%s1570 + $0x108] sm:$0xff]
  %v1605 = vld [vmem:[%s1570 + $0x110] sm:$0xff]
  %v1606 = vld [vmem:[%s1570 + $0x118] sm:$0xff]
  %v1607 = vld [vmem:[%s1570 + $0x120] sm:$0xff]
  %v1608 = vld [vmem:[%s1570 + $0x128] sm:$0xff]
  %v1609 = vld [vmem:[%s1570 + $0x130] sm:$0xff]
  %v1610 = vld [vmem:[%s1570 + $0x138] sm:$0xff]
  %v1611 = vld [vmem:[%s1570 + $0x140] sm:$0xff]
  %v1612 = vld [vmem:[%s1570 + $0x148] sm:$0xff]
  %v1613 = vld [vmem:[%s1570 + $0x150] sm:$0xff]
  %v1614 = vld [vmem:[%s1570 + $0x158] sm:$0xff]
  %v1615 = vld [vmem:[%s1570 + $0x160] sm:$0xff]
  %v1616 = vld [vmem:[%s1570 + $0x168] sm:$0xff]
  %v1617 = vld [vmem:[%s1570 + $0x170] sm:$0xff]
  %v1618 = vld [vmem:[%s1570 + $0x178] sm:$0xff]
  %v1619 = vld [vmem:[%s1570 + $0x180] sm:$0xff]
  %v1620 = vld [vmem:[%s1570 + $0x188] sm:$0xff]
  %v1621 = vld [vmem:[%s1570 + $0x190] sm:$0xff]
  %v1622 = vld [vmem:[%s1570 + $0x198] sm:$0xff]
  %v1623 = vld [vmem:[%s1570 + $0x1a0] sm:$0xff]
  %v1624 = vld [vmem:[%s1570 + $0x1a8] sm:$0xff]
  %v1625 = vld [vmem:[%s1570 + $0x1b0] sm:$0xff]
  %v1626 = vld [vmem:[%s1570 + $0x1b8] sm:$0xff]
  %v1627 = vld [vmem:[%s1570 + $0x1c0] sm:$0xff]
  %v1628 = vld [vmem:[%s1570 + $0x1c8] sm:$0xff]
  %v1629 = vld [vmem:[%s1570 + $0x1d0] sm:$0xff]
  %v1630 = vld [vmem:[%s1570 + $0x1d8] sm:$0xff]
  %v1631 = vld [vmem:[%s1570 + $0x1e0] sm:$0xff]
  %v1632 = vld [vmem:[%s1570 + $0x1e8] sm:$0xff]
  %v1633 = vld [vmem:[%s1570 + $0x1f0] sm:$0xff]
  %v1634 = vld [vmem:[%s1570 + $0x1f8] sm:$0xff]
  %v1635 = vld [vmem:[%s1570 + $0x200] sm:$0xff]
  %v1636 = vld [vmem:[%s1570 + $0x208] sm:$0xff]
  %v1637 = vld [vmem:[%s1570 + $0x210] sm:$0xff]
  %v1638 = vld [vmem:[%s1570 + $0x218] sm:$0xff]
  %v1639 = vld [vmem:[%s1570 + $0x220] sm:$0xff]
  %v1640 = vld [vmem:[%s1570 + $0x228] sm:$0xff]
  %v1641 = vld [vmem:[%s1570 + $0x230] sm:$0xff]
  %v1642 = vld [vmem:[%s1570 + $0x238] sm:$0xff]
  %v1643 = vld [vmem:[%s1570 + $0x240] sm:$0xff]
  %v1644 = vld [vmem:[%s1570 + $0x248] sm:$0xff]
  %v1645 = vld [vmem:[%s1570 + $0x250] sm:$0xff]
  %v1646 = vld [vmem:[%s1570 + $0x258] sm:$0xff]
  %v1647 = vld [vmem:[%s1570 + $0x260] sm:$0xff]
  %v1648 = vld [vmem:[%s1570 + $0x268] sm:$0xff]
  %v1649 = vld [vmem:[%s1570 + $0x270] sm:$0xff]
  %v1650 = vld [vmem:[%s1570 + $0x278] sm:$0xff]
  %v1651 = vld [vmem:[%s1570 + $0x280] sm:$0xff]
  %v1652 = vld [vmem:[%s1570 + $0x288] sm:$0xff]
  %v1653 = vld [vmem:[%s1570 + $0x290] sm:$0xff]
  %v1654 = vld [vmem:[%s1570 + $0x298] sm:$0xff]
  %v1655 = vld [vmem:[%s1570 + $0x2a0] sm:$0xff]
  %v1656 = vld [vmem:[%s1570 + $0x2a8] sm:$0xff]
  %v1657 = vld [vmem:[%s1570 + $0x2b0] sm:$0xff]
  %v1658 = vld [vmem:[%s1570 + $0x2b8] sm:$0xff]
  %v1659 = vld [vmem:[%s1570 + $0x2c0] sm:$0xff]
  %v1660 = vld [vmem:[%s1570 + $0x2c8] sm:$0xff]
  %v1661 = vld [vmem:[%s1570 + $0x2d0] sm:$0xff]
  %v1662 = vld [vmem:[%s1570 + $0x2d8] sm:$0xff]
  %v1663 = vld [vmem:[%s1570 + $0x2e0] sm:$0xff]
  %v1664 = vld [vmem:[%s1570 + $0x2e8] sm:$0xff]
  %v1665 = vld [vmem:[%s1570 + $0x2f0] sm:$0xff]
  %v1666 = vld [vmem:[%s1570 + $0x2f8] sm:$0xff]
  %1667 = vmatprep.subr.mxu0 %v1572
  %1668 = vmatpush1.msra.mxu0 %v1571
  %1669 = vmatprep.subr.mxu0 %v1575
  %1670 = vmatpush1.msra.mxu0 %v1574
  %1671 = vmatprep.subr.mxu0 %v1578
  %1672 = vmatpush1.msra.mxu0 %v1577
  %1673 = vmatprep.subr.mxu0 %v1581
  %1674 = vmatpush1.msra.mxu0 %v1580
  %1675 = vmatprep.subr.mxu0 %v1584
  %1676 = vmatpush1.msra.mxu0 %v1583
  %1677 = vmatprep.subr.mxu0 %v1587
  %1678 = vmatpush1.msra.mxu0 %v1586
  %1679 = vmatprep.subr.mxu0 %v1590
  %1680 = vmatpush1.msra.mxu0 %v1589
  %1681 = vmatprep.subr.mxu0 %v1593
  %1682 = vmatpush1.msra.mxu0 %v1592
  %1683 = vmatprep.subr.mxu0 %v1596
  %1684 = vmatpush1.msra.mxu0 %v1595
  %1685 = vmatprep.subr.mxu0 %v1599
  %1686 = vmatpush1.msra.mxu0 %v1598
  %1687 = vmatprep.subr.mxu0 %v1602
  %1688 = vmatpush1.msra.mxu0 %v1601
  %1689 = vmatprep.subr.mxu0 %v1605
  %1690 = vmatpush1.msra.mxu0 %v1604
  %1691 = vmatprep.subr.mxu0 %v1608
  %1692 = vmatpush1.msra.mxu0 %v1607
  %1693 = vmatprep.subr.mxu0 %v1611
  %1694 = vmatpush1.msra.mxu0 %v1610
  %1695 = vmatprep.subr.mxu0 %v1614
  %1696 = vmatpush1.msra.mxu0 %v1613
  %1697 = vmatprep.subr.mxu0 %v1617
  %1698 = vmatpush1.msra.mxu0 %v1616
  %1699 = vmatprep.subr.mxu0 %v1620
  %1700 = vmatpush1.msra.mxu0 %v1619
  %1701 = vmatprep.subr.mxu0 %v1623
  %1702 = vmatpush1.msra.mxu0 %v1622
  %1703 = vmatprep.subr.mxu0 %v1626
  %1704 = vmatpush1.msra.mxu0 %v1625
  %1705 = vmatprep.subr.mxu0 %v1629
  %1706 = vmatpush1.msra.mxu0 %v1628
  %1707 = vmatprep.subr.mxu0 %v1632
  %1708 = vmatpush1.msra.mxu0 %v1631
  %1709 = vmatprep.subr.mxu0 %v1635
  %1710 = vmatpush1.msra.mxu0 %v1634
  %1711 = vmatprep.subr.mxu0 %v1638
  %1712 = vmatpush1.msra.mxu0 %v1637
  %1713 = vmatprep.subr.mxu0 %v1641
  %1714 = vmatpush1.msra.mxu0 %v1640
  %1715 = vmatprep.subr.mxu0 %v1644
  %1716 = vmatpush1.msra.mxu0 %v1643
  %1717 = vmatprep.subr.mxu0 %v1647
  %1718 = vmatpush1.msra.mxu0 %v1646
  %1719 = vmatprep.subr.mxu0 %v1650
  %1720 = vmatpush1.msra.mxu0 %v1649
  %1721 = vmatprep.subr.mxu0 %v1653
  %1722 = vmatpush1.msra.mxu0 %v1652
  %1723 = vmatprep.subr.mxu0 %v1656
  %1724 = vmatpush1.msra.mxu0 %v1655
  %1725 = vmatprep.subr.mxu0 %v1659
  %1726 = vmatpush1.msra.mxu0 %v1658
  %1727 = vmatprep.subr.mxu0 %v1662
  %1728 = vmatpush1.msra.mxu0 %v1661
  %1729 = vmatprep.subr.mxu0 %v1665
  %1730 = vmatpush1.msra.mxu0 %v1664
  %1731 = vmatprep.mubr.f32.mxu0 %v51
  %1732 = vmatmul.mubr.f32.gmra.mrb[0].mxu0 %v50
  %v1733 = vpop.f32.mrb[0].mxu0
  %v1734 = vadd.f32 0.0, %v1733
  %v1735 = vpop.f32.mrb[0].mxu0
  %v1736 = vadd.f32 0.0, %v1735
  %1737 = vdwg.mxu0
  %1738 = vmatprep.subr.mxu0 0.0
  %1739 = vmatpush1.msra.mxu0 %v1573
  %1740 = vmatprep.subr.mxu0 0.0
  %1741 = vmatpush1.msra.mxu0 %v1576
  %1742 = vmatprep.subr.mxu0 0.0
  %1743 = vmatpush1.msra.mxu0 %v1579
  %1744 = vmatprep.subr.mxu0 0.0
  %1745 = vmatpush1.msra.mxu0 %v1582
  %1746 = vmatprep.subr.mxu0 0.0
  %1747 = vmatpush1.msra.mxu0 %v1585
  %1748 = vmatprep.subr.mxu0 0.0
  %1749 = vmatpush1.msra.mxu0 %v1588
  %1750 = vmatprep.subr.mxu0 0.0
  %1751 = vmatpush1.msra.mxu0 %v1591
  %1752 = vmatprep.subr.mxu0 0.0
  %1753 = vmatpush1.msra.mxu0 %v1594
  %1754 = vmatprep.subr.mxu0 0.0
  %1755 = vmatpush1.msra.mxu0 %v1597
  %1756 = vmatprep.subr.mxu0 0.0
  %1757 = vmatpush1.msra.mxu0 %v1600
  %1758 = vmatprep.subr.mxu0 0.0
  %1759 = vmatpush1.msra.mxu0 %v1603
  %1760 = vmatprep.subr.mxu0 0.0
  %1761 = vmatpush1.msra.mxu0 %v1606
  %1762 = vmatprep.subr.mxu0 0.0
  %1763 = vmatpush1.msra.mxu0 %v1609
  %1764 = vmatprep.subr.mxu0 0.0
  %1765 = vmatpush1.msra.mxu0 %v1612
  %1766 = vmatprep.subr.mxu0 0.0
  %1767 = vmatpush1.msra.mxu0 %v1615
  %1768 = vmatprep.subr.mxu0 0.0
  %1769 = vmatpush1.msra.mxu0 %v1618
  %1770 = vmatprep.subr.mxu0 0.0
  %1771 = vmatpush1.msra.mxu0 %v1621
  %1772 = vmatprep.subr.mxu0 0.0
  %1773 = vmatpush1.msra.mxu0 %v1624
  %1774 = vmatprep.subr.mxu0 0.0
  %1775 = vmatpush1.msra.mxu0 %v1627
  %1776 = vmatprep.subr.mxu0 0.0
  %1777 = vmatpush1.msra.mxu0 %v1630
  %1778 = vmatprep.subr.mxu0 0.0
  %1779 = vmatpush1.msra.mxu0 %v1633
  %1780 = vmatprep.subr.mxu0 0.0
  %1781 = vmatpush1.msra.mxu0 %v1636
  %1782 = vmatprep.subr.mxu0 0.0
  %1783 = vmatpush1.msra.mxu0 %v1639
  %1784 = vmatprep.subr.mxu0 0.0
  %1785 = vmatpush1.msra.mxu0 %v1642
  %1786 = vmatprep.subr.mxu0 0.0
  %1787 = vmatpush1.msra.mxu0 %v1645
  %1788 = vmatprep.subr.mxu0 0.0
  %1789 = vmatpush1.msra.mxu0 %v1648
  %1790 = vmatprep.subr.mxu0 0.0
  %1791 = vmatpush1.msra.mxu0 %v1651
  %1792 = vmatprep.subr.mxu0 0.0
  %1793 = vmatpush1.msra.mxu0 %v1654
  %1794 = vmatprep.subr.mxu0 0.0
  %1795 = vmatpush1.msra.mxu0 %v1657
  %1796 = vmatprep.subr.mxu0 0.0
  %1797 = vmatpush1.msra.mxu0 %v1660
  %1798 = vmatprep.subr.mxu0 0.0
  %1799 = vmatpush1.msra.mxu0 %v1663
  %1800 = vmatprep.subr.mxu0 0.0
  %1801 = vmatpush1.msra.mxu0 %v1666
  %1802 = vmatprep.mubr.f32.mxu0 %v51
  %1803 = vmatmul.mubr.f32.gmra.mrb[0].mxu0 %v50
  %v1804 = vpop.f32.mrb[0].mxu0
  %v1805 = vadd.f32 0.0, %v1804
  %v1806 = vpop.f32.mrb[0].mxu0
  %1807 = vdwg.mxu0
  %s1808 = scalar_lea.vmem %s2, 192
  %v1809 = vld [vmem:[%s1808] sm:$0xff]
  %v1810 = vld [vmem:[%s1808 + $0x8] sm:$0xff]
  %v1811 = vld [vmem:[%s1808 + $0x10] sm:$0xff]
  %v1812 = vld [vmem:[%s1808 + $0x18] sm:$0xff]
  %v1813 = vld [vmem:[%s1808 + $0x20] sm:$0xff]
  %v1814 = vld [vmem:[%s1808 + $0x28] sm:$0xff]
  %v1815 = vld [vmem:[%s1808 + $0x30] sm:$0xff]
  %v1816 = vld [vmem:[%s1808 + $0x38] sm:$0xff]
  %v1818 = vsel %vm544, %v1809, 0
  %v1821 = vsel %vm544, %v1810, 0
  %v1824 = vsel %vm544, %v1811, 0
  %v1827 = vsel %vm544, %v1812, 0
  %v1830 = vsel %vm544, %v1813, 0
  %v1833 = vsel %vm544, %v1814, 0
  %v1836 = vsel %vm544, %v1815, 0
  %v1839 = vsel %vm544, %v1816, 0
  %v1842 = vsel %vm569, %v1734, 0
  %v1845 = vsel %vm569, %v1736, 0
  %v1848 = vsel %vm569, %v1805, 0
  %1850 = vmatprep.subr.mxu0 %v1845
  %1851 = vmatpush1.msra.mxu0 %v1842
  %1852 = vmatprep.subr.mxu0 0.0
  %1853 = vmatpush1.msra.mxu0 0.0
  %1854 = vmatprep.subr.mxu0 0.0
  %1855 = vmatpush1.msra.mxu0 0.0
  %1856 = vmatprep.subr.mxu0 0.0
  %1857 = vmatpush1.msra.mxu0 0.0
  %1858 = vmatprep.subr.mxu0 0.0
  %1859 = vmatpush1.msra.mxu0 0.0
  %1860 = vmatprep.subr.mxu0 0.0
  %1861 = vmatpush1.msra.mxu0 0.0
  %1862 = vmatprep.subr.mxu0 0.0
  %1863 = vmatpush1.msra.mxu0 0.0
  %1864 = vmatprep.subr.mxu0 0.0
  %1865 = vmatpush1.msra.mxu0 0.0
  %1866 = vmatprep.subr.mxu0 0.0
  %1867 = vmatpush1.msra.mxu0 0.0
  %1868 = vmatprep.subr.mxu0 0.0
  %1869 = vmatpush1.msra.mxu0 0.0
  %1870 = vmatprep.subr.mxu0 0.0
  %1871 = vmatpush1.msra.mxu0 0.0
  %1872 = vmatprep.subr.mxu0 0.0
  %1873 = vmatpush1.msra.mxu0 0.0
  %1874 = vmatprep.subr.mxu0 0.0
  %1875 = vmatpush1.msra.mxu0 0.0
  %1876 = vmatprep.subr.mxu0 0.0
  %1877 = vmatpush1.msra.mxu0 0.0
  %1878 = vmatprep.subr.mxu0 0.0
  %1879 = vmatpush1.msra.mxu0 0.0
  %1880 = vmatprep.subr.mxu0 0.0
  %1881 = vmatpush1.msra.mxu0 0.0
  %1882 = vmatprep.subr.mxu0 0.0
  %1883 = vmatpush1.msra.mxu0 0.0
  %1884 = vmatprep.subr.mxu0 0.0
  %1885 = vmatpush1.msra.mxu0 0.0
  %1886 = vmatprep.subr.mxu0 0.0
  %1887 = vmatpush1.msra.mxu0 0.0
  %1888 = vmatprep.subr.mxu0 0.0
  %1889 = vmatpush1.msra.mxu0 0.0
  %1890 = vmatprep.subr.mxu0 0.0
  %1891 = vmatpush1.msra.mxu0 0.0
  %1892 = vmatprep.subr.mxu0 0.0
  %1893 = vmatpush1.msra.mxu0 0.0
  %1894 = vmatprep.subr.mxu0 0.0
  %1895 = vmatpush1.msra.mxu0 0.0
  %1896 = vmatprep.subr.mxu0 0.0
  %1897 = vmatpush1.msra.mxu0 0.0
  %1898 = vmatprep.subr.mxu0 0.0
  %1899 = vmatpush1.msra.mxu0 0.0
  %1900 = vmatprep.subr.mxu0 0.0
  %1901 = vmatpush1.msra.mxu0 0.0
  %1902 = vmatprep.subr.mxu0 0.0
  %1903 = vmatpush1.msra.mxu0 0.0
  %1904 = vmatprep.subr.mxu0 0.0
  %1905 = vmatpush1.msra.mxu0 0.0
  %1906 = vmatprep.subr.mxu0 0.0
  %1907 = vmatpush1.msra.mxu0 0.0
  %1908 = vmatprep.subr.mxu0 0.0
  %1909 = vmatpush1.msra.mxu0 0.0
  %1910 = vmatprep.subr.mxu0 0.0
  %1911 = vmatpush1.msra.mxu0 0.0
  %1912 = vmatprep.subr.mxu0 0.0
  %1913 = vmatpush1.msra.mxu0 0.0
  %1914 = vmatprep.mubr.f32.mxu0 0.0
  %1915 = vmatmul.mubr.f32.gmra.mrb[0].mxu0 %v1818
  %v1916 = vpop.f32.mrb[0].mxu0
  %v1917 = vadd.f32 0.0, %v1916
  %v1918 = vpop.f32.mrb[0].mxu0
  %v1919 = vadd.f32 0.0, %v1918
  %1920 = vmatprep.mubr.f32.mxu0 0.0
  %1921 = vmatmul.mubr.f32.gmra.mrb[0].mxu0 %v1821
  %v1922 = vpop.f32.mrb[0].mxu0
  %v1923 = vadd.f32 0.0, %v1922
  %v1924 = vpop.f32.mrb[0].mxu0
  %v1925 = vadd.f32 0.0, %v1924
  %1926 = vmatprep.mubr.f32.mxu0 0.0
  %1927 = vmatmul.mubr.f32.gmra.mrb[0].mxu0 %v1824
  %v1928 = vpop.f32.mrb[0].mxu0
  %v1929 = vadd.f32 0.0, %v1928
  %v1930 = vpop.f32.mrb[0].mxu0
  %v1931 = vadd.f32 0.0, %v1930
  %1932 = vmatprep.mubr.f32.mxu0 0.0
  %1933 = vmatmul.mubr.f32.gmra.mrb[0].mxu0 %v1827
  %v1934 = vpop.f32.mrb[0].mxu0
  %v1935 = vadd.f32 0.0, %v1934
  %v1936 = vpop.f32.mrb[0].mxu0
  %v1937 = vadd.f32 0.0, %v1936
  %1938 = vmatprep.mubr.f32.mxu0 0.0
  %1939 = vmatmul.mubr.f32.gmra.mrb[0].mxu0 %v1830
  %v1940 = vpop.f32.mrb[0].mxu0
  %v1941 = vadd.f32 0.0, %v1940
  %v1942 = vpop.f32.mrb[0].mxu0
  %v1943 = vadd.f32 0.0, %v1942
  %1944 = vmatprep.mubr.f32.mxu0 0.0
  %1945 = vmatmul.mubr.f32.gmra.mrb[0].mxu0 %v1833
  %v1946 = vpop.f32.mrb[0].mxu0
  %v1947 = vadd.f32 0.0, %v1946
  %v1948 = vpop.f32.mrb[0].mxu0
  %v1949 = vadd.f32 0.0, %v1948
  %1950 = vmatprep.mubr.f32.mxu0 0.0
  %1951 = vmatmul.mubr.f32.gmra.mrb[0].mxu0 %v1836
  %v1952 = vpop.f32.mrb[0].mxu0
  %v1953 = vadd.f32 0.0, %v1952
  %v1954 = vpop.f32.mrb[0].mxu0
  %v1955 = vadd.f32 0.0, %v1954
  %1956 = vmatprep.mubr.f32.mxu0 0.0
  %1957 = vmatmul.mubr.f32.gmra.mrb[0].mxu0 %v1839
  %v1958 = vpop.f32.mrb[0].mxu0
  %v1959 = vadd.f32 0.0, %v1958
  %v1960 = vpop.f32.mrb[0].mxu0
  %v1961 = vadd.f32 0.0, %v1960
  %1962 = vdwg.mxu0
  %1963 = vmatprep.subr.mxu0 0.0
  %1964 = vmatpush1.msra.mxu0 %v1848
  %1965 = vmatprep.subr.mxu0 0.0
  %1966 = vmatpush1.msra.mxu0 0.0
  %1967 = vmatprep.subr.mxu0 0.0
  %1968 = vmatpush1.msra.mxu0 0.0
  %1969 = vmatprep.subr.mxu0 0.0
  %1970 = vmatpush1.msra.mxu0 0.0
  %1971 = vmatprep.subr.mxu0 0.0
  %1972 = vmatpush1.msra.mxu0 0.0
  %1973 = vmatprep.subr.mxu0 0.0
  %1974 = vmatpush1.msra.mxu0 0.0
  %1975 = vmatprep.subr.mxu0 0.0
  %1976 = vmatpush1.msra.mxu0 0.0
  %1977 = vmatprep.subr.mxu0 0.0
  %1978 = vmatpush1.msra.mxu0 0.0
  %1979 = vmatprep.subr.mxu0 0.0
  %1980 = vmatpush1.msra.mxu0 0.0
  %1981 = vmatprep.subr.mxu0 0.0
  %1982 = vmatpush1.msra.mxu0 0.0
  %1983 = vmatprep.subr.mxu0 0.0
  %1984 = vmatpush1.msra.mxu0 0.0
  %1985 = vmatprep.subr.mxu0 0.0
  %1986 = vmatpush1.msra.mxu0 0.0
  %1987 = vmatprep.subr.mxu0 0.0
  %1988 = vmatpush1.msra.mxu0 0.0
  %1989 = vmatprep.subr.mxu0 0.0
  %1990 = vmatpush1.msra.mxu0 0.0
  %1991 = vmatprep.subr.mxu0 0.0
  %1992 = vmatpush1.msra.mxu0 0.0
  %1993 = vmatprep.subr.mxu0 0.0
  %1994 = vmatpush1.msra.mxu0 0.0
  %1995 = vmatprep.subr.mxu0 0.0
  %1996 = vmatpush1.msra.mxu0 0.0
  %1997 = vmatprep.subr.mxu0 0.0
  %1998 = vmatpush1.msra.mxu0 0.0
  %1999 = vmatprep.subr.mxu0 0.0
  %2000 = vmatpush1.msra.mxu0 0.0
  %2001 = vmatprep.subr.mxu0 0.0
  %2002 = vmatpush1.msra.mxu0 0.0
  %2003 = vmatprep.subr.mxu0 0.0
  %2004 = vmatpush1.msra.mxu0 0.0
  %2005 = vmatprep.subr.mxu0 0.0
  %2006 = vmatpush1.msra.mxu0 0.0
  %2007 = vmatprep.subr.mxu0 0.0
  %2008 = vmatpush1.msra.mxu0 0.0
  %2009 = vmatprep.subr.mxu0 0.0
  %2010 = vmatpush1.msra.mxu0 0.0
  %2011 = vmatprep.subr.mxu0 0.0
  %2012 = vmatpush1.msra.mxu0 0.0
  %2013 = vmatprep.subr.mxu0 0.0
  %2014 = vmatpush1.msra.mxu0 0.0
  %2015 = vmatprep.subr.mxu0 0.0
  %2016 = vmatpush1.msra.mxu0 0.0
  %2017 = vmatprep.subr.mxu0 0.0
  %2018 = vmatpush1.msra.mxu0 0.0
  %2019 = vmatprep.subr.mxu0 0.0
  %2020 = vmatpush1.msra.mxu0 0.0
  %2021 = vmatprep.subr.mxu0 0.0
  %2022 = vmatpush1.msra.mxu0 0.0
  %2023 = vmatprep.subr.mxu0 0.0
  %2024 = vmatpush1.msra.mxu0 0.0
  %2025 = vmatprep.subr.mxu0 0.0
  %2026 = vmatpush1.msra.mxu0 0.0
  %2027 = vmatprep.mubr.f32.mxu0 0.0
  %2028 = vmatmul.mubr.f32.gmra.mrb[0].mxu0 %v1818
  %v2029 = vpop.f32.mrb[0].mxu0
  %v2030 = vadd.f32 0.0, %v2029
  %v2031 = vpop.f32.mrb[0].mxu0
  %2032 = vmatprep.mubr.f32.mxu0 0.0
  %2033 = vmatmul.mubr.f32.gmra.mrb[0].mxu0 %v1821
  %v2034 = vpop.f32.mrb[0].mxu0
  %v2035 = vadd.f32 0.0, %v2034
  %v2036 = vpop.f32.mrb[0].mxu0
  %2037 = vmatprep.mubr.f32.mxu0 0.0
  %2038 = vmatmul.mubr.f32.gmra.mrb[0].mxu0 %v1824
  %v2039 = vpop.f32.mrb[0].mxu0
  %v2040 = vadd.f32 0.0, %v2039
  %v2041 = vpop.f32.mrb[0].mxu0
  %2042 = vmatprep.mubr.f32.mxu0 0.0
  %2043 = vmatmul.mubr.f32.gmra.mrb[0].mxu0 %v1827
  %v2044 = vpop.f32.mrb[0].mxu0
  %v2045 = vadd.f32 0.0, %v2044
  %v2046 = vpop.f32.mrb[0].mxu0
  %2047 = vmatprep.mubr.f32.mxu0 0.0
  %2048 = vmatmul.mubr.f32.gmra.mrb[0].mxu0 %v1830
  %v2049 = vpop.f32.mrb[0].mxu0
  %v2050 = vadd.f32 0.0, %v2049
  %v2051 = vpop.f32.mrb[0].mxu0
  %2052 = vmatprep.mubr.f32.mxu0 0.0
  %2053 = vmatmul.mubr.f32.gmra.mrb[0].mxu0 %v1833
  %v2054 = vpop.f32.mrb[0].mxu0
  %v2055 = vadd.f32 0.0, %v2054
  %v2056 = vpop.f32.mrb[0].mxu0
  %2057 = vmatprep.mubr.f32.mxu0 0.0
  %2058 = vmatmul.mubr.f32.gmra.mrb[0].mxu0 %v1836
  %v2059 = vpop.f32.mrb[0].mxu0
  %v2060 = vadd.f32 0.0, %v2059
  %v2061 = vpop.f32.mrb[0].mxu0
  %2062 = vmatprep.mubr.f32.mxu0 0.0
  %2063 = vmatmul.mubr.f32.gmra.mrb[0].mxu0 %v1839
  %v2064 = vpop.f32.mrb[0].mxu0
  %v2065 = vadd.f32 0.0, %v2064
  %v2066 = vpop.f32.mrb[0].mxu0
  %2067 = vdwg.mxu0
  %v2068 = vadd.f32 %v1546, %v1917
  %v2069 = vadd.f32 %v1547, %v1919
  %v2070 = vadd.f32 %v1548, %v2030
  %v2071 = vadd.f32 %v1549, %v1923
  %v2072 = vadd.f32 %v1550, %v1925
  %v2073 = vadd.f32 %v1551, %v2035
  %v2074 = vadd.f32 %v1552, %v1929
  %v2075 = vadd.f32 %v1553, %v1931
  %v2076 = vadd.f32 %v1554, %v2040
  %v2077 = vadd.f32 %v1555, %v1935
  %v2078 = vadd.f32 %v1556, %v1937
  %v2079 = vadd.f32 %v1557, %v2045
  %v2080 = vadd.f32 %v1558, %v1941
  %v2081 = vadd.f32 %v1559, %v1943
  %v2082 = vadd.f32 %v1560, %v2050
  %v2083 = vadd.f32 %v1561, %v1947
  %v2084 = vadd.f32 %v1562, %v1949
  %v2085 = vadd.f32 %v1563, %v2055
  %v2086 = vadd.f32 %v1564, %v1953
  %v2087 = vadd.f32 %v1565, %v1955
  %v2088 = vadd.f32 %v1566, %v2060
  %v2089 = vadd.f32 %v1567, %v1959
  %v2090 = vadd.f32 %v1568, %v1961
  %v2091 = vadd.f32 %v1569, %v2065
  %v2092 = vld [vmem:[%s3] sm:$0xff]
  %v2093 = vld [vmem:[%s3 + $0x8] sm:$0xff]
  %v2094 = vld [vmem:[%s3 + $0x10] sm:$0xff]
  %v2095 = vld [vmem:[%s3 + $0x18] sm:$0xff]
  %v2096 = vld [vmem:[%s3 + $0x20] sm:$0xff]
  %v2097 = vld [vmem:[%s3 + $0x28] sm:$0xff]
  %v2098 = vld [vmem:[%s3 + $0x30] sm:$0xff]
  %v2099 = vld [vmem:[%s3 + $0x38] sm:$0xff]
  %2101 = vset.pattern.permute.xlu0 0
  %2102 = vperm.xlu0 %2101, %v2092
  %v2103 = vpop.permute.xlu0 %2102
  %2106 = vset.pattern.permute.xlu0 0
  %2107 = vperm.xlu0 %2106, %v2093
  %v2108 = vpop.permute.xlu0 %2107
  %2111 = vset.pattern.permute.xlu0 0
  %2112 = vperm.xlu0 %2111, %v2094
  %v2113 = vpop.permute.xlu0 %2112
  %2116 = vset.pattern.permute.xlu0 0
  %2117 = vperm.xlu0 %2116, %v2095
  %v2118 = vpop.permute.xlu0 %2117
  %2121 = vset.pattern.permute.xlu0 0
  %2122 = vperm.xlu0 %2121, %v2096
  %v2123 = vpop.permute.xlu0 %2122
  %2126 = vset.pattern.permute.xlu0 0
  %2127 = vperm.xlu0 %2126, %v2097
  %v2128 = vpop.permute.xlu0 %2127
  %2131 = vset.pattern.permute.xlu0 0
  %2132 = vperm.xlu0 %2131, %v2098
  %v2133 = vpop.permute.xlu0 %2132
  %2136 = vset.pattern.permute.xlu0 0
  %2137 = vperm.xlu0 %2136, %v2099
  %v2138 = vpop.permute.xlu0 %2137
  %v2140 = vadd.f32 %v2068, %v2103
  %v2141 = vadd.f32 %v2069, %v2103
  %v2142 = vadd.f32 %v2070, %v2103
  %v2143 = vadd.f32 %v2071, %v2108
  %v2144 = vadd.f32 %v2072, %v2108
  %v2145 = vadd.f32 %v2073, %v2108
  %v2146 = vadd.f32 %v2074, %v2113
  %v2147 = vadd.f32 %v2075, %v2113
  %v2148 = vadd.f32 %v2076, %v2113
  %v2149 = vadd.f32 %v2077, %v2118
  %v2150 = vadd.f32 %v2078, %v2118
  %v2151 = vadd.f32 %v2079, %v2118
  %v2152 = vadd.f32 %v2080, %v2123
  %v2153 = vadd.f32 %v2081, %v2123
  %v2154 = vadd.f32 %v2082, %v2123
  %v2155 = vadd.f32 %v2083, %v2128
  %v2156 = vadd.f32 %v2084, %v2128
  %v2157 = vadd.f32 %v2085, %v2128
  %v2158 = vadd.f32 %v2086, %v2133
  %v2159 = vadd.f32 %v2087, %v2133
  %v2160 = vadd.f32 %v2088, %v2133
  %v2161 = vadd.f32 %v2089, %v2138
  %v2162 = vadd.f32 %v2090, %v2138
  %v2163 = vadd.f32 %v2091, %v2138
  %v2164 = vxor.u32 %v2140, 2147483648
  %v2165 = vxor.u32 %v2141, 2147483648
  %v2166 = vxor.u32 %v2142, 2147483648
  %v2167 = vxor.u32 %v2143, 2147483648
  %v2168 = vxor.u32 %v2144, 2147483648
  %v2169 = vxor.u32 %v2145, 2147483648
  %v2170 = vxor.u32 %v2146, 2147483648
  %v2171 = vxor.u32 %v2147, 2147483648
  %v2172 = vxor.u32 %v2148, 2147483648
  %v2173 = vxor.u32 %v2149, 2147483648
  %v2174 = vxor.u32 %v2150, 2147483648
  %v2175 = vxor.u32 %v2151, 2147483648
  %v2176 = vxor.u32 %v2152, 2147483648
  %v2177 = vxor.u32 %v2153, 2147483648
  %v2178 = vxor.u32 %v2154, 2147483648
  %v2179 = vxor.u32 %v2155, 2147483648
  %v2180 = vxor.u32 %v2156, 2147483648
  %v2181 = vxor.u32 %v2157, 2147483648
  %v2182 = vxor.u32 %v2158, 2147483648
  %v2183 = vxor.u32 %v2159, 2147483648
  %v2184 = vxor.u32 %v2160, 2147483648
  %v2185 = vxor.u32 %v2161, 2147483648
  %v2186 = vxor.u32 %v2162, 2147483648
  %v2187 = vxor.u32 %v2163, 2147483648
  %v2188 = vmul.f32 %v2164, 1.442695
  %v2189 = vpow.pop %v2188
  %v2190 = vmul.f32 %v2165, 1.442695
  %v2191 = vpow.pop %v2190
  %v2192 = vmul.f32 %v2166, 1.442695
  %v2193 = vpow.pop %v2192
  %v2194 = vmul.f32 %v2167, 1.442695
  %v2195 = vpow.pop %v2194
  %v2196 = vmul.f32 %v2168, 1.442695
  %v2197 = vpow.pop %v2196
  %v2198 = vmul.f32 %v2169, 1.442695
  %v2199 = vpow.pop %v2198
  %v2200 = vmul.f32 %v2170, 1.442695
  %v2201 = vpow.pop %v2200
  %v2202 = vmul.f32 %v2171, 1.442695
  %v2203 = vpow.pop %v2202
  %v2204 = vmul.f32 %v2172, 1.442695
  %v2205 = vpow.pop %v2204
  %v2206 = vmul.f32 %v2173, 1.442695
  %v2207 = vpow.pop %v2206
  %v2208 = vmul.f32 %v2174, 1.442695
  %v2209 = vpow.pop %v2208
  %v2210 = vmul.f32 %v2175, 1.442695
  %v2211 = vpow.pop %v2210
  %v2212 = vmul.f32 %v2176, 1.442695
  %v2213 = vpow.pop %v2212
  %v2214 = vmul.f32 %v2177, 1.442695
  %v2215 = vpow.pop %v2214
  %v2216 = vmul.f32 %v2178, 1.442695
  %v2217 = vpow.pop %v2216
  %v2218 = vmul.f32 %v2179, 1.442695
  %v2219 = vpow.pop %v2218
  %v2220 = vmul.f32 %v2180, 1.442695
  %v2221 = vpow.pop %v2220
  %v2222 = vmul.f32 %v2181, 1.442695
  %v2223 = vpow.pop %v2222
  %v2224 = vmul.f32 %v2182, 1.442695
  %v2225 = vpow.pop %v2224
  %v2226 = vmul.f32 %v2183, 1.442695
  %v2227 = vpow.pop %v2226
  %v2228 = vmul.f32 %v2184, 1.442695
  %v2229 = vpow.pop %v2228
  %v2230 = vmul.f32 %v2185, 1.442695
  %v2231 = vpow.pop %v2230
  %v2232 = vmul.f32 %v2186, 1.442695
  %v2233 = vpow.pop %v2232
  %v2234 = vmul.f32 %v2187, 1.442695
  %v2235 = vpow.pop %v2234
  %v2236 = vadd.f32 %v2189, 1.0
  %v2237 = vadd.f32 %v2191, 1.0
  %v2238 = vadd.f32 %v2193, 1.0
  %v2239 = vadd.f32 %v2195, 1.0
  %v2240 = vadd.f32 %v2197, 1.0
  %v2241 = vadd.f32 %v2199, 1.0
  %v2242 = vadd.f32 %v2201, 1.0
  %v2243 = vadd.f32 %v2203, 1.0
  %v2244 = vadd.f32 %v2205, 1.0
  %v2245 = vadd.f32 %v2207, 1.0
  %v2246 = vadd.f32 %v2209, 1.0
  %v2247 = vadd.f32 %v2211, 1.0
  %v2248 = vadd.f32 %v2213, 1.0
  %v2249 = vadd.f32 %v2215, 1.0
  %v2250 = vadd.f32 %v2217, 1.0
  %v2251 = vadd.f32 %v2219, 1.0
  %v2252 = vadd.f32 %v2221, 1.0
  %v2253 = vadd.f32 %v2223, 1.0
  %v2254 = vadd.f32 %v2225, 1.0
  %v2255 = vadd.f32 %v2227, 1.0
  %v2256 = vadd.f32 %v2229, 1.0
  %v2257 = vadd.f32 %v2231, 1.0
  %v2258 = vadd.f32 %v2233, 1.0
  %v2259 = vadd.f32 %v2235, 1.0
  %v2260 = vrcp.pop %v2236
  %v2261 = vmul.f32 1.0, %v2260
  %v2262 = vrcp.pop %v2237
  %v2263 = vmul.f32 1.0, %v2262
  %v2264 = vrcp.pop %v2238
  %v2265 = vmul.f32 1.0, %v2264
  %v2266 = vrcp.pop %v2239
  %v2267 = vmul.f32 1.0, %v2266
  %v2268 = vrcp.pop %v2240
  %v2269 = vmul.f32 1.0, %v2268
  %v2270 = vrcp.pop %v2241
  %v2271 = vmul.f32 1.0, %v2270
  %v2272 = vrcp.pop %v2242
  %v2273 = vmul.f32 1.0, %v2272
  %v2274 = vrcp.pop %v2243
  %v2275 = vmul.f32 1.0, %v2274
  %v2276 = vrcp.pop %v2244
  %v2277 = vmul.f32 1.0, %v2276
  %v2278 = vrcp.pop %v2245
  %v2279 = vmul.f32 1.0, %v2278
  %v2280 = vrcp.pop %v2246
  %v2281 = vmul.f32 1.0, %v2280
  %v2282 = vrcp.pop %v2247
  %v2283 = vmul.f32 1.0, %v2282
  %v2284 = vrcp.pop %v2248
  %v2285 = vmul.f32 1.0, %v2284
  %v2286 = vrcp.pop %v2249
  %v2287 = vmul.f32 1.0, %v2286
  %v2288 = vrcp.pop %v2250
  %v2289 = vmul.f32 1.0, %v2288
  %v2290 = vrcp.pop %v2251
  %v2291 = vmul.f32 1.0, %v2290
  %v2292 = vrcp.pop %v2252
  %v2293 = vmul.f32 1.0, %v2292
  %v2294 = vrcp.pop %v2253
  %v2295 = vmul.f32 1.0, %v2294
  %v2296 = vrcp.pop %v2254
  %v2297 = vmul.f32 1.0, %v2296
  %v2298 = vrcp.pop %v2255
  %v2299 = vmul.f32 1.0, %v2298
  %v2300 = vrcp.pop %v2256
  %v2301 = vmul.f32 1.0, %v2300
  %v2302 = vrcp.pop %v2257
  %v2303 = vmul.f32 1.0, %v2302
  %v2304 = vrcp.pop %v2258
  %v2305 = vmul.f32 1.0, %v2304
  %v2306 = vrcp.pop %v2259
  %v2307 = vmul.f32 1.0, %v2306
  %v2308 = vld [vmem:[%s4] sm:$0xff]
  %v2309 = vld [vmem:[%s4 + $0x8] sm:$0xff]
  %v2310 = vld [vmem:[%s4 + $0x10] sm:$0xff]
  %v2311 = vld [vmem:[%s4 + $0x18] sm:$0xff]
  %v2312 = vld [vmem:[%s4 + $0x20] sm:$0xff]
  %v2313 = vld [vmem:[%s4 + $0x28] sm:$0xff]
  %v2314 = vld [vmem:[%s4 + $0x30] sm:$0xff]
  %v2315 = vld [vmem:[%s4 + $0x38] sm:$0xff]
  %v2316 = vld [vmem:[%s4 + $0x40] sm:$0xff]
  %v2317 = vld [vmem:[%s4 + $0x48] sm:$0xff]
  %v2318 = vld [vmem:[%s4 + $0x50] sm:$0xff]
  %v2319 = vld [vmem:[%s4 + $0x58] sm:$0xff]
  %v2320 = vld [vmem:[%s4 + $0x60] sm:$0xff]
  %v2321 = vld [vmem:[%s4 + $0x68] sm:$0xff]
  %v2322 = vld [vmem:[%s4 + $0x70] sm:$0xff]
  %v2323 = vld [vmem:[%s4 + $0x78] sm:$0xff]
  %v2324 = vld [vmem:[%s4 + $0x80] sm:$0xff]
  %v2325 = vld [vmem:[%s4 + $0x88] sm:$0xff]
  %v2326 = vld [vmem:[%s4 + $0x90] sm:$0xff]
  %v2327 = vld [vmem:[%s4 + $0x98] sm:$0xff]
  %v2328 = vld [vmem:[%s4 + $0xa0] sm:$0xff]
  %v2329 = vld [vmem:[%s4 + $0xa8] sm:$0xff]
  %v2330 = vld [vmem:[%s4 + $0xb0] sm:$0xff]
  %v2331 = vld [vmem:[%s4 + $0xb8] sm:$0xff]
  %v2332 = vld [vmem:[%s4 + $0xc0] sm:$0xff]
  %v2333 = vld [vmem:[%s4 + $0xc8] sm:$0xff]
  %v2334 = vld [vmem:[%s4 + $0xd0] sm:$0xff]
  %v2335 = vld [vmem:[%s4 + $0xd8] sm:$0xff]
  %v2336 = vld [vmem:[%s4 + $0xe0] sm:$0xff]
  %v2337 = vld [vmem:[%s4 + $0xe8] sm:$0xff]
  %v2338 = vld [vmem:[%s4 + $0xf0] sm:$0xff]
  %v2339 = vld [vmem:[%s4 + $0xf8] sm:$0xff]
  %v2340 = vld [vmem:[%s4 + $0x100] sm:$0xff]
  %v2341 = vld [vmem:[%s4 + $0x108] sm:$0xff]
  %v2342 = vld [vmem:[%s4 + $0x110] sm:$0xff]
  %v2343 = vld [vmem:[%s4 + $0x118] sm:$0xff]
  %v2344 = vld [vmem:[%s4 + $0x120] sm:$0x1]
  %vm2345 = vcmask 269312
  %v2347 = vsel %vm2345, %v2265, 0
  %v2350 = vsel %vm2345, %v2271, 0
  %v2353 = vsel %vm2345, %v2277, 0
  %v2356 = vsel %vm2345, %v2283, 0
  %v2359 = vsel %vm2345, %v2289, 0
  %v2362 = vsel %vm2345, %v2295, 0
  %v2365 = vsel %vm2345, %v2301, 0
  %v2368 = vsel %vm2345, %v2307, 0
  %vm2370 = vcmask 1040384
  %v2372 = vsel %vm2370, %v2344, 0
  %2374 = vmatprep.subr.mxu0 0.0
  %2375 = vmatpush1.msra.mxu0 %v2308
  %2376 = vmatprep.subr.mxu0 0.0
  %2377 = vmatpush1.msra.mxu0 %v2309
  %2378 = vmatprep.subr.mxu0 0.0
  %2379 = vmatpush1.msra.mxu0 %v2310
  %2380 = vmatprep.subr.mxu0 0.0
  %2381 = vmatpush1.msra.mxu0 %v2311
  %2382 = vmatprep.subr.mxu0 0.0
  %2383 = vmatpush1.msra.mxu0 %v2312
  %2384 = vmatprep.subr.mxu0 0.0
  %2385 = vmatpush1.msra.mxu0 %v2313
  %2386 = vmatprep.subr.mxu0 0.0
  %2387 = vmatpush1.msra.mxu0 %v2314
  %2388 = vmatprep.subr.mxu0 0.0
  %2389 = vmatpush1.msra.mxu0 %v2315
  %2390 = vmatprep.subr.mxu0 0.0
  %2391 = vmatpush1.msra.mxu0 %v2316
  %2392 = vmatprep.subr.mxu0 0.0
  %2393 = vmatpush1.msra.mxu0 %v2317
  %2394 = vmatprep.subr.mxu0 0.0
  %2395 = vmatpush1.msra.mxu0 %v2318
  %2396 = vmatprep.subr.mxu0 0.0
  %2397 = vmatpush1.msra.mxu0 %v2319
  %2398 = vmatprep.subr.mxu0 0.0
  %2399 = vmatpush1.msra.mxu0 %v2320
  %2400 = vmatprep.subr.mxu0 0.0
  %2401 = vmatpush1.msra.mxu0 %v2321
  %2402 = vmatprep.subr.mxu0 0.0
  %2403 = vmatpush1.msra.mxu0 %v2322
  %2404 = vmatprep.subr.mxu0 0.0
  %2405 = vmatpush1.msra.mxu0 %v2323
  %2406 = vmatprep.subr.mxu0 0.0
  %2407 = vmatpush1.msra.mxu0 %v2324
  %2408 = vmatprep.subr.mxu0 0.0
  %2409 = vmatpush1.msra.mxu0 %v2325
  %2410 = vmatprep.subr.mxu0 0.0
  %2411 = vmatpush1.msra.mxu0 %v2326
  %2412 = vmatprep.subr.mxu0 0.0
  %2413 = vmatpush1.msra.mxu0 %v2327
  %2414 = vmatprep.subr.mxu0 0.0
  %2415 = vmatpush1.msra.mxu0 %v2328
  %2416 = vmatprep.subr.mxu0 0.0
  %2417 = vmatpush1.msra.mxu0 %v2329
  %2418 = vmatprep.subr.mxu0 0.0
  %2419 = vmatpush1.msra.mxu0 %v2330
  %2420 = vmatprep.subr.mxu0 0.0
  %2421 = vmatpush1.msra.mxu0 %v2331
  %2422 = vmatprep.subr.mxu0 0.0
  %2423 = vmatpush1.msra.mxu0 %v2332
  %2424 = vmatprep.subr.mxu0 0.0
  %2425 = vmatpush1.msra.mxu0 %v2333
  %2426 = vmatprep.subr.mxu0 0.0
  %2427 = vmatpush1.msra.mxu0 %v2334
  %2428 = vmatprep.subr.mxu0 0.0
  %2429 = vmatpush1.msra.mxu0 %v2335
  %2430 = vmatprep.subr.mxu0 0.0
  %2431 = vmatpush1.msra.mxu0 %v2336
  %2432 = vmatprep.subr.mxu0 0.0
  %2433 = vmatpush1.msra.mxu0 %v2337
  %2434 = vmatprep.subr.mxu0 0.0
  %2435 = vmatpush1.msra.mxu0 %v2338
  %2436 = vmatprep.subr.mxu0 0.0
  %2437 = vmatpush1.msra.mxu0 %v2339
  %2438 = vmatprep.mubr.f32.mxu0 %v2263
  %2439 = vmatmul.mubr.f32.gmra.mrb[0].mxu0 %v2261
  %v2440 = vpop.f32.mrb[0].mxu0
  %v2441 = vadd.f32 0.0, %v2440
  %v2442 = vpop.f32.mrb[0].mxu0
  %2443 = vmatprep.mubr.f32.mxu0 %v2269
  %2444 = vmatmul.mubr.f32.gmra.mrb[0].mxu0 %v2267
  %v2445 = vpop.f32.mrb[0].mxu0
  %v2446 = vadd.f32 0.0, %v2445
  %v2447 = vpop.f32.mrb[0].mxu0
  %2448 = vmatprep.mubr.f32.mxu0 %v2275
  %2449 = vmatmul.mubr.f32.gmra.mrb[0].mxu0 %v2273
  %v2450 = vpop.f32.mrb[0].mxu0
  %v2451 = vadd.f32 0.0, %v2450
  %v2452 = vpop.f32.mrb[0].mxu0
  %2453 = vmatprep.mubr.f32.mxu0 %v2281
  %2454 = vmatmul.mubr.f32.gmra.mrb[0].mxu0 %v2279
  %v2455 = vpop.f32.mrb[0].mxu0
  %v2456 = vadd.f32 0.0, %v2455
  %v2457 = vpop.f32.mrb[0].mxu0
  %2458 = vmatprep.mubr.f32.mxu0 %v2287
  %2459 = vmatmul.mubr.f32.gmra.mrb[0].mxu0 %v2285
  %v2460 = vpop.f32.mrb[0].mxu0
  %v2461 = vadd.f32 0.0, %v2460
  %v2462 = vpop.f32.mrb[0].mxu0
  %2463 = vmatprep.mubr.f32.mxu0 %v2293
  %2464 = vmatmul.mubr.f32.gmra.mrb[0].mxu0 %v2291
  %v2465 = vpop.f32.mrb[0].mxu0
  %v2466 = vadd.f32 0.0, %v2465
  %v2467 = vpop.f32.mrb[0].mxu0
  %2468 = vmatprep.mubr.f32.mxu0 %v2299
  %2469 = vmatmul.mubr.f32.gmra.mrb[0].mxu0 %v2297
  %v2470 = vpop.f32.mrb[0].mxu0
  %v2471 = vadd.f32 0.0, %v2470
  %v2472 = vpop.f32.mrb[0].mxu0
  %2473 = vmatprep.mubr.f32.mxu0 %v2305
  %2474 = vmatmul.mubr.f32.gmra.mrb[0].mxu0 %v2303
  %v2475 = vpop.f32.mrb[0].mxu0
  %v2476 = vadd.f32 0.0, %v2475
  %v2477 = vpop.f32.mrb[0].mxu0
  %2478 = vdwg.mxu0
  %2479 = vmatprep.subr.mxu0 0.0
  %2480 = vmatpush1.msra.mxu0 %v2340
  %2481 = vmatprep.subr.mxu0 0.0
  %2482 = vmatpush1.msra.mxu0 %v2341
  %2483 = vmatprep.subr.mxu0 0.0
  %2484 = vmatpush1.msra.mxu0 %v2342
  %2485 = vmatprep.subr.mxu0 0.0
  %2486 = vmatpush1.msra.mxu0 %v2343
  %2487 = vmatprep.subr.mxu0 0.0
  %2488 = vmatpush1.msra.mxu0 %v2372
  %2489 = vmatprep.subr.mxu0 0.0
  %2490 = vmatpush1.msra.mxu0 0.0
  %2491 = vmatprep.subr.mxu0 0.0
  %2492 = vmatpush1.msra.mxu0 0.0
  %2493 = vmatprep.subr.mxu0 0.0
  %2494 = vmatpush1.msra.mxu0 0.0
  %2495 = vmatprep.subr.mxu0 0.0
  %2496 = vmatpush1.msra.mxu0 0.0
  %2497 = vmatprep.subr.mxu0 0.0
  %2498 = vmatpush1.msra.mxu0 0.0
  %2499 = vmatprep.subr.mxu0 0.0
  %2500 = vmatpush1.msra.mxu0 0.0
  %2501 = vmatprep.subr.mxu0 0.0
  %2502 = vmatpush1.msra.mxu0 0.0
  %2503 = vmatprep.subr.mxu0 0.0
  %2504 = vmatpush1.msra.mxu0 0.0
  %2505 = vmatprep.subr.mxu0 0.0
  %2506 = vmatpush1.msra.mxu0 0.0
  %2507 = vmatprep.subr.mxu0 0.0
  %2508 = vmatpush1.msra.mxu0 0.0
  %2509 = vmatprep.subr.mxu0 0.0
  %2510 = vmatpush1.msra.mxu0 0.0
  %2511 = vmatprep.subr.mxu0 0.0
  %2512 = vmatpush1.msra.mxu0 0.0
  %2513 = vmatprep.subr.mxu0 0.0
  %2514 = vmatpush1.msra.mxu0 0.0
  %2515 = vmatprep.subr.mxu0 0.0
  %2516 = vmatpush1.msra.mxu0 0.0
  %2517 = vmatprep.subr.mxu0 0.0
  %2518 = vmatpush1.msra.mxu0 0.0
  %2519 = vmatprep.subr.mxu0 0.0
  %2520 = vmatpush1.msra.mxu0 0.0
  %2521 = vmatprep.subr.mxu0 0.0
  %2522 = vmatpush1.msra.mxu0 0.0
  %2523 = vmatprep.subr.mxu0 0.0
  %2524 = vmatpush1.msra.mxu0 0.0
  %2525 = vmatprep.subr.mxu0 0.0
  %2526 = vmatpush1.msra.mxu0 0.0
  %2527 = vmatprep.subr.mxu0 0.0
  %2528 = vmatpush1.msra.mxu0 0.0
  %2529 = vmatprep.subr.mxu0 0.0
  %2530 = vmatpush1.msra.mxu0 0.0
  %2531 = vmatprep.subr.mxu0 0.0
  %2532 = vmatpush1.msra.mxu0 0.0
  %2533 = vmatprep.subr.mxu0 0.0
  %2534 = vmatpush1.msra.mxu0 0.0
  %2535 = vmatprep.subr.mxu0 0.0
  %2536 = vmatpush1.msra.mxu0 0.0
  %2537 = vmatprep.subr.mxu0 0.0
  %2538 = vmatpush1.msra.mxu0 0.0
  %2539 = vmatprep.subr.mxu0 0.0
  %2540 = vmatpush1.msra.mxu0 0.0
  %2541 = vmatprep.subr.mxu0 0.0
  %2542 = vmatpush1.msra.mxu0 0.0
  %2543 = vmatprep.mubr.f32.mxu0 0.0
  %2544 = vmatmul.mubr.f32.gmra.mrb[0].mxu0 %v2347
  %v2545 = vpop.f32.mrb[0].mxu0
  %v2546 = vadd.f32 %v2441, %v2545
  %v2547 = vpop.f32.mrb[0].mxu0
  %2548 = vmatprep.mubr.f32.mxu0 0.0
  %2549 = vmatmul.mubr.f32.gmra.mrb[0].mxu0 %v2350
  %v2550 = vpop.f32.mrb[0].mxu0
  %v2551 = vadd.f32 %v2446, %v2550
  %v2552 = vpop.f32.mrb[0].mxu0
  %2553 = vmatprep.mubr.f32.mxu0 0.0
  %2554 = vmatmul.mubr.f32.gmra.mrb[0].mxu0 %v2353
  %v2555 = vpop.f32.mrb[0].mxu0
  %v2556 = vadd.f32 %v2451, %v2555
  %v2557 = vpop.f32.mrb[0].mxu0
  %2558 = vmatprep.mubr.f32.mxu0 0.0
  %2559 = vmatmul.mubr.f32.gmra.mrb[0].mxu0 %v2356
  %v2560 = vpop.f32.mrb[0].mxu0
  %v2561 = vadd.f32 %v2456, %v2560
  %v2562 = vpop.f32.mrb[0].mxu0
  %2563 = vmatprep.mubr.f32.mxu0 0.0
  %2564 = vmatmul.mubr.f32.gmra.mrb[0].mxu0 %v2359
  %v2565 = vpop.f32.mrb[0].mxu0
  %v2566 = vadd.f32 %v2461, %v2565
  %v2567 = vpop.f32.mrb[0].mxu0
  %2568 = vmatprep.mubr.f32.mxu0 0.0
  %2569 = vmatmul.mubr.f32.gmra.mrb[0].mxu0 %v2362
  %v2570 = vpop.f32.mrb[0].mxu0
  %v2571 = vadd.f32 %v2466, %v2570
  %v2572 = vpop.f32.mrb[0].mxu0
  %2573 = vmatprep.mubr.f32.mxu0 0.0
  %2574 = vmatmul.mubr.f32.gmra.mrb[0].mxu0 %v2365
  %v2575 = vpop.f32.mrb[0].mxu0
  %v2576 = vadd.f32 %v2471, %v2575
  %v2577 = vpop.f32.mrb[0].mxu0
  %2578 = vmatprep.mubr.f32.mxu0 0.0
  %2579 = vmatmul.mubr.f32.gmra.mrb[0].mxu0 %v2368
  %v2580 = vpop.f32.mrb[0].mxu0
  %v2581 = vadd.f32 %v2476, %v2580
  %v2582 = vpop.f32.mrb[0].mxu0
  %2583 = vdwg.mxu0
  %v2584 = vld [vmem:[%s5] sm:$0xff]
  %v2585 = vld [vmem:[%s5 + $0x8] sm:$0xff]
  %v2586 = vld [vmem:[%s5 + $0x10] sm:$0xff]
  %v2587 = vld [vmem:[%s5 + $0x18] sm:$0xff]
  %v2588 = vld [vmem:[%s5 + $0x20] sm:$0xff]
  %v2589 = vld [vmem:[%s5 + $0x28] sm:$0xff]
  %v2590 = vld [vmem:[%s5 + $0x30] sm:$0xff]
  %v2591 = vld [vmem:[%s5 + $0x38] sm:$0xff]
  %s2592 = scalar_lea.vmem %s4, 296
  %v2593 = vld [vmem:[%s2592] sm:$0xff]
  %v2594 = vld [vmem:[%s2592 + $0x8] sm:$0xff]
  %v2595 = vld [vmem:[%s2592 + $0x10] sm:$0xff]
  %v2596 = vld [vmem:[%s2592 + $0x18] sm:$0xff]
  %v2597 = vld [vmem:[%s2592 + $0x20] sm:$0xff]
  %v2598 = vld [vmem:[%s2592 + $0x28] sm:$0xff]
  %v2599 = vld [vmem:[%s2592 + $0x30] sm:$0xff]
  %v2600 = vld [vmem:[%s2592 + $0x38] sm:$0xff]
  %v2601 = vld [vmem:[%s2592 + $0x40] sm:$0xff]
  %v2602 = vld [vmem:[%s2592 + $0x48] sm:$0xff]
  %v2603 = vld [vmem:[%s2592 + $0x50] sm:$0xff]
  %v2604 = vld [vmem:[%s2592 + $0x58] sm:$0xff]
  %v2605 = vld [vmem:[%s2592 + $0x60] sm:$0xff]
  %v2606 = vld [vmem:[%s2592 + $0x68] sm:$0xff]
  %v2607 = vld [vmem:[%s2592 + $0x70] sm:$0xff]
  %v2608 = vld [vmem:[%s2592 + $0x78] sm:$0xff]
  %v2609 = vld [vmem:[%s2592 + $0x80] sm:$0xff]
  %v2610 = vld [vmem:[%s2592 + $0x88] sm:$0xff]
  %v2611 = vld [vmem:[%s2592 + $0x90] sm:$0xff]
  %v2612 = vld [vmem:[%s2592 + $0x98] sm:$0xff]
  %v2613 = vld [vmem:[%s2592 + $0xa0] sm:$0xff]
  %v2614 = vld [vmem:[%s2592 + $0xa8] sm:$0xff]
  %v2615 = vld [vmem:[%s2592 + $0xb0] sm:$0xff]
  %v2616 = vld [vmem:[%s2592 + $0xb8] sm:$0xff]
  %v2617 = vld [vmem:[%s2592 + $0xc0] sm:$0xff]
  %v2618 = vld [vmem:[%s2592 + $0xc8] sm:$0xff]
  %v2619 = vld [vmem:[%s2592 + $0xd0] sm:$0xff]
  %v2620 = vld [vmem:[%s2592 + $0xd8] sm:$0xff]
  %v2621 = vld [vmem:[%s2592 + $0xe0] sm:$0xff]
  %v2622 = vld [vmem:[%s2592 + $0xe8] sm:$0xff]
  %v2623 = vld [vmem:[%s2592 + $0xf0] sm:$0xff]
  %v2624 = vld [vmem:[%s2592 + $0xf8] sm:$0xff]
  %v2625 = vld [vmem:[%s2592 + $0x100] sm:$0xff]
  %v2626 = vld [vmem:[%s2592 + $0x108] sm:$0xff]
  %v2627 = vld [vmem:[%s2592 + $0x110] sm:$0xff]
  %v2628 = vld [vmem:[%s2592 + $0x118] sm:$0xff]
  %v2629 = vld [vmem:[%s2592 + $0x120] sm:$0x1]
  %v2631 = vsel %vm2370, %v2629, 0
  %2633 = vmatprep.subr.mxu0 0.0
  %2634 = vmatpush1.msra.mxu0 %v2593
  %2635 = vmatprep.subr.mxu0 0.0
  %2636 = vmatpush1.msra.mxu0 %v2594
  %2637 = vmatprep.subr.mxu0 0.0
  %2638 = vmatpush1.msra.mxu0 %v2595
  %2639 = vmatprep.subr.mxu0 0.0
  %2640 = vmatpush1.msra.mxu0 %v2596
  %2641 = vmatprep.subr.mxu0 0.0
  %2642 = vmatpush1.msra.mxu0 %v2597
  %2643 = vmatprep.subr.mxu0 0.0
  %2644 = vmatpush1.msra.mxu0 %v2598
  %2645 = vmatprep.subr.mxu0 0.0
  %2646 = vmatpush1.msra.mxu0 %v2599
  %2647 = vmatprep.subr.mxu0 0.0
  %2648 = vmatpush1.msra.mxu0 %v2600
  %2649 = vmatprep.subr.mxu0 0.0
  %2650 = vmatpush1.msra.mxu0 %v2601
  %2651 = vmatprep.subr.mxu0 0.0
  %2652 = vmatpush1.msra.mxu0 %v2602
  %2653 = vmatprep.subr.mxu0 0.0
  %2654 = vmatpush1.msra.mxu0 %v2603
  %2655 = vmatprep.subr.mxu0 0.0
  %2656 = vmatpush1.msra.mxu0 %v2604
  %2657 = vmatprep.subr.mxu0 0.0
  %2658 = vmatpush1.msra.mxu0 %v2605
  %2659 = vmatprep.subr.mxu0 0.0
  %2660 = vmatpush1.msra.mxu0 %v2606
  %2661 = vmatprep.subr.mxu0 0.0
  %2662 = vmatpush1.msra.mxu0 %v2607
  %2663 = vmatprep.subr.mxu0 0.0
  %2664 = vmatpush1.msra.mxu0 %v2608
  %2665 = vmatprep.subr.mxu0 0.0
  %2666 = vmatpush1.msra.mxu0 %v2609
  %2667 = vmatprep.subr.mxu0 0.0
  %2668 = vmatpush1.msra.mxu0 %v2610
  %2669 = vmatprep.subr.mxu0 0.0
  %2670 = vmatpush1.msra.mxu0 %v2611
  %2671 = vmatprep.subr.mxu0 0.0
  %2672 = vmatpush1.msra.mxu0 %v2612
  %2673 = vmatprep.subr.mxu0 0.0
  %2674 = vmatpush1.msra.mxu0 %v2613
  %2675 = vmatprep.subr.mxu0 0.0
  %2676 = vmatpush1.msra.mxu0 %v2614
  %2677 = vmatprep.subr.mxu0 0.0
  %2678 = vmatpush1.msra.mxu0 %v2615
  %2679 = vmatprep.subr.mxu0 0.0
  %2680 = vmatpush1.msra.mxu0 %v2616
  %2681 = vmatprep.subr.mxu0 0.0
  %2682 = vmatpush1.msra.mxu0 %v2617
  %2683 = vmatprep.subr.mxu0 0.0
  %2684 = vmatpush1.msra.mxu0 %v2618
  %2685 = vmatprep.subr.mxu0 0.0
  %2686 = vmatpush1.msra.mxu0 %v2619
  %2687 = vmatprep.subr.mxu0 0.0
  %2688 = vmatpush1.msra.mxu0 %v2620
  %2689 = vmatprep.subr.mxu0 0.0
  %2690 = vmatpush1.msra.mxu0 %v2621
  %2691 = vmatprep.subr.mxu0 0.0
  %2692 = vmatpush1.msra.mxu0 %v2622
  %2693 = vmatprep.subr.mxu0 0.0
  %2694 = vmatpush1.msra.mxu0 %v2623
  %2695 = vmatprep.subr.mxu0 0.0
  %2696 = vmatpush1.msra.mxu0 %v2624
  %2697 = vmatprep.mubr.f32.mxu0 %v2263
  %2698 = vmatmul.mubr.f32.gmra.mrb[0].mxu0 %v2261
  %v2699 = vpop.f32.mrb[0].mxu0
  %v2700 = vadd.f32 0.0, %v2699
  %v2701 = vpop.f32.mrb[0].mxu0
  %2702 = vmatprep.mubr.f32.mxu0 %v2269
  %2703 = vmatmul.mubr.f32.gmra.mrb[0].mxu0 %v2267
  %v2704 = vpop.f32.mrb[0].mxu0
  %v2705 = vadd.f32 0.0, %v2704
  %v2706 = vpop.f32.mrb[0].mxu0
  %2707 = vmatprep.mubr.f32.mxu0 %v2275
  %2708 = vmatmul.mubr.f32.gmra.mrb[0].mxu0 %v2273
  %v2709 = vpop.f32.mrb[0].mxu0
  %v2710 = vadd.f32 0.0, %v2709
  %v2711 = vpop.f32.mrb[0].mxu0
  %2712 = vmatprep.mubr.f32.mxu0 %v2281
  %2713 = vmatmul.mubr.f32.gmra.mrb[0].mxu0 %v2279
  %v2714 = vpop.f32.mrb[0].mxu0
  %v2715 = vadd.f32 0.0, %v2714
  %v2716 = vpop.f32.mrb[0].mxu0
  %2717 = vmatprep.mubr.f32.mxu0 %v2287
  %2718 = vmatmul.mubr.f32.gmra.mrb[0].mxu0 %v2285
  %v2719 = vpop.f32.mrb[0].mxu0
  %v2720 = vadd.f32 0.0, %v2719
  %v2721 = vpop.f32.mrb[0].mxu0
  %2722 = vmatprep.mubr.f32.mxu0 %v2293
  %2723 = vmatmul.mubr.f32.gmra.mrb[0].mxu0 %v2291
  %v2724 = vpop.f32.mrb[0].mxu0
  %v2725 = vadd.f32 0.0, %v2724
  %v2726 = vpop.f32.mrb[0].mxu0
  %2727 = vmatprep.mubr.f32.mxu0 %v2299
  %2728 = vmatmul.mubr.f32.gmra.mrb[0].mxu0 %v2297
  %v2729 = vpop.f32.mrb[0].mxu0
  %v2730 = vadd.f32 0.0, %v2729
  %v2731 = vpop.f32.mrb[0].mxu0
  %2732 = vmatprep.mubr.f32.mxu0 %v2305
  %2733 = vmatmul.mubr.f32.gmra.mrb[0].mxu0 %v2303
  %v2734 = vpop.f32.mrb[0].mxu0
  %v2735 = vadd.f32 0.0, %v2734
  %v2736 = vpop.f32.mrb[0].mxu0
  %2737 = vdwg.mxu0
  %2738 = vmatprep.subr.mxu0 0.0
  %2739 = vmatpush1.msra.mxu0 %v2625
  %2740 = vmatprep.subr.mxu0 0.0
  %2741 = vmatpush1.msra.mxu0 %v2626
  %2742 = vmatprep.subr.mxu0 0.0
  %2743 = vmatpush1.msra.mxu0 %v2627
  %2744 = vmatprep.subr.mxu0 0.0
  %2745 = vmatpush1.msra.mxu0 %v2628
  %2746 = vmatprep.subr.mxu0 0.0
  %2747 = vmatpush1.msra.mxu0 %v2631
  %2748 = vmatprep.subr.mxu0 0.0
  %2749 = vmatpush1.msra.mxu0 0.0
  %2750 = vmatprep.subr.mxu0 0.0
  %2751 = vmatpush1.msra.mxu0 0.0
  %2752 = vmatprep.subr.mxu0 0.0
  %2753 = vmatpush1.msra.mxu0 0.0
  %2754 = vmatprep.subr.mxu0 0.0
  %2755 = vmatpush1.msra.mxu0 0.0
  %2756 = vmatprep.subr.mxu0 0.0
  %2757 = vmatpush1.msra.mxu0 0.0
  %2758 = vmatprep.subr.mxu0 0.0
  %2759 = vmatpush1.msra.mxu0 0.0
  %2760 = vmatprep.subr.mxu0 0.0
  %2761 = vmatpush1.msra.mxu0 0.0
  %2762 = vmatprep.subr.mxu0 0.0
  %2763 = vmatpush1.msra.mxu0 0.0
  %2764 = vmatprep.subr.mxu0 0.0
  %2765 = vmatpush1.msra.mxu0 0.0
  %2766 = vmatprep.subr.mxu0 0.0
  %2767 = vmatpush1.msra.mxu0 0.0
  %2768 = vmatprep.subr.mxu0 0.0
  %2769 = vmatpush1.msra.mxu0 0.0
  %2770 = vmatprep.subr.mxu0 0.0
  %2771 = vmatpush1.msra.mxu0 0.0
  %2772 = vmatprep.subr.mxu0 0.0
  %2773 = vmatpush1.msra.mxu0 0.0
  %2774 = vmatprep.subr.mxu0 0.0
  %2775 = vmatpush1.msra.mxu0 0.0
  %2776 = vmatprep.subr.mxu0 0.0
  %2777 = vmatpush1.msra.mxu0 0.0
  %2778 = vmatprep.subr.mxu0 0.0
  %2779 = vmatpush1.msra.mxu0 0.0
  %2780 = vmatprep.subr.mxu0 0.0
  %2781 = vmatpush1.msra.mxu0 0.0
  %2782 = vmatprep.subr.mxu0 0.0
  %2783 = vmatpush1.msra.mxu0 0.0
  %2784 = vmatprep.subr.mxu0 0.0
  %2785 = vmatpush1.msra.mxu0 0.0
  %2786 = vmatprep.subr.mxu0 0.0
  %2787 = vmatpush1.msra.mxu0 0.0
  %2788 = vmatprep.subr.mxu0 0.0
  %2789 = vmatpush1.msra.mxu0 0.0
  %2790 = vmatprep.subr.mxu0 0.0
  %2791 = vmatpush1.msra.mxu0 0.0
  %2792 = vmatprep.subr.mxu0 0.0
  %2793 = vmatpush1.msra.mxu0 0.0
  %2794 = vmatprep.subr.mxu0 0.0
  %2795 = vmatpush1.msra.mxu0 0.0
  %2796 = vmatprep.subr.mxu0 0.0
  %2797 = vmatpush1.msra.mxu0 0.0
  %2798 = vmatprep.subr.mxu0 0.0
  %2799 = vmatpush1.msra.mxu0 0.0
  %2800 = vmatprep.subr.mxu0 0.0
  %2801 = vmatpush1.msra.mxu0 0.0
  %2802 = vmatprep.mubr.f32.mxu0 0.0
  %2803 = vmatmul.mubr.f32.gmra.mrb[0].mxu0 %v2347
  %v2804 = vpop.f32.mrb[0].mxu0
  %v2805 = vadd.f32 %v2700, %v2804
  %v2806 = vpop.f32.mrb[0].mxu0
  %2807 = vmatprep.mubr.f32.mxu0 0.0
  %2808 = vmatmul.mubr.f32.gmra.mrb[0].mxu0 %v2350
  %v2809 = vpop.f32.mrb[0].mxu0
  %v2810 = vadd.f32 %v2705, %v2809
  %v2811 = vpop.f32.mrb[0].mxu0
  %2812 = vmatprep.mubr.f32.mxu0 0.0
  %2813 = vmatmul.mubr.f32.gmra.mrb[0].mxu0 %v2353
  %v2814 = vpop.f32.mrb[0].mxu0
  %v2815 = vadd.f32 %v2710, %v2814
  %v2816 = vpop.f32.mrb[0].mxu0
  %2817 = vmatprep.mubr.f32.mxu0 0.0
  %2818 = vmatmul.mubr.f32.gmra.mrb[0].mxu0 %v2356
  %v2819 = vpop.f32.mrb[0].mxu0
  %v2820 = vadd.f32 %v2715, %v2819
  %v2821 = vpop.f32.mrb[0].mxu0
  %2822 = vmatprep.mubr.f32.mxu0 0.0
  %2823 = vmatmul.mubr.f32.gmra.mrb[0].mxu0 %v2359
  %v2824 = vpop.f32.mrb[0].mxu0
  %v2825 = vadd.f32 %v2720, %v2824
  %v2826 = vpop.f32.mrb[0].mxu0
  %2827 = vmatprep.mubr.f32.mxu0 0.0
  %2828 = vmatmul.mubr.f32.gmra.mrb[0].mxu0 %v2362
  %v2829 = vpop.f32.mrb[0].mxu0
  %v2830 = vadd.f32 %v2725, %v2829
  %v2831 = vpop.f32.mrb[0].mxu0
  %2832 = vmatprep.mubr.f32.mxu0 0.0
  %2833 = vmatmul.mubr.f32.gmra.mrb[0].mxu0 %v2365
  %v2834 = vpop.f32.mrb[0].mxu0
  %v2835 = vadd.f32 %v2730, %v2834
  %v2836 = vpop.f32.mrb[0].mxu0
  %2837 = vmatprep.mubr.f32.mxu0 0.0
  %2838 = vmatmul.mubr.f32.gmra.mrb[0].mxu0 %v2368
  %v2839 = vpop.f32.mrb[0].mxu0
  %v2840 = vadd.f32 %v2735, %v2839
  %v2841 = vpop.f32.mrb[0].mxu0
  %2842 = vdwg.mxu0
  %s2843 = scalar_lea.vmem %s5, 64
  %v2844 = vld [vmem:[%s2843] sm:$0xff]
  %v2845 = vld [vmem:[%s2843 + $0x8] sm:$0xff]
  %v2846 = vld [vmem:[%s2843 + $0x10] sm:$0xff]
  %v2847 = vld [vmem:[%s2843 + $0x18] sm:$0xff]
  %v2848 = vld [vmem:[%s2843 + $0x20] sm:$0xff]
  %v2849 = vld [vmem:[%s2843 + $0x28] sm:$0xff]
  %v2850 = vld [vmem:[%s2843 + $0x30] sm:$0xff]
  %v2851 = vld [vmem:[%s2843 + $0x38] sm:$0xff]
  %vm2852 = vcmask 523264
  %v2854 = vsel %vm2852, %v2844, 0
  %v2857 = vsel %vm2852, %v2845, 0
  %v2860 = vsel %vm2852, %v2846, 0
  %v2863 = vsel %vm2852, %v2847, 0
  %v2866 = vsel %vm2852, %v2848, 0
  %v2869 = vsel %vm2852, %v2849, 0
  %v2872 = vsel %vm2852, %v2850, 0
  %v2875 = vsel %vm2852, %v2851, 0
  %2877 = vmatprep.subr.mxu0 0.0
  %2878 = vmatpush1.msra.mxu0 %v2805
  %2879 = vmatprep.subr.mxu0 0.0
  %2880 = vmatpush1.msra.mxu0 %v2810
  %2881 = vmatprep.subr.mxu0 0.0
  %2882 = vmatpush1.msra.mxu0 %v2815
  %2883 = vmatprep.subr.mxu0 0.0
  %2884 = vmatpush1.msra.mxu0 %v2820
  %2885 = vmatprep.subr.mxu0 0.0
  %2886 = vmatpush1.msra.mxu0 %v2825
  %2887 = vmatprep.subr.mxu0 0.0
  %2888 = vmatpush1.msra.mxu0 %v2830
  %2889 = vmatprep.subr.mxu0 0.0
  %2890 = vmatpush1.msra.mxu0 %v2835
  %2891 = vmatprep.subr.mxu0 0.0
  %2892 = vmatpush1.msra.mxu0 %v2840
  %2893 = vmatprep.subr.mxu0 0.0
  %2894 = vmatpush1.msra.mxu0 0.0
  %2895 = vmatprep.subr.mxu0 0.0
  %2896 = vmatpush1.msra.mxu0 0.0
  %2897 = vmatprep.subr.mxu0 0.0
  %2898 = vmatpush1.msra.mxu0 0.0
  %2899 = vmatprep.subr.mxu0 0.0
  %2900 = vmatpush1.msra.mxu0 0.0
  %2901 = vmatprep.subr.mxu0 0.0
  %2902 = vmatpush1.msra.mxu0 0.0
  %2903 = vmatprep.subr.mxu0 0.0
  %2904 = vmatpush1.msra.mxu0 0.0
  %2905 = vmatprep.subr.mxu0 0.0
  %2906 = vmatpush1.msra.mxu0 0.0
  %2907 = vmatprep.subr.mxu0 0.0
  %2908 = vmatpush1.msra.mxu0 0.0
  %2909 = vmatprep.subr.mxu0 0.0
  %2910 = vmatpush1.msra.mxu0 0.0
  %2911 = vmatprep.subr.mxu0 0.0
  %2912 = vmatpush1.msra.mxu0 0.0
  %2913 = vmatprep.subr.mxu0 0.0
  %2914 = vmatpush1.msra.mxu0 0.0
  %2915 = vmatprep.subr.mxu0 0.0
  %2916 = vmatpush1.msra.mxu0 0.0
  %2917 = vmatprep.subr.mxu0 0.0
  %2918 = vmatpush1.msra.mxu0 0.0
  %2919 = vmatprep.subr.mxu0 0.0
  %2920 = vmatpush1.msra.mxu0 0.0
  %2921 = vmatprep.subr.mxu0 0.0
  %2922 = vmatpush1.msra.mxu0 0.0
  %2923 = vmatprep.subr.mxu0 0.0
  %2924 = vmatpush1.msra.mxu0 0.0
  %2925 = vmatprep.subr.mxu0 0.0
  %2926 = vmatpush1.msra.mxu0 0.0
  %2927 = vmatprep.subr.mxu0 0.0
  %2928 = vmatpush1.msra.mxu0 0.0
  %2929 = vmatprep.subr.mxu0 0.0
  %2930 = vmatpush1.msra.mxu0 0.0
  %2931 = vmatprep.subr.mxu0 0.0
  %2932 = vmatpush1.msra.mxu0 0.0
  %2933 = vmatprep.subr.mxu0 0.0
  %2934 = vmatpush1.msra.mxu0 0.0
  %2935 = vmatprep.subr.mxu0 0.0
  %2936 = vmatpush1.msra.mxu0 0.0
  %2937 = vmatprep.subr.mxu0 0.0
  %2938 = vmatpush1.msra.mxu0 0.0
  %2939 = vmatprep.subr.mxu0 0.0
  %2940 = vmatpush1.msra.mxu0 0.0
  %2941 = vmatprep.mubr.f32.mxu0 0.0
  %2942 = vmatmul.mubr.f32.gmra.mrb[0].mxu0 %v2854
  %v2943 = vpop.f32.mrb[0].mxu0
  %v2944 = vadd.f32 0.0, %v2943
  %v2945 = vpop.f32.mrb[0].mxu0
  %2946 = vmatprep.mubr.f32.mxu0 0.0
  %2947 = vmatmul.mubr.f32.gmra.mrb[0].mxu0 %v2857
  %v2948 = vpop.f32.mrb[0].mxu0
  %v2949 = vadd.f32 0.0, %v2948
  %v2950 = vpop.f32.mrb[0].mxu0
  %2951 = vmatprep.mubr.f32.mxu0 0.0
  %2952 = vmatmul.mubr.f32.gmra.mrb[0].mxu0 %v2860
  %v2953 = vpop.f32.mrb[0].mxu0
  %v2954 = vadd.f32 0.0, %v2953
  %v2955 = vpop.f32.mrb[0].mxu0
  %2956 = vmatprep.mubr.f32.mxu0 0.0
  %2957 = vmatmul.mubr.f32.gmra.mrb[0].mxu0 %v2863
  %v2958 = vpop.f32.mrb[0].mxu0
  %v2959 = vadd.f32 0.0, %v2958
  %v2960 = vpop.f32.mrb[0].mxu0
  %2961 = vmatprep.mubr.f32.mxu0 0.0
  %2962 = vmatmul.mubr.f32.gmra.mrb[0].mxu0 %v2866
  %v2963 = vpop.f32.mrb[0].mxu0
  %v2964 = vadd.f32 0.0, %v2963
  %v2965 = vpop.f32.mrb[0].mxu0
  %2966 = vmatprep.mubr.f32.mxu0 0.0
  %2967 = vmatmul.mubr.f32.gmra.mrb[0].mxu0 %v2869
  %v2968 = vpop.f32.mrb[0].mxu0
  %v2969 = vadd.f32 0.0, %v2968
  %v2970 = vpop.f32.mrb[0].mxu0
  %2971 = vmatprep.mubr.f32.mxu0 0.0
  %2972 = vmatmul.mubr.f32.gmra.mrb[0].mxu0 %v2872
  %v2973 = vpop.f32.mrb[0].mxu0
  %v2974 = vadd.f32 0.0, %v2973
  %v2975 = vpop.f32.mrb[0].mxu0
  %2976 = vmatprep.mubr.f32.mxu0 0.0
  %2977 = vmatmul.mubr.f32.gmra.mrb[0].mxu0 %v2875
  %v2978 = vpop.f32.mrb[0].mxu0
  %v2979 = vadd.f32 0.0, %v2978
  %v2980 = vpop.f32.mrb[0].mxu0
  %2981 = vdwg.mxu0
  %v2983 = vsel %vm2852, %v2584, 0
  %v2986 = vsel %vm2852, %v2585, 0
  %v2989 = vsel %vm2852, %v2586, 0
  %v2992 = vsel %vm2852, %v2587, 0
  %v2995 = vsel %vm2852, %v2588, 0
  %v2998 = vsel %vm2852, %v2589, 0
  %v3001 = vsel %vm2852, %v2590, 0
  %v3004 = vsel %vm2852, %v2591, 0
  %3006 = vmatprep.subr.mxu0 0.0
  %3007 = vmatpush1.msra.mxu0 %v2546
  %3008 = vmatprep.subr.mxu0 0.0
  %3009 = vmatpush1.msra.mxu0 %v2551
  %3010 = vmatprep.subr.mxu0 0.0
  %3011 = vmatpush1.msra.mxu0 %v2556
  %3012 = vmatprep.subr.mxu0 0.0
  %3013 = vmatpush1.msra.mxu0 %v2561
  %3014 = vmatprep.subr.mxu0 0.0
  %3015 = vmatpush1.msra.mxu0 %v2566
  %3016 = vmatprep.subr.mxu0 0.0
  %3017 = vmatpush1.msra.mxu0 %v2571
  %3018 = vmatprep.subr.mxu0 0.0
  %3019 = vmatpush1.msra.mxu0 %v2576
  %3020 = vmatprep.subr.mxu0 0.0
  %3021 = vmatpush1.msra.mxu0 %v2581
  %3022 = vmatprep.subr.mxu0 0.0
  %3023 = vmatpush1.msra.mxu0 0.0
  %3024 = vmatprep.subr.mxu0 0.0
  %3025 = vmatpush1.msra.mxu0 0.0
  %3026 = vmatprep.subr.mxu0 0.0
  %3027 = vmatpush1.msra.mxu0 0.0
  %3028 = vmatprep.subr.mxu0 0.0
  %3029 = vmatpush1.msra.mxu0 0.0
  %3030 = vmatprep.subr.mxu0 0.0
  %3031 = vmatpush1.msra.mxu0 0.0
  %3032 = vmatprep.subr.mxu0 0.0
  %3033 = vmatpush1.msra.mxu0 0.0
  %3034 = vmatprep.subr.mxu0 0.0
  %3035 = vmatpush1.msra.mxu0 0.0
  %3036 = vmatprep.subr.mxu0 0.0
  %3037 = vmatpush1.msra.mxu0 0.0
  %3038 = vmatprep.subr.mxu0 0.0
  %3039 = vmatpush1.msra.mxu0 0.0
  %3040 = vmatprep.subr.mxu0 0.0
  %3041 = vmatpush1.msra.mxu0 0.0
  %3042 = vmatprep.subr.mxu0 0.0
  %3043 = vmatpush1.msra.mxu0 0.0
  %3044 = vmatprep.subr.mxu0 0.0
  %3045 = vmatpush1.msra.mxu0 0.0
  %3046 = vmatprep.subr.mxu0 0.0
  %3047 = vmatpush1.msra.mxu0 0.0
  %3048 = vmatprep.subr.mxu0 0.0
  %3049 = vmatpush1.msra.mxu0 0.0
  %3050 = vmatprep.subr.mxu0 0.0
  %3051 = vmatpush1.msra.mxu0 0.0
  %3052 = vmatprep.subr.mxu0 0.0
  %3053 = vmatpush1.msra.mxu0 0.0
  %3054 = vmatprep.subr.mxu0 0.0
  %3055 = vmatpush1.msra.mxu0 0.0
  %3056 = vmatprep.subr.mxu0 0.0
  %3057 = vmatpush1.msra.mxu0 0.0
  %3058 = vmatprep.subr.mxu0 0.0
  %3059 = vmatpush1.msra.mxu0 0.0
  %3060 = vmatprep.subr.mxu0 0.0
  %3061 = vmatpush1.msra.mxu0 0.0
  %3062 = vmatprep.subr.mxu0 0.0
  %3063 = vmatpush1.msra.mxu0 0.0
  %3064 = vmatprep.subr.mxu0 0.0
  %3065 = vmatpush1.msra.mxu0 0.0
  %3066 = vmatprep.subr.mxu0 0.0
  %3067 = vmatpush1.msra.mxu0 0.0
  %3068 = vmatprep.subr.mxu0 0.0
  %3069 = vmatpush1.msra.mxu0 0.0
  %3070 = vmatprep.mubr.f32.mxu0 0.0
  %3071 = vmatmul.mubr.f32.gmra.mrb[0].mxu0 %v2983
  %v3072 = vpop.f32.mrb[0].mxu0
  %v3073 = vadd.f32 %v2944, %v3072
  %v3074 = vpop.f32.mrb[0].mxu0
  %3075 = vmatprep.mubr.f32.mxu0 0.0
  %3076 = vmatmul.mubr.f32.gmra.mrb[0].mxu0 %v2986
  %v3077 = vpop.f32.mrb[0].mxu0
  %v3078 = vadd.f32 %v2949, %v3077
  %v3079 = vpop.f32.mrb[0].mxu0
  %3080 = vmatprep.mubr.f32.mxu0 0.0
  %3081 = vmatmul.mubr.f32.gmra.mrb[0].mxu0 %v2989
  %v3082 = vpop.f32.mrb[0].mxu0
  %v3083 = vadd.f32 %v2954, %v3082
  %v3084 = vpop.f32.mrb[0].mxu0
  %3085 = vmatprep.mubr.f32.mxu0 0.0
  %3086 = vmatmul.mubr.f32.gmra.mrb[0].mxu0 %v2992
  %v3087 = vpop.f32.mrb[0].mxu0
  %v3088 = vadd.f32 %v2959, %v3087
  %v3089 = vpop.f32.mrb[0].mxu0
  %3090 = vmatprep.mubr.f32.mxu0 0.0
  %3091 = vmatmul.mubr.f32.gmra.mrb[0].mxu0 %v2995
  %v3092 = vpop.f32.mrb[0].mxu0
  %v3093 = vadd.f32 %v2964, %v3092
  %v3094 = vpop.f32.mrb[0].mxu0
  %3095 = vmatprep.mubr.f32.mxu0 0.0
  %3096 = vmatmul.mubr.f32.gmra.mrb[0].mxu0 %v2998
  %v3097 = vpop.f32.mrb[0].mxu0
  %v3098 = vadd.f32 %v2969, %v3097
  %v3099 = vpop.f32.mrb[0].mxu0
  %3100 = vmatprep.mubr.f32.mxu0 0.0
  %3101 = vmatmul.mubr.f32.gmra.mrb[0].mxu0 %v3001
  %v3102 = vpop.f32.mrb[0].mxu0
  %v3103 = vadd.f32 %v2974, %v3102
  %v3104 = vpop.f32.mrb[0].mxu0
  %3105 = vmatprep.mubr.f32.mxu0 0.0
  %3106 = vmatmul.mubr.f32.gmra.mrb[0].mxu0 %v3004
  %v3107 = vpop.f32.mrb[0].mxu0
  %v3108 = vadd.f32 %v2979, %v3107
  %v3109 = vpop.f32.mrb[0].mxu0
  %3110 = vdwg.mxu0
  %s3111 = scalar_lea.vmem %s4, 592
  %v3112 = vld [vmem:[%s3111] sm:$0xff]
  %v3113 = vld [vmem:[%s3111 + $0x8] sm:$0xff]
  %v3114 = vld [vmem:[%s3111 + $0x10] sm:$0xff]
  %v3115 = vld [vmem:[%s3111 + $0x18] sm:$0xff]
  %v3116 = vld [vmem:[%s3111 + $0x20] sm:$0xff]
  %v3117 = vld [vmem:[%s3111 + $0x28] sm:$0xff]
  %v3118 = vld [vmem:[%s3111 + $0x30] sm:$0xff]
  %v3119 = vld [vmem:[%s3111 + $0x38] sm:$0xff]
  %v3120 = vld [vmem:[%s3111 + $0x40] sm:$0xff]
  %v3121 = vld [vmem:[%s3111 + $0x48] sm:$0xff]
  %v3122 = vld [vmem:[%s3111 + $0x50] sm:$0xff]
  %v3123 = vld [vmem:[%s3111 + $0x58] sm:$0xff]
  %v3124 = vld [vmem:[%s3111 + $0x60] sm:$0xff]
  %v3125 = vld [vmem:[%s3111 + $0x68] sm:$0xff]
  %v3126 = vld [vmem:[%s3111 + $0x70] sm:$0xff]
  %v3127 = vld [vmem:[%s3111 + $0x78] sm:$0xff]
  %v3128 = vld [vmem:[%s3111 + $0x80] sm:$0xff]
  %v3129 = vld [vmem:[%s3111 + $0x88] sm:$0xff]
  %v3130 = vld [vmem:[%s3111 + $0x90] sm:$0xff]
  %v3131 = vld [vmem:[%s3111 + $0x98] sm:$0xff]
  %v3132 = vld [vmem:[%s3111 + $0xa0] sm:$0xff]
  %v3133 = vld [vmem:[%s3111 + $0xa8] sm:$0xff]
  %v3134 = vld [vmem:[%s3111 + $0xb0] sm:$0xff]
  %v3135 = vld [vmem:[%s3111 + $0xb8] sm:$0xff]
  %v3136 = vld [vmem:[%s3111 + $0xc0] sm:$0xff]
  %v3137 = vld [vmem:[%s3111 + $0xc8] sm:$0xff]
  %v3138 = vld [vmem:[%s3111 + $0xd0] sm:$0xff]
  %v3139 = vld [vmem:[%s3111 + $0xd8] sm:$0xff]
  %v3140 = vld [vmem:[%s3111 + $0xe0] sm:$0xff]
  %v3141 = vld [vmem:[%s3111 + $0xe8] sm:$0xff]
  %v3142 = vld [vmem:[%s3111 + $0xf0] sm:$0xff]
  %v3143 = vld [vmem:[%s3111 + $0xf8] sm:$0xff]
  %v3144 = vld [vmem:[%s3111 + $0x100] sm:$0xff]
  %v3145 = vld [vmem:[%s3111 + $0x108] sm:$0xff]
  %v3146 = vld [vmem:[%s3111 + $0x110] sm:$0xff]
  %v3147 = vld [vmem:[%s3111 + $0x118] sm:$0xff]
  %v3148 = vld [vmem:[%s3111 + $0x120] sm:$0x1]
  %v3150 = vsel %vm2370, %v3148, 0
  %3152 = vmatprep.subr.mxu0 0.0
  %3153 = vmatpush1.msra.mxu0 %v3112
  %3154 = vmatprep.subr.mxu0 0.0
  %3155 = vmatpush1.msra.mxu0 %v3113
  %3156 = vmatprep.subr.mxu0 0.0
  %3157 = vmatpush1.msra.mxu0 %v3114
  %3158 = vmatprep.subr.mxu0 0.0
  %3159 = vmatpush1.msra.mxu0 %v3115
  %3160 = vmatprep.subr.mxu0 0.0
  %3161 = vmatpush1.msra.mxu0 %v3116
  %3162 = vmatprep.subr.mxu0 0.0
  %3163 = vmatpush1.msra.mxu0 %v3117
  %3164 = vmatprep.subr.mxu0 0.0
  %3165 = vmatpush1.msra.mxu0 %v3118
  %3166 = vmatprep.subr.mxu0 0.0
  %3167 = vmatpush1.msra.mxu0 %v3119
  %3168 = vmatprep.subr.mxu0 0.0
  %3169 = vmatpush1.msra.mxu0 %v3120
  %3170 = vmatprep.subr.mxu0 0.0
  %3171 = vmatpush1.msra.mxu0 %v3121
  %3172 = vmatprep.subr.mxu0 0.0
  %3173 = vmatpush1.msra.mxu0 %v3122
  %3174 = vmatprep.subr.mxu0 0.0
  %3175 = vmatpush1.msra.mxu0 %v3123
  %3176 = vmatprep.subr.mxu0 0.0
  %3177 = vmatpush1.msra.mxu0 %v3124
  %3178 = vmatprep.subr.mxu0 0.0
  %3179 = vmatpush1.msra.mxu0 %v3125
  %3180 = vmatprep.subr.mxu0 0.0
  %3181 = vmatpush1.msra.mxu0 %v3126
  %3182 = vmatprep.subr.mxu0 0.0
  %3183 = vmatpush1.msra.mxu0 %v3127
  %3184 = vmatprep.subr.mxu0 0.0
  %3185 = vmatpush1.msra.mxu0 %v3128
  %3186 = vmatprep.subr.mxu0 0.0
  %3187 = vmatpush1.msra.mxu0 %v3129
  %3188 = vmatprep.subr.mxu0 0.0
  %3189 = vmatpush1.msra.mxu0 %v3130
  %3190 = vmatprep.subr.mxu0 0.0
  %3191 = vmatpush1.msra.mxu0 %v3131
  %3192 = vmatprep.subr.mxu0 0.0
  %3193 = vmatpush1.msra.mxu0 %v3132
  %3194 = vmatprep.subr.mxu0 0.0
  %3195 = vmatpush1.msra.mxu0 %v3133
  %3196 = vmatprep.subr.mxu0 0.0
  %3197 = vmatpush1.msra.mxu0 %v3134
  %3198 = vmatprep.subr.mxu0 0.0
  %3199 = vmatpush1.msra.mxu0 %v3135
  %3200 = vmatprep.subr.mxu0 0.0
  %3201 = vmatpush1.msra.mxu0 %v3136
  %3202 = vmatprep.subr.mxu0 0.0
  %3203 = vmatpush1.msra.mxu0 %v3137
  %3204 = vmatprep.subr.mxu0 0.0
  %3205 = vmatpush1.msra.mxu0 %v3138
  %3206 = vmatprep.subr.mxu0 0.0
  %3207 = vmatpush1.msra.mxu0 %v3139
  %3208 = vmatprep.subr.mxu0 0.0
  %3209 = vmatpush1.msra.mxu0 %v3140
  %3210 = vmatprep.subr.mxu0 0.0
  %3211 = vmatpush1.msra.mxu0 %v3141
  %3212 = vmatprep.subr.mxu0 0.0
  %3213 = vmatpush1.msra.mxu0 %v3142
  %3214 = vmatprep.subr.mxu0 0.0
  %3215 = vmatpush1.msra.mxu0 %v3143
  %3216 = vmatprep.mubr.f32.mxu0 %v2263
  %3217 = vmatmul.mubr.f32.gmra.mrb[0].mxu0 %v2261
  %v3218 = vpop.f32.mrb[0].mxu0
  %v3219 = vadd.f32 0.0, %v3218
  %v3220 = vpop.f32.mrb[0].mxu0
  %3221 = vmatprep.mubr.f32.mxu0 %v2269
  %3222 = vmatmul.mubr.f32.gmra.mrb[0].mxu0 %v2267
  %v3223 = vpop.f32.mrb[0].mxu0
  %v3224 = vadd.f32 0.0, %v3223
  %v3225 = vpop.f32.mrb[0].mxu0
  %3226 = vmatprep.mubr.f32.mxu0 %v2275
  %3227 = vmatmul.mubr.f32.gmra.mrb[0].mxu0 %v2273
  %v3228 = vpop.f32.mrb[0].mxu0
  %v3229 = vadd.f32 0.0, %v3228
  %v3230 = vpop.f32.mrb[0].mxu0
  %3231 = vmatprep.mubr.f32.mxu0 %v2281
  %3232 = vmatmul.mubr.f32.gmra.mrb[0].mxu0 %v2279
  %v3233 = vpop.f32.mrb[0].mxu0
  %v3234 = vadd.f32 0.0, %v3233
  %v3235 = vpop.f32.mrb[0].mxu0
  %3236 = vmatprep.mubr.f32.mxu0 %v2287
  %3237 = vmatmul.mubr.f32.gmra.mrb[0].mxu0 %v2285
  %v3238 = vpop.f32.mrb[0].mxu0
  %v3239 = vadd.f32 0.0, %v3238
  %v3240 = vpop.f32.mrb[0].mxu0
  %3241 = vmatprep.mubr.f32.mxu0 %v2293
  %3242 = vmatmul.mubr.f32.gmra.mrb[0].mxu0 %v2291
  %v3243 = vpop.f32.mrb[0].mxu0
  %v3244 = vadd.f32 0.0, %v3243
  %v3245 = vpop.f32.mrb[0].mxu0
  %3246 = vmatprep.mubr.f32.mxu0 %v2299
  %3247 = vmatmul.mubr.f32.gmra.mrb[0].mxu0 %v2297
  %v3248 = vpop.f32.mrb[0].mxu0
  %v3249 = vadd.f32 0.0, %v3248
  %v3250 = vpop.f32.mrb[0].mxu0
  %3251 = vmatprep.mubr.f32.mxu0 %v2305
  %3252 = vmatmul.mubr.f32.gmra.mrb[0].mxu0 %v2303
  %v3253 = vpop.f32.mrb[0].mxu0
  %v3254 = vadd.f32 0.0, %v3253
  %v3255 = vpop.f32.mrb[0].mxu0
  %3256 = vdwg.mxu0
  %3257 = vmatprep.subr.mxu0 0.0
  %3258 = vmatpush1.msra.mxu0 %v3144
  %3259 = vmatprep.subr.mxu0 0.0
  %3260 = vmatpush1.msra.mxu0 %v3145
  %3261 = vmatprep.subr.mxu0 0.0
  %3262 = vmatpush1.msra.mxu0 %v3146
  %3263 = vmatprep.subr.mxu0 0.0
  %3264 = vmatpush1.msra.mxu0 %v3147
  %3265 = vmatprep.subr.mxu0 0.0
  %3266 = vmatpush1.msra.mxu0 %v3150
  %3267 = vmatprep.subr.mxu0 0.0
  %3268 = vmatpush1.msra.mxu0 0.0
  %3269 = vmatprep.subr.mxu0 0.0
  %3270 = vmatpush1.msra.mxu0 0.0
  %3271 = vmatprep.subr.mxu0 0.0
  %3272 = vmatpush1.msra.mxu0 0.0
  %3273 = vmatprep.subr.mxu0 0.0
  %3274 = vmatpush1.msra.mxu0 0.0
  %3275 = vmatprep.subr.mxu0 0.0
  %3276 = vmatpush1.msra.mxu0 0.0
  %3277 = vmatprep.subr.mxu0 0.0
  %3278 = vmatpush1.msra.mxu0 0.0
  %3279 = vmatprep.subr.mxu0 0.0
  %3280 = vmatpush1.msra.mxu0 0.0
  %3281 = vmatprep.subr.mxu0 0.0
  %3282 = vmatpush1.msra.mxu0 0.0
  %3283 = vmatprep.subr.mxu0 0.0
  %3284 = vmatpush1.msra.mxu0 0.0
  %3285 = vmatprep.subr.mxu0 0.0
  %3286 = vmatpush1.msra.mxu0 0.0
  %3287 = vmatprep.subr.mxu0 0.0
  %3288 = vmatpush1.msra.mxu0 0.0
  %3289 = vmatprep.subr.mxu0 0.0
  %3290 = vmatpush1.msra.mxu0 0.0
  %3291 = vmatprep.subr.mxu0 0.0
  %3292 = vmatpush1.msra.mxu0 0.0
  %3293 = vmatprep.subr.mxu0 0.0
  %3294 = vmatpush1.msra.mxu0 0.0
  %3295 = vmatprep.subr.mxu0 0.0
  %3296 = vmatpush1.msra.mxu0 0.0
  %3297 = vmatprep.subr.mxu0 0.0
  %3298 = vmatpush1.msra.mxu0 0.0
  %3299 = vmatprep.subr.mxu0 0.0
  %3300 = vmatpush1.msra.mxu0 0.0
  %3301 = vmatprep.subr.mxu0 0.0
  %3302 = vmatpush1.msra.mxu0 0.0
  %3303 = vmatprep.subr.mxu0 0.0
  %3304 = vmatpush1.msra.mxu0 0.0
  %3305 = vmatprep.subr.mxu0 0.0
  %3306 = vmatpush1.msra.mxu0 0.0
  %3307 = vmatprep.subr.mxu0 0.0
  %3308 = vmatpush1.msra.mxu0 0.0
  %3309 = vmatprep.subr.mxu0 0.0
  %3310 = vmatpush1.msra.mxu0 0.0
  %3311 = vmatprep.subr.mxu0 0.0
  %3312 = vmatpush1.msra.mxu0 0.0
  %3313 = vmatprep.subr.mxu0 0.0
  %3314 = vmatpush1.msra.mxu0 0.0
  %3315 = vmatprep.subr.mxu0 0.0
  %3316 = vmatpush1.msra.mxu0 0.0
  %3317 = vmatprep.subr.mxu0 0.0
  %3318 = vmatpush1.msra.mxu0 0.0
  %3319 = vmatprep.subr.mxu0 0.0
  %3320 = vmatpush1.msra.mxu0 0.0
  %3321 = vmatprep.mubr.f32.mxu0 0.0
  %3322 = vmatmul.mubr.f32.gmra.mrb[0].mxu0 %v2347
  %v3323 = vpop.f32.mrb[0].mxu0
  %v3324 = vadd.f32 %v3219, %v3323
  %v3325 = vpop.f32.mrb[0].mxu0
  %3326 = vmatprep.mubr.f32.mxu0 0.0
  %3327 = vmatmul.mubr.f32.gmra.mrb[0].mxu0 %v2350
  %v3328 = vpop.f32.mrb[0].mxu0
  %v3329 = vadd.f32 %v3224, %v3328
  %v3330 = vpop.f32.mrb[0].mxu0
  %3331 = vmatprep.mubr.f32.mxu0 0.0
  %3332 = vmatmul.mubr.f32.gmra.mrb[0].mxu0 %v2353
  %v3333 = vpop.f32.mrb[0].mxu0
  %v3334 = vadd.f32 %v3229, %v3333
  %v3335 = vpop.f32.mrb[0].mxu0
  %3336 = vmatprep.mubr.f32.mxu0 0.0
  %3337 = vmatmul.mubr.f32.gmra.mrb[0].mxu0 %v2356
  %v3338 = vpop.f32.mrb[0].mxu0
  %v3339 = vadd.f32 %v3234, %v3338
  %v3340 = vpop.f32.mrb[0].mxu0
  %3341 = vmatprep.mubr.f32.mxu0 0.0
  %3342 = vmatmul.mubr.f32.gmra.mrb[0].mxu0 %v2359
  %v3343 = vpop.f32.mrb[0].mxu0
  %v3344 = vadd.f32 %v3239, %v3343
  %v3345 = vpop.f32.mrb[0].mxu0
  %3346 = vmatprep.mubr.f32.mxu0 0.0
  %3347 = vmatmul.mubr.f32.gmra.mrb[0].mxu0 %v2362
  %v3348 = vpop.f32.mrb[0].mxu0
  %v3349 = vadd.f32 %v3244, %v3348
  %v3350 = vpop.f32.mrb[0].mxu0
  %3351 = vmatprep.mubr.f32.mxu0 0.0
  %3352 = vmatmul.mubr.f32.gmra.mrb[0].mxu0 %v2365
  %v3353 = vpop.f32.mrb[0].mxu0
  %v3354 = vadd.f32 %v3249, %v3353
  %v3355 = vpop.f32.mrb[0].mxu0
  %3356 = vmatprep.mubr.f32.mxu0 0.0
  %3357 = vmatmul.mubr.f32.gmra.mrb[0].mxu0 %v2368
  %v3358 = vpop.f32.mrb[0].mxu0
  %v3359 = vadd.f32 %v3254, %v3358
  %v3360 = vpop.f32.mrb[0].mxu0
  %3361 = vdwg.mxu0
  %s3362 = scalar_lea.vmem %s5, 128
  %v3363 = vld [vmem:[%s3362] sm:$0xff]
  %v3364 = vld [vmem:[%s3362 + $0x8] sm:$0xff]
  %v3365 = vld [vmem:[%s3362 + $0x10] sm:$0xff]
  %v3366 = vld [vmem:[%s3362 + $0x18] sm:$0xff]
  %v3367 = vld [vmem:[%s3362 + $0x20] sm:$0xff]
  %v3368 = vld [vmem:[%s3362 + $0x28] sm:$0xff]
  %v3369 = vld [vmem:[%s3362 + $0x30] sm:$0xff]
  %v3370 = vld [vmem:[%s3362 + $0x38] sm:$0xff]
  %v3372 = vsel %vm2852, %v3363, 0
  %v3375 = vsel %vm2852, %v3364, 0
  %v3378 = vsel %vm2852, %v3365, 0
  %v3381 = vsel %vm2852, %v3366, 0
  %v3384 = vsel %vm2852, %v3367, 0
  %v3387 = vsel %vm2852, %v3368, 0
  %v3390 = vsel %vm2852, %v3369, 0
  %v3393 = vsel %vm2852, %v3370, 0
  %3395 = vmatprep.subr.mxu0 0.0
  %3396 = vmatpush1.msra.mxu0 %v3324
  %3397 = vmatprep.subr.mxu0 0.0
  %3398 = vmatpush1.msra.mxu0 %v3329
  %3399 = vmatprep.subr.mxu0 0.0
  %3400 = vmatpush1.msra.mxu0 %v3334
  %3401 = vmatprep.subr.mxu0 0.0
  %3402 = vmatpush1.msra.mxu0 %v3339
  %3403 = vmatprep.subr.mxu0 0.0
  %3404 = vmatpush1.msra.mxu0 %v3344
  %3405 = vmatprep.subr.mxu0 0.0
  %3406 = vmatpush1.msra.mxu0 %v3349
  %3407 = vmatprep.subr.mxu0 0.0
  %3408 = vmatpush1.msra.mxu0 %v3354
  %3409 = vmatprep.subr.mxu0 0.0
  %3410 = vmatpush1.msra.mxu0 %v3359
  %3411 = vmatprep.subr.mxu0 0.0
  %3412 = vmatpush1.msra.mxu0 0.0
  %3413 = vmatprep.subr.mxu0 0.0
  %3414 = vmatpush1.msra.mxu0 0.0
  %3415 = vmatprep.subr.mxu0 0.0
  %3416 = vmatpush1.msra.mxu0 0.0
  %3417 = vmatprep.subr.mxu0 0.0
  %3418 = vmatpush1.msra.mxu0 0.0
  %3419 = vmatprep.subr.mxu0 0.0
  %3420 = vmatpush1.msra.mxu0 0.0
  %3421 = vmatprep.subr.mxu0 0.0
  %3422 = vmatpush1.msra.mxu0 0.0
  %3423 = vmatprep.subr.mxu0 0.0
  %3424 = vmatpush1.msra.mxu0 0.0
  %3425 = vmatprep.subr.mxu0 0.0
  %3426 = vmatpush1.msra.mxu0 0.0
  %3427 = vmatprep.subr.mxu0 0.0
  %3428 = vmatpush1.msra.mxu0 0.0
  %3429 = vmatprep.subr.mxu0 0.0
  %3430 = vmatpush1.msra.mxu0 0.0
  %3431 = vmatprep.subr.mxu0 0.0
  %3432 = vmatpush1.msra.mxu0 0.0
  %3433 = vmatprep.subr.mxu0 0.0
  %3434 = vmatpush1.msra.mxu0 0.0
  %3435 = vmatprep.subr.mxu0 0.0
  %3436 = vmatpush1.msra.mxu0 0.0
  %3437 = vmatprep.subr.mxu0 0.0
  %3438 = vmatpush1.msra.mxu0 0.0
  %3439 = vmatprep.subr.mxu0 0.0
  %3440 = vmatpush1.msra.mxu0 0.0
  %3441 = vmatprep.subr.mxu0 0.0
  %3442 = vmatpush1.msra.mxu0 0.0
  %3443 = vmatprep.subr.mxu0 0.0
  %3444 = vmatpush1.msra.mxu0 0.0
  %3445 = vmatprep.subr.mxu0 0.0
  %3446 = vmatpush1.msra.mxu0 0.0
  %3447 = vmatprep.subr.mxu0 0.0
  %3448 = vmatpush1.msra.mxu0 0.0
  %3449 = vmatprep.subr.mxu0 0.0
  %3450 = vmatpush1.msra.mxu0 0.0
  %3451 = vmatprep.subr.mxu0 0.0
  %3452 = vmatpush1.msra.mxu0 0.0
  %3453 = vmatprep.subr.mxu0 0.0
  %3454 = vmatpush1.msra.mxu0 0.0
  %3455 = vmatprep.subr.mxu0 0.0
  %3456 = vmatpush1.msra.mxu0 0.0
  %3457 = vmatprep.subr.mxu0 0.0
  %3458 = vmatpush1.msra.mxu0 0.0
  %3459 = vmatprep.mubr.f32.mxu0 0.0
  %3460 = vmatmul.mubr.f32.gmra.mrb[0].mxu0 %v3372
  %v3461 = vpop.f32.mrb[0].mxu0
  %v3462 = vadd.f32 0.0, %v3461
  %v3463 = vpop.f32.mrb[0].mxu0
  %3464 = vmatprep.mubr.f32.mxu0 0.0
  %3465 = vmatmul.mubr.f32.gmra.mrb[0].mxu0 %v3375
  %v3466 = vpop.f32.mrb[0].mxu0
  %v3467 = vadd.f32 0.0, %v3466
  %v3468 = vpop.f32.mrb[0].mxu0
  %3469 = vmatprep.mubr.f32.mxu0 0.0
  %3470 = vmatmul.mubr.f32.gmra.mrb[0].mxu0 %v3378
  %v3471 = vpop.f32.mrb[0].mxu0
  %v3472 = vadd.f32 0.0, %v3471
  %v3473 = vpop.f32.mrb[0].mxu0
  %3474 = vmatprep.mubr.f32.mxu0 0.0
  %3475 = vmatmul.mubr.f32.gmra.mrb[0].mxu0 %v3381
  %v3476 = vpop.f32.mrb[0].mxu0
  %v3477 = vadd.f32 0.0, %v3476
  %v3478 = vpop.f32.mrb[0].mxu0
  %3479 = vmatprep.mubr.f32.mxu0 0.0
  %3480 = vmatmul.mubr.f32.gmra.mrb[0].mxu0 %v3384
  %v3481 = vpop.f32.mrb[0].mxu0
  %v3482 = vadd.f32 0.0, %v3481
  %v3483 = vpop.f32.mrb[0].mxu0
  %3484 = vmatprep.mubr.f32.mxu0 0.0
  %3485 = vmatmul.mubr.f32.gmra.mrb[0].mxu0 %v3387
  %v3486 = vpop.f32.mrb[0].mxu0
  %v3487 = vadd.f32 0.0, %v3486
  %v3488 = vpop.f32.mrb[0].mxu0
  %3489 = vmatprep.mubr.f32.mxu0 0.0
  %3490 = vmatmul.mubr.f32.gmra.mrb[0].mxu0 %v3390
  %v3491 = vpop.f32.mrb[0].mxu0
  %v3492 = vadd.f32 0.0, %v3491
  %v3493 = vpop.f32.mrb[0].mxu0
  %3494 = vmatprep.mubr.f32.mxu0 0.0
  %3495 = vmatmul.mubr.f32.gmra.mrb[0].mxu0 %v3393
  %v3496 = vpop.f32.mrb[0].mxu0
  %v3497 = vadd.f32 0.0, %v3496
  %v3498 = vpop.f32.mrb[0].mxu0
  %3499 = vdwg.mxu0
  %v3500 = vadd.f32 %v3073, %v3462
  %v3501 = vadd.f32 %v3078, %v3467
  %v3502 = vadd.f32 %v3083, %v3472
  %v3503 = vadd.f32 %v3088, %v3477
  %v3504 = vadd.f32 %v3093, %v3482
  %v3505 = vadd.f32 %v3098, %v3487
  %v3506 = vadd.f32 %v3103, %v3492
  %v3507 = vadd.f32 %v3108, %v3497
  %s3508 = scalar_lea.vmem %s4, 888
  %v3509 = vld [vmem:[%s3508] sm:$0xff]
  %v3510 = vld [vmem:[%s3508 + $0x8] sm:$0xff]
  %v3511 = vld [vmem:[%s3508 + $0x10] sm:$0xff]
  %v3512 = vld [vmem:[%s3508 + $0x18] sm:$0xff]
  %v3513 = vld [vmem:[%s3508 + $0x20] sm:$0xff]
  %v3514 = vld [vmem:[%s3508 + $0x28] sm:$0xff]
  %v3515 = vld [vmem:[%s3508 + $0x30] sm:$0xff]
  %v3516 = vld [vmem:[%s3508 + $0x38] sm:$0xff]
  %v3517 = vld [vmem:[%s3508 + $0x40] sm:$0xff]
  %v3518 = vld [vmem:[%s3508 + $0x48] sm:$0xff]
  %v3519 = vld [vmem:[%s3508 + $0x50] sm:$0xff]
  %v3520 = vld [vmem:[%s3508 + $0x58] sm:$0xff]
  %v3521 = vld [vmem:[%s3508 + $0x60] sm:$0xff]
  %v3522 = vld [vmem:[%s3508 + $0x68] sm:$0xff]
  %v3523 = vld [vmem:[%s3508 + $0x70] sm:$0xff]
  %v3524 = vld [vmem:[%s3508 + $0x78] sm:$0xff]
  %v3525 = vld [vmem:[%s3508 + $0x80] sm:$0xff]
  %v3526 = vld [vmem:[%s3508 + $0x88] sm:$0xff]
  %v3527 = vld [vmem:[%s3508 + $0x90] sm:$0xff]
  %v3528 = vld [vmem:[%s3508 + $0x98] sm:$0xff]
  %v3529 = vld [vmem:[%s3508 + $0xa0] sm:$0xff]
  %v3530 = vld [vmem:[%s3508 + $0xa8] sm:$0xff]
  %v3531 = vld [vmem:[%s3508 + $0xb0] sm:$0xff]
  %v3532 = vld [vmem:[%s3508 + $0xb8] sm:$0xff]
  %v3533 = vld [vmem:[%s3508 + $0xc0] sm:$0xff]
  %v3534 = vld [vmem:[%s3508 + $0xc8] sm:$0xff]
  %v3535 = vld [vmem:[%s3508 + $0xd0] sm:$0xff]
  %v3536 = vld [vmem:[%s3508 + $0xd8] sm:$0xff]
  %v3537 = vld [vmem:[%s3508 + $0xe0] sm:$0xff]
  %v3538 = vld [vmem:[%s3508 + $0xe8] sm:$0xff]
  %v3539 = vld [vmem:[%s3508 + $0xf0] sm:$0xff]
  %v3540 = vld [vmem:[%s3508 + $0xf8] sm:$0xff]
  %v3541 = vld [vmem:[%s3508 + $0x100] sm:$0xff]
  %v3542 = vld [vmem:[%s3508 + $0x108] sm:$0xff]
  %v3543 = vld [vmem:[%s3508 + $0x110] sm:$0xff]
  %v3544 = vld [vmem:[%s3508 + $0x118] sm:$0xff]
  %v3545 = vld [vmem:[%s3508 + $0x120] sm:$0x1]
  %v3547 = vsel %vm2370, %v3545, 0
  %3549 = vmatprep.subr.mxu0 0.0
  %3550 = vmatpush1.msra.mxu0 %v3509
  %3551 = vmatprep.subr.mxu0 0.0
  %3552 = vmatpush1.msra.mxu0 %v3510
  %3553 = vmatprep.subr.mxu0 0.0
  %3554 = vmatpush1.msra.mxu0 %v3511
  %3555 = vmatprep.subr.mxu0 0.0
  %3556 = vmatpush1.msra.mxu0 %v3512
  %3557 = vmatprep.subr.mxu0 0.0
  %3558 = vmatpush1.msra.mxu0 %v3513
  %3559 = vmatprep.subr.mxu0 0.0
  %3560 = vmatpush1.msra.mxu0 %v3514
  %3561 = vmatprep.subr.mxu0 0.0
  %3562 = vmatpush1.msra.mxu0 %v3515
  %3563 = vmatprep.subr.mxu0 0.0
  %3564 = vmatpush1.msra.mxu0 %v3516
  %3565 = vmatprep.subr.mxu0 0.0
  %3566 = vmatpush1.msra.mxu0 %v3517
  %3567 = vmatprep.subr.mxu0 0.0
  %3568 = vmatpush1.msra.mxu0 %v3518
  %3569 = vmatprep.subr.mxu0 0.0
  %3570 = vmatpush1.msra.mxu0 %v3519
  %3571 = vmatprep.subr.mxu0 0.0
  %3572 = vmatpush1.msra.mxu0 %v3520
  %3573 = vmatprep.subr.mxu0 0.0
  %3574 = vmatpush1.msra.mxu0 %v3521
  %3575 = vmatprep.subr.mxu0 0.0
  %3576 = vmatpush1.msra.mxu0 %v3522
  %3577 = vmatprep.subr.mxu0 0.0
  %3578 = vmatpush1.msra.mxu0 %v3523
  %3579 = vmatprep.subr.mxu0 0.0
  %3580 = vmatpush1.msra.mxu0 %v3524
  %3581 = vmatprep.subr.mxu0 0.0
  %3582 = vmatpush1.msra.mxu0 %v3525
  %3583 = vmatprep.subr.mxu0 0.0
  %3584 = vmatpush1.msra.mxu0 %v3526
  %3585 = vmatprep.subr.mxu0 0.0
  %3586 = vmatpush1.msra.mxu0 %v3527
  %3587 = vmatprep.subr.mxu0 0.0
  %3588 = vmatpush1.msra.mxu0 %v3528
  %3589 = vmatprep.subr.mxu0 0.0
  %3590 = vmatpush1.msra.mxu0 %v3529
  %3591 = vmatprep.subr.mxu0 0.0
  %3592 = vmatpush1.msra.mxu0 %v3530
  %3593 = vmatprep.subr.mxu0 0.0
  %3594 = vmatpush1.msra.mxu0 %v3531
  %3595 = vmatprep.subr.mxu0 0.0
  %3596 = vmatpush1.msra.mxu0 %v3532
  %3597 = vmatprep.subr.mxu0 0.0
  %3598 = vmatpush1.msra.mxu0 %v3533
  %3599 = vmatprep.subr.mxu0 0.0
  %3600 = vmatpush1.msra.mxu0 %v3534
  %3601 = vmatprep.subr.mxu0 0.0
  %3602 = vmatpush1.msra.mxu0 %v3535
  %3603 = vmatprep.subr.mxu0 0.0
  %3604 = vmatpush1.msra.mxu0 %v3536
  %3605 = vmatprep.subr.mxu0 0.0
  %3606 = vmatpush1.msra.mxu0 %v3537
  %3607 = vmatprep.subr.mxu0 0.0
  %3608 = vmatpush1.msra.mxu0 %v3538
  %3609 = vmatprep.subr.mxu0 0.0
  %3610 = vmatpush1.msra.mxu0 %v3539
  %3611 = vmatprep.subr.mxu0 0.0
  %3612 = vmatpush1.msra.mxu0 %v3540
  %3613 = vmatprep.mubr.f32.mxu0 %v2263
  %3614 = vmatmul.mubr.f32.gmra.mrb[0].mxu0 %v2261
  %v3615 = vpop.f32.mrb[0].mxu0
  %v3616 = vadd.f32 0.0, %v3615
  %v3617 = vpop.f32.mrb[0].mxu0
  %3618 = vmatprep.mubr.f32.mxu0 %v2269
  %3619 = vmatmul.mubr.f32.gmra.mrb[0].mxu0 %v2267
  %v3620 = vpop.f32.mrb[0].mxu0
  %v3621 = vadd.f32 0.0, %v3620
  %v3622 = vpop.f32.mrb[0].mxu0
  %3623 = vmatprep.mubr.f32.mxu0 %v2275
  %3624 = vmatmul.mubr.f32.gmra.mrb[0].mxu0 %v2273
  %v3625 = vpop.f32.mrb[0].mxu0
  %v3626 = vadd.f32 0.0, %v3625
  %v3627 = vpop.f32.mrb[0].mxu0
  %3628 = vmatprep.mubr.f32.mxu0 %v2281
  %3629 = vmatmul.mubr.f32.gmra.mrb[0].mxu0 %v2279
  %v3630 = vpop.f32.mrb[0].mxu0
  %v3631 = vadd.f32 0.0, %v3630
  %v3632 = vpop.f32.mrb[0].mxu0
  %3633 = vmatprep.mubr.f32.mxu0 %v2287
  %3634 = vmatmul.mubr.f32.gmra.mrb[0].mxu0 %v2285
  %v3635 = vpop.f32.mrb[0].mxu0
  %v3636 = vadd.f32 0.0, %v3635
  %v3637 = vpop.f32.mrb[0].mxu0
  %3638 = vmatprep.mubr.f32.mxu0 %v2293
  %3639 = vmatmul.mubr.f32.gmra.mrb[0].mxu0 %v2291
  %v3640 = vpop.f32.mrb[0].mxu0
  %v3641 = vadd.f32 0.0, %v3640
  %v3642 = vpop.f32.mrb[0].mxu0
  %3643 = vmatprep.mubr.f32.mxu0 %v2299
  %3644 = vmatmul.mubr.f32.gmra.mrb[0].mxu0 %v2297
  %v3645 = vpop.f32.mrb[0].mxu0
  %v3646 = vadd.f32 0.0, %v3645
  %v3647 = vpop.f32.mrb[0].mxu0
  %3648 = vmatprep.mubr.f32.mxu0 %v2305
  %3649 = vmatmul.mubr.f32.gmra.mrb[0].mxu0 %v2303
  %v3650 = vpop.f32.mrb[0].mxu0
  %v3651 = vadd.f32 0.0, %v3650
  %v3652 = vpop.f32.mrb[0].mxu0
  %3653 = vdwg.mxu0
  %3654 = vmatprep.subr.mxu0 0.0
  %3655 = vmatpush1.msra.mxu0 %v3541
  %3656 = vmatprep.subr.mxu0 0.0
  %3657 = vmatpush1.msra.mxu0 %v3542
  %3658 = vmatprep.subr.mxu0 0.0
  %3659 = vmatpush1.msra.mxu0 %v3543
  %3660 = vmatprep.subr.mxu0 0.0
  %3661 = vmatpush1.msra.mxu0 %v3544
  %3662 = vmatprep.subr.mxu0 0.0
  %3663 = vmatpush1.msra.mxu0 %v3547
  %3664 = vmatprep.subr.mxu0 0.0
  %3665 = vmatpush1.msra.mxu0 0.0
  %3666 = vmatprep.subr.mxu0 0.0
  %3667 = vmatpush1.msra.mxu0 0.0
  %3668 = vmatprep.subr.mxu0 0.0
  %3669 = vmatpush1.msra.mxu0 0.0
  %3670 = vmatprep.subr.mxu0 0.0
  %3671 = vmatpush1.msra.mxu0 0.0
  %3672 = vmatprep.subr.mxu0 0.0
  %3673 = vmatpush1.msra.mxu0 0.0
  %3674 = vmatprep.subr.mxu0 0.0
  %3675 = vmatpush1.msra.mxu0 0.0
  %3676 = vmatprep.subr.mxu0 0.0
  %3677 = vmatpush1.msra.mxu0 0.0
  %3678 = vmatprep.subr.mxu0 0.0
  %3679 = vmatpush1.msra.mxu0 0.0
  %3680 = vmatprep.subr.mxu0 0.0
  %3681 = vmatpush1.msra.mxu0 0.0
  %3682 = vmatprep.subr.mxu0 0.0
  %3683 = vmatpush1.msra.mxu0 0.0
  %3684 = vmatprep.subr.mxu0 0.0
  %3685 = vmatpush1.msra.mxu0 0.0
  %3686 = vmatprep.subr.mxu0 0.0
  %3687 = vmatpush1.msra.mxu0 0.0
  %3688 = vmatprep.subr.mxu0 0.0
  %3689 = vmatpush1.msra.mxu0 0.0
  %3690 = vmatprep.subr.mxu0 0.0
  %3691 = vmatpush1.msra.mxu0 0.0
  %3692 = vmatprep.subr.mxu0 0.0
  %3693 = vmatpush1.msra.mxu0 0.0
  %3694 = vmatprep.subr.mxu0 0.0
  %3695 = vmatpush1.msra.mxu0 0.0
  %3696 = vmatprep.subr.mxu0 0.0
  %3697 = vmatpush1.msra.mxu0 0.0
  %3698 = vmatprep.subr.mxu0 0.0
  %3699 = vmatpush1.msra.mxu0 0.0
  %3700 = vmatprep.subr.mxu0 0.0
  %3701 = vmatpush1.msra.mxu0 0.0
  %3702 = vmatprep.subr.mxu0 0.0
  %3703 = vmatpush1.msra.mxu0 0.0
  %3704 = vmatprep.subr.mxu0 0.0
  %3705 = vmatpush1.msra.mxu0 0.0
  %3706 = vmatprep.subr.mxu0 0.0
  %3707 = vmatpush1.msra.mxu0 0.0
  %3708 = vmatprep.subr.mxu0 0.0
  %3709 = vmatpush1.msra.mxu0 0.0
  %3710 = vmatprep.subr.mxu0 0.0
  %3711 = vmatpush1.msra.mxu0 0.0
  %3712 = vmatprep.subr.mxu0 0.0
  %3713 = vmatpush1.msra.mxu0 0.0
  %3714 = vmatprep.subr.mxu0 0.0
  %3715 = vmatpush1.msra.mxu0 0.0
  %3716 = vmatprep.subr.mxu0 0.0
  %3717 = vmatpush1.msra.mxu0 0.0
  %3718 = vmatprep.mubr.f32.mxu0 0.0
  %3719 = vmatmul.mubr.f32.gmra.mrb[0].mxu0 %v2347
  %v3720 = vpop.f32.mrb[0].mxu0
  %v3721 = vadd.f32 %v3616, %v3720
  %v3722 = vpop.f32.mrb[0].mxu0
  %3723 = vmatprep.mubr.f32.mxu0 0.0
  %3724 = vmatmul.mubr.f32.gmra.mrb[0].mxu0 %v2350
  %v3725 = vpop.f32.mrb[0].mxu0
  %v3726 = vadd.f32 %v3621, %v3725
  %v3727 = vpop.f32.mrb[0].mxu0
  %3728 = vmatprep.mubr.f32.mxu0 0.0
  %3729 = vmatmul.mubr.f32.gmra.mrb[0].mxu0 %v2353
  %v3730 = vpop.f32.mrb[0].mxu0
  %v3731 = vadd.f32 %v3626, %v3730
  %v3732 = vpop.f32.mrb[0].mxu0
  %3733 = vmatprep.mubr.f32.mxu0 0.0
  %3734 = vmatmul.mubr.f32.gmra.mrb[0].mxu0 %v2356
  %v3735 = vpop.f32.mrb[0].mxu0
  %v3736 = vadd.f32 %v3631, %v3735
  %v3737 = vpop.f32.mrb[0].mxu0
  %3738 = vmatprep.mubr.f32.mxu0 0.0
  %3739 = vmatmul.mubr.f32.gmra.mrb[0].mxu0 %v2359
  %v3740 = vpop.f32.mrb[0].mxu0
  %v3741 = vadd.f32 %v3636, %v3740
  %v3742 = vpop.f32.mrb[0].mxu0
  %3743 = vmatprep.mubr.f32.mxu0 0.0
  %3744 = vmatmul.mubr.f32.gmra.mrb[0].mxu0 %v2362
  %v3745 = vpop.f32.mrb[0].mxu0
  %v3746 = vadd.f32 %v3641, %v3745
  %v3747 = vpop.f32.mrb[0].mxu0
  %3748 = vmatprep.mubr.f32.mxu0 0.0
  %3749 = vmatmul.mubr.f32.gmra.mrb[0].mxu0 %v2365
  %v3750 = vpop.f32.mrb[0].mxu0
  %v3751 = vadd.f32 %v3646, %v3750
  %v3752 = vpop.f32.mrb[0].mxu0
  %3753 = vmatprep.mubr.f32.mxu0 0.0
  %3754 = vmatmul.mubr.f32.gmra.mrb[0].mxu0 %v2368
  %v3755 = vpop.f32.mrb[0].mxu0
  %v3756 = vadd.f32 %v3651, %v3755
  %v3757 = vpop.f32.mrb[0].mxu0
  %3758 = vdwg.mxu0
  %s3759 = scalar_lea.vmem %s5, 192
  %v3760 = vld [vmem:[%s3759] sm:$0xff]
  %v3761 = vld [vmem:[%s3759 + $0x8] sm:$0xff]
  %v3762 = vld [vmem:[%s3759 + $0x10] sm:$0xff]
  %v3763 = vld [vmem:[%s3759 + $0x18] sm:$0xff]
  %v3764 = vld [vmem:[%s3759 + $0x20] sm:$0xff]
  %v3765 = vld [vmem:[%s3759 + $0x28] sm:$0xff]
  %v3766 = vld [vmem:[%s3759 + $0x30] sm:$0xff]
  %v3767 = vld [vmem:[%s3759 + $0x38] sm:$0xff]
  %v3769 = vsel %vm2852, %v3760, 0
  %v3772 = vsel %vm2852, %v3761, 0
  %v3775 = vsel %vm2852, %v3762, 0
  %v3778 = vsel %vm2852, %v3763, 0
  %v3781 = vsel %vm2852, %v3764, 0
  %v3784 = vsel %vm2852, %v3765, 0
  %v3787 = vsel %vm2852, %v3766, 0
  %v3790 = vsel %vm2852, %v3767, 0
  %3792 = vmatprep.subr.mxu0 0.0
  %3793 = vmatpush1.msra.mxu0 %v3721
  %3794 = vmatprep.subr.mxu0 0.0
  %3795 = vmatpush1.msra.mxu0 %v3726
  %3796 = vmatprep.subr.mxu0 0.0
  %3797 = vmatpush1.msra.mxu0 %v3731
  %3798 = vmatprep.subr.mxu0 0.0
  %3799 = vmatpush1.msra.mxu0 %v3736
  %3800 = vmatprep.subr.mxu0 0.0
  %3801 = vmatpush1.msra.mxu0 %v3741
  %3802 = vmatprep.subr.mxu0 0.0
  %3803 = vmatpush1.msra.mxu0 %v3746
  %3804 = vmatprep.subr.mxu0 0.0
  %3805 = vmatpush1.msra.mxu0 %v3751
  %3806 = vmatprep.subr.mxu0 0.0
  %3807 = vmatpush1.msra.mxu0 %v3756
  %3808 = vmatprep.subr.mxu0 0.0
  %3809 = vmatpush1.msra.mxu0 0.0
  %3810 = vmatprep.subr.mxu0 0.0
  %3811 = vmatpush1.msra.mxu0 0.0
  %3812 = vmatprep.subr.mxu0 0.0
  %3813 = vmatpush1.msra.mxu0 0.0
  %3814 = vmatprep.subr.mxu0 0.0
  %3815 = vmatpush1.msra.mxu0 0.0
  %3816 = vmatprep.subr.mxu0 0.0
  %3817 = vmatpush1.msra.mxu0 0.0
  %3818 = vmatprep.subr.mxu0 0.0
  %3819 = vmatpush1.msra.mxu0 0.0
  %3820 = vmatprep.subr.mxu0 0.0
  %3821 = vmatpush1.msra.mxu0 0.0
  %3822 = vmatprep.subr.mxu0 0.0
  %3823 = vmatpush1.msra.mxu0 0.0
  %3824 = vmatprep.subr.mxu0 0.0
  %3825 = vmatpush1.msra.mxu0 0.0
  %3826 = vmatprep.subr.mxu0 0.0
  %3827 = vmatpush1.msra.mxu0 0.0
  %3828 = vmatprep.subr.mxu0 0.0
  %3829 = vmatpush1.msra.mxu0 0.0
  %3830 = vmatprep.subr.mxu0 0.0
  %3831 = vmatpush1.msra.mxu0 0.0
  %3832 = vmatprep.subr.mxu0 0.0
  %3833 = vmatpush1.msra.mxu0 0.0
  %3834 = vmatprep.subr.mxu0 0.0
  %3835 = vmatpush1.msra.mxu0 0.0
  %3836 = vmatprep.subr.mxu0 0.0
  %3837 = vmatpush1.msra.mxu0 0.0
  %3838 = vmatprep.subr.mxu0 0.0
  %3839 = vmatpush1.msra.mxu0 0.0
  %3840 = vmatprep.subr.mxu0 0.0
  %3841 = vmatpush1.msra.mxu0 0.0
  %3842 = vmatprep.subr.mxu0 0.0
  %3843 = vmatpush1.msra.mxu0 0.0
  %3844 = vmatprep.subr.mxu0 0.0
  %3845 = vmatpush1.msra.mxu0 0.0
  %3846 = vmatprep.subr.mxu0 0.0
  %3847 = vmatpush1.msra.mxu0 0.0
  %3848 = vmatprep.subr.mxu0 0.0
  %3849 = vmatpush1.msra.mxu0 0.0
  %3850 = vmatprep.subr.mxu0 0.0
  %3851 = vmatpush1.msra.mxu0 0.0
  %3852 = vmatprep.subr.mxu0 0.0
  %3853 = vmatpush1.msra.mxu0 0.0
  %3854 = vmatprep.subr.mxu0 0.0
  %3855 = vmatpush1.msra.mxu0 0.0
  %3856 = vmatprep.mubr.f32.mxu0 0.0
  %3857 = vmatmul.mubr.f32.gmra.mrb[0].mxu0 %v3769
  %v3858 = vpop.f32.mrb[0].mxu0
  %v3859 = vadd.f32 0.0, %v3858
  %v3860 = vpop.f32.mrb[0].mxu0
  %3861 = vmatprep.mubr.f32.mxu0 0.0
  %3862 = vmatmul.mubr.f32.gmra.mrb[0].mxu0 %v3772
  %v3863 = vpop.f32.mrb[0].mxu0
  %v3864 = vadd.f32 0.0, %v3863
  %v3865 = vpop.f32.mrb[0].mxu0
  %3866 = vmatprep.mubr.f32.mxu0 0.0
  %3867 = vmatmul.mubr.f32.gmra.mrb[0].mxu0 %v3775
  %v3868 = vpop.f32.mrb[0].mxu0
  %v3869 = vadd.f32 0.0, %v3868
  %v3870 = vpop.f32.mrb[0].mxu0
  %3871 = vmatprep.mubr.f32.mxu0 0.0
  %3872 = vmatmul.mubr.f32.gmra.mrb[0].mxu0 %v3778
  %v3873 = vpop.f32.mrb[0].mxu0
  %v3874 = vadd.f32 0.0, %v3873
  %v3875 = vpop.f32.mrb[0].mxu0
  %3876 = vmatprep.mubr.f32.mxu0 0.0
  %3877 = vmatmul.mubr.f32.gmra.mrb[0].mxu0 %v3781
  %v3878 = vpop.f32.mrb[0].mxu0
  %v3879 = vadd.f32 0.0, %v3878
  %v3880 = vpop.f32.mrb[0].mxu0
  %3881 = vmatprep.mubr.f32.mxu0 0.0
  %3882 = vmatmul.mubr.f32.gmra.mrb[0].mxu0 %v3784
  %v3883 = vpop.f32.mrb[0].mxu0
  %v3884 = vadd.f32 0.0, %v3883
  %v3885 = vpop.f32.mrb[0].mxu0
  %3886 = vmatprep.mubr.f32.mxu0 0.0
  %3887 = vmatmul.mubr.f32.gmra.mrb[0].mxu0 %v3787
  %v3888 = vpop.f32.mrb[0].mxu0
  %v3889 = vadd.f32 0.0, %v3888
  %v3890 = vpop.f32.mrb[0].mxu0
  %3891 = vmatprep.mubr.f32.mxu0 0.0
  %3892 = vmatmul.mubr.f32.gmra.mrb[0].mxu0 %v3790
  %v3893 = vpop.f32.mrb[0].mxu0
  %v3894 = vadd.f32 0.0, %v3893
  %v3895 = vpop.f32.mrb[0].mxu0
  %3896 = vdwg.mxu0
  %v3897 = vadd.f32 %v3500, %v3859
  %v3898 = vadd.f32 %v3501, %v3864
  %v3899 = vadd.f32 %v3502, %v3869
  %v3900 = vadd.f32 %v3503, %v3874
  %v3901 = vadd.f32 %v3504, %v3879
  %v3902 = vadd.f32 %v3505, %v3884
  %v3903 = vadd.f32 %v3506, %v3889
  %v3904 = vadd.f32 %v3507, %v3894
  %v3905 = vld [vmem:[%s6] sm:$0xff]
  %v3906 = vld [vmem:[%s6 + $0x8] sm:$0xff]
  %v3907 = vld [vmem:[%s6 + $0x10] sm:$0xff]
  %v3908 = vld [vmem:[%s6 + $0x18] sm:$0xff]
  %v3909 = vld [vmem:[%s6 + $0x20] sm:$0xff]
  %v3910 = vld [vmem:[%s6 + $0x28] sm:$0xff]
  %v3911 = vld [vmem:[%s6 + $0x30] sm:$0xff]
  %v3912 = vld [vmem:[%s6 + $0x38] sm:$0xff]
  %3914 = vset.pattern.permute.xlu0 0
  %3915 = vperm.xlu0 %3914, %v3905
  %v3916 = vpop.permute.xlu0 %3915
  %3919 = vset.pattern.permute.xlu0 0
  %3920 = vperm.xlu0 %3919, %v3906
  %v3921 = vpop.permute.xlu0 %3920
  %3924 = vset.pattern.permute.xlu0 0
  %3925 = vperm.xlu0 %3924, %v3907
  %v3926 = vpop.permute.xlu0 %3925
  %3929 = vset.pattern.permute.xlu0 0
  %3930 = vperm.xlu0 %3929, %v3908
  %v3931 = vpop.permute.xlu0 %3930
  %3934 = vset.pattern.permute.xlu0 0
  %3935 = vperm.xlu0 %3934, %v3909
  %v3936 = vpop.permute.xlu0 %3935
  %3939 = vset.pattern.permute.xlu0 0
  %3940 = vperm.xlu0 %3939, %v3910
  %v3941 = vpop.permute.xlu0 %3940
  %3944 = vset.pattern.permute.xlu0 0
  %3945 = vperm.xlu0 %3944, %v3911
  %v3946 = vpop.permute.xlu0 %3945
  %3949 = vset.pattern.permute.xlu0 0
  %3950 = vperm.xlu0 %3949, %v3912
  %v3951 = vpop.permute.xlu0 %3950
  %v3953 = vadd.f32 %v3897, %v3916
  %v3954 = vadd.f32 %v3898, %v3921
  %v3955 = vadd.f32 %v3899, %v3926
  %v3956 = vadd.f32 %v3900, %v3931
  %v3957 = vadd.f32 %v3901, %v3936
  %v3958 = vadd.f32 %v3902, %v3941
  %v3959 = vadd.f32 %v3903, %v3946
  %v3960 = vadd.f32 %v3904, %v3951
  %v3961 = vxor.u32 %v3953, 2147483648
  %v3962 = vxor.u32 %v3954, 2147483648
  %v3963 = vxor.u32 %v3955, 2147483648
  %v3964 = vxor.u32 %v3956, 2147483648
  %v3965 = vxor.u32 %v3957, 2147483648
  %v3966 = vxor.u32 %v3958, 2147483648
  %v3967 = vxor.u32 %v3959, 2147483648
  %v3968 = vxor.u32 %v3960, 2147483648
  %v3969 = vmul.f32 %v3961, 1.442695
  %v3970 = vpow.pop %v3969
  %v3971 = vmul.f32 %v3962, 1.442695
  %v3972 = vpow.pop %v3971
  %v3973 = vmul.f32 %v3963, 1.442695
  %v3974 = vpow.pop %v3973
  %v3975 = vmul.f32 %v3964, 1.442695
  %v3976 = vpow.pop %v3975
  %v3977 = vmul.f32 %v3965, 1.442695
  %v3978 = vpow.pop %v3977
  %v3979 = vmul.f32 %v3966, 1.442695
  %v3980 = vpow.pop %v3979
  %v3981 = vmul.f32 %v3967, 1.442695
  %v3982 = vpow.pop %v3981
  %v3983 = vmul.f32 %v3968, 1.442695
  %v3984 = vpow.pop %v3983
  %v3985 = vadd.f32 %v3970, 1.0
  %v3986 = vadd.f32 %v3972, 1.0
  %v3987 = vadd.f32 %v3974, 1.0
  %v3988 = vadd.f32 %v3976, 1.0
  %v3989 = vadd.f32 %v3978, 1.0
  %v3990 = vadd.f32 %v3980, 1.0
  %v3991 = vadd.f32 %v3982, 1.0
  %v3992 = vadd.f32 %v3984, 1.0
  %v3993 = vrcp.pop %v3985
  %v3994 = vmul.f32 1.0, %v3993
  %v3995 = vrcp.pop %v3986
  %v3996 = vmul.f32 1.0, %v3995
  %v3997 = vrcp.pop %v3987
  %v3998 = vmul.f32 1.0, %v3997
  %v3999 = vrcp.pop %v3988
  %v4000 = vmul.f32 1.0, %v3999
  %v4001 = vrcp.pop %v3989
  %v4002 = vmul.f32 1.0, %v4001
  %v4003 = vrcp.pop %v3990
  %v4004 = vmul.f32 1.0, %v4003
  %v4005 = vrcp.pop %v3991
  %v4006 = vmul.f32 1.0, %v4005
  %v4007 = vrcp.pop %v3992
  %v4008 = vmul.f32 1.0, %v4007
  %v4009 = vld [vmem:[%s7] sm:$0xff]
  %v4010 = vld [vmem:[%s7 + $0x8] sm:$0xff]
  %v4011 = vld [vmem:[%s7 + $0x10] sm:$0xff]
  %v4012 = vld [vmem:[%s7 + $0x18] sm:$0xff]
  %v4013 = vld [vmem:[%s7 + $0x20] sm:$0xff]
  %v4014 = vld [vmem:[%s7 + $0x28] sm:$0xff]
  %v4015 = vld [vmem:[%s7 + $0x30] sm:$0xff]
  %v4016 = vld [vmem:[%s7 + $0x38] sm:$0xff]
  %v4017 = vld [vmem:[%s7 + $0x40] sm:$0xff]
  %v4018 = vld [vmem:[%s7 + $0x48] sm:$0xff]
  %v4019 = vld [vmem:[%s7 + $0x50] sm:$0x1]
  %vm4020 = vcmask 662528
  %v4022 = vsel %vm4020, %v3994, 0
  %v4025 = vsel %vm4020, %v3996, 0
  %v4028 = vsel %vm4020, %v3998, 0
  %v4031 = vsel %vm4020, %v4000, 0
  %v4034 = vsel %vm4020, %v4002, 0
  %v4037 = vsel %vm4020, %v4004, 0
  %v4040 = vsel %vm4020, %v4006, 0
  %v4043 = vsel %vm4020, %v4008, 0
  %v4046 = vsel %vm2370, %v4019, 0
  %4048 = vmatprep.subr.mxu0 0.0
  %4049 = vmatpush1.msra.mxu0 %v4009
  %4050 = vmatprep.subr.mxu0 0.0
  %4051 = vmatpush1.msra.mxu0 %v4010
  %4052 = vmatprep.subr.mxu0 0.0
  %4053 = vmatpush1.msra.mxu0 %v4011
  %4054 = vmatprep.subr.mxu0 0.0
  %4055 = vmatpush1.msra.mxu0 %v4012
  %4056 = vmatprep.subr.mxu0 0.0
  %4057 = vmatpush1.msra.mxu0 %v4013
  %4058 = vmatprep.subr.mxu0 0.0
  %4059 = vmatpush1.msra.mxu0 %v4014
  %4060 = vmatprep.subr.mxu0 0.0
  %4061 = vmatpush1.msra.mxu0 %v4015
  %4062 = vmatprep.subr.mxu0 0.0
  %4063 = vmatpush1.msra.mxu0 %v4016
  %4064 = vmatprep.subr.mxu0 0.0
  %4065 = vmatpush1.msra.mxu0 %v4017
  %4066 = vmatprep.subr.mxu0 0.0
  %4067 = vmatpush1.msra.mxu0 %v4018
  %4068 = vmatprep.subr.mxu0 0.0
  %4069 = vmatpush1.msra.mxu0 %v4046
  %4070 = vmatprep.subr.mxu0 0.0
  %4071 = vmatpush1.msra.mxu0 0.0
  %4072 = vmatprep.subr.mxu0 0.0
  %4073 = vmatpush1.msra.mxu0 0.0
  %4074 = vmatprep.subr.mxu0 0.0
  %4075 = vmatpush1.msra.mxu0 0.0
  %4076 = vmatprep.subr.mxu0 0.0
  %4077 = vmatpush1.msra.mxu0 0.0
  %4078 = vmatprep.subr.mxu0 0.0
  %4079 = vmatpush1.msra.mxu0 0.0
  %4080 = vmatprep.subr.mxu0 0.0
  %4081 = vmatpush1.msra.mxu0 0.0
  %4082 = vmatprep.subr.mxu0 0.0
  %4083 = vmatpush1.msra.mxu0 0.0
  %4084 = vmatprep.subr.mxu0 0.0
  %4085 = vmatpush1.msra.mxu0 0.0
  %4086 = vmatprep.subr.mxu0 0.0
  %4087 = vmatpush1.msra.mxu0 0.0
  %4088 = vmatprep.subr.mxu0 0.0
  %4089 = vmatpush1.msra.mxu0 0.0
  %4090 = vmatprep.subr.mxu0 0.0
  %4091 = vmatpush1.msra.mxu0 0.0
  %4092 = vmatprep.subr.mxu0 0.0
  %4093 = vmatpush1.msra.mxu0 0.0
  %4094 = vmatprep.subr.mxu0 0.0
  %4095 = vmatpush1.msra.mxu0 0.0
  %4096 = vmatprep.subr.mxu0 0.0
  %4097 = vmatpush1.msra.mxu0 0.0
  %4098 = vmatprep.subr.mxu0 0.0
  %4099 = vmatpush1.msra.mxu0 0.0
  %4100 = vmatprep.subr.mxu0 0.0
  %4101 = vmatpush1.msra.mxu0 0.0
  %4102 = vmatprep.subr.mxu0 0.0
  %4103 = vmatpush1.msra.mxu0 0.0
  %4104 = vmatprep.subr.mxu0 0.0
  %4105 = vmatpush1.msra.mxu0 0.0
  %4106 = vmatprep.subr.mxu0 0.0
  %4107 = vmatpush1.msra.mxu0 0.0
  %4108 = vmatprep.subr.mxu0 0.0
  %4109 = vmatpush1.msra.mxu0 0.0
  %4110 = vmatprep.subr.mxu0 0.0
  %4111 = vmatpush1.msra.mxu0 0.0
  %4112 = vmatprep.mubr.f32.mxu0 0.0
  %4113 = vmatmul.mubr.f32.gmra.mrb[0].mxu0 %v4022
  %v4114 = vpop.f32.mrb[0].mxu0
  %v4115 = vadd.f32 0.0, %v4114
  %v4116 = vpop.f32.mrb[0].mxu0
  %4117 = vmatprep.mubr.f32.mxu0 0.0
  %4118 = vmatmul.mubr.f32.gmra.mrb[0].mxu0 %v4025
  %v4119 = vpop.f32.mrb[0].mxu0
  %v4120 = vadd.f32 0.0, %v4119
  %v4121 = vpop.f32.mrb[0].mxu0
  %4122 = vmatprep.mubr.f32.mxu0 0.0
  %4123 = vmatmul.mubr.f32.gmra.mrb[0].mxu0 %v4028
  %v4124 = vpop.f32.mrb[0].mxu0
  %v4125 = vadd.f32 0.0, %v4124
  %v4126 = vpop.f32.mrb[0].mxu0
  %4127 = vmatprep.mubr.f32.mxu0 0.0
  %4128 = vmatmul.mubr.f32.gmra.mrb[0].mxu0 %v4031
  %v4129 = vpop.f32.mrb[0].mxu0
  %v4130 = vadd.f32 0.0, %v4129
  %v4131 = vpop.f32.mrb[0].mxu0
  %4132 = vmatprep.mubr.f32.mxu0 0.0
  %4133 = vmatmul.mubr.f32.gmra.mrb[0].mxu0 %v4034
  %v4134 = vpop.f32.mrb[0].mxu0
  %v4135 = vadd.f32 0.0, %v4134
  %v4136 = vpop.f32.mrb[0].mxu0
  %4137 = vmatprep.mubr.f32.mxu0 0.0
  %4138 = vmatmul.mubr.f32.gmra.mrb[0].mxu0 %v4037
  %v4139 = vpop.f32.mrb[0].mxu0
  %v4140 = vadd.f32 0.0, %v4139
  %v4141 = vpop.f32.mrb[0].mxu0
  %4142 = vmatprep.mubr.f32.mxu0 0.0
  %4143 = vmatmul.mubr.f32.gmra.mrb[0].mxu0 %v4040
  %v4144 = vpop.f32.mrb[0].mxu0
  %v4145 = vadd.f32 0.0, %v4144
  %v4146 = vpop.f32.mrb[0].mxu0
  %4147 = vmatprep.mubr.f32.mxu0 0.0
  %4148 = vmatmul.mubr.f32.gmra.mrb[0].mxu0 %v4043
  %v4149 = vpop.f32.mrb[0].mxu0
  %v4150 = vadd.f32 0.0, %v4149
  %v4151 = vpop.f32.mrb[0].mxu0
  %4152 = vdwg.mxu0
  %v4153 = vld [vmem:[%s8] sm:$0xff]
  %v4154 = vld [vmem:[%s8 + $0x8] sm:$0xff]
  %v4155 = vld [vmem:[%s8 + $0x10] sm:$0xff]
  %v4156 = vld [vmem:[%s8 + $0x18] sm:$0xff]
  %v4157 = vld [vmem:[%s8 + $0x20] sm:$0xff]
  %v4158 = vld [vmem:[%s8 + $0x28] sm:$0xff]
  %v4159 = vld [vmem:[%s8 + $0x30] sm:$0xff]
  %v4160 = vld [vmem:[%s8 + $0x38] sm:$0xff]
  %s4161 = scalar_lea.vmem %s7, 88
  %v4162 = vld [vmem:[%s4161] sm:$0xff]
  %v4163 = vld [vmem:[%s4161 + $0x8] sm:$0xff]
  %v4164 = vld [vmem:[%s4161 + $0x10] sm:$0xff]
  %v4165 = vld [vmem:[%s4161 + $0x18] sm:$0xff]
  %v4166 = vld [vmem:[%s4161 + $0x20] sm:$0xff]
  %v4167 = vld [vmem:[%s4161 + $0x28] sm:$0xff]
  %v4168 = vld [vmem:[%s4161 + $0x30] sm:$0xff]
  %v4169 = vld [vmem:[%s4161 + $0x38] sm:$0xff]
  %v4170 = vld [vmem:[%s4161 + $0x40] sm:$0xff]
  %v4171 = vld [vmem:[%s4161 + $0x48] sm:$0xff]
  %v4172 = vld [vmem:[%s4161 + $0x50] sm:$0x1]
  %v4174 = vsel %vm2370, %v4172, 0
  %4176 = vmatprep.subr.mxu0 0.0
  %4177 = vmatpush1.msra.mxu0 %v4162
  %4178 = vmatprep.subr.mxu0 0.0
  %4179 = vmatpush1.msra.mxu0 %v4163
  %4180 = vmatprep.subr.mxu0 0.0
  %4181 = vmatpush1.msra.mxu0 %v4164
  %4182 = vmatprep.subr.mxu0 0.0
  %4183 = vmatpush1.msra.mxu0 %v4165
  %4184 = vmatprep.subr.mxu0 0.0
  %4185 = vmatpush1.msra.mxu0 %v4166
  %4186 = vmatprep.subr.mxu0 0.0
  %4187 = vmatpush1.msra.mxu0 %v4167
  %4188 = vmatprep.subr.mxu0 0.0
  %4189 = vmatpush1.msra.mxu0 %v4168
  %4190 = vmatprep.subr.mxu0 0.0
  %4191 = vmatpush1.msra.mxu0 %v4169
  %4192 = vmatprep.subr.mxu0 0.0
  %4193 = vmatpush1.msra.mxu0 %v4170
  %4194 = vmatprep.subr.mxu0 0.0
  %4195 = vmatpush1.msra.mxu0 %v4171
  %4196 = vmatprep.subr.mxu0 0.0
  %4197 = vmatpush1.msra.mxu0 %v4174
  %4198 = vmatprep.subr.mxu0 0.0
  %4199 = vmatpush1.msra.mxu0 0.0
  %4200 = vmatprep.subr.mxu0 0.0
  %4201 = vmatpush1.msra.mxu0 0.0
  %4202 = vmatprep.subr.mxu0 0.0
  %4203 = vmatpush1.msra.mxu0 0.0
  %4204 = vmatprep.subr.mxu0 0.0
  %4205 = vmatpush1.msra.mxu0 0.0
  %4206 = vmatprep.subr.mxu0 0.0
  %4207 = vmatpush1.msra.mxu0 0.0
  %4208 = vmatprep.subr.mxu0 0.0
  %4209 = vmatpush1.msra.mxu0 0.0
  %4210 = vmatprep.subr.mxu0 0.0
  %4211 = vmatpush1.msra.mxu0 0.0
  %4212 = vmatprep.subr.mxu0 0.0
  %4213 = vmatpush1.msra.mxu0 0.0
  %4214 = vmatprep.subr.mxu0 0.0
  %4215 = vmatpush1.msra.mxu0 0.0
  %4216 = vmatprep.subr.mxu0 0.0
  %4217 = vmatpush1.msra.mxu0 0.0
  %4218 = vmatprep.subr.mxu0 0.0
  %4219 = vmatpush1.msra.mxu0 0.0
  %4220 = vmatprep.subr.mxu0 0.0
  %4221 = vmatpush1.msra.mxu0 0.0
  %4222 = vmatprep.subr.mxu0 0.0
  %4223 = vmatpush1.msra.mxu0 0.0
  %4224 = vmatprep.subr.mxu0 0.0
  %4225 = vmatpush1.msra.mxu0 0.0
  %4226 = vmatprep.subr.mxu0 0.0
  %4227 = vmatpush1.msra.mxu0 0.0
  %4228 = vmatprep.subr.mxu0 0.0
  %4229 = vmatpush1.msra.mxu0 0.0
  %4230 = vmatprep.subr.mxu0 0.0
  %4231 = vmatpush1.msra.mxu0 0.0
  %4232 = vmatprep.subr.mxu0 0.0
  %4233 = vmatpush1.msra.mxu0 0.0
  %4234 = vmatprep.subr.mxu0 0.0
  %4235 = vmatpush1.msra.mxu0 0.0
  %4236 = vmatprep.subr.mxu0 0.0
  %4237 = vmatpush1.msra.mxu0 0.0
  %4238 = vmatprep.subr.mxu0 0.0
  %4239 = vmatpush1.msra.mxu0 0.0
  %4240 = vmatprep.mubr.f32.mxu0 0.0
  %4241 = vmatmul.mubr.f32.gmra.mrb[0].mxu0 %v4022
  %v4242 = vpop.f32.mrb[0].mxu0
  %v4243 = vadd.f32 0.0, %v4242
  %v4244 = vpop.f32.mrb[0].mxu0
  %4245 = vmatprep.mubr.f32.mxu0 0.0
  %4246 = vmatmul.mubr.f32.gmra.mrb[0].mxu0 %v4025
  %v4247 = vpop.f32.mrb[0].mxu0
  %v4248 = vadd.f32 0.0, %v4247
  %v4249 = vpop.f32.mrb[0].mxu0
  %4250 = vmatprep.mubr.f32.mxu0 0.0
  %4251 = vmatmul.mubr.f32.gmra.mrb[0].mxu0 %v4028
  %v4252 = vpop.f32.mrb[0].mxu0
  %v4253 = vadd.f32 0.0, %v4252
  %v4254 = vpop.f32.mrb[0].mxu0
  %4255 = vmatprep.mubr.f32.mxu0 0.0
  %4256 = vmatmul.mubr.f32.gmra.mrb[0].mxu0 %v4031
  %v4257 = vpop.f32.mrb[0].mxu0
  %v4258 = vadd.f32 0.0, %v4257
  %v4259 = vpop.f32.mrb[0].mxu0
  %4260 = vmatprep.mubr.f32.mxu0 0.0
  %4261 = vmatmul.mubr.f32.gmra.mrb[0].mxu0 %v4034
  %v4262 = vpop.f32.mrb[0].mxu0
  %v4263 = vadd.f32 0.0, %v4262
  %v4264 = vpop.f32.mrb[0].mxu0
  %4265 = vmatprep.mubr.f32.mxu0 0.0
  %4266 = vmatmul.mubr.f32.gmra.mrb[0].mxu0 %v4037
  %v4267 = vpop.f32.mrb[0].mxu0
  %v4268 = vadd.f32 0.0, %v4267
  %v4269 = vpop.f32.mrb[0].mxu0
  %4270 = vmatprep.mubr.f32.mxu0 0.0
  %4271 = vmatmul.mubr.f32.gmra.mrb[0].mxu0 %v4040
  %v4272 = vpop.f32.mrb[0].mxu0
  %v4273 = vadd.f32 0.0, %v4272
  %v4274 = vpop.f32.mrb[0].mxu0
  %4275 = vmatprep.mubr.f32.mxu0 0.0
  %4276 = vmatmul.mubr.f32.gmra.mrb[0].mxu0 %v4043
  %v4277 = vpop.f32.mrb[0].mxu0
  %v4278 = vadd.f32 0.0, %v4277
  %v4279 = vpop.f32.mrb[0].mxu0
  %4280 = vdwg.mxu0
  %s4281 = scalar_lea.vmem %s8, 64
  %v4282 = vld [vmem:[%s4281] sm:$0xff]
  %v4283 = vld [vmem:[%s4281 + $0x8] sm:$0xff]
  %v4284 = vld [vmem:[%s4281 + $0x10] sm:$0xff]
  %v4285 = vld [vmem:[%s4281 + $0x18] sm:$0xff]
  %v4286 = vld [vmem:[%s4281 + $0x20] sm:$0xff]
  %v4287 = vld [vmem:[%s4281 + $0x28] sm:$0xff]
  %v4288 = vld [vmem:[%s4281 + $0x30] sm:$0xff]
  %v4289 = vld [vmem:[%s4281 + $0x38] sm:$0xff]
  %v4291 = vsel %vm2852, %v4282, 0
  %v4294 = vsel %vm2852, %v4283, 0
  %v4297 = vsel %vm2852, %v4284, 0
  %v4300 = vsel %vm2852, %v4285, 0
  %v4303 = vsel %vm2852, %v4286, 0
  %v4306 = vsel %vm2852, %v4287, 0
  %v4309 = vsel %vm2852, %v4288, 0
  %v4312 = vsel %vm2852, %v4289, 0
  %4314 = vmatprep.subr.mxu0 0.0
  %4315 = vmatpush1.msra.mxu0 %v4243
  %4316 = vmatprep.subr.mxu0 0.0
  %4317 = vmatpush1.msra.mxu0 %v4248
  %4318 = vmatprep.subr.mxu0 0.0
  %4319 = vmatpush1.msra.mxu0 %v4253
  %4320 = vmatprep.subr.mxu0 0.0
  %4321 = vmatpush1.msra.mxu0 %v4258
  %4322 = vmatprep.subr.mxu0 0.0
  %4323 = vmatpush1.msra.mxu0 %v4263
  %4324 = vmatprep.subr.mxu0 0.0
  %4325 = vmatpush1.msra.mxu0 %v4268
  %4326 = vmatprep.subr.mxu0 0.0
  %4327 = vmatpush1.msra.mxu0 %v4273
  %4328 = vmatprep.subr.mxu0 0.0
  %4329 = vmatpush1.msra.mxu0 %v4278
  %4330 = vmatprep.subr.mxu0 0.0
  %4331 = vmatpush1.msra.mxu0 0.0
  %4332 = vmatprep.subr.mxu0 0.0
  %4333 = vmatpush1.msra.mxu0 0.0
  %4334 = vmatprep.subr.mxu0 0.0
  %4335 = vmatpush1.msra.mxu0 0.0
  %4336 = vmatprep.subr.mxu0 0.0
  %4337 = vmatpush1.msra.mxu0 0.0
  %4338 = vmatprep.subr.mxu0 0.0
  %4339 = vmatpush1.msra.mxu0 0.0
  %4340 = vmatprep.subr.mxu0 0.0
  %4341 = vmatpush1.msra.mxu0 0.0
  %4342 = vmatprep.subr.mxu0 0.0
  %4343 = vmatpush1.msra.mxu0 0.0
  %4344 = vmatprep.subr.mxu0 0.0
  %4345 = vmatpush1.msra.mxu0 0.0
  %4346 = vmatprep.subr.mxu0 0.0
  %4347 = vmatpush1.msra.mxu0 0.0
  %4348 = vmatprep.subr.mxu0 0.0
  %4349 = vmatpush1.msra.mxu0 0.0
  %4350 = vmatprep.subr.mxu0 0.0
  %4351 = vmatpush1.msra.mxu0 0.0
  %4352 = vmatprep.subr.mxu0 0.0
  %4353 = vmatpush1.msra.mxu0 0.0
  %4354 = vmatprep.subr.mxu0 0.0
  %4355 = vmatpush1.msra.mxu0 0.0
  %4356 = vmatprep.subr.mxu0 0.0
  %4357 = vmatpush1.msra.mxu0 0.0
  %4358 = vmatprep.subr.mxu0 0.0
  %4359 = vmatpush1.msra.mxu0 0.0
  %4360 = vmatprep.subr.mxu0 0.0
  %4361 = vmatpush1.msra.mxu0 0.0
  %4362 = vmatprep.subr.mxu0 0.0
  %4363 = vmatpush1.msra.mxu0 0.0
  %4364 = vmatprep.subr.mxu0 0.0
  %4365 = vmatpush1.msra.mxu0 0.0
  %4366 = vmatprep.subr.mxu0 0.0
  %4367 = vmatpush1.msra.mxu0 0.0
  %4368 = vmatprep.subr.mxu0 0.0
  %4369 = vmatpush1.msra.mxu0 0.0
  %4370 = vmatprep.subr.mxu0 0.0
  %4371 = vmatpush1.msra.mxu0 0.0
  %4372 = vmatprep.subr.mxu0 0.0
  %4373 = vmatpush1.msra.mxu0 0.0
  %4374 = vmatprep.subr.mxu0 0.0
  %4375 = vmatpush1.msra.mxu0 0.0
  %4376 = vmatprep.subr.mxu0 0.0
  %4377 = vmatpush1.msra.mxu0 0.0
  %4378 = vmatprep.mubr.f32.mxu0 0.0
  %4379 = vmatmul.mubr.f32.gmra.mrb[0].mxu0 %v4291
  %v4380 = vpop.f32.mrb[0].mxu0
  %v4381 = vadd.f32 0.0, %v4380
  %v4382 = vpop.f32.mrb[0].mxu0
  %4383 = vmatprep.mubr.f32.mxu0 0.0
  %4384 = vmatmul.mubr.f32.gmra.mrb[0].mxu0 %v4294
  %v4385 = vpop.f32.mrb[0].mxu0
  %v4386 = vadd.f32 0.0, %v4385
  %v4387 = vpop.f32.mrb[0].mxu0
  %4388 = vmatprep.mubr.f32.mxu0 0.0
  %4389 = vmatmul.mubr.f32.gmra.mrb[0].mxu0 %v4297
  %v4390 = vpop.f32.mrb[0].mxu0
  %v4391 = vadd.f32 0.0, %v4390
  %v4392 = vpop.f32.mrb[0].mxu0
  %4393 = vmatprep.mubr.f32.mxu0 0.0
  %4394 = vmatmul.mubr.f32.gmra.mrb[0].mxu0 %v4300
  %v4395 = vpop.f32.mrb[0].mxu0
  %v4396 = vadd.f32 0.0, %v4395
  %v4397 = vpop.f32.mrb[0].mxu0
  %4398 = vmatprep.mubr.f32.mxu0 0.0
  %4399 = vmatmul.mubr.f32.gmra.mrb[0].mxu0 %v4303
  %v4400 = vpop.f32.mrb[0].mxu0
  %v4401 = vadd.f32 0.0, %v4400
  %v4402 = vpop.f32.mrb[0].mxu0
  %4403 = vmatprep.mubr.f32.mxu0 0.0
  %4404 = vmatmul.mubr.f32.gmra.mrb[0].mxu0 %v4306
  %v4405 = vpop.f32.mrb[0].mxu0
  %v4406 = vadd.f32 0.0, %v4405
  %v4407 = vpop.f32.mrb[0].mxu0
  %4408 = vmatprep.mubr.f32.mxu0 0.0
  %4409 = vmatmul.mubr.f32.gmra.mrb[0].mxu0 %v4309
  %v4410 = vpop.f32.mrb[0].mxu0
  %v4411 = vadd.f32 0.0, %v4410
  %v4412 = vpop.f32.mrb[0].mxu0
  %4413 = vmatprep.mubr.f32.mxu0 0.0
  %4414 = vmatmul.mubr.f32.gmra.mrb[0].mxu0 %v4312
  %v4415 = vpop.f32.mrb[0].mxu0
  %v4416 = vadd.f32 0.0, %v4415
  %v4417 = vpop.f32.mrb[0].mxu0
  %4418 = vdwg.mxu0
  %v4420 = vsel %vm2852, %v4153, 0
  %v4423 = vsel %vm2852, %v4154, 0
  %v4426 = vsel %vm2852, %v4155, 0
  %v4429 = vsel %vm2852, %v4156, 0
  %v4432 = vsel %vm2852, %v4157, 0
  %v4435 = vsel %vm2852, %v4158, 0
  %v4438 = vsel %vm2852, %v4159, 0
  %v4441 = vsel %vm2852, %v4160, 0
  %4443 = vmatprep.subr.mxu0 0.0
  %4444 = vmatpush1.msra.mxu0 %v4115
  %4445 = vmatprep.subr.mxu0 0.0
  %4446 = vmatpush1.msra.mxu0 %v4120
  %4447 = vmatprep.subr.mxu0 0.0
  %4448 = vmatpush1.msra.mxu0 %v4125
  %4449 = vmatprep.subr.mxu0 0.0
  %4450 = vmatpush1.msra.mxu0 %v4130
  %4451 = vmatprep.subr.mxu0 0.0
  %4452 = vmatpush1.msra.mxu0 %v4135
  %4453 = vmatprep.subr.mxu0 0.0
  %4454 = vmatpush1.msra.mxu0 %v4140
  %4455 = vmatprep.subr.mxu0 0.0
  %4456 = vmatpush1.msra.mxu0 %v4145
  %4457 = vmatprep.subr.mxu0 0.0
  %4458 = vmatpush1.msra.mxu0 %v4150
  %4459 = vmatprep.subr.mxu0 0.0
  %4460 = vmatpush1.msra.mxu0 0.0
  %4461 = vmatprep.subr.mxu0 0.0
  %4462 = vmatpush1.msra.mxu0 0.0
  %4463 = vmatprep.subr.mxu0 0.0
  %4464 = vmatpush1.msra.mxu0 0.0
  %4465 = vmatprep.subr.mxu0 0.0
  %4466 = vmatpush1.msra.mxu0 0.0
  %4467 = vmatprep.subr.mxu0 0.0
  %4468 = vmatpush1.msra.mxu0 0.0
  %4469 = vmatprep.subr.mxu0 0.0
  %4470 = vmatpush1.msra.mxu0 0.0
  %4471 = vmatprep.subr.mxu0 0.0
  %4472 = vmatpush1.msra.mxu0 0.0
  %4473 = vmatprep.subr.mxu0 0.0
  %4474 = vmatpush1.msra.mxu0 0.0
  %4475 = vmatprep.subr.mxu0 0.0
  %4476 = vmatpush1.msra.mxu0 0.0
  %4477 = vmatprep.subr.mxu0 0.0
  %4478 = vmatpush1.msra.mxu0 0.0
  %4479 = vmatprep.subr.mxu0 0.0
  %4480 = vmatpush1.msra.mxu0 0.0
  %4481 = vmatprep.subr.mxu0 0.0
  %4482 = vmatpush1.msra.mxu0 0.0
  %4483 = vmatprep.subr.mxu0 0.0
  %4484 = vmatpush1.msra.mxu0 0.0
  %4485 = vmatprep.subr.mxu0 0.0
  %4486 = vmatpush1.msra.mxu0 0.0
  %4487 = vmatprep.subr.mxu0 0.0
  %4488 = vmatpush1.msra.mxu0 0.0
  %4489 = vmatprep.subr.mxu0 0.0
  %4490 = vmatpush1.msra.mxu0 0.0
  %4491 = vmatprep.subr.mxu0 0.0
  %4492 = vmatpush1.msra.mxu0 0.0
  %4493 = vmatprep.subr.mxu0 0.0
  %4494 = vmatpush1.msra.mxu0 0.0
  %4495 = vmatprep.subr.mxu0 0.0
  %4496 = vmatpush1.msra.mxu0 0.0
  %4497 = vmatprep.subr.mxu0 0.0
  %4498 = vmatpush1.msra.mxu0 0.0
  %4499 = vmatprep.subr.mxu0 0.0
  %4500 = vmatpush1.msra.mxu0 0.0
  %4501 = vmatprep.subr.mxu0 0.0
  %4502 = vmatpush1.msra.mxu0 0.0
  %4503 = vmatprep.subr.mxu0 0.0
  %4504 = vmatpush1.msra.mxu0 0.0
  %4505 = vmatprep.subr.mxu0 0.0
  %4506 = vmatpush1.msra.mxu0 0.0
  %4507 = vmatprep.mubr.f32.mxu0 0.0
  %4508 = vmatmul.mubr.f32.gmra.mrb[0].mxu0 %v4420
  %v4509 = vpop.f32.mrb[0].mxu0
  %v4510 = vadd.f32 %v4381, %v4509
  %v4511 = vpop.f32.mrb[0].mxu0
  %4512 = vmatprep.mubr.f32.mxu0 0.0
  %4513 = vmatmul.mubr.f32.gmra.mrb[0].mxu0 %v4423
  %v4514 = vpop.f32.mrb[0].mxu0
  %v4515 = vadd.f32 %v4386, %v4514
  %v4516 = vpop.f32.mrb[0].mxu0
  %4517 = vmatprep.mubr.f32.mxu0 0.0
  %4518 = vmatmul.mubr.f32.gmra.mrb[0].mxu0 %v4426
  %v4519 = vpop.f32.mrb[0].mxu0
  %v4520 = vadd.f32 %v4391, %v4519
  %v4521 = vpop.f32.mrb[0].mxu0
  %4522 = vmatprep.mubr.f32.mxu0 0.0
  %4523 = vmatmul.mubr.f32.gmra.mrb[0].mxu0 %v4429
  %v4524 = vpop.f32.mrb[0].mxu0
  %v4525 = vadd.f32 %v4396, %v4524
  %v4526 = vpop.f32.mrb[0].mxu0
  %4527 = vmatprep.mubr.f32.mxu0 0.0
  %4528 = vmatmul.mubr.f32.gmra.mrb[0].mxu0 %v4432
  %v4529 = vpop.f32.mrb[0].mxu0
  %v4530 = vadd.f32 %v4401, %v4529
  %v4531 = vpop.f32.mrb[0].mxu0
  %4532 = vmatprep.mubr.f32.mxu0 0.0
  %4533 = vmatmul.mubr.f32.gmra.mrb[0].mxu0 %v4435
  %v4534 = vpop.f32.mrb[0].mxu0
  %v4535 = vadd.f32 %v4406, %v4534
  %v4536 = vpop.f32.mrb[0].mxu0
  %4537 = vmatprep.mubr.f32.mxu0 0.0
  %4538 = vmatmul.mubr.f32.gmra.mrb[0].mxu0 %v4438
  %v4539 = vpop.f32.mrb[0].mxu0
  %v4540 = vadd.f32 %v4411, %v4539
  %v4541 = vpop.f32.mrb[0].mxu0
  %4542 = vmatprep.mubr.f32.mxu0 0.0
  %4543 = vmatmul.mubr.f32.gmra.mrb[0].mxu0 %v4441
  %v4544 = vpop.f32.mrb[0].mxu0
  %v4545 = vadd.f32 %v4416, %v4544
  %v4546 = vpop.f32.mrb[0].mxu0
  %4547 = vdwg.mxu0
  %s4548 = scalar_lea.vmem %s7, 176
  %v4549 = vld [vmem:[%s4548] sm:$0xff]
  %v4550 = vld [vmem:[%s4548 + $0x8] sm:$0xff]
  %v4551 = vld [vmem:[%s4548 + $0x10] sm:$0xff]
  %v4552 = vld [vmem:[%s4548 + $0x18] sm:$0xff]
  %v4553 = vld [vmem:[%s4548 + $0x20] sm:$0xff]
  %v4554 = vld [vmem:[%s4548 + $0x28] sm:$0xff]
  %v4555 = vld [vmem:[%s4548 + $0x30] sm:$0xff]
  %v4556 = vld [vmem:[%s4548 + $0x38] sm:$0xff]
  %v4557 = vld [vmem:[%s4548 + $0x40] sm:$0xff]
  %v4558 = vld [vmem:[%s4548 + $0x48] sm:$0xff]
  %v4559 = vld [vmem:[%s4548 + $0x50] sm:$0x1]
  %v4561 = vsel %vm2370, %v4559, 0
  %4563 = vmatprep.subr.mxu0 0.0
  %4564 = vmatpush1.msra.mxu0 %v4549
  %4565 = vmatprep.subr.mxu0 0.0
  %4566 = vmatpush1.msra.mxu0 %v4550
  %4567 = vmatprep.subr.mxu0 0.0
  %4568 = vmatpush1.msra.mxu0 %v4551
  %4569 = vmatprep.subr.mxu0 0.0
  %4570 = vmatpush1.msra.mxu0 %v4552
  %4571 = vmatprep.subr.mxu0 0.0
  %4572 = vmatpush1.msra.mxu0 %v4553
  %4573 = vmatprep.subr.mxu0 0.0
  %4574 = vmatpush1.msra.mxu0 %v4554
  %4575 = vmatprep.subr.mxu0 0.0
  %4576 = vmatpush1.msra.mxu0 %v4555
  %4577 = vmatprep.subr.mxu0 0.0
  %4578 = vmatpush1.msra.mxu0 %v4556
  %4579 = vmatprep.subr.mxu0 0.0
  %4580 = vmatpush1.msra.mxu0 %v4557
  %4581 = vmatprep.subr.mxu0 0.0
  %4582 = vmatpush1.msra.mxu0 %v4558
  %4583 = vmatprep.subr.mxu0 0.0
  %4584 = vmatpush1.msra.mxu0 %v4561
  %4585 = vmatprep.subr.mxu0 0.0
  %4586 = vmatpush1.msra.mxu0 0.0
  %4587 = vmatprep.subr.mxu0 0.0
  %4588 = vmatpush1.msra.mxu0 0.0
  %4589 = vmatprep.subr.mxu0 0.0
  %4590 = vmatpush1.msra.mxu0 0.0
  %4591 = vmatprep.subr.mxu0 0.0
  %4592 = vmatpush1.msra.mxu0 0.0
  %4593 = vmatprep.subr.mxu0 0.0
  %4594 = vmatpush1.msra.mxu0 0.0
  %4595 = vmatprep.subr.mxu0 0.0
  %4596 = vmatpush1.msra.mxu0 0.0
  %4597 = vmatprep.subr.mxu0 0.0
  %4598 = vmatpush1.msra.mxu0 0.0
  %4599 = vmatprep.subr.mxu0 0.0
  %4600 = vmatpush1.msra.mxu0 0.0
  %4601 = vmatprep.subr.mxu0 0.0
  %4602 = vmatpush1.msra.mxu0 0.0
  %4603 = vmatprep.subr.mxu0 0.0
  %4604 = vmatpush1.msra.mxu0 0.0
  %4605 = vmatprep.subr.mxu0 0.0
  %4606 = vmatpush1.msra.mxu0 0.0
  %4607 = vmatprep.subr.mxu0 0.0
  %4608 = vmatpush1.msra.mxu0 0.0
  %4609 = vmatprep.subr.mxu0 0.0
  %4610 = vmatpush1.msra.mxu0 0.0
  %4611 = vmatprep.subr.mxu0 0.0
  %4612 = vmatpush1.msra.mxu0 0.0
  %4613 = vmatprep.subr.mxu0 0.0
  %4614 = vmatpush1.msra.mxu0 0.0
  %4615 = vmatprep.subr.mxu0 0.0
  %4616 = vmatpush1.msra.mxu0 0.0
  %4617 = vmatprep.subr.mxu0 0.0
  %4618 = vmatpush1.msra.mxu0 0.0
  %4619 = vmatprep.subr.mxu0 0.0
  %4620 = vmatpush1.msra.mxu0 0.0
  %4621 = vmatprep.subr.mxu0 0.0
  %4622 = vmatpush1.msra.mxu0 0.0
  %4623 = vmatprep.subr.mxu0 0.0
  %4624 = vmatpush1.msra.mxu0 0.0
  %4625 = vmatprep.subr.mxu0 0.0
  %4626 = vmatpush1.msra.mxu0 0.0
  %4627 = vmatprep.mubr.f32.mxu0 0.0
  %4628 = vmatmul.mubr.f32.gmra.mrb[0].mxu0 %v4022
  %v4629 = vpop.f32.mrb[0].mxu0
  %v4630 = vadd.f32 0.0, %v4629
  %v4631 = vpop.f32.mrb[0].mxu0
  %4632 = vmatprep.mubr.f32.mxu0 0.0
  %4633 = vmatmul.mubr.f32.gmra.mrb[0].mxu0 %v4025
  %v4634 = vpop.f32.mrb[0].mxu0
  %v4635 = vadd.f32 0.0, %v4634
  %v4636 = vpop.f32.mrb[0].mxu0
  %4637 = vmatprep.mubr.f32.mxu0 0.0
  %4638 = vmatmul.mubr.f32.gmra.mrb[0].mxu0 %v4028
  %v4639 = vpop.f32.mrb[0].mxu0
  %v4640 = vadd.f32 0.0, %v4639
  %v4641 = vpop.f32.mrb[0].mxu0
  %4642 = vmatprep.mubr.f32.mxu0 0.0
  %4643 = vmatmul.mubr.f32.gmra.mrb[0].mxu0 %v4031
  %v4644 = vpop.f32.mrb[0].mxu0
  %v4645 = vadd.f32 0.0, %v4644
  %v4646 = vpop.f32.mrb[0].mxu0
  %4647 = vmatprep.mubr.f32.mxu0 0.0
  %4648 = vmatmul.mubr.f32.gmra.mrb[0].mxu0 %v4034
  %v4649 = vpop.f32.mrb[0].mxu0
  %v4650 = vadd.f32 0.0, %v4649
  %v4651 = vpop.f32.mrb[0].mxu0
  %4652 = vmatprep.mubr.f32.mxu0 0.0
  %4653 = vmatmul.mubr.f32.gmra.mrb[0].mxu0 %v4037
  %v4654 = vpop.f32.mrb[0].mxu0
  %v4655 = vadd.f32 0.0, %v4654
  %v4656 = vpop.f32.mrb[0].mxu0
  %4657 = vmatprep.mubr.f32.mxu0 0.0
  %4658 = vmatmul.mubr.f32.gmra.mrb[0].mxu0 %v4040
  %v4659 = vpop.f32.mrb[0].mxu0
  %v4660 = vadd.f32 0.0, %v4659
  %v4661 = vpop.f32.mrb[0].mxu0
  %4662 = vmatprep.mubr.f32.mxu0 0.0
  %4663 = vmatmul.mubr.f32.gmra.mrb[0].mxu0 %v4043
  %v4664 = vpop.f32.mrb[0].mxu0
  %v4665 = vadd.f32 0.0, %v4664
  %v4666 = vpop.f32.mrb[0].mxu0
  %4667 = vdwg.mxu0
  %s4668 = scalar_lea.vmem %s8, 128
  %v4669 = vld [vmem:[%s4668] sm:$0xff]
  %v4670 = vld [vmem:[%s4668 + $0x8] sm:$0xff]
  %v4671 = vld [vmem:[%s4668 + $0x10] sm:$0xff]
  %v4672 = vld [vmem:[%s4668 + $0x18] sm:$0xff]
  %v4673 = vld [vmem:[%s4668 + $0x20] sm:$0xff]
  %v4674 = vld [vmem:[%s4668 + $0x28] sm:$0xff]
  %v4675 = vld [vmem:[%s4668 + $0x30] sm:$0xff]
  %v4676 = vld [vmem:[%s4668 + $0x38] sm:$0xff]
  %v4678 = vsel %vm2852, %v4669, 0
  %v4681 = vsel %vm2852, %v4670, 0
  %v4684 = vsel %vm2852, %v4671, 0
  %v4687 = vsel %vm2852, %v4672, 0
  %v4690 = vsel %vm2852, %v4673, 0
  %v4693 = vsel %vm2852, %v4674, 0
  %v4696 = vsel %vm2852, %v4675, 0
  %v4699 = vsel %vm2852, %v4676, 0
  %4701 = vmatprep.subr.mxu0 0.0
  %4702 = vmatpush1.msra.mxu0 %v4630
  %4703 = vmatprep.subr.mxu0 0.0
  %4704 = vmatpush1.msra.mxu0 %v4635
  %4705 = vmatprep.subr.mxu0 0.0
  %4706 = vmatpush1.msra.mxu0 %v4640
  %4707 = vmatprep.subr.mxu0 0.0
  %4708 = vmatpush1.msra.mxu0 %v4645
  %4709 = vmatprep.subr.mxu0 0.0
  %4710 = vmatpush1.msra.mxu0 %v4650
  %4711 = vmatprep.subr.mxu0 0.0
  %4712 = vmatpush1.msra.mxu0 %v4655
  %4713 = vmatprep.subr.mxu0 0.0
  %4714 = vmatpush1.msra.mxu0 %v4660
  %4715 = vmatprep.subr.mxu0 0.0
  %4716 = vmatpush1.msra.mxu0 %v4665
  %4717 = vmatprep.subr.mxu0 0.0
  %4718 = vmatpush1.msra.mxu0 0.0
  %4719 = vmatprep.subr.mxu0 0.0
  %4720 = vmatpush1.msra.mxu0 0.0
  %4721 = vmatprep.subr.mxu0 0.0
  %4722 = vmatpush1.msra.mxu0 0.0
  %4723 = vmatprep.subr.mxu0 0.0
  %4724 = vmatpush1.msra.mxu0 0.0
  %4725 = vmatprep.subr.mxu0 0.0
  %4726 = vmatpush1.msra.mxu0 0.0
  %4727 = vmatprep.subr.mxu0 0.0
  %4728 = vmatpush1.msra.mxu0 0.0
  %4729 = vmatprep.subr.mxu0 0.0
  %4730 = vmatpush1.msra.mxu0 0.0
  %4731 = vmatprep.subr.mxu0 0.0
  %4732 = vmatpush1.msra.mxu0 0.0
  %4733 = vmatprep.subr.mxu0 0.0
  %4734 = vmatpush1.msra.mxu0 0.0
  %4735 = vmatprep.subr.mxu0 0.0
  %4736 = vmatpush1.msra.mxu0 0.0
  %4737 = vmatprep.subr.mxu0 0.0
  %4738 = vmatpush1.msra.mxu0 0.0
  %4739 = vmatprep.subr.mxu0 0.0
  %4740 = vmatpush1.msra.mxu0 0.0
  %4741 = vmatprep.subr.mxu0 0.0
  %4742 = vmatpush1.msra.mxu0 0.0
  %4743 = vmatprep.subr.mxu0 0.0
  %4744 = vmatpush1.msra.mxu0 0.0
  %4745 = vmatprep.subr.mxu0 0.0
  %4746 = vmatpush1.msra.mxu0 0.0
  %4747 = vmatprep.subr.mxu0 0.0
  %4748 = vmatpush1.msra.mxu0 0.0
  %4749 = vmatprep.subr.mxu0 0.0
  %4750 = vmatpush1.msra.mxu0 0.0
  %4751 = vmatprep.subr.mxu0 0.0
  %4752 = vmatpush1.msra.mxu0 0.0
  %4753 = vmatprep.subr.mxu0 0.0
  %4754 = vmatpush1.msra.mxu0 0.0
  %4755 = vmatprep.subr.mxu0 0.0
  %4756 = vmatpush1.msra.mxu0 0.0
  %4757 = vmatprep.subr.mxu0 0.0
  %4758 = vmatpush1.msra.mxu0 0.0
  %4759 = vmatprep.subr.mxu0 0.0
  %4760 = vmatpush1.msra.mxu0 0.0
  %4761 = vmatprep.subr.mxu0 0.0
  %4762 = vmatpush1.msra.mxu0 0.0
  %4763 = vmatprep.subr.mxu0 0.0
  %4764 = vmatpush1.msra.mxu0 0.0
  %4765 = vmatprep.mubr.f32.mxu0 0.0
  %4766 = vmatmul.mubr.f32.gmra.mrb[0].mxu0 %v4678
  %v4767 = vpop.f32.mrb[0].mxu0
  %v4768 = vadd.f32 0.0, %v4767
  %v4769 = vpop.f32.mrb[0].mxu0
  %4770 = vmatprep.mubr.f32.mxu0 0.0
  %4771 = vmatmul.mubr.f32.gmra.mrb[0].mxu0 %v4681
  %v4772 = vpop.f32.mrb[0].mxu0
  %v4773 = vadd.f32 0.0, %v4772
  %v4774 = vpop.f32.mrb[0].mxu0
  %4775 = vmatprep.mubr.f32.mxu0 0.0
  %4776 = vmatmul.mubr.f32.gmra.mrb[0].mxu0 %v4684
  %v4777 = vpop.f32.mrb[0].mxu0
  %v4778 = vadd.f32 0.0, %v4777
  %v4779 = vpop.f32.mrb[0].mxu0
  %4780 = vmatprep.mubr.f32.mxu0 0.0
  %4781 = vmatmul.mubr.f32.gmra.mrb[0].mxu0 %v4687
  %v4782 = vpop.f32.mrb[0].mxu0
  %v4783 = vadd.f32 0.0, %v4782
  %v4784 = vpop.f32.mrb[0].mxu0
  %4785 = vmatprep.mubr.f32.mxu0 0.0
  %4786 = vmatmul.mubr.f32.gmra.mrb[0].mxu0 %v4690
  %v4787 = vpop.f32.mrb[0].mxu0
  %v4788 = vadd.f32 0.0, %v4787
  %v4789 = vpop.f32.mrb[0].mxu0
  %4790 = vmatprep.mubr.f32.mxu0 0.0
  %4791 = vmatmul.mubr.f32.gmra.mrb[0].mxu0 %v4693
  %v4792 = vpop.f32.mrb[0].mxu0
  %v4793 = vadd.f32 0.0, %v4792
  %v4794 = vpop.f32.mrb[0].mxu0
  %4795 = vmatprep.mubr.f32.mxu0 0.0
  %4796 = vmatmul.mubr.f32.gmra.mrb[0].mxu0 %v4696
  %v4797 = vpop.f32.mrb[0].mxu0
  %v4798 = vadd.f32 0.0, %v4797
  %v4799 = vpop.f32.mrb[0].mxu0
  %4800 = vmatprep.mubr.f32.mxu0 0.0
  %4801 = vmatmul.mubr.f32.gmra.mrb[0].mxu0 %v4699
  %v4802 = vpop.f32.mrb[0].mxu0
  %v4803 = vadd.f32 0.0, %v4802
  %v4804 = vpop.f32.mrb[0].mxu0
  %4805 = vdwg.mxu0
  %v4806 = vadd.f32 %v4510, %v4768
  %v4807 = vadd.f32 %v4515, %v4773
  %v4808 = vadd.f32 %v4520, %v4778
  %v4809 = vadd.f32 %v4525, %v4783
  %v4810 = vadd.f32 %v4530, %v4788
  %v4811 = vadd.f32 %v4535, %v4793
  %v4812 = vadd.f32 %v4540, %v4798
  %v4813 = vadd.f32 %v4545, %v4803
  %s4814 = scalar_lea.vmem %s7, 264
  %v4815 = vld [vmem:[%s4814] sm:$0xff]
  %v4816 = vld [vmem:[%s4814 + $0x8] sm:$0xff]
  %v4817 = vld [vmem:[%s4814 + $0x10] sm:$0xff]
  %v4818 = vld [vmem:[%s4814 + $0x18] sm:$0xff]
  %v4819 = vld [vmem:[%s4814 + $0x20] sm:$0xff]
  %v4820 = vld [vmem:[%s4814 + $0x28] sm:$0xff]
  %v4821 = vld [vmem:[%s4814 + $0x30] sm:$0xff]
  %v4822 = vld [vmem:[%s4814 + $0x38] sm:$0xff]
  %v4823 = vld [vmem:[%s4814 + $0x40] sm:$0xff]
  %v4824 = vld [vmem:[%s4814 + $0x48] sm:$0xff]
  %v4825 = vld [vmem:[%s4814 + $0x50] sm:$0x1]
  %v4827 = vsel %vm2370, %v4825, 0
  %4829 = vmatprep.subr.mxu0 0.0
  %4830 = vmatpush1.msra.mxu0 %v4815
  %4831 = vmatprep.subr.mxu0 0.0
  %4832 = vmatpush1.msra.mxu0 %v4816
  %4833 = vmatprep.subr.mxu0 0.0
  %4834 = vmatpush1.msra.mxu0 %v4817
  %4835 = vmatprep.subr.mxu0 0.0
  %4836 = vmatpush1.msra.mxu0 %v4818
  %4837 = vmatprep.subr.mxu0 0.0
  %4838 = vmatpush1.msra.mxu0 %v4819
  %4839 = vmatprep.subr.mxu0 0.0
  %4840 = vmatpush1.msra.mxu0 %v4820
  %4841 = vmatprep.subr.mxu0 0.0
  %4842 = vmatpush1.msra.mxu0 %v4821
  %4843 = vmatprep.subr.mxu0 0.0
  %4844 = vmatpush1.msra.mxu0 %v4822
  %4845 = vmatprep.subr.mxu0 0.0
  %4846 = vmatpush1.msra.mxu0 %v4823
  %4847 = vmatprep.subr.mxu0 0.0
  %4848 = vmatpush1.msra.mxu0 %v4824
  %4849 = vmatprep.subr.mxu0 0.0
  %4850 = vmatpush1.msra.mxu0 %v4827
  %4851 = vmatprep.subr.mxu0 0.0
  %4852 = vmatpush1.msra.mxu0 0.0
  %4853 = vmatprep.subr.mxu0 0.0
  %4854 = vmatpush1.msra.mxu0 0.0
  %4855 = vmatprep.subr.mxu0 0.0
  %4856 = vmatpush1.msra.mxu0 0.0
  %4857 = vmatprep.subr.mxu0 0.0
  %4858 = vmatpush1.msra.mxu0 0.0
  %4859 = vmatprep.subr.mxu0 0.0
  %4860 = vmatpush1.msra.mxu0 0.0
  %4861 = vmatprep.subr.mxu0 0.0
  %4862 = vmatpush1.msra.mxu0 0.0
  %4863 = vmatprep.subr.mxu0 0.0
  %4864 = vmatpush1.msra.mxu0 0.0
  %4865 = vmatprep.subr.mxu0 0.0
  %4866 = vmatpush1.msra.mxu0 0.0
  %4867 = vmatprep.subr.mxu0 0.0
  %4868 = vmatpush1.msra.mxu0 0.0
  %4869 = vmatprep.subr.mxu0 0.0
  %4870 = vmatpush1.msra.mxu0 0.0
  %4871 = vmatprep.subr.mxu0 0.0
  %4872 = vmatpush1.msra.mxu0 0.0
  %4873 = vmatprep.subr.mxu0 0.0
  %4874 = vmatpush1.msra.mxu0 0.0
  %4875 = vmatprep.subr.mxu0 0.0
  %4876 = vmatpush1.msra.mxu0 0.0
  %4877 = vmatprep.subr.mxu0 0.0
  %4878 = vmatpush1.msra.mxu0 0.0
  %4879 = vmatprep.subr.mxu0 0.0
  %4880 = vmatpush1.msra.mxu0 0.0
  %4881 = vmatprep.subr.mxu0 0.0
  %4882 = vmatpush1.msra.mxu0 0.0
  %4883 = vmatprep.subr.mxu0 0.0
  %4884 = vmatpush1.msra.mxu0 0.0
  %4885 = vmatprep.subr.mxu0 0.0
  %4886 = vmatpush1.msra.mxu0 0.0
  %4887 = vmatprep.subr.mxu0 0.0
  %4888 = vmatpush1.msra.mxu0 0.0
  %4889 = vmatprep.subr.mxu0 0.0
  %4890 = vmatpush1.msra.mxu0 0.0
  %4891 = vmatprep.subr.mxu0 0.0
  %4892 = vmatpush1.msra.mxu0 0.0
  %4893 = vmatprep.mubr.f32.mxu0 0.0
  %4894 = vmatmul.mubr.f32.gmra.mrb[0].mxu0 %v4022
  %v4895 = vpop.f32.mrb[0].mxu0
  %v4896 = vadd.f32 0.0, %v4895
  %v4897 = vpop.f32.mrb[0].mxu0
  %4898 = vmatprep.mubr.f32.mxu0 0.0
  %4899 = vmatmul.mubr.f32.gmra.mrb[0].mxu0 %v4025
  %v4900 = vpop.f32.mrb[0].mxu0
  %v4901 = vadd.f32 0.0, %v4900
  %v4902 = vpop.f32.mrb[0].mxu0
  %4903 = vmatprep.mubr.f32.mxu0 0.0
  %4904 = vmatmul.mubr.f32.gmra.mrb[0].mxu0 %v4028
  %v4905 = vpop.f32.mrb[0].mxu0
  %v4906 = vadd.f32 0.0, %v4905
  %v4907 = vpop.f32.mrb[0].mxu0
  %4908 = vmatprep.mubr.f32.mxu0 0.0
  %4909 = vmatmul.mubr.f32.gmra.mrb[0].mxu0 %v4031
  %v4910 = vpop.f32.mrb[0].mxu0
  %v4911 = vadd.f32 0.0, %v4910
  %v4912 = vpop.f32.mrb[0].mxu0
  %4913 = vmatprep.mubr.f32.mxu0 0.0
  %4914 = vmatmul.mubr.f32.gmra.mrb[0].mxu0 %v4034
  %v4915 = vpop.f32.mrb[0].mxu0
  %v4916 = vadd.f32 0.0, %v4915
  %v4917 = vpop.f32.mrb[0].mxu0
  %4918 = vmatprep.mubr.f32.mxu0 0.0
  %4919 = vmatmul.mubr.f32.gmra.mrb[0].mxu0 %v4037
  %v4920 = vpop.f32.mrb[0].mxu0
  %v4921 = vadd.f32 0.0, %v4920
  %v4922 = vpop.f32.mrb[0].mxu0
  %4923 = vmatprep.mubr.f32.mxu0 0.0
  %4924 = vmatmul.mubr.f32.gmra.mrb[0].mxu0 %v4040
  %v4925 = vpop.f32.mrb[0].mxu0
  %v4926 = vadd.f32 0.0, %v4925
  %v4927 = vpop.f32.mrb[0].mxu0
  %4928 = vmatprep.mubr.f32.mxu0 0.0
  %4929 = vmatmul.mubr.f32.gmra.mrb[0].mxu0 %v4043
  %v4930 = vpop.f32.mrb[0].mxu0
  %v4931 = vadd.f32 0.0, %v4930
  %v4932 = vpop.f32.mrb[0].mxu0
  %4933 = vdwg.mxu0
  %s4934 = scalar_lea.vmem %s8, 192
  %v4935 = vld [vmem:[%s4934] sm:$0xff]
  %v4936 = vld [vmem:[%s4934 + $0x8] sm:$0xff]
  %v4937 = vld [vmem:[%s4934 + $0x10] sm:$0xff]
  %v4938 = vld [vmem:[%s4934 + $0x18] sm:$0xff]
  %v4939 = vld [vmem:[%s4934 + $0x20] sm:$0xff]
  %v4940 = vld [vmem:[%s4934 + $0x28] sm:$0xff]
  %v4941 = vld [vmem:[%s4934 + $0x30] sm:$0xff]
  %v4942 = vld [vmem:[%s4934 + $0x38] sm:$0xff]
  %v4944 = vsel %vm2852, %v4935, 0
  %v4947 = vsel %vm2852, %v4936, 0
  %v4950 = vsel %vm2852, %v4937, 0
  %v4953 = vsel %vm2852, %v4938, 0
  %v4956 = vsel %vm2852, %v4939, 0
  %v4959 = vsel %vm2852, %v4940, 0
  %v4962 = vsel %vm2852, %v4941, 0
  %v4965 = vsel %vm2852, %v4942, 0
  %4967 = vmatprep.subr.mxu0 0.0
  %4968 = vmatpush1.msra.mxu0 %v4896
  %4969 = vmatprep.subr.mxu0 0.0
  %4970 = vmatpush1.msra.mxu0 %v4901
  %4971 = vmatprep.subr.mxu0 0.0
  %4972 = vmatpush1.msra.mxu0 %v4906
  %4973 = vmatprep.subr.mxu0 0.0
  %4974 = vmatpush1.msra.mxu0 %v4911
  %4975 = vmatprep.subr.mxu0 0.0
  %4976 = vmatpush1.msra.mxu0 %v4916
  %4977 = vmatprep.subr.mxu0 0.0
  %4978 = vmatpush1.msra.mxu0 %v4921
  %4979 = vmatprep.subr.mxu0 0.0
  %4980 = vmatpush1.msra.mxu0 %v4926
  %4981 = vmatprep.subr.mxu0 0.0
  %4982 = vmatpush1.msra.mxu0 %v4931
  %4983 = vmatprep.subr.mxu0 0.0
  %4984 = vmatpush1.msra.mxu0 0.0
  %4985 = vmatprep.subr.mxu0 0.0
  %4986 = vmatpush1.msra.mxu0 0.0
  %4987 = vmatprep.subr.mxu0 0.0
  %4988 = vmatpush1.msra.mxu0 0.0
  %4989 = vmatprep.subr.mxu0 0.0
  %4990 = vmatpush1.msra.mxu0 0.0
  %4991 = vmatprep.subr.mxu0 0.0
  %4992 = vmatpush1.msra.mxu0 0.0
  %4993 = vmatprep.subr.mxu0 0.0
  %4994 = vmatpush1.msra.mxu0 0.0
  %4995 = vmatprep.subr.mxu0 0.0
  %4996 = vmatpush1.msra.mxu0 0.0
  %4997 = vmatprep.subr.mxu0 0.0
  %4998 = vmatpush1.msra.mxu0 0.0
  %4999 = vmatprep.subr.mxu0 0.0
  %5000 = vmatpush1.msra.mxu0 0.0
  %5001 = vmatprep.subr.mxu0 0.0
  %5002 = vmatpush1.msra.mxu0 0.0
  %5003 = vmatprep.subr.mxu0 0.0
  %5004 = vmatpush1.msra.mxu0 0.0
  %5005 = vmatprep.subr.mxu0 0.0
  %5006 = vmatpush1.msra.mxu0 0.0
  %5007 = vmatprep.subr.mxu0 0.0
  %5008 = vmatpush1.msra.mxu0 0.0
  %5009 = vmatprep.subr.mxu0 0.0
  %5010 = vmatpush1.msra.mxu0 0.0
  %5011 = vmatprep.subr.mxu0 0.0
  %5012 = vmatpush1.msra.mxu0 0.0
  %5013 = vmatprep.subr.mxu0 0.0
  %5014 = vmatpush1.msra.mxu0 0.0
  %5015 = vmatprep.subr.mxu0 0.0
  %5016 = vmatpush1.msra.mxu0 0.0
  %5017 = vmatprep.subr.mxu0 0.0
  %5018 = vmatpush1.msra.mxu0 0.0
  %5019 = vmatprep.subr.mxu0 0.0
  %5020 = vmatpush1.msra.mxu0 0.0
  %5021 = vmatprep.subr.mxu0 0.0
  %5022 = vmatpush1.msra.mxu0 0.0
  %5023 = vmatprep.subr.mxu0 0.0
  %5024 = vmatpush1.msra.mxu0 0.0
  %5025 = vmatprep.subr.mxu0 0.0
  %5026 = vmatpush1.msra.mxu0 0.0
  %5027 = vmatprep.subr.mxu0 0.0
  %5028 = vmatpush1.msra.mxu0 0.0
  %5029 = vmatprep.subr.mxu0 0.0
  %5030 = vmatpush1.msra.mxu0 0.0
  %5031 = vmatprep.mubr.f32.mxu0 0.0
  %5032 = vmatmul.mubr.f32.gmra.mrb[0].mxu0 %v4944
  %v5033 = vpop.f32.mrb[0].mxu0
  %v5034 = vadd.f32 0.0, %v5033
  %v5035 = vpop.f32.mrb[0].mxu0
  %5036 = vmatprep.mubr.f32.mxu0 0.0
  %5037 = vmatmul.mubr.f32.gmra.mrb[0].mxu0 %v4947
  %v5038 = vpop.f32.mrb[0].mxu0
  %v5039 = vadd.f32 0.0, %v5038
  %v5040 = vpop.f32.mrb[0].mxu0
  %5041 = vmatprep.mubr.f32.mxu0 0.0
  %5042 = vmatmul.mubr.f32.gmra.mrb[0].mxu0 %v4950
  %v5043 = vpop.f32.mrb[0].mxu0
  %v5044 = vadd.f32 0.0, %v5043
  %v5045 = vpop.f32.mrb[0].mxu0
  %5046 = vmatprep.mubr.f32.mxu0 0.0
  %5047 = vmatmul.mubr.f32.gmra.mrb[0].mxu0 %v4953
  %v5048 = vpop.f32.mrb[0].mxu0
  %v5049 = vadd.f32 0.0, %v5048
  %v5050 = vpop.f32.mrb[0].mxu0
  %5051 = vmatprep.mubr.f32.mxu0 0.0
  %5052 = vmatmul.mubr.f32.gmra.mrb[0].mxu0 %v4956
  %v5053 = vpop.f32.mrb[0].mxu0
  %v5054 = vadd.f32 0.0, %v5053
  %v5055 = vpop.f32.mrb[0].mxu0
  %5056 = vmatprep.mubr.f32.mxu0 0.0
  %5057 = vmatmul.mubr.f32.gmra.mrb[0].mxu0 %v4959
  %v5058 = vpop.f32.mrb[0].mxu0
  %v5059 = vadd.f32 0.0, %v5058
  %v5060 = vpop.f32.mrb[0].mxu0
  %5061 = vmatprep.mubr.f32.mxu0 0.0
  %5062 = vmatmul.mubr.f32.gmra.mrb[0].mxu0 %v4962
  %v5063 = vpop.f32.mrb[0].mxu0
  %v5064 = vadd.f32 0.0, %v5063
  %v5065 = vpop.f32.mrb[0].mxu0
  %5066 = vmatprep.mubr.f32.mxu0 0.0
  %5067 = vmatmul.mubr.f32.gmra.mrb[0].mxu0 %v4965
  %v5068 = vpop.f32.mrb[0].mxu0
  %v5069 = vadd.f32 0.0, %v5068
  %v5070 = vpop.f32.mrb[0].mxu0
  %5071 = vdwg.mxu0
  %v5072 = vadd.f32 %v4806, %v5034
  %v5073 = vadd.f32 %v4807, %v5039
  %v5074 = vadd.f32 %v4808, %v5044
  %v5075 = vadd.f32 %v4809, %v5049
  %v5076 = vadd.f32 %v4810, %v5054
  %v5077 = vadd.f32 %v4811, %v5059
  %v5078 = vadd.f32 %v4812, %v5064
  %v5079 = vadd.f32 %v4813, %v5069
  %v5080 = vld [vmem:[%s9] sm:$0xff]
  %v5081 = vld [vmem:[%s9 + $0x8] sm:$0xff]
  %v5082 = vld [vmem:[%s9 + $0x10] sm:$0xff]
  %v5083 = vld [vmem:[%s9 + $0x18] sm:$0xff]
  %v5084 = vld [vmem:[%s9 + $0x20] sm:$0xff]
  %v5085 = vld [vmem:[%s9 + $0x28] sm:$0xff]
  %v5086 = vld [vmem:[%s9 + $0x30] sm:$0xff]
  %v5087 = vld [vmem:[%s9 + $0x38] sm:$0xff]
  %5089 = vset.pattern.permute.xlu0 0
  %5090 = vperm.xlu0 %5089, %v5080
  %v5091 = vpop.permute.xlu0 %5090
  %5094 = vset.pattern.permute.xlu0 0
  %5095 = vperm.xlu0 %5094, %v5081
  %v5096 = vpop.permute.xlu0 %5095
  %5099 = vset.pattern.permute.xlu0 0
  %5100 = vperm.xlu0 %5099, %v5082
  %v5101 = vpop.permute.xlu0 %5100
  %5104 = vset.pattern.permute.xlu0 0
  %5105 = vperm.xlu0 %5104, %v5083
  %v5106 = vpop.permute.xlu0 %5105
  %5109 = vset.pattern.permute.xlu0 0
  %5110 = vperm.xlu0 %5109, %v5084
  %v5111 = vpop.permute.xlu0 %5110
  %5114 = vset.pattern.permute.xlu0 0
  %5115 = vperm.xlu0 %5114, %v5085
  %v5116 = vpop.permute.xlu0 %5115
  %5119 = vset.pattern.permute.xlu0 0
  %5120 = vperm.xlu0 %5119, %v5086
  %v5121 = vpop.permute.xlu0 %5120
  %5124 = vset.pattern.permute.xlu0 0
  %5125 = vperm.xlu0 %5124, %v5087
  %v5126 = vpop.permute.xlu0 %5125
  %v5128 = vadd.f32 %v5072, %v5091
  %v5129 = vadd.f32 %v5073, %v5096
  %v5130 = vadd.f32 %v5074, %v5101
  %v5131 = vadd.f32 %v5075, %v5106
  %v5132 = vadd.f32 %v5076, %v5111
  %v5133 = vadd.f32 %v5077, %v5116
  %v5134 = vadd.f32 %v5078, %v5121
  %v5135 = vadd.f32 %v5079, %v5126
  %v5136 = vxor.u32 %v5128, 2147483648
  %v5137 = vxor.u32 %v5129, 2147483648
  %v5138 = vxor.u32 %v5130, 2147483648
  %v5139 = vxor.u32 %v5131, 2147483648
  %v5140 = vxor.u32 %v5132, 2147483648
  %v5141 = vxor.u32 %v5133, 2147483648
  %v5142 = vxor.u32 %v5134, 2147483648
  %v5143 = vxor.u32 %v5135, 2147483648
  %v5144 = vmul.f32 %v5136, 1.442695
  %v5145 = vpow.pop %v5144
  %v5146 = vmul.f32 %v5137, 1.442695
  %v5147 = vpow.pop %v5146
  %v5148 = vmul.f32 %v5138, 1.442695
  %v5149 = vpow.pop %v5148
  %v5150 = vmul.f32 %v5139, 1.442695
  %v5151 = vpow.pop %v5150
  %v5152 = vmul.f32 %v5140, 1.442695
  %v5153 = vpow.pop %v5152
  %v5154 = vmul.f32 %v5141, 1.442695
  %v5155 = vpow.pop %v5154
  %v5156 = vmul.f32 %v5142, 1.442695
  %v5157 = vpow.pop %v5156
  %v5158 = vmul.f32 %v5143, 1.442695
  %v5159 = vpow.pop %v5158
  %v5160 = vadd.f32 %v5145, 1.0
  %v5161 = vadd.f32 %v5147, 1.0
  %v5162 = vadd.f32 %v5149, 1.0
  %v5163 = vadd.f32 %v5151, 1.0
  %v5164 = vadd.f32 %v5153, 1.0
  %v5165 = vadd.f32 %v5155, 1.0
  %v5166 = vadd.f32 %v5157, 1.0
  %v5167 = vadd.f32 %v5159, 1.0
  %v5168 = vrcp.pop %v5160
  %v5169 = vmul.f32 1.0, %v5168
  %v5170 = vrcp.pop %v5161
  %v5171 = vmul.f32 1.0, %v5170
  %v5172 = vrcp.pop %v5162
  %v5173 = vmul.f32 1.0, %v5172
  %v5174 = vrcp.pop %v5163
  %v5175 = vmul.f32 1.0, %v5174
  %v5176 = vrcp.pop %v5164
  %v5177 = vmul.f32 1.0, %v5176
  %v5178 = vrcp.pop %v5165
  %v5179 = vmul.f32 1.0, %v5178
  %v5180 = vrcp.pop %v5166
  %v5181 = vmul.f32 1.0, %v5180
  %v5182 = vrcp.pop %v5167
  %v5183 = vmul.f32 1.0, %v5182
  %v5184 = vld [vmem:[%s10] sm:$0xff]
  %v5185 = vld [vmem:[%s10 + $0x8] sm:$0xff]
  %v5186 = vld [vmem:[%s10 + $0x10] sm:$0xff]
  %v5187 = vld [vmem:[%s10 + $0x18] sm:$0x1]
  %vm5188 = vcmask 203776
  %v5190 = vsel %vm5188, %v5169, 0
  %v5193 = vsel %vm5188, %v5171, 0
  %v5196 = vsel %vm5188, %v5173, 0
  %v5199 = vsel %vm5188, %v5175, 0
  %v5202 = vsel %vm5188, %v5177, 0
  %v5205 = vsel %vm5188, %v5179, 0
  %v5208 = vsel %vm5188, %v5181, 0
  %v5211 = vsel %vm5188, %v5183, 0
  %v5214 = vsel %vm2370, %v5187, 0
  %5216 = vmatprep.subr.mxu0 0.0
  %5217 = vmatpush1.msra.mxu0 %v5184
  %5218 = vmatprep.subr.mxu0 0.0
  %5219 = vmatpush1.msra.mxu0 %v5185
  %5220 = vmatprep.subr.mxu0 0.0
  %5221 = vmatpush1.msra.mxu0 %v5186
  %5222 = vmatprep.subr.mxu0 0.0
  %5223 = vmatpush1.msra.mxu0 %v5214
  %5224 = vmatprep.subr.mxu0 0.0
  %5225 = vmatpush1.msra.mxu0 0.0
  %5226 = vmatprep.subr.mxu0 0.0
  %5227 = vmatpush1.msra.mxu0 0.0
  %5228 = vmatprep.subr.mxu0 0.0
  %5229 = vmatpush1.msra.mxu0 0.0
  %5230 = vmatprep.subr.mxu0 0.0
  %5231 = vmatpush1.msra.mxu0 0.0
  %5232 = vmatprep.subr.mxu0 0.0
  %5233 = vmatpush1.msra.mxu0 0.0
  %5234 = vmatprep.subr.mxu0 0.0
  %5235 = vmatpush1.msra.mxu0 0.0
  %5236 = vmatprep.subr.mxu0 0.0
  %5237 = vmatpush1.msra.mxu0 0.0
  %5238 = vmatprep.subr.mxu0 0.0
  %5239 = vmatpush1.msra.mxu0 0.0
  %5240 = vmatprep.subr.mxu0 0.0
  %5241 = vmatpush1.msra.mxu0 0.0
  %5242 = vmatprep.subr.mxu0 0.0
  %5243 = vmatpush1.msra.mxu0 0.0
  %5244 = vmatprep.subr.mxu0 0.0
  %5245 = vmatpush1.msra.mxu0 0.0
  %5246 = vmatprep.subr.mxu0 0.0
  %5247 = vmatpush1.msra.mxu0 0.0
  %5248 = vmatprep.subr.mxu0 0.0
  %5249 = vmatpush1.msra.mxu0 0.0
  %5250 = vmatprep.subr.mxu0 0.0
  %5251 = vmatpush1.msra.mxu0 0.0
  %5252 = vmatprep.subr.mxu0 0.0
  %5253 = vmatpush1.msra.mxu0 0.0
  %5254 = vmatprep.subr.mxu0 0.0
  %5255 = vmatpush1.msra.mxu0 0.0
  %5256 = vmatprep.subr.mxu0 0.0
  %5257 = vmatpush1.msra.mxu0 0.0
  %5258 = vmatprep.subr.mxu0 0.0
  %5259 = vmatpush1.msra.mxu0 0.0
  %5260 = vmatprep.subr.mxu0 0.0
  %5261 = vmatpush1.msra.mxu0 0.0
  %5262 = vmatprep.subr.mxu0 0.0
  %5263 = vmatpush1.msra.mxu0 0.0
  %5264 = vmatprep.subr.mxu0 0.0
  %5265 = vmatpush1.msra.mxu0 0.0
  %5266 = vmatprep.subr.mxu0 0.0
  %5267 = vmatpush1.msra.mxu0 0.0
  %5268 = vmatprep.subr.mxu0 0.0
  %5269 = vmatpush1.msra.mxu0 0.0
  %5270 = vmatprep.subr.mxu0 0.0
  %5271 = vmatpush1.msra.mxu0 0.0
  %5272 = vmatprep.subr.mxu0 0.0
  %5273 = vmatpush1.msra.mxu0 0.0
  %5274 = vmatprep.subr.mxu0 0.0
  %5275 = vmatpush1.msra.mxu0 0.0
  %5276 = vmatprep.subr.mxu0 0.0
  %5277 = vmatpush1.msra.mxu0 0.0
  %5278 = vmatprep.subr.mxu0 0.0
  %5279 = vmatpush1.msra.mxu0 0.0
  %5280 = vmatprep.mubr.f32.mxu0 0.0
  %5281 = vmatmul.mubr.f32.gmra.mrb[0].mxu0 %v5190
  %v5282 = vpop.f32.mrb[0].mxu0
  %v5283 = vadd.f32 0.0, %v5282
  %v5284 = vpop.f32.mrb[0].mxu0
  %5285 = vmatprep.mubr.f32.mxu0 0.0
  %5286 = vmatmul.mubr.f32.gmra.mrb[0].mxu0 %v5193
  %v5287 = vpop.f32.mrb[0].mxu0
  %v5288 = vadd.f32 0.0, %v5287
  %v5289 = vpop.f32.mrb[0].mxu0
  %5290 = vmatprep.mubr.f32.mxu0 0.0
  %5291 = vmatmul.mubr.f32.gmra.mrb[0].mxu0 %v5196
  %v5292 = vpop.f32.mrb[0].mxu0
  %v5293 = vadd.f32 0.0, %v5292
  %v5294 = vpop.f32.mrb[0].mxu0
  %5295 = vmatprep.mubr.f32.mxu0 0.0
  %5296 = vmatmul.mubr.f32.gmra.mrb[0].mxu0 %v5199
  %v5297 = vpop.f32.mrb[0].mxu0
  %v5298 = vadd.f32 0.0, %v5297
  %v5299 = vpop.f32.mrb[0].mxu0
  %5300 = vmatprep.mubr.f32.mxu0 0.0
  %5301 = vmatmul.mubr.f32.gmra.mrb[0].mxu0 %v5202
  %v5302 = vpop.f32.mrb[0].mxu0
  %v5303 = vadd.f32 0.0, %v5302
  %v5304 = vpop.f32.mrb[0].mxu0
  %5305 = vmatprep.mubr.f32.mxu0 0.0
  %5306 = vmatmul.mubr.f32.gmra.mrb[0].mxu0 %v5205
  %v5307 = vpop.f32.mrb[0].mxu0
  %v5308 = vadd.f32 0.0, %v5307
  %v5309 = vpop.f32.mrb[0].mxu0
  %5310 = vmatprep.mubr.f32.mxu0 0.0
  %5311 = vmatmul.mubr.f32.gmra.mrb[0].mxu0 %v5208
  %v5312 = vpop.f32.mrb[0].mxu0
  %v5313 = vadd.f32 0.0, %v5312
  %v5314 = vpop.f32.mrb[0].mxu0
  %5315 = vmatprep.mubr.f32.mxu0 0.0
  %5316 = vmatmul.mubr.f32.gmra.mrb[0].mxu0 %v5211
  %v5317 = vpop.f32.mrb[0].mxu0
  %v5318 = vadd.f32 0.0, %v5317
  %v5319 = vpop.f32.mrb[0].mxu0
  %5320 = vdwg.mxu0
  %v5321 = vld [vmem:[%s11] sm:$0xff]
  %v5322 = vld [vmem:[%s11 + $0x8] sm:$0xff]
  %v5323 = vld [vmem:[%s11 + $0x10] sm:$0xff]
  %v5324 = vld [vmem:[%s11 + $0x18] sm:$0xff]
  %v5325 = vld [vmem:[%s11 + $0x20] sm:$0xff]
  %v5326 = vld [vmem:[%s11 + $0x28] sm:$0xff]
  %v5327 = vld [vmem:[%s11 + $0x30] sm:$0xff]
  %v5328 = vld [vmem:[%s11 + $0x38] sm:$0xff]
  %s5329 = scalar_lea.vmem %s10, 32
  %v5330 = vld [vmem:[%s5329] sm:$0xff]
  %v5331 = vld [vmem:[%s5329 + $0x8] sm:$0xff]
  %v5332 = vld [vmem:[%s5329 + $0x10] sm:$0xff]
  %v5333 = vld [vmem:[%s5329 + $0x18] sm:$0x1]
  %v5335 = vsel %vm2370, %v5333, 0
  %5337 = vmatprep.subr.mxu0 0.0
  %5338 = vmatpush1.msra.mxu0 %v5330
  %5339 = vmatprep.subr.mxu0 0.0
  %5340 = vmatpush1.msra.mxu0 %v5331
  %5341 = vmatprep.subr.mxu0 0.0
  %5342 = vmatpush1.msra.mxu0 %v5332
  %5343 = vmatprep.subr.mxu0 0.0
  %5344 = vmatpush1.msra.mxu0 %v5335
  %5345 = vmatprep.subr.mxu0 0.0
  %5346 = vmatpush1.msra.mxu0 0.0
  %5347 = vmatprep.subr.mxu0 0.0
  %5348 = vmatpush1.msra.mxu0 0.0
  %5349 = vmatprep.subr.mxu0 0.0
  %5350 = vmatpush1.msra.mxu0 0.0
  %5351 = vmatprep.subr.mxu0 0.0
  %5352 = vmatpush1.msra.mxu0 0.0
  %5353 = vmatprep.subr.mxu0 0.0
  %5354 = vmatpush1.msra.mxu0 0.0
  %5355 = vmatprep.subr.mxu0 0.0
  %5356 = vmatpush1.msra.mxu0 0.0
  %5357 = vmatprep.subr.mxu0 0.0
  %5358 = vmatpush1.msra.mxu0 0.0
  %5359 = vmatprep.subr.mxu0 0.0
  %5360 = vmatpush1.msra.mxu0 0.0
  %5361 = vmatprep.subr.mxu0 0.0
  %5362 = vmatpush1.msra.mxu0 0.0
  %5363 = vmatprep.subr.mxu0 0.0
  %5364 = vmatpush1.msra.mxu0 0.0
  %5365 = vmatprep.subr.mxu0 0.0
  %5366 = vmatpush1.msra.mxu0 0.0
  %5367 = vmatprep.subr.mxu0 0.0
  %5368 = vmatpush1.msra.mxu0 0.0
  %5369 = vmatprep.subr.mxu0 0.0
  %5370 = vmatpush1.msra.mxu0 0.0
  %5371 = vmatprep.subr.mxu0 0.0
  %5372 = vmatpush1.msra.mxu0 0.0
  %5373 = vmatprep.subr.mxu0 0.0
  %5374 = vmatpush1.msra.mxu0 0.0
  %5375 = vmatprep.subr.mxu0 0.0
  %5376 = vmatpush1.msra.mxu0 0.0
  %5377 = vmatprep.subr.mxu0 0.0
  %5378 = vmatpush1.msra.mxu0 0.0
  %5379 = vmatprep.subr.mxu0 0.0
  %5380 = vmatpush1.msra.mxu0 0.0
  %5381 = vmatprep.subr.mxu0 0.0
  %5382 = vmatpush1.msra.mxu0 0.0
  %5383 = vmatprep.subr.mxu0 0.0
  %5384 = vmatpush1.msra.mxu0 0.0
  %5385 = vmatprep.subr.mxu0 0.0
  %5386 = vmatpush1.msra.mxu0 0.0
  %5387 = vmatprep.subr.mxu0 0.0
  %5388 = vmatpush1.msra.mxu0 0.0
  %5389 = vmatprep.subr.mxu0 0.0
  %5390 = vmatpush1.msra.mxu0 0.0
  %5391 = vmatprep.subr.mxu0 0.0
  %5392 = vmatpush1.msra.mxu0 0.0
  %5393 = vmatprep.subr.mxu0 0.0
  %5394 = vmatpush1.msra.mxu0 0.0
  %5395 = vmatprep.subr.mxu0 0.0
  %5396 = vmatpush1.msra.mxu0 0.0
  %5397 = vmatprep.subr.mxu0 0.0
  %5398 = vmatpush1.msra.mxu0 0.0
  %5399 = vmatprep.subr.mxu0 0.0
  %5400 = vmatpush1.msra.mxu0 0.0
  %5401 = vmatprep.mubr.f32.mxu0 0.0
  %5402 = vmatmul.mubr.f32.gmra.mrb[0].mxu0 %v5190
  %v5403 = vpop.f32.mrb[0].mxu0
  %v5404 = vadd.f32 0.0, %v5403
  %v5405 = vpop.f32.mrb[0].mxu0
  %5406 = vmatprep.mubr.f32.mxu0 0.0
  %5407 = vmatmul.mubr.f32.gmra.mrb[0].mxu0 %v5193
  %v5408 = vpop.f32.mrb[0].mxu0
  %v5409 = vadd.f32 0.0, %v5408
  %v5410 = vpop.f32.mrb[0].mxu0
  %5411 = vmatprep.mubr.f32.mxu0 0.0
  %5412 = vmatmul.mubr.f32.gmra.mrb[0].mxu0 %v5196
  %v5413 = vpop.f32.mrb[0].mxu0
  %v5414 = vadd.f32 0.0, %v5413
  %v5415 = vpop.f32.mrb[0].mxu0
  %5416 = vmatprep.mubr.f32.mxu0 0.0
  %5417 = vmatmul.mubr.f32.gmra.mrb[0].mxu0 %v5199
  %v5418 = vpop.f32.mrb[0].mxu0
  %v5419 = vadd.f32 0.0, %v5418
  %v5420 = vpop.f32.mrb[0].mxu0
  %5421 = vmatprep.mubr.f32.mxu0 0.0
  %5422 = vmatmul.mubr.f32.gmra.mrb[0].mxu0 %v5202
  %v5423 = vpop.f32.mrb[0].mxu0
  %v5424 = vadd.f32 0.0, %v5423
  %v5425 = vpop.f32.mrb[0].mxu0
  %5426 = vmatprep.mubr.f32.mxu0 0.0
  %5427 = vmatmul.mubr.f32.gmra.mrb[0].mxu0 %v5205
  %v5428 = vpop.f32.mrb[0].mxu0
  %v5429 = vadd.f32 0.0, %v5428
  %v5430 = vpop.f32.mrb[0].mxu0
  %5431 = vmatprep.mubr.f32.mxu0 0.0
  %5432 = vmatmul.mubr.f32.gmra.mrb[0].mxu0 %v5208
  %v5433 = vpop.f32.mrb[0].mxu0
  %v5434 = vadd.f32 0.0, %v5433
  %v5435 = vpop.f32.mrb[0].mxu0
  %5436 = vmatprep.mubr.f32.mxu0 0.0
  %5437 = vmatmul.mubr.f32.gmra.mrb[0].mxu0 %v5211
  %v5438 = vpop.f32.mrb[0].mxu0
  %v5439 = vadd.f32 0.0, %v5438
  %v5440 = vpop.f32.mrb[0].mxu0
  %5441 = vdwg.mxu0
  %s5442 = scalar_lea.vmem %s11, 64
  %v5443 = vld [vmem:[%s5442] sm:$0xff]
  %v5444 = vld [vmem:[%s5442 + $0x8] sm:$0xff]
  %v5445 = vld [vmem:[%s5442 + $0x10] sm:$0xff]
  %v5446 = vld [vmem:[%s5442 + $0x18] sm:$0xff]
  %v5447 = vld [vmem:[%s5442 + $0x20] sm:$0xff]
  %v5448 = vld [vmem:[%s5442 + $0x28] sm:$0xff]
  %v5449 = vld [vmem:[%s5442 + $0x30] sm:$0xff]
  %v5450 = vld [vmem:[%s5442 + $0x38] sm:$0xff]
  %v5452 = vsel %vm2852, %v5443, 0
  %v5455 = vsel %vm2852, %v5444, 0
  %v5458 = vsel %vm2852, %v5445, 0
  %v5461 = vsel %vm2852, %v5446, 0
  %v5464 = vsel %vm2852, %v5447, 0
  %v5467 = vsel %vm2852, %v5448, 0
  %v5470 = vsel %vm2852, %v5449, 0
  %v5473 = vsel %vm2852, %v5450, 0
  %5475 = vmatprep.subr.mxu0 0.0
  %5476 = vmatpush1.msra.mxu0 %v5404
  %5477 = vmatprep.subr.mxu0 0.0
  %5478 = vmatpush1.msra.mxu0 %v5409
  %5479 = vmatprep.subr.mxu0 0.0
  %5480 = vmatpush1.msra.mxu0 %v5414
  %5481 = vmatprep.subr.mxu0 0.0
  %5482 = vmatpush1.msra.mxu0 %v5419
  %5483 = vmatprep.subr.mxu0 0.0
  %5484 = vmatpush1.msra.mxu0 %v5424
  %5485 = vmatprep.subr.mxu0 0.0
  %5486 = vmatpush1.msra.mxu0 %v5429
  %5487 = vmatprep.subr.mxu0 0.0
  %5488 = vmatpush1.msra.mxu0 %v5434
  %5489 = vmatprep.subr.mxu0 0.0
  %5490 = vmatpush1.msra.mxu0 %v5439
  %5491 = vmatprep.subr.mxu0 0.0
  %5492 = vmatpush1.msra.mxu0 0.0
  %5493 = vmatprep.subr.mxu0 0.0
  %5494 = vmatpush1.msra.mxu0 0.0
  %5495 = vmatprep.subr.mxu0 0.0
  %5496 = vmatpush1.msra.mxu0 0.0
  %5497 = vmatprep.subr.mxu0 0.0
  %5498 = vmatpush1.msra.mxu0 0.0
  %5499 = vmatprep.subr.mxu0 0.0
  %5500 = vmatpush1.msra.mxu0 0.0
  %5501 = vmatprep.subr.mxu0 0.0
  %5502 = vmatpush1.msra.mxu0 0.0
  %5503 = vmatprep.subr.mxu0 0.0
  %5504 = vmatpush1.msra.mxu0 0.0
  %5505 = vmatprep.subr.mxu0 0.0
  %5506 = vmatpush1.msra.mxu0 0.0
  %5507 = vmatprep.subr.mxu0 0.0
  %5508 = vmatpush1.msra.mxu0 0.0
  %5509 = vmatprep.subr.mxu0 0.0
  %5510 = vmatpush1.msra.mxu0 0.0
  %5511 = vmatprep.subr.mxu0 0.0
  %5512 = vmatpush1.msra.mxu0 0.0
  %5513 = vmatprep.subr.mxu0 0.0
  %5514 = vmatpush1.msra.mxu0 0.0
  %5515 = vmatprep.subr.mxu0 0.0
  %5516 = vmatpush1.msra.mxu0 0.0
  %5517 = vmatprep.subr.mxu0 0.0
  %5518 = vmatpush1.msra.mxu0 0.0
  %5519 = vmatprep.subr.mxu0 0.0
  %5520 = vmatpush1.msra.mxu0 0.0
  %5521 = vmatprep.subr.mxu0 0.0
  %5522 = vmatpush1.msra.mxu0 0.0
  %5523 = vmatprep.subr.mxu0 0.0
  %5524 = vmatpush1.msra.mxu0 0.0
  %5525 = vmatprep.subr.mxu0 0.0
  %5526 = vmatpush1.msra.mxu0 0.0
  %5527 = vmatprep.subr.mxu0 0.0
  %5528 = vmatpush1.msra.mxu0 0.0
  %5529 = vmatprep.subr.mxu0 0.0
  %5530 = vmatpush1.msra.mxu0 0.0
  %5531 = vmatprep.subr.mxu0 0.0
  %5532 = vmatpush1.msra.mxu0 0.0
  %5533 = vmatprep.subr.mxu0 0.0
  %5534 = vmatpush1.msra.mxu0 0.0
  %5535 = vmatprep.subr.mxu0 0.0
  %5536 = vmatpush1.msra.mxu0 0.0
  %5537 = vmatprep.subr.mxu0 0.0
  %5538 = vmatpush1.msra.mxu0 0.0
  %5539 = vmatprep.mubr.f32.mxu0 0.0
  %5540 = vmatmul.mubr.f32.gmra.mrb[0].mxu0 %v5452
  %v5541 = vpop.f32.mrb[0].mxu0
  %v5542 = vadd.f32 0.0, %v5541
  %v5543 = vpop.f32.mrb[0].mxu0
  %5544 = vmatprep.mubr.f32.mxu0 0.0
  %5545 = vmatmul.mubr.f32.gmra.mrb[0].mxu0 %v5455
  %v5546 = vpop.f32.mrb[0].mxu0
  %v5547 = vadd.f32 0.0, %v5546
  %v5548 = vpop.f32.mrb[0].mxu0
  %5549 = vmatprep.mubr.f32.mxu0 0.0
  %5550 = vmatmul.mubr.f32.gmra.mrb[0].mxu0 %v5458
  %v5551 = vpop.f32.mrb[0].mxu0
  %v5552 = vadd.f32 0.0, %v5551
  %v5553 = vpop.f32.mrb[0].mxu0
  %5554 = vmatprep.mubr.f32.mxu0 0.0
  %5555 = vmatmul.mubr.f32.gmra.mrb[0].mxu0 %v5461
  %v5556 = vpop.f32.mrb[0].mxu0
  %v5557 = vadd.f32 0.0, %v5556
  %v5558 = vpop.f32.mrb[0].mxu0
  %5559 = vmatprep.mubr.f32.mxu0 0.0
  %5560 = vmatmul.mubr.f32.gmra.mrb[0].mxu0 %v5464
  %v5561 = vpop.f32.mrb[0].mxu0
  %v5562 = vadd.f32 0.0, %v5561
  %v5563 = vpop.f32.mrb[0].mxu0
  %5564 = vmatprep.mubr.f32.mxu0 0.0
  %5565 = vmatmul.mubr.f32.gmra.mrb[0].mxu0 %v5467
  %v5566 = vpop.f32.mrb[0].mxu0
  %v5567 = vadd.f32 0.0, %v5566
  %v5568 = vpop.f32.mrb[0].mxu0
  %5569 = vmatprep.mubr.f32.mxu0 0.0
  %5570 = vmatmul.mubr.f32.gmra.mrb[0].mxu0 %v5470
  %v5571 = vpop.f32.mrb[0].mxu0
  %v5572 = vadd.f32 0.0, %v5571
  %v5573 = vpop.f32.mrb[0].mxu0
  %5574 = vmatprep.mubr.f32.mxu0 0.0
  %5575 = vmatmul.mubr.f32.gmra.mrb[0].mxu0 %v5473
  %v5576 = vpop.f32.mrb[0].mxu0
  %v5577 = vadd.f32 0.0, %v5576
  %v5578 = vpop.f32.mrb[0].mxu0
  %5579 = vdwg.mxu0
  %v5581 = vsel %vm2852, %v5321, 0
  %v5584 = vsel %vm2852, %v5322, 0
  %v5587 = vsel %vm2852, %v5323, 0
  %v5590 = vsel %vm2852, %v5324, 0
  %v5593 = vsel %vm2852, %v5325, 0
  %v5596 = vsel %vm2852, %v5326, 0
  %v5599 = vsel %vm2852, %v5327, 0
  %v5602 = vsel %vm2852, %v5328, 0
  %5604 = vmatprep.subr.mxu0 0.0
  %5605 = vmatpush1.msra.mxu0 %v5283
  %5606 = vmatprep.subr.mxu0 0.0
  %5607 = vmatpush1.msra.mxu0 %v5288
  %5608 = vmatprep.subr.mxu0 0.0
  %5609 = vmatpush1.msra.mxu0 %v5293
  %5610 = vmatprep.subr.mxu0 0.0
  %5611 = vmatpush1.msra.mxu0 %v5298
  %5612 = vmatprep.subr.mxu0 0.0
  %5613 = vmatpush1.msra.mxu0 %v5303
  %5614 = vmatprep.subr.mxu0 0.0
  %5615 = vmatpush1.msra.mxu0 %v5308
  %5616 = vmatprep.subr.mxu0 0.0
  %5617 = vmatpush1.msra.mxu0 %v5313
  %5618 = vmatprep.subr.mxu0 0.0
  %5619 = vmatpush1.msra.mxu0 %v5318
  %5620 = vmatprep.subr.mxu0 0.0
  %5621 = vmatpush1.msra.mxu0 0.0
  %5622 = vmatprep.subr.mxu0 0.0
  %5623 = vmatpush1.msra.mxu0 0.0
  %5624 = vmatprep.subr.mxu0 0.0
  %5625 = vmatpush1.msra.mxu0 0.0
  %5626 = vmatprep.subr.mxu0 0.0
  %5627 = vmatpush1.msra.mxu0 0.0
  %5628 = vmatprep.subr.mxu0 0.0
  %5629 = vmatpush1.msra.mxu0 0.0
  %5630 = vmatprep.subr.mxu0 0.0
  %5631 = vmatpush1.msra.mxu0 0.0
  %5632 = vmatprep.subr.mxu0 0.0
  %5633 = vmatpush1.msra.mxu0 0.0
  %5634 = vmatprep.subr.mxu0 0.0
  %5635 = vmatpush1.msra.mxu0 0.0
  %5636 = vmatprep.subr.mxu0 0.0
  %5637 = vmatpush1.msra.mxu0 0.0
  %5638 = vmatprep.subr.mxu0 0.0
  %5639 = vmatpush1.msra.mxu0 0.0
  %5640 = vmatprep.subr.mxu0 0.0
  %5641 = vmatpush1.msra.mxu0 0.0
  %5642 = vmatprep.subr.mxu0 0.0
  %5643 = vmatpush1.msra.mxu0 0.0
  %5644 = vmatprep.subr.mxu0 0.0
  %5645 = vmatpush1.msra.mxu0 0.0
  %5646 = vmatprep.subr.mxu0 0.0
  %5647 = vmatpush1.msra.mxu0 0.0
  %5648 = vmatprep.subr.mxu0 0.0
  %5649 = vmatpush1.msra.mxu0 0.0
  %5650 = vmatprep.subr.mxu0 0.0
  %5651 = vmatpush1.msra.mxu0 0.0
  %5652 = vmatprep.subr.mxu0 0.0
  %5653 = vmatpush1.msra.mxu0 0.0
  %5654 = vmatprep.subr.mxu0 0.0
  %5655 = vmatpush1.msra.mxu0 0.0
  %5656 = vmatprep.subr.mxu0 0.0
  %5657 = vmatpush1.msra.mxu0 0.0
  %5658 = vmatprep.subr.mxu0 0.0
  %5659 = vmatpush1.msra.mxu0 0.0
  %5660 = vmatprep.subr.mxu0 0.0
  %5661 = vmatpush1.msra.mxu0 0.0
  %5662 = vmatprep.subr.mxu0 0.0
  %5663 = vmatpush1.msra.mxu0 0.0
  %5664 = vmatprep.subr.mxu0 0.0
  %5665 = vmatpush1.msra.mxu0 0.0
  %5666 = vmatprep.subr.mxu0 0.0
  %5667 = vmatpush1.msra.mxu0 0.0
  %5668 = vmatprep.mubr.f32.mxu0 0.0
  %5669 = vmatmul.mubr.f32.gmra.mrb[0].mxu0 %v5581
  %v5670 = vpop.f32.mrb[0].mxu0
  %v5671 = vadd.f32 %v5542, %v5670
  %v5672 = vpop.f32.mrb[0].mxu0
  %5673 = vmatprep.mubr.f32.mxu0 0.0
  %5674 = vmatmul.mubr.f32.gmra.mrb[0].mxu0 %v5584
  %v5675 = vpop.f32.mrb[0].mxu0
  %v5676 = vadd.f32 %v5547, %v5675
  %v5677 = vpop.f32.mrb[0].mxu0
  %5678 = vmatprep.mubr.f32.mxu0 0.0
  %5679 = vmatmul.mubr.f32.gmra.mrb[0].mxu0 %v5587
  %v5680 = vpop.f32.mrb[0].mxu0
  %v5681 = vadd.f32 %v5552, %v5680
  %v5682 = vpop.f32.mrb[0].mxu0
  %5683 = vmatprep.mubr.f32.mxu0 0.0
  %5684 = vmatmul.mubr.f32.gmra.mrb[0].mxu0 %v5590
  %v5685 = vpop.f32.mrb[0].mxu0
  %v5686 = vadd.f32 %v5557, %v5685
  %v5687 = vpop.f32.mrb[0].mxu0
  %5688 = vmatprep.mubr.f32.mxu0 0.0
  %5689 = vmatmul.mubr.f32.gmra.mrb[0].mxu0 %v5593
  %v5690 = vpop.f32.mrb[0].mxu0
  %v5691 = vadd.f32 %v5562, %v5690
  %v5692 = vpop.f32.mrb[0].mxu0
  %5693 = vmatprep.mubr.f32.mxu0 0.0
  %5694 = vmatmul.mubr.f32.gmra.mrb[0].mxu0 %v5596
  %v5695 = vpop.f32.mrb[0].mxu0
  %v5696 = vadd.f32 %v5567, %v5695
  %v5697 = vpop.f32.mrb[0].mxu0
  %5698 = vmatprep.mubr.f32.mxu0 0.0
  %5699 = vmatmul.mubr.f32.gmra.mrb[0].mxu0 %v5599
  %v5700 = vpop.f32.mrb[0].mxu0
  %v5701 = vadd.f32 %v5572, %v5700
  %v5702 = vpop.f32.mrb[0].mxu0
  %5703 = vmatprep.mubr.f32.mxu0 0.0
  %5704 = vmatmul.mubr.f32.gmra.mrb[0].mxu0 %v5602
  %v5705 = vpop.f32.mrb[0].mxu0
  %v5706 = vadd.f32 %v5577, %v5705
  %v5707 = vpop.f32.mrb[0].mxu0
  %5708 = vdwg.mxu0
  %s5709 = scalar_lea.vmem %s10, 64
  %v5710 = vld [vmem:[%s5709] sm:$0xff]
  %v5711 = vld [vmem:[%s5709 + $0x8] sm:$0xff]
  %v5712 = vld [vmem:[%s5709 + $0x10] sm:$0xff]
  %v5713 = vld [vmem:[%s5709 + $0x18] sm:$0x1]
  %v5715 = vsel %vm2370, %v5713, 0
  %5717 = vmatprep.subr.mxu0 0.0
  %5718 = vmatpush1.msra.mxu0 %v5710
  %5719 = vmatprep.subr.mxu0 0.0
  %5720 = vmatpush1.msra.mxu0 %v5711
  %5721 = vmatprep.subr.mxu0 0.0
  %5722 = vmatpush1.msra.mxu0 %v5712
  %5723 = vmatprep.subr.mxu0 0.0
  %5724 = vmatpush1.msra.mxu0 %v5715
  %5725 = vmatprep.subr.mxu0 0.0
  %5726 = vmatpush1.msra.mxu0 0.0
  %5727 = vmatprep.subr.mxu0 0.0
  %5728 = vmatpush1.msra.mxu0 0.0
  %5729 = vmatprep.subr.mxu0 0.0
  %5730 = vmatpush1.msra.mxu0 0.0
  %5731 = vmatprep.subr.mxu0 0.0
  %5732 = vmatpush1.msra.mxu0 0.0
  %5733 = vmatprep.subr.mxu0 0.0
  %5734 = vmatpush1.msra.mxu0 0.0
  %5735 = vmatprep.subr.mxu0 0.0
  %5736 = vmatpush1.msra.mxu0 0.0
  %5737 = vmatprep.subr.mxu0 0.0
  %5738 = vmatpush1.msra.mxu0 0.0
  %5739 = vmatprep.subr.mxu0 0.0
  %5740 = vmatpush1.msra.mxu0 0.0
  %5741 = vmatprep.subr.mxu0 0.0
  %5742 = vmatpush1.msra.mxu0 0.0
  %5743 = vmatprep.subr.mxu0 0.0
  %5744 = vmatpush1.msra.mxu0 0.0
  %5745 = vmatprep.subr.mxu0 0.0
  %5746 = vmatpush1.msra.mxu0 0.0
  %5747 = vmatprep.subr.mxu0 0.0
  %5748 = vmatpush1.msra.mxu0 0.0
  %5749 = vmatprep.subr.mxu0 0.0
  %5750 = vmatpush1.msra.mxu0 0.0
  %5751 = vmatprep.subr.mxu0 0.0
  %5752 = vmatpush1.msra.mxu0 0.0
  %5753 = vmatprep.subr.mxu0 0.0
  %5754 = vmatpush1.msra.mxu0 0.0
  %5755 = vmatprep.subr.mxu0 0.0
  %5756 = vmatpush1.msra.mxu0 0.0
  %5757 = vmatprep.subr.mxu0 0.0
  %5758 = vmatpush1.msra.mxu0 0.0
  %5759 = vmatprep.subr.mxu0 0.0
  %5760 = vmatpush1.msra.mxu0 0.0
  %5761 = vmatprep.subr.mxu0 0.0
  %5762 = vmatpush1.msra.mxu0 0.0
  %5763 = vmatprep.subr.mxu0 0.0
  %5764 = vmatpush1.msra.mxu0 0.0
  %5765 = vmatprep.subr.mxu0 0.0
  %5766 = vmatpush1.msra.mxu0 0.0
  %5767 = vmatprep.subr.mxu0 0.0
  %5768 = vmatpush1.msra.mxu0 0.0
  %5769 = vmatprep.subr.mxu0 0.0
  %5770 = vmatpush1.msra.mxu0 0.0
  %5771 = vmatprep.subr.mxu0 0.0
  %5772 = vmatpush1.msra.mxu0 0.0
  %5773 = vmatprep.subr.mxu0 0.0
  %5774 = vmatpush1.msra.mxu0 0.0
  %5775 = vmatprep.subr.mxu0 0.0
  %5776 = vmatpush1.msra.mxu0 0.0
  %5777 = vmatprep.subr.mxu0 0.0
  %5778 = vmatpush1.msra.mxu0 0.0
  %5779 = vmatprep.subr.mxu0 0.0
  %5780 = vmatpush1.msra.mxu0 0.0
  %5781 = vmatprep.mubr.f32.mxu0 0.0
  %5782 = vmatmul.mubr.f32.gmra.mrb[0].mxu0 %v5190
  %v5783 = vpop.f32.mrb[0].mxu0
  %v5784 = vadd.f32 0.0, %v5783
  %v5785 = vpop.f32.mrb[0].mxu0
  %5786 = vmatprep.mubr.f32.mxu0 0.0
  %5787 = vmatmul.mubr.f32.gmra.mrb[0].mxu0 %v5193
  %v5788 = vpop.f32.mrb[0].mxu0
  %v5789 = vadd.f32 0.0, %v5788
  %v5790 = vpop.f32.mrb[0].mxu0
  %5791 = vmatprep.mubr.f32.mxu0 0.0
  %5792 = vmatmul.mubr.f32.gmra.mrb[0].mxu0 %v5196
  %v5793 = vpop.f32.mrb[0].mxu0
  %v5794 = vadd.f32 0.0, %v5793
  %v5795 = vpop.f32.mrb[0].mxu0
  %5796 = vmatprep.mubr.f32.mxu0 0.0
  %5797 = vmatmul.mubr.f32.gmra.mrb[0].mxu0 %v5199
  %v5798 = vpop.f32.mrb[0].mxu0
  %v5799 = vadd.f32 0.0, %v5798
  %v5800 = vpop.f32.mrb[0].mxu0
  %5801 = vmatprep.mubr.f32.mxu0 0.0
  %5802 = vmatmul.mubr.f32.gmra.mrb[0].mxu0 %v5202
  %v5803 = vpop.f32.mrb[0].mxu0
  %v5804 = vadd.f32 0.0, %v5803
  %v5805 = vpop.f32.mrb[0].mxu0
  %5806 = vmatprep.mubr.f32.mxu0 0.0
  %5807 = vmatmul.mubr.f32.gmra.mrb[0].mxu0 %v5205
  %v5808 = vpop.f32.mrb[0].mxu0
  %v5809 = vadd.f32 0.0, %v5808
  %v5810 = vpop.f32.mrb[0].mxu0
  %5811 = vmatprep.mubr.f32.mxu0 0.0
  %5812 = vmatmul.mubr.f32.gmra.mrb[0].mxu0 %v5208
  %v5813 = vpop.f32.mrb[0].mxu0
  %v5814 = vadd.f32 0.0, %v5813
  %v5815 = vpop.f32.mrb[0].mxu0
  %5816 = vmatprep.mubr.f32.mxu0 0.0
  %5817 = vmatmul.mubr.f32.gmra.mrb[0].mxu0 %v5211
  %v5818 = vpop.f32.mrb[0].mxu0
  %v5819 = vadd.f32 0.0, %v5818
  %v5820 = vpop.f32.mrb[0].mxu0
  %5821 = vdwg.mxu0
  %s5822 = scalar_lea.vmem %s11, 128
  %v5823 = vld [vmem:[%s5822] sm:$0xff]
  %v5824 = vld [vmem:[%s5822 + $0x8] sm:$0xff]
  %v5825 = vld [vmem:[%s5822 + $0x10] sm:$0xff]
  %v5826 = vld [vmem:[%s5822 + $0x18] sm:$0xff]
  %v5827 = vld [vmem:[%s5822 + $0x20] sm:$0xff]
  %v5828 = vld [vmem:[%s5822 + $0x28] sm:$0xff]
  %v5829 = vld [vmem:[%s5822 + $0x30] sm:$0xff]
  %v5830 = vld [vmem:[%s5822 + $0x38] sm:$0xff]
  %v5832 = vsel %vm2852, %v5823, 0
  %v5835 = vsel %vm2852, %v5824, 0
  %v5838 = vsel %vm2852, %v5825, 0
  %v5841 = vsel %vm2852, %v5826, 0
  %v5844 = vsel %vm2852, %v5827, 0
  %v5847 = vsel %vm2852, %v5828, 0
  %v5850 = vsel %vm2852, %v5829, 0
  %v5853 = vsel %vm2852, %v5830, 0
  %5855 = vmatprep.subr.mxu0 0.0
  %5856 = vmatpush1.msra.mxu0 %v5784
  %5857 = vmatprep.subr.mxu0 0.0
  %5858 = vmatpush1.msra.mxu0 %v5789
  %5859 = vmatprep.subr.mxu0 0.0
  %5860 = vmatpush1.msra.mxu0 %v5794
  %5861 = vmatprep.subr.mxu0 0.0
  %5862 = vmatpush1.msra.mxu0 %v5799
  %5863 = vmatprep.subr.mxu0 0.0
  %5864 = vmatpush1.msra.mxu0 %v5804
  %5865 = vmatprep.subr.mxu0 0.0
  %5866 = vmatpush1.msra.mxu0 %v5809
  %5867 = vmatprep.subr.mxu0 0.0
  %5868 = vmatpush1.msra.mxu0 %v5814
  %5869 = vmatprep.subr.mxu0 0.0
  %5870 = vmatpush1.msra.mxu0 %v5819
  %5871 = vmatprep.subr.mxu0 0.0
  %5872 = vmatpush1.msra.mxu0 0.0
  %5873 = vmatprep.subr.mxu0 0.0
  %5874 = vmatpush1.msra.mxu0 0.0
  %5875 = vmatprep.subr.mxu0 0.0
  %5876 = vmatpush1.msra.mxu0 0.0
  %5877 = vmatprep.subr.mxu0 0.0
  %5878 = vmatpush1.msra.mxu0 0.0
  %5879 = vmatprep.subr.mxu0 0.0
  %5880 = vmatpush1.msra.mxu0 0.0
  %5881 = vmatprep.subr.mxu0 0.0
  %5882 = vmatpush1.msra.mxu0 0.0
  %5883 = vmatprep.subr.mxu0 0.0
  %5884 = vmatpush1.msra.mxu0 0.0
  %5885 = vmatprep.subr.mxu0 0.0
  %5886 = vmatpush1.msra.mxu0 0.0
  %5887 = vmatprep.subr.mxu0 0.0
  %5888 = vmatpush1.msra.mxu0 0.0
  %5889 = vmatprep.subr.mxu0 0.0
  %5890 = vmatpush1.msra.mxu0 0.0
  %5891 = vmatprep.subr.mxu0 0.0
  %5892 = vmatpush1.msra.mxu0 0.0
  %5893 = vmatprep.subr.mxu0 0.0
  %5894 = vmatpush1.msra.mxu0 0.0
  %5895 = vmatprep.subr.mxu0 0.0
  %5896 = vmatpush1.msra.mxu0 0.0
  %5897 = vmatprep.subr.mxu0 0.0
  %5898 = vmatpush1.msra.mxu0 0.0
  %5899 = vmatprep.subr.mxu0 0.0
  %5900 = vmatpush1.msra.mxu0 0.0
  %5901 = vmatprep.subr.mxu0 0.0
  %5902 = vmatpush1.msra.mxu0 0.0
  %5903 = vmatprep.subr.mxu0 0.0
  %5904 = vmatpush1.msra.mxu0 0.0
  %5905 = vmatprep.subr.mxu0 0.0
  %5906 = vmatpush1.msra.mxu0 0.0
  %5907 = vmatprep.subr.mxu0 0.0
  %5908 = vmatpush1.msra.mxu0 0.0
  %5909 = vmatprep.subr.mxu0 0.0
  %5910 = vmatpush1.msra.mxu0 0.0
  %5911 = vmatprep.subr.mxu0 0.0
  %5912 = vmatpush1.msra.mxu0 0.0
  %5913 = vmatprep.subr.mxu0 0.0
  %5914 = vmatpush1.msra.mxu0 0.0
  %5915 = vmatprep.subr.mxu0 0.0
  %5916 = vmatpush1.msra.mxu0 0.0
  %5917 = vmatprep.subr.mxu0 0.0
  %5918 = vmatpush1.msra.mxu0 0.0
  %5919 = vmatprep.mubr.f32.mxu0 0.0
  %5920 = vmatmul.mubr.f32.gmra.mrb[0].mxu0 %v5832
  %v5921 = vpop.f32.mrb[0].mxu0
  %v5922 = vadd.f32 0.0, %v5921
  %v5923 = vpop.f32.mrb[0].mxu0
  %5924 = vmatprep.mubr.f32.mxu0 0.0
  %5925 = vmatmul.mubr.f32.gmra.mrb[0].mxu0 %v5835
  %v5926 = vpop.f32.mrb[0].mxu0
  %v5927 = vadd.f32 0.0, %v5926
  %v5928 = vpop.f32.mrb[0].mxu0
  %5929 = vmatprep.mubr.f32.mxu0 0.0
  %5930 = vmatmul.mubr.f32.gmra.mrb[0].mxu0 %v5838
  %v5931 = vpop.f32.mrb[0].mxu0
  %v5932 = vadd.f32 0.0, %v5931
  %v5933 = vpop.f32.mrb[0].mxu0
  %5934 = vmatprep.mubr.f32.mxu0 0.0
  %5935 = vmatmul.mubr.f32.gmra.mrb[0].mxu0 %v5841
  %v5936 = vpop.f32.mrb[0].mxu0
  %v5937 = vadd.f32 0.0, %v5936
  %v5938 = vpop.f32.mrb[0].mxu0
  %5939 = vmatprep.mubr.f32.mxu0 0.0
  %5940 = vmatmul.mubr.f32.gmra.mrb[0].mxu0 %v5844
  %v5941 = vpop.f32.mrb[0].mxu0
  %v5942 = vadd.f32 0.0, %v5941
  %v5943 = vpop.f32.mrb[0].mxu0
  %5944 = vmatprep.mubr.f32.mxu0 0.0
  %5945 = vmatmul.mubr.f32.gmra.mrb[0].mxu0 %v5847
  %v5946 = vpop.f32.mrb[0].mxu0
  %v5947 = vadd.f32 0.0, %v5946
  %v5948 = vpop.f32.mrb[0].mxu0
  %5949 = vmatprep.mubr.f32.mxu0 0.0
  %5950 = vmatmul.mubr.f32.gmra.mrb[0].mxu0 %v5850
  %v5951 = vpop.f32.mrb[0].mxu0
  %v5952 = vadd.f32 0.0, %v5951
  %v5953 = vpop.f32.mrb[0].mxu0
  %5954 = vmatprep.mubr.f32.mxu0 0.0
  %5955 = vmatmul.mubr.f32.gmra.mrb[0].mxu0 %v5853
  %v5956 = vpop.f32.mrb[0].mxu0
  %v5957 = vadd.f32 0.0, %v5956
  %v5958 = vpop.f32.mrb[0].mxu0
  %5959 = vdwg.mxu0
  %v5960 = vadd.f32 %v5671, %v5922
  %v5961 = vadd.f32 %v5676, %v5927
  %v5962 = vadd.f32 %v5681, %v5932
  %v5963 = vadd.f32 %v5686, %v5937
  %v5964 = vadd.f32 %v5691, %v5942
  %v5965 = vadd.f32 %v5696, %v5947
  %v5966 = vadd.f32 %v5701, %v5952
  %v5967 = vadd.f32 %v5706, %v5957
  %s5968 = scalar_lea.vmem %s10, 96
  %v5969 = vld [vmem:[%s5968] sm:$0xff]
  %v5970 = vld [vmem:[%s5968 + $0x8] sm:$0xff]
  %v5971 = vld [vmem:[%s5968 + $0x10] sm:$0xff]
  %v5972 = vld [vmem:[%s5968 + $0x18] sm:$0x1]
  %v5974 = vsel %vm2370, %v5972, 0
  %5976 = vmatprep.subr.mxu0 0.0
  %5977 = vmatpush1.msra.mxu0 %v5969
  %5978 = vmatprep.subr.mxu0 0.0
  %5979 = vmatpush1.msra.mxu0 %v5970
  %5980 = vmatprep.subr.mxu0 0.0
  %5981 = vmatpush1.msra.mxu0 %v5971
  %5982 = vmatprep.subr.mxu0 0.0
  %5983 = vmatpush1.msra.mxu0 %v5974
  %5984 = vmatprep.subr.mxu0 0.0
  %5985 = vmatpush1.msra.mxu0 0.0
  %5986 = vmatprep.subr.mxu0 0.0
  %5987 = vmatpush1.msra.mxu0 0.0
  %5988 = vmatprep.subr.mxu0 0.0
  %5989 = vmatpush1.msra.mxu0 0.0
  %5990 = vmatprep.subr.mxu0 0.0
  %5991 = vmatpush1.msra.mxu0 0.0
  %5992 = vmatprep.subr.mxu0 0.0
  %5993 = vmatpush1.msra.mxu0 0.0
  %5994 = vmatprep.subr.mxu0 0.0
  %5995 = vmatpush1.msra.mxu0 0.0
  %5996 = vmatprep.subr.mxu0 0.0
  %5997 = vmatpush1.msra.mxu0 0.0
  %5998 = vmatprep.subr.mxu0 0.0
  %5999 = vmatpush1.msra.mxu0 0.0
  %6000 = vmatprep.subr.mxu0 0.0
  %6001 = vmatpush1.msra.mxu0 0.0
  %6002 = vmatprep.subr.mxu0 0.0
  %6003 = vmatpush1.msra.mxu0 0.0
  %6004 = vmatprep.subr.mxu0 0.0
  %6005 = vmatpush1.msra.mxu0 0.0
  %6006 = vmatprep.subr.mxu0 0.0
  %6007 = vmatpush1.msra.mxu0 0.0
  %6008 = vmatprep.subr.mxu0 0.0
  %6009 = vmatpush1.msra.mxu0 0.0
  %6010 = vmatprep.subr.mxu0 0.0
  %6011 = vmatpush1.msra.mxu0 0.0
  %6012 = vmatprep.subr.mxu0 0.0
  %6013 = vmatpush1.msra.mxu0 0.0
  %6014 = vmatprep.subr.mxu0 0.0
  %6015 = vmatpush1.msra.mxu0 0.0
  %6016 = vmatprep.subr.mxu0 0.0
  %6017 = vmatpush1.msra.mxu0 0.0
  %6018 = vmatprep.subr.mxu0 0.0
  %6019 = vmatpush1.msra.mxu0 0.0
  %6020 = vmatprep.subr.mxu0 0.0
  %6021 = vmatpush1.msra.mxu0 0.0
  %6022 = vmatprep.subr.mxu0 0.0
  %6023 = vmatpush1.msra.mxu0 0.0
  %6024 = vmatprep.subr.mxu0 0.0
  %6025 = vmatpush1.msra.mxu0 0.0
  %6026 = vmatprep.subr.mxu0 0.0
  %6027 = vmatpush1.msra.mxu0 0.0
  %6028 = vmatprep.subr.mxu0 0.0
  %6029 = vmatpush1.msra.mxu0 0.0
  %6030 = vmatprep.subr.mxu0 0.0
  %6031 = vmatpush1.msra.mxu0 0.0
  %6032 = vmatprep.subr.mxu0 0.0
  %6033 = vmatpush1.msra.mxu0 0.0
  %6034 = vmatprep.subr.mxu0 0.0
  %6035 = vmatpush1.msra.mxu0 0.0
  %6036 = vmatprep.subr.mxu0 0.0
  %6037 = vmatpush1.msra.mxu0 0.0
  %6038 = vmatprep.subr.mxu0 0.0
  %6039 = vmatpush1.msra.mxu0 0.0
  %6040 = vmatprep.mubr.f32.mxu0 0.0
  %6041 = vmatmul.mubr.f32.gmra.mrb[0].mxu0 %v5190
  %v6042 = vpop.f32.mrb[0].mxu0
  %v6043 = vadd.f32 0.0, %v6042
  %v6044 = vpop.f32.mrb[0].mxu0
  %6045 = vmatprep.mubr.f32.mxu0 0.0
  %6046 = vmatmul.mubr.f32.gmra.mrb[0].mxu0 %v5193
  %v6047 = vpop.f32.mrb[0].mxu0
  %v6048 = vadd.f32 0.0, %v6047
  %v6049 = vpop.f32.mrb[0].mxu0
  %6050 = vmatprep.mubr.f32.mxu0 0.0
  %6051 = vmatmul.mubr.f32.gmra.mrb[0].mxu0 %v5196
  %v6052 = vpop.f32.mrb[0].mxu0
  %v6053 = vadd.f32 0.0, %v6052
  %v6054 = vpop.f32.mrb[0].mxu0
  %6055 = vmatprep.mubr.f32.mxu0 0.0
  %6056 = vmatmul.mubr.f32.gmra.mrb[0].mxu0 %v5199
  %v6057 = vpop.f32.mrb[0].mxu0
  %v6058 = vadd.f32 0.0, %v6057
  %v6059 = vpop.f32.mrb[0].mxu0
  %6060 = vmatprep.mubr.f32.mxu0 0.0
  %6061 = vmatmul.mubr.f32.gmra.mrb[0].mxu0 %v5202
  %v6062 = vpop.f32.mrb[0].mxu0
  %v6063 = vadd.f32 0.0, %v6062
  %v6064 = vpop.f32.mrb[0].mxu0
  %6065 = vmatprep.mubr.f32.mxu0 0.0
  %6066 = vmatmul.mubr.f32.gmra.mrb[0].mxu0 %v5205
  %v6067 = vpop.f32.mrb[0].mxu0
  %v6068 = vadd.f32 0.0, %v6067
  %v6069 = vpop.f32.mrb[0].mxu0
  %6070 = vmatprep.mubr.f32.mxu0 0.0
  %6071 = vmatmul.mubr.f32.gmra.mrb[0].mxu0 %v5208
  %v6072 = vpop.f32.mrb[0].mxu0
  %v6073 = vadd.f32 0.0, %v6072
  %v6074 = vpop.f32.mrb[0].mxu0
  %6075 = vmatprep.mubr.f32.mxu0 0.0
  %6076 = vmatmul.mubr.f32.gmra.mrb[0].mxu0 %v5211
  %v6077 = vpop.f32.mrb[0].mxu0
  %v6078 = vadd.f32 0.0, %v6077
  %v6079 = vpop.f32.mrb[0].mxu0
  %6080 = vdwg.mxu0
  %s6081 = scalar_lea.vmem %s11, 192
  %v6082 = vld [vmem:[%s6081] sm:$0xff]
  %v6083 = vld [vmem:[%s6081 + $0x8] sm:$0xff]
  %v6084 = vld [vmem:[%s6081 + $0x10] sm:$0xff]
  %v6085 = vld [vmem:[%s6081 + $0x18] sm:$0xff]
  %v6086 = vld [vmem:[%s6081 + $0x20] sm:$0xff]
  %v6087 = vld [vmem:[%s6081 + $0x28] sm:$0xff]
  %v6088 = vld [vmem:[%s6081 + $0x30] sm:$0xff]
  %v6089 = vld [vmem:[%s6081 + $0x38] sm:$0xff]
  %v6091 = vsel %vm2852, %v6082, 0
  %v6094 = vsel %vm2852, %v6083, 0
  %v6097 = vsel %vm2852, %v6084, 0
  %v6100 = vsel %vm2852, %v6085, 0
  %v6103 = vsel %vm2852, %v6086, 0
  %v6106 = vsel %vm2852, %v6087, 0
  %v6109 = vsel %vm2852, %v6088, 0
  %v6112 = vsel %vm2852, %v6089, 0
  %6114 = vmatprep.subr.mxu0 0.0
  %6115 = vmatpush1.msra.mxu0 %v6043
  %6116 = vmatprep.subr.mxu0 0.0
  %6117 = vmatpush1.msra.mxu0 %v6048
  %6118 = vmatprep.subr.mxu0 0.0
  %6119 = vmatpush1.msra.mxu0 %v6053
  %6120 = vmatprep.subr.mxu0 0.0
  %6121 = vmatpush1.msra.mxu0 %v6058
  %6122 = vmatprep.subr.mxu0 0.0
  %6123 = vmatpush1.msra.mxu0 %v6063
  %6124 = vmatprep.subr.mxu0 0.0
  %6125 = vmatpush1.msra.mxu0 %v6068
  %6126 = vmatprep.subr.mxu0 0.0
  %6127 = vmatpush1.msra.mxu0 %v6073
  %6128 = vmatprep.subr.mxu0 0.0
  %6129 = vmatpush1.msra.mxu0 %v6078
  %6130 = vmatprep.subr.mxu0 0.0
  %6131 = vmatpush1.msra.mxu0 0.0
  %6132 = vmatprep.subr.mxu0 0.0
  %6133 = vmatpush1.msra.mxu0 0.0
  %6134 = vmatprep.subr.mxu0 0.0
  %6135 = vmatpush1.msra.mxu0 0.0
  %6136 = vmatprep.subr.mxu0 0.0
  %6137 = vmatpush1.msra.mxu0 0.0
  %6138 = vmatprep.subr.mxu0 0.0
  %6139 = vmatpush1.msra.mxu0 0.0
  %6140 = vmatprep.subr.mxu0 0.0
  %6141 = vmatpush1.msra.mxu0 0.0
  %6142 = vmatprep.subr.mxu0 0.0
  %6143 = vmatpush1.msra.mxu0 0.0
  %6144 = vmatprep.subr.mxu0 0.0
  %6145 = vmatpush1.msra.mxu0 0.0
  %6146 = vmatprep.subr.mxu0 0.0
  %6147 = vmatpush1.msra.mxu0 0.0
  %6148 = vmatprep.subr.mxu0 0.0
  %6149 = vmatpush1.msra.mxu0 0.0
  %6150 = vmatprep.subr.mxu0 0.0
  %6151 = vmatpush1.msra.mxu0 0.0
  %6152 = vmatprep.subr.mxu0 0.0
  %6153 = vmatpush1.msra.mxu0 0.0
  %6154 = vmatprep.subr.mxu0 0.0
  %6155 = vmatpush1.msra.mxu0 0.0
  %6156 = vmatprep.subr.mxu0 0.0
  %6157 = vmatpush1.msra.mxu0 0.0
  %6158 = vmatprep.subr.mxu0 0.0
  %6159 = vmatpush1.msra.mxu0 0.0
  %6160 = vmatprep.subr.mxu0 0.0
  %6161 = vmatpush1.msra.mxu0 0.0
  %6162 = vmatprep.subr.mxu0 0.0
  %6163 = vmatpush1.msra.mxu0 0.0
  %6164 = vmatprep.subr.mxu0 0.0
  %6165 = vmatpush1.msra.mxu0 0.0
  %6166 = vmatprep.subr.mxu0 0.0
  %6167 = vmatpush1.msra.mxu0 0.0
  %6168 = vmatprep.subr.mxu0 0.0
  %6169 = vmatpush1.msra.mxu0 0.0
  %6170 = vmatprep.subr.mxu0 0.0
  %6171 = vmatpush1.msra.mxu0 0.0
  %6172 = vmatprep.subr.mxu0 0.0
  %6173 = vmatpush1.msra.mxu0 0.0
  %6174 = vmatprep.subr.mxu0 0.0
  %6175 = vmatpush1.msra.mxu0 0.0
  %6176 = vmatprep.subr.mxu0 0.0
  %6177 = vmatpush1.msra.mxu0 0.0
  %6178 = vmatprep.mubr.f32.mxu0 0.0
  %6179 = vmatmul.mubr.f32.gmra.mrb[0].mxu0 %v6091
  %v6180 = vpop.f32.mrb[0].mxu0
  %v6181 = vadd.f32 0.0, %v6180
  %v6182 = vpop.f32.mrb[0].mxu0
  %6183 = vmatprep.mubr.f32.mxu0 0.0
  %6184 = vmatmul.mubr.f32.gmra.mrb[0].mxu0 %v6094
  %v6185 = vpop.f32.mrb[0].mxu0
  %v6186 = vadd.f32 0.0, %v6185
  %v6187 = vpop.f32.mrb[0].mxu0
  %6188 = vmatprep.mubr.f32.mxu0 0.0
  %6189 = vmatmul.mubr.f32.gmra.mrb[0].mxu0 %v6097
  %v6190 = vpop.f32.mrb[0].mxu0
  %v6191 = vadd.f32 0.0, %v6190
  %v6192 = vpop.f32.mrb[0].mxu0
  %6193 = vmatprep.mubr.f32.mxu0 0.0
  %6194 = vmatmul.mubr.f32.gmra.mrb[0].mxu0 %v6100
  %v6195 = vpop.f32.mrb[0].mxu0
  %v6196 = vadd.f32 0.0, %v6195
  %v6197 = vpop.f32.mrb[0].mxu0
  %6198 = vmatprep.mubr.f32.mxu0 0.0
  %6199 = vmatmul.mubr.f32.gmra.mrb[0].mxu0 %v6103
  %v6200 = vpop.f32.mrb[0].mxu0
  %v6201 = vadd.f32 0.0, %v6200
  %v6202 = vpop.f32.mrb[0].mxu0
  %6203 = vmatprep.mubr.f32.mxu0 0.0
  %6204 = vmatmul.mubr.f32.gmra.mrb[0].mxu0 %v6106
  %v6205 = vpop.f32.mrb[0].mxu0
  %v6206 = vadd.f32 0.0, %v6205
  %v6207 = vpop.f32.mrb[0].mxu0
  %6208 = vmatprep.mubr.f32.mxu0 0.0
  %6209 = vmatmul.mubr.f32.gmra.mrb[0].mxu0 %v6109
  %v6210 = vpop.f32.mrb[0].mxu0
  %v6211 = vadd.f32 0.0, %v6210
  %v6212 = vpop.f32.mrb[0].mxu0
  %6213 = vmatprep.mubr.f32.mxu0 0.0
  %6214 = vmatmul.mubr.f32.gmra.mrb[0].mxu0 %v6112
  %v6215 = vpop.f32.mrb[0].mxu0
  %v6216 = vadd.f32 0.0, %v6215
  %v6217 = vpop.f32.mrb[0].mxu0
  %6218 = vdwg.mxu0
  %v6219 = vadd.f32 %v5960, %v6181
  %v6220 = vadd.f32 %v5961, %v6186
  %v6221 = vadd.f32 %v5962, %v6191
  %v6222 = vadd.f32 %v5963, %v6196
  %v6223 = vadd.f32 %v5964, %v6201
  %v6224 = vadd.f32 %v5965, %v6206
  %v6225 = vadd.f32 %v5966, %v6211
  %v6226 = vadd.f32 %v5967, %v6216
  %v6227 = vld [vmem:[%s12] sm:$0xff]
  %v6228 = vld [vmem:[%s12 + $0x8] sm:$0xff]
  %v6229 = vld [vmem:[%s12 + $0x10] sm:$0xff]
  %v6230 = vld [vmem:[%s12 + $0x18] sm:$0xff]
  %v6231 = vld [vmem:[%s12 + $0x20] sm:$0xff]
  %v6232 = vld [vmem:[%s12 + $0x28] sm:$0xff]
  %v6233 = vld [vmem:[%s12 + $0x30] sm:$0xff]
  %v6234 = vld [vmem:[%s12 + $0x38] sm:$0xff]
  %v6235 = vadd.f32 %v6219, %v6227
  %v6236 = vadd.f32 %v6220, %v6228
  %v6237 = vadd.f32 %v6221, %v6229
  %v6238 = vadd.f32 %v6222, %v6230
  %v6239 = vadd.f32 %v6223, %v6231
  %v6240 = vadd.f32 %v6224, %v6232
  %v6241 = vadd.f32 %v6225, %v6233
  %v6242 = vadd.f32 %v6226, %v6234
  %v6243 = vxor.u32 %v6235, 2147483648
  %v6244 = vxor.u32 %v6236, 2147483648
  %v6245 = vxor.u32 %v6237, 2147483648
  %v6246 = vxor.u32 %v6238, 2147483648
  %v6247 = vxor.u32 %v6239, 2147483648
  %v6248 = vxor.u32 %v6240, 2147483648
  %v6249 = vxor.u32 %v6241, 2147483648
  %v6250 = vxor.u32 %v6242, 2147483648
  %v6251 = vmul.f32 %v6243, 1.442695
  %v6252 = vpow.pop %v6251
  %v6253 = vmul.f32 %v6244, 1.442695
  %v6254 = vpow.pop %v6253
  %v6255 = vmul.f32 %v6245, 1.442695
  %v6256 = vpow.pop %v6255
  %v6257 = vmul.f32 %v6246, 1.442695
  %v6258 = vpow.pop %v6257
  %v6259 = vmul.f32 %v6247, 1.442695
  %v6260 = vpow.pop %v6259
  %v6261 = vmul.f32 %v6248, 1.442695
  %v6262 = vpow.pop %v6261
  %v6263 = vmul.f32 %v6249, 1.442695
  %v6264 = vpow.pop %v6263
  %v6265 = vmul.f32 %v6250, 1.442695
  %v6266 = vpow.pop %v6265
  %v6267 = vadd.f32 %v6252, 1.0
  %v6268 = vadd.f32 %v6254, 1.0
  %v6269 = vadd.f32 %v6256, 1.0
  %v6270 = vadd.f32 %v6258, 1.0
  %v6271 = vadd.f32 %v6260, 1.0
  %v6272 = vadd.f32 %v6262, 1.0
  %v6273 = vadd.f32 %v6264, 1.0
  %v6274 = vadd.f32 %v6266, 1.0
  %v6275 = vrcp.pop %v6267
  %v6276 = vmul.f32 1.0, %v6275
  %v6277 = vrcp.pop %v6268
  %v6278 = vmul.f32 1.0, %v6277
  %v6279 = vrcp.pop %v6269
  %v6280 = vmul.f32 1.0, %v6279
  %v6281 = vrcp.pop %v6270
  %v6282 = vmul.f32 1.0, %v6281
  %v6283 = vrcp.pop %v6271
  %v6284 = vmul.f32 1.0, %v6283
  %v6285 = vrcp.pop %v6272
  %v6286 = vmul.f32 1.0, %v6285
  %v6287 = vrcp.pop %v6273
  %v6288 = vmul.f32 1.0, %v6287
  %v6289 = vrcp.pop %v6274
  %v6290 = vmul.f32 1.0, %v6289
  %v6291 = vxor.u32 %v6276, 2147483648
  %v6292 = vxor.u32 %v6278, 2147483648
  %v6293 = vxor.u32 %v6280, 2147483648
  %v6294 = vxor.u32 %v6282, 2147483648
  %v6295 = vxor.u32 %v6284, 2147483648
  %v6296 = vxor.u32 %v6286, 2147483648
  %v6297 = vxor.u32 %v6288, 2147483648
  %v6298 = vxor.u32 %v6290, 2147483648
  %v6299 = vmul.f32 %v6291, 1.442695
  %v6300 = vpow.pop %v6299
  %v6301 = vmul.f32 %v6292, 1.442695
  %v6302 = vpow.pop %v6301
  %v6303 = vmul.f32 %v6293, 1.442695
  %v6304 = vpow.pop %v6303
  %v6305 = vmul.f32 %v6294, 1.442695
  %v6306 = vpow.pop %v6305
  %v6307 = vmul.f32 %v6295, 1.442695
  %v6308 = vpow.pop %v6307
  %v6309 = vmul.f32 %v6296, 1.442695
  %v6310 = vpow.pop %v6309
  %v6311 = vmul.f32 %v6297, 1.442695
  %v6312 = vpow.pop %v6311
  %v6313 = vmul.f32 %v6298, 1.442695
  %v6314 = vpow.pop %v6313
  %v6315 = vadd.f32 %v6300, 1.0
  %v6316 = vadd.f32 %v6302, 1.0
  %v6317 = vadd.f32 %v6304, 1.0
  %v6318 = vadd.f32 %v6306, 1.0
  %v6319 = vadd.f32 %v6308, 1.0
  %v6320 = vadd.f32 %v6310, 1.0
  %v6321 = vadd.f32 %v6312, 1.0
  %v6322 = vadd.f32 %v6314, 1.0
  %v6323 = vrcp.pop %v6315
  %v6324 = vmul.f32 1.0, %v6323
  %v6325 = vrcp.pop %v6316
  %v6326 = vmul.f32 1.0, %v6325
  %v6327 = vrcp.pop %v6317
  %v6328 = vmul.f32 1.0, %v6327
  %v6329 = vrcp.pop %v6318
  %v6330 = vmul.f32 1.0, %v6329
  %v6331 = vrcp.pop %v6319
  %v6332 = vmul.f32 1.0, %v6331
  %v6333 = vrcp.pop %v6320
  %v6334 = vmul.f32 1.0, %v6333
  %v6335 = vrcp.pop %v6321
  %v6336 = vmul.f32 1.0, %v6335
  %v6337 = vrcp.pop %v6322
  %v6338 = vmul.f32 1.0, %v6337
  %v6339 = vld [vmem:[%s13] sm:$0x3]
  %v6340 = vld [vmem:[%s14] sm:$0x3]
  %v6342 = vsel %vm2852, %v6339, 0
  %6344 = vmatprep.subr.mxu0 0.0
  %6345 = vmatpush1.msra.mxu0 %v6324
  %6346 = vmatprep.subr.mxu0 0.0
  %6347 = vmatpush1.msra.mxu0 %v6326
  %6348 = vmatprep.subr.mxu0 0.0
  %6349 = vmatpush1.msra.mxu0 %v6328
  %6350 = vmatprep.subr.mxu0 0.0
  %6351 = vmatpush1.msra.mxu0 %v6330
  %6352 = vmatprep.subr.mxu0 0.0
  %6353 = vmatpush1.msra.mxu0 %v6332
  %6354 = vmatprep.subr.mxu0 0.0
  %6355 = vmatpush1.msra.mxu0 %v6334
  %6356 = vmatprep.subr.mxu0 0.0
  %6357 = vmatpush1.msra.mxu0 %v6336
  %6358 = vmatprep.subr.mxu0 0.0
  %6359 = vmatpush1.msra.mxu0 %v6338
  %6360 = vmatprep.subr.mxu0 0.0
  %6361 = vmatpush1.msra.mxu0 0.0
  %6362 = vmatprep.subr.mxu0 0.0
  %6363 = vmatpush1.msra.mxu0 0.0
  %6364 = vmatprep.subr.mxu0 0.0
  %6365 = vmatpush1.msra.mxu0 0.0
  %6366 = vmatprep.subr.mxu0 0.0
  %6367 = vmatpush1.msra.mxu0 0.0
  %6368 = vmatprep.subr.mxu0 0.0
  %6369 = vmatpush1.msra.mxu0 0.0
  %6370 = vmatprep.subr.mxu0 0.0
  %6371 = vmatpush1.msra.mxu0 0.0
  %6372 = vmatprep.subr.mxu0 0.0
  %6373 = vmatpush1.msra.mxu0 0.0
  %6374 = vmatprep.subr.mxu0 0.0
  %6375 = vmatpush1.msra.mxu0 0.0
  %6376 = vmatprep.subr.mxu0 0.0
  %6377 = vmatpush1.msra.mxu0 0.0
  %6378 = vmatprep.subr.mxu0 0.0
  %6379 = vmatpush1.msra.mxu0 0.0
  %6380 = vmatprep.subr.mxu0 0.0
  %6381 = vmatpush1.msra.mxu0 0.0
  %6382 = vmatprep.subr.mxu0 0.0
  %6383 = vmatpush1.msra.mxu0 0.0
  %6384 = vmatprep.subr.mxu0 0.0
  %6385 = vmatpush1.msra.mxu0 0.0
  %6386 = vmatprep.subr.mxu0 0.0
  %6387 = vmatpush1.msra.mxu0 0.0
  %6388 = vmatprep.subr.mxu0 0.0
  %6389 = vmatpush1.msra.mxu0 0.0
  %6390 = vmatprep.subr.mxu0 0.0
  %6391 = vmatpush1.msra.mxu0 0.0
  %6392 = vmatprep.subr.mxu0 0.0
  %6393 = vmatpush1.msra.mxu0 0.0
  %6394 = vmatprep.subr.mxu0 0.0
  %6395 = vmatpush1.msra.mxu0 0.0
  %6396 = vmatprep.subr.mxu0 0.0
  %6397 = vmatpush1.msra.mxu0 0.0
  %6398 = vmatprep.subr.mxu0 0.0
  %6399 = vmatpush1.msra.mxu0 0.0
  %6400 = vmatprep.subr.mxu0 0.0
  %6401 = vmatpush1.msra.mxu0 0.0
  %6402 = vmatprep.subr.mxu0 0.0
  %6403 = vmatpush1.msra.mxu0 0.0
  %6404 = vmatprep.subr.mxu0 0.0
  %6405 = vmatpush1.msra.mxu0 0.0
  %6406 = vmatprep.subr.mxu0 0.0
  %6407 = vmatpush1.msra.mxu0 0.0
  %6408 = vmatprep.mubr.f32.mxu0 0.0
  %6409 = vmatmul.mubr.f32.gmra.mrb[0].mxu0 %v6342
  %v6410 = vpop.f32.mrb[0].mxu0
  %v6411 = vadd.f32 %v6340, %v6410
  %v6412 = vpop.f32.mrb[0].mxu0
  %6413 = vdwg.mxu0
  %v6414 = vxor.u32 %v6411, 2147483648
  %v6415 = vmul.f32 %v6414, 1.442695
  %v6416 = vpow.pop %v6415
  %v6417 = vadd.f32 %v6416, 1.0
  %v6418 = vrcp.pop %v6417
  %v6419 = vmul.f32 1.0, %v6418
  %vm6420 = vcmask 1024
  %6421 = vst.msk [vmem:[%s15] sm:$0x3] %vm6420, %v6419
  // Predicated region
  $region62: #{simplenet_forward.1} parent=0 // pred_check
    _
  $region63: #{simplenet_forward.1} parent=0 // pred_check_branch
    %6423 = sbr.rel (0) target = $region65
  $region64: #{simplenet_forward.1} parent=0 // pred_region
    _
  $region65: #{simplenet_forward.1} parent=0 // pred_fallthru
    _
  // Predicated region
  $region66: #{simplenet_forward.1} parent=0 // pred_check
    _
  $region67: #{simplenet_forward.1} parent=0 // pred_check_branch
    %6425 = sbr.rel (0) target = $region69
  $region68: #{simplenet_forward.1} parent=0 // pred_region
    _
  $region69: #{simplenet_forward.1} parent=0 // pred_fallthru
    _

</llo_original>
